<compile_context>
chip_gen: v6e
topology: v6e:2x2x1
jax: 0.10.0
libtpu: 0.0.40
codegen_flags: <defaults>
</compile_context>

<pallas_src>
import functools

import jax
import jax.numpy as jnp
from jax import lax
from jax.experimental import pallas as pl
from jax.experimental.pallas import tpu as pltpu


def _round_up(x, m):
    return (x + m - 1) // m * m


# ----------------------------------------------------------------------------
# Pallas kernels
# ----------------------------------------------------------------------------
def linear_kernel(x_ref, wT_ref, b_ref, o_ref, *, act=None):
    """y = x @ wT + b (+ optional tanh). Single-block (demo-size) matmul."""
    y = jnp.dot(x_ref[...], wT_ref[...],
                preferred_element_type=jnp.float32) + b_ref[...]
    if act == "tanh":
        y = jnp.tanh(y)
    o_ref[...] = y.astype(o_ref.dtype)


def lstm_encode_kernel(gx_ref, whh_ref, h0_ref, c0_ref, lens_ref,
                       hn_ref, h_sc, c_sc, *, hp, tb):
    """Tb LSTM steps per grid iteration; x-gate term precomputed (gx).
    Only the final hidden state is emitted (all the encoder needs)."""
    blk = pl.program_id(0)

    @pl.when(blk == 0)
    def _():
        h_sc[...] = h0_ref[...]
        c_sc[...] = c0_ref[...]

    lens = lens_ref[...]          # (Bp, 1) int32
    whh = whh_ref[...]            # (Hp, 4Hp) — loop invariant, load once

    def step(i, carry):
        t = blk * tb + i
        h_prev = h_sc[...]
        c_prev = c_sc[...]
        gates = gx_ref[i] + jnp.dot(h_prev, whh,
                                    preferred_element_type=jnp.float32)
        i_g = jax.nn.sigmoid(gates[:, 0 * hp:1 * hp])
        f_g = jax.nn.sigmoid(gates[:, 1 * hp:2 * hp])
        g_g = jnp.tanh(gates[:, 2 * hp:3 * hp])
        o_g = jax.nn.sigmoid(gates[:, 3 * hp:4 * hp])
        c_new = f_g * c_prev + i_g * g_g
        h_new = o_g * jnp.tanh(c_new)
        # pack_padded_sequence semantics: freeze state past each seq length.
        valid = t < lens
        h_sc[...] = jnp.where(valid, h_new, h_prev)
        c_sc[...] = jnp.where(valid, c_new, c_prev)
        return carry

    lax.fori_loop(0, tb, step, 0, unroll=True)

    @pl.when(blk == pl.num_programs(0) - 1)
    def _():
        hn_ref[...] = h_sc[...].astype(hn_ref.dtype)


def lstm_decode_kernel(gx_ref, gadd_ref, whh_ref, h0_ref, c0_ref, lens_ref,
                       woT_ref, bo_ref, y_ref, h_sc, c_sc, *, hp, tb):
    """Decoder LSTM with the output projection fused (y = h @ woT + bo).
    gadd holds the loop-invariant sample-gate + bias contribution."""
    blk = pl.program_id(0)

    @pl.when(blk == 0)
    def _():
        h_sc[...] = h0_ref[...]
        c_sc[...] = c0_ref[...]

    lens = lens_ref[...]
    whh = whh_ref[...]
    gadd = gadd_ref[...]
    woT = woT_ref[...]
    bo = bo_ref[...]

    def step(i, carry):
        t = blk * tb + i
        h_prev = h_sc[...]
        c_prev = c_sc[...]
        gates = (gx_ref[i] + gadd
                 + jnp.dot(h_prev, whh, preferred_element_type=jnp.float32))
        i_g = jax.nn.sigmoid(gates[:, 0 * hp:1 * hp])
        f_g = jax.nn.sigmoid(gates[:, 1 * hp:2 * hp])
        g_g = jnp.tanh(gates[:, 2 * hp:3 * hp])
        o_g = jax.nn.sigmoid(gates[:, 3 * hp:4 * hp])
        c_new = f_g * c_prev + i_g * g_g
        h_new = o_g * jnp.tanh(c_new)
        valid = t < lens
        h_upd = jnp.where(valid, h_new, h_prev)
        c_upd = jnp.where(valid, c_new, c_prev)
        h_sc[...] = h_upd
        c_sc[...] = c_upd
        # Fused output projection while h_upd is live in vregs.
        y_ref[i] = (jnp.dot(h_upd, woT, preferred_element_type=jnp.float32)
                    + bo).astype(y_ref.dtype)
        return carry

    lax.fori_loop(0, tb, step, 0, unroll=True)


# ----------------------------------------------------------------------------
# Pallas wrappers
# ----------------------------------------------------------------------------
def linear_wT(x, wT, b, act=None):
    """x: (M, K), wT: (K, N), b: (1, N) -> (M, N) float32."""
    M = x.shape[0]
    N = wT.shape[1]
    return pl.pallas_call(
        functools.partial(linear_kernel, act=act),
        out_shape=jax.ShapeDtypeStruct((M, N), jnp.float32),
    )(x, wT, b)


def lstm_encode(gx, whhT, h0, c0, lens, *, hp, tb):
    Tp, Bp, G = gx.shape
    return pl.pallas_call(
        functools.partial(lstm_encode_kernel, hp=hp, tb=tb),
        out_shape=jax.ShapeDtypeStruct((Bp, hp), jnp.float32),
        grid_spec=pltpu.PrefetchScalarGridSpec(
            num_scalar_prefetch=0,
            grid=(Tp // tb,),
            in_specs=[
                pl.BlockSpec((tb, Bp, G), lambda b: (b, 0, 0)),
                pl.BlockSpec((hp, G), lambda b: (0, 0)),
                pl.BlockSpec((Bp, hp), lambda b: (0, 0)),
                pl.BlockSpec((Bp, hp), lambda b: (0, 0)),
                pl.BlockSpec((Bp, 1), lambda b: (0, 0)),
            ],
            out_specs=pl.BlockSpec((Bp, hp), lambda b: (0, 0)),
            scratch_shapes=[pltpu.VMEM((Bp, hp), jnp.float32),
                            pltpu.VMEM((Bp, hp), jnp.float32)]),
        compiler_params=pltpu.CompilerParams(
            dimension_semantics=("arbitrary",)),
    )(gx, whhT, h0, c0, lens)


def lstm_decode(gx, gadd, whhT, h0, c0, lens, woT, bo, *, hp, tb):
    Tp, Bp, G = gx.shape
    Op = woT.shape[1]
    return pl.pallas_call(
        functools.partial(lstm_decode_kernel, hp=hp, tb=tb),
        out_shape=jax.ShapeDtypeStruct((Tp, Bp, Op), jnp.float32),
        grid_spec=pltpu.PrefetchScalarGridSpec(
            num_scalar_prefetch=0,
            grid=(Tp // tb,),
            in_specs=[
                pl.BlockSpec((tb, Bp, G), lambda b: (b, 0, 0)),
                pl.BlockSpec((Bp, G), lambda b: (0, 0)),
                pl.BlockSpec((hp, G), lambda b: (0, 0)),
                pl.BlockSpec((Bp, hp), lambda b: (0, 0)),
                pl.BlockSpec((Bp, hp), lambda b: (0, 0)),
                pl.BlockSpec((Bp, 1), lambda b: (0, 0)),
                pl.BlockSpec((hp, Op), lambda b: (0, 0)),
                pl.BlockSpec((1, Op), lambda b: (0, 0)),
            ],
            out_specs=pl.BlockSpec((tb, Bp, Op), lambda b: (b, 0, 0)),
            scratch_shapes=[pltpu.VMEM((Bp, hp), jnp.float32),
                            pltpu.VMEM((Bp, hp), jnp.float32)]),
        compiler_params=pltpu.CompilerParams(
            dimension_semantics=("arbitrary",)),
    )(gx, gadd, whhT, h0, c0, lens, woT, bo)


# ----------------------------------------------------------------------------
# Weight re-layout helpers (gate-lane-aligned, zero-padded)
# ----------------------------------------------------------------------------
def pack_gates_T(w, H, Hp, Kp=None):
    """w: (4H, K) PyTorch gate weights -> (Kp, 4Hp) transposed; gate g lives in
    lane-aligned columns [g*Hp, g*Hp+H); padded rows/cols are zero."""
    K = w.shape[1]
    Kp = K if Kp is None else Kp
    out = jnp.zeros((Kp, 4 * Hp), jnp.float32)
    for g in range(4):
        out = out.at[:K, g * Hp:g * Hp + H].set(w[g * H:(g + 1) * H, :].T)
    return out


def pack_gate_bias(b, H, Hp):
    out = jnp.zeros((1, 4 * Hp), jnp.float32)
    for g in range(4):
        out = out.at[0, g * Hp:g * Hp + H].set(b[g * H:(g + 1) * H])
    return out


def pack_pair_T(w1, w2, H, Hp):
    """Two (H, H) head weights -> one (Hp, 2Hp) lane-aligned wT."""
    out = jnp.zeros((Hp, 2 * Hp), jnp.float32)
    out = out.at[:H, 0:H].set(w1.T)
    out = out.at[:H, Hp:Hp + H].set(w2.T)
    return out


def pack_pair_bias(b1, b2, H, Hp):
    out = jnp.zeros((1, 2 * Hp), jnp.float32)
    out = out.at[0, 0:H].set(b1)
    out = out.at[0, Hp:Hp + H].set(b2)
    return out


# ----------------------------------------------------------------------------
# SketchRnn forward (training mode: testing=False, bidir=False)
# ----------------------------------------------------------------------------
def init_params(key, input_num, hidden_num, output_num):
    def u(key, shape, fan):
        bound = 1.0 / jnp.sqrt(float(fan))
        return jax.random.uniform(key, shape, jnp.float32, -bound, bound)

    keys = iter(jax.random.split(key, 32))
    H, In, Out = hidden_num, input_num, output_num
    dec_in = In + H
    return {
        "enc_w_ih": u(next(keys), (4 * H, In), H),
        "enc_w_hh": u(next(keys), (4 * H, H), H),
        "enc_b_ih": u(next(keys), (4 * H,), H),
        "enc_b_hh": u(next(keys), (4 * H,), H),
        "mean_w": u(next(keys), (H, H), H), "mean_b": u(next(keys), (H,), H),
        "logstd_w": u(next(keys), (H, H), H), "logstd_b": u(next(keys), (H,), H),
        "decH_w": u(next(keys), (H, H), H), "decH_b": u(next(keys), (H,), H),
        "decC_w": u(next(keys), (H, H), H), "decC_b": u(next(keys), (H,), H),
        "dec_w_ih": u(next(keys), (4 * H, dec_in), H),
        "dec_w_hh": u(next(keys), (4 * H, H), H),
        "dec_b_ih": u(next(keys), (4 * H,), H),
        "dec_b_hh": u(next(keys), (4 * H,), H),
        "out_w": u(next(keys), (Out, H), H), "out_b": u(next(keys), (Out,), H),
    }


def sketch_rnn_forward(params, x, seq_len, noise_key, hidden_num):
    """x: (seq, batch, inputNum); seq_len: (batch,) int32."""
    seq, B, In = x.shape
    T = seq - 1
    H = hidden_num
    Out = params["out_w"].shape[0]
    Hp = _round_up(H, 128)        # lane-aligned gate / hidden width
    Bp = _round_up(B, 8)          # sublane-aligned batch
    Op = _round_up(Out, 128)      # lane-dense fused-projection output
    Tb = 8                        # timesteps per grid iteration
    Tp = _round_up(T, Tb)
    f32 = jnp.float32

    x_p = jnp.zeros((seq, Bp, In), f32).at[:, :B, :].set(x.astype(f32))
    lens = jnp.zeros((Bp, 1), jnp.int32).at[:B, 0].set(seq_len.astype(jnp.int32))
    zeros_bh = jnp.zeros((Bp, Hp), f32)

    # --- encoder: hoisted x-gate projection, then recurrence ----------------
    wihT_e = pack_gates_T(params["enc_w_ih"], H, Hp)                 # (In, 4Hp)
    whhT_e = pack_gates_T(params["enc_w_hh"], H, Hp, Kp=Hp)          # (Hp, 4Hp)
    b_e = pack_gate_bias(params["enc_b_ih"] + params["enc_b_hh"], H, Hp)

    x_enc = jnp.zeros((Tp, Bp, In), f32).at[:T].set(x_p[1:])
    gx_enc = linear_wT(x_enc.reshape(Tp * Bp, In), wihT_e,
                       b_e).reshape(Tp, Bp, 4 * Hp)
    hn = lstm_encode(gx_enc, whhT_e, zeros_bh, zeros_bh, lens, hp=Hp, tb=Tb)

    # --- variational head: mean & logstd fused into one matmul --------------
    w_ml = pack_pair_T(params["mean_w"], params["logstd_w"], H, Hp)
    b_ml = pack_pair_bias(params["mean_b"], params["logstd_b"], H, Hp)
    ml = linear_wT(hn, w_ml, b_ml)                                   # (Bp, 2Hp)
    mean_p, logstd_p = ml[:, :Hp], ml[:, Hp:]

    eps = jax.random.normal(noise_key, (B, H), f32)
    eps_p = jnp.zeros((Bp, Hp), f32).at[:B, :H].set(eps)
    sample_p = mean_p + jnp.exp(logstd_p / 2.0) * eps_p              # (Bp, Hp)

    # --- decoder initial state: decoderH & decoderC fused (tanh) ------------
    w_hc = pack_pair_T(params["decH_w"], params["decC_w"], H, Hp)
    b_hc = pack_pair_bias(params["decH_b"], params["decC_b"], H, Hp)
    hc = linear_wT(sample_p, w_hc, b_hc, act="tanh")                 # (Bp, 2Hp)
    h_dec, c_dec = hc[:, :Hp], hc[:, Hp:]

    # --- decoder: no concat([x, sample]) — sample gate term hoisted ---------
    dec_w_ih = params["dec_w_ih"]
    wihT_dx = pack_gates_T(dec_w_ih[:, :In], H, Hp)                  # (In, 4Hp)
    wihT_ds = pack_gates_T(dec_w_ih[:, In:], H, Hp, Kp=Hp)           # (Hp, 4Hp)
    whhT_d = pack_gates_T(params["dec_w_hh"], H, Hp, Kp=Hp)
    b_d = pack_gate_bias(params["dec_b_ih"] + params["dec_b_hh"], H, Hp)

    x_dec = jnp.zeros((Tp, Bp, In), f32).at[:T].set(x_p[:-1])
    zero_b = jnp.zeros((1, 4 * Hp), f32)
    gx_dec = linear_wT(x_dec.reshape(Tp * Bp, In), wihT_dx,
                       zero_b).reshape(Tp, Bp, 4 * Hp)
    gadd = linear_wT(sample_p, wihT_ds, b_d)                         # (Bp, 4Hp)

    woT = jnp.zeros((Hp, Op), f32).at[:H, :Out].set(params["out_w"].T)
    bo = jnp.zeros((1, Op), f32).at[0, :Out].set(params["out_b"])

    y = lstm_decode(gx_dec, gadd, whhT_d, h_dec, c_dec, lens, woT, bo,
                    hp=Hp, tb=Tb)                                    # (Tp,Bp,Op)

    meanVar = mean_p[:B, :H]
    logstdVar = logstd_p[:B, :H]
    # TODO(synk): ragged pack_padded_sequence output (unequal seq_len) would
    # need dynamic row packing; here all seq_len == T so the dense (T*B) rows
    # match PyTorch's packed ordering (time-major, equal lengths).
    outputVar = y[:T, :B, :Out].reshape(T * B, Out)
    return meanVar, logstdVar, outputVar


# ----------------------------------------------------------------------------
# Demo
# ----------------------------------------------------------------------------
if __name__ == "__main__":
    inputNum, hiddenNum, outputNum = 5, 32, 5
    seq, batch = 8, 2

    root = jax.random.PRNGKey(0)
    k_param, k_x, k_noise = jax.random.split(root, 3)

    params = init_params(k_param, inputNum, hiddenNum, outputNum)
    x = jax.random.normal(k_x, (seq, batch, inputNum), jnp.float32)
    seq_len = jnp.full((batch,), seq - 1, dtype=jnp.int32)

    fwd = jax.jit(sketch_rnn_forward, static_argnums=(4,))
    meanVar, logstdVar, outputVar = fwd(params, x, seq_len, k_noise, hiddenNum)
    jax.block_until_ready((meanVar, logstdVar, outputVar))

    assert meanVar.shape == (batch, hiddenNum)
    assert logstdVar.shape == (batch, hiddenNum)
    assert outputVar.shape == ((seq - 1) * batch, outputNum)
    assert bool(jnp.all(jnp.isfinite(meanVar)))
    assert bool(jnp.all(jnp.isfinite(outputVar)))
    print("KERNEL_OK")
</pallas_src>

<mosaic_0001>
module attributes {stable_mosaic.version = 11 : i64} {
  func.func @linear_kernel(%arg0: memref<64x5xf32, #tpu.memory_space<vmem>>, %arg1: memref<5x512xf32, #tpu.memory_space<vmem>>, %arg2: memref<1x512xf32, #tpu.memory_space<vmem>>, %arg3: memref<64x512xf32, #tpu.memory_space<vmem>>) attributes {dimension_semantics = [], scalar_prefetch = 0 : i64, scratch_operands = 0 : i64, tpu.core_type = #tpu.core_type<tc>} {
    %c0 = arith.constant 0 : index
    %c0_0 = arith.constant 0 : index
    %0 = vector.load %arg0[%c0, %c0_0] : memref<64x5xf32, #tpu.memory_space<vmem>>, vector<64x5xf32>
    %c0_1 = arith.constant 0 : index
    %c0_2 = arith.constant 0 : index
    %1 = vector.load %arg1[%c0_1, %c0_2] : memref<5x512xf32, #tpu.memory_space<vmem>>, vector<5x512xf32>
    %cst = arith.constant dense<0.000000e+00> : vector<64x512xf32>
    %2 = tpu.matmul %0, %1, %cst {dimension_numbers = #tpu.dot_dimension_numbers<[1], [0], [0], [1], [0, 0, 1, 1], [], []>} : vector<64x5xf32>, vector<5x512xf32>, vector<64x512xf32> -> vector<64x512xf32>
    %c0_3 = arith.constant 0 : index
    %c0_4 = arith.constant 0 : index
    %3 = vector.load %arg2[%c0_3, %c0_4] : memref<1x512xf32, #tpu.memory_space<vmem>>, vector<1x512xf32>
    %4 = vector.broadcast %3 : vector<1x512xf32> to vector<64x512xf32>
    %5 = arith.addf %2, %4 : vector<64x512xf32>
    %c0_5 = arith.constant 0 : index
    %c0_6 = arith.constant 0 : index
    %6 = vector.load %arg3[%c0_5, %c0_6] : memref<64x512xf32, #tpu.memory_space<vmem>>, vector<64x512xf32>
    tpu.vector_store %arg3[%c0_5, %c0_6], %5 {strides = array<i32>} : memref<64x512xf32, #tpu.memory_space<vmem>>, vector<64x512xf32>,
    return
  }
}

module attributes {stable_mosaic.version = 11 : i64} {
  func.func @lstm_encode_kernel(%arg0: i32, %arg1: memref<8x8x512xf32, #tpu.memory_space<vmem>>, %arg2: memref<128x512xf32, #tpu.memory_space<vmem>>, %arg3: memref<8x128xf32, #tpu.memory_space<vmem>>, %arg4: memref<8x128xf32, #tpu.memory_space<vmem>>, %arg5: memref<8x1xi32, #tpu.memory_space<vmem>>, %arg6: memref<8x128xf32, #tpu.memory_space<vmem>>, %arg7: memref<8x128xf32, #tpu.memory_space<vmem>>, %arg8: memref<8x128xf32, #tpu.memory_space<vmem>>) attributes {dimension_semantics = [#tpu.dimension_semantics<arbitrary>], iteration_bounds = array<i64: 1>, scalar_prefetch = 0 : i64, scratch_operands = 2 : i64, tpu.core_type = #tpu.core_type<tc>, window_params = [{transform_indices = @transform_0, window_bounds = array<i64: 8, 8, 512>}, {pipeline_mode = #tpu.pipeline_mode<synchronous>, transform_indices = @transform_1, window_bounds = array<i64: 128, 512>}, {pipeline_mode = #tpu.pipeline_mode<synchronous>, transform_indices = @transform_2, window_bounds = array<i64: 8, 128>}, {pipeline_mode = #tpu.pipeline_mode<synchronous>, transform_indices = @transform_3, window_bounds = array<i64: 8, 128>}, {pipeline_mode = #tpu.pipeline_mode<synchronous>, transform_indices = @transform_4, window_bounds = array<i64: 8, 1>}, {pipeline_mode = #tpu.pipeline_mode<synchronous>, transform_indices = @transform_5, window_bounds = array<i64: 8, 128>}]} {
    %c0_i32 = arith.constant 0 : i32
    %0 = arith.cmpi eq, %arg0, %c0_i32 : i32
    %1 = arith.extui %0 : i1 to i32
    %c0_i32_0 = arith.constant 0 : i32
    %2 = arith.cmpi ne, %1, %c0_i32_0 : i32
    scf.if %2 {
      %c0_126 = arith.constant 0 : index
      %c0_127 = arith.constant 0 : index
      %360 = vector.load %arg3[%c0_126, %c0_127] : memref<8x128xf32, #tpu.memory_space<vmem>>, vector<8x128xf32>
      %c0_128 = arith.constant 0 : index
      %c0_129 = arith.constant 0 : index
      %361 = vector.load %arg7[%c0_128, %c0_129] : memref<8x128xf32, #tpu.memory_space<vmem>>, vector<8x128xf32>
      tpu.vector_store %arg7[%c0_128, %c0_129], %360 {strides = array<i32>} : memref<8x128xf32, #tpu.memory_space<vmem>>, vector<8x128xf32>,
      %c0_130 = arith.constant 0 : index
      %c0_131 = arith.constant 0 : index
      %362 = vector.load %arg4[%c0_130, %c0_131] : memref<8x128xf32, #tpu.memory_space<vmem>>, vector<8x128xf32>
      %c0_132 = arith.constant 0 : index
      %c0_133 = arith.constant 0 : index
      %363 = vector.load %arg8[%c0_132, %c0_133] : memref<8x128xf32, #tpu.memory_space<vmem>>, vector<8x128xf32>
      tpu.vector_store %arg8[%c0_132, %c0_133], %362 {strides = array<i32>} : memref<8x128xf32, #tpu.memory_space<vmem>>, vector<8x128xf32>,
    } else {
    }
    %c0 = arith.constant 0 : index
    %c0_1 = arith.constant 0 : index
    %3 = vector.load %arg5[%c0, %c0_1] : memref<8x1xi32, #tpu.memory_space<vmem>>, vector<8x1xi32>
    %c0_2 = arith.constant 0 : index
    %c0_3 = arith.constant 0 : index
    %4 = vector.load %arg2[%c0_2, %c0_3] : memref<128x512xf32, #tpu.memory_space<vmem>>, vector<128x512xf32>
    %c0_i32_4 = arith.constant 0 : i32
    %c8_i32 = arith.constant 8 : i32
    %5 = arith.muli %arg0, %c8_i32 : i32
    %6 = arith.addi %5, %c0_i32_4 : i32
    %c0_5 = arith.constant 0 : index
    %c0_6 = arith.constant 0 : index
    %7 = vector.load %arg7[%c0_5, %c0_6] : memref<8x128xf32, #tpu.memory_space<vmem>>, vector<8x128xf32>
    %c0_7 = arith.constant 0 : index
    %c0_8 = arith.constant 0 : index
    %8 = vector.load %arg8[%c0_7, %c0_8] : memref<8x128xf32, #tpu.memory_space<vmem>>, vector<8x128xf32>
    %9 = arith.index_cast %c0_i32_4 : i32 to index
    %c0_9 = arith.constant 0 : index
    %c0_10 = arith.constant 0 : index
    %10 = vector.load %arg1[%9, %c0_9, %c0_10] : memref<8x8x512xf32, #tpu.memory_space<vmem>>, vector<1x8x512xf32>
    %11 = vector.shape_cast %10 : vector<1x8x512xf32> to vector<8x512xf32>
    %cst = arith.constant dense<0.000000e+00> : vector<8x512xf32>
    %12 = tpu.matmul %7, %4, %cst {dimension_numbers = #tpu.dot_dimension_numbers<[1], [0], [0], [1], [0, 0, 1, 1], [], []>} : vector<8x128xf32>, vector<128x512xf32>, vector<8x512xf32> -> vector<8x512xf32>
    %13 = arith.addf %11, %12 : vector<8x512xf32>
    %14 = vector.extract_strided_slice %13 {offsets = [0, 0], sizes = [8, 128], strides = [1, 1]} : vector<8x512xf32> to vector<8x128xf32>
    %15 = arith.negf %14 : vector<8x128xf32>
    %16 = math.exp %15 : vector<8x128xf32>
    %cst_11 = arith.constant 1.000000e+00 : f32
    %17 = vector.broadcast %cst_11 : f32 to vector<8x128xf32>
    %18 = arith.addf %17, %16 : vector<8x128xf32>
    %19 = arith.divf %17, %18 : vector<8x128xf32>
    %20 = vector.extract_strided_slice %13 {offsets = [0, 128], sizes = [8, 128], strides = [1, 1]} : vector<8x512xf32> to vector<8x128xf32>
    %21 = arith.negf %20 : vector<8x128xf32>
    %22 = math.exp %21 : vector<8x128xf32>
    %cst_12 = arith.constant 1.000000e+00 : f32
    %23 = vector.broadcast %cst_12 : f32 to vector<8x128xf32>
    %24 = arith.addf %23, %22 : vector<8x128xf32>
    %25 = arith.divf %23, %24 : vector<8x128xf32>
    %26 = vector.extract_strided_slice %13 {offsets = [0, 256], sizes = [8, 128], strides = [1, 1]} : vector<8x512xf32> to vector<8x128xf32>
    %27 = math.tanh %26 : vector<8x128xf32>
    %28 = vector.extract_strided_slice %13 {offsets = [0, 384], sizes = [8, 128], strides = [1, 1]} : vector<8x512xf32> to vector<8x128xf32>
    %29 = arith.negf %28 : vector<8x128xf32>
    %30 = math.exp %29 : vector<8x128xf32>
    %cst_13 = arith.constant 1.000000e+00 : f32
    %31 = vector.broadcast %cst_13 : f32 to vector<8x128xf32>
    %32 = arith.addf %31, %30 : vector<8x128xf32>
    %33 = arith.divf %31, %32 : vector<8x128xf32>
    %34 = arith.mulf %25, %8 : vector<8x128xf32>
    %35 = arith.mulf %19, %27 : vector<8x128xf32>
    %36 = arith.addf %34, %35 : vector<8x128xf32>
    %37 = math.tanh %36 : vector<8x128xf32>
    %38 = arith.mulf %33, %37 : vector<8x128xf32>
    %39 = vector.broadcast %6 : i32 to vector<8x1xi32>
    %40 = arith.cmpi slt, %39, %3 : vector<8x1xi32>
    %41 = vector.shape_cast %40 : vector<8x1xi1> to vector<8x1xi1>
    %42 = vector.broadcast %41 : vector<8x1xi1> to vector<8x128xi1>
    %43 = arith.select %42, %38, %7 : vector<8x128xi1>, vector<8x128xf32>
    %c0_14 = arith.constant 0 : index
    %c0_15 = arith.constant 0 : index
    %44 = vector.load %arg7[%c0_14, %c0_15] : memref<8x128xf32, #tpu.memory_space<vmem>>, vector<8x128xf32>
    tpu.vector_store %arg7[%c0_14, %c0_15], %43 {strides = array<i32>} : memref<8x128xf32, #tpu.memory_space<vmem>>, vector<8x128xf32>,
    %45 = vector.shape_cast %40 : vector<8x1xi1> to vector<8x1xi1>
    %46 = vector.broadcast %45 : vector<8x1xi1> to vector<8x128xi1>
    %47 = arith.select %46, %36, %8 : vector<8x128xi1>, vector<8x128xf32>
    %c0_16 = arith.constant 0 : index
    %c0_17 = arith.constant 0 : index
    %48 = vector.load %arg8[%c0_16, %c0_17] : memref<8x128xf32, #tpu.memory_space<vmem>>, vector<8x128xf32>
    tpu.vector_store %arg8[%c0_16, %c0_17], %47 {strides = array<i32>} : memref<8x128xf32, #tpu.memory_space<vmem>>, vector<8x128xf32>,
    %c1_i32 = arith.constant 1 : i32
    %c8_i32_18 = arith.constant 8 : i32
    %49 = arith.muli %arg0, %c8_i32_18 : i32
    %50 = arith.addi %49, %c1_i32 : i32
    %c0_19 = arith.constant 0 : index
    %c0_20 = arith.constant 0 : index
    %51 = vector.load %arg7[%c0_19, %c0_20] : memref<8x128xf32, #tpu.memory_space<vmem>>, vector<8x128xf32>
    %c0_21 = arith.constant 0 : index
    %c0_22 = arith.constant 0 : index
    %52 = vector.load %arg8[%c0_21, %c0_22] : memref<8x128xf32, #tpu.memory_space<vmem>>, vector<8x128xf32>
    %53 = arith.index_cast %c1_i32 : i32 to index
    %c0_23 = arith.constant 0 : index
    %c0_24 = arith.constant 0 : index
    %54 = vector.load %arg1[%53, %c0_23, %c0_24] : memref<8x8x512xf32, #tpu.memory_space<vmem>>, vector<1x8x512xf32>
    %55 = vector.shape_cast %54 : vector<1x8x512xf32> to vector<8x512xf32>
    %cst_25 = arith.constant dense<0.000000e+00> : vector<8x512xf32>
    %56 = tpu.matmul %51, %4, %cst_25 {dimension_numbers = #tpu.dot_dimension_numbers<[1], [0], [0], [1], [0, 0, 1, 1], [], []>} : vector<8x128xf32>, vector<128x512xf32>, vector<8x512xf32> -> vector<8x512xf32>
    %57 = arith.addf %55, %56 : vector<8x512xf32>
    %58 = vector.extract_strided_slice %57 {offsets = [0, 0], sizes = [8, 128], strides = [1, 1]} : vector<8x512xf32> to vector<8x128xf32>
    %59 = arith.negf %58 : vector<8x128xf32>
    %60 = math.exp %59 : vector<8x128xf32>
    %cst_26 = arith.constant 1.000000e+00 : f32
    %61 = vector.broadcast %cst_26 : f32 to vector<8x128xf32>
    %62 = arith.addf %61, %60 : vector<8x128xf32>
    %63 = arith.divf %61, %62 : vector<8x128xf32>
    %64 = vector.extract_strided_slice %57 {offsets = [0, 128], sizes = [8, 128], strides = [1, 1]} : vector<8x512xf32> to vector<8x128xf32>
    %65 = arith.negf %64 : vector<8x128xf32>
    %66 = math.exp %65 : vector<8x128xf32>
    %cst_27 = arith.constant 1.000000e+00 : f32
    %67 = vector.broadcast %cst_27 : f32 to vector<8x128xf32>
    %68 = arith.addf %67, %66 : vector<8x128xf32>
    %69 = arith.divf %67, %68 : vector<8x128xf32>
    %70 = vector.extract_strided_slice %57 {offsets = [0, 256], sizes = [8, 128], strides = [1, 1]} : vector<8x512xf32> to vector<8x128xf32>
    %71 = math.tanh %70 : vector<8x128xf32>
    %72 = vector.extract_strided_slice %57 {offsets = [0, 384], sizes = [8, 128], strides = [1, 1]} : vector<8x512xf32> to vector<8x128xf32>
    %73 = arith.negf %72 : vector<8x128xf32>
    %74 = math.exp %73 : vector<8x128xf32>
    %cst_28 = arith.constant 1.000000e+00 : f32
    %75 = vector.broadcast %cst_28 : f32 to vector<8x128xf32>
    %76 = arith.addf %75, %74 : vector<8x128xf32>
    %77 = arith.divf %75, %76 : vector<8x128xf32>
    %78 = arith.mulf %69, %52 : vector<8x128xf32>
    %79 = arith.mulf %63, %71 : vector<8x128xf32>
    %80 = arith.addf %78, %79 : vector<8x128xf32>
    %81 = math.tanh %80 : vector<8x128xf32>
    %82 = arith.mulf %77, %81 : vector<8x128xf32>
    %83 = vector.broadcast %50 : i32 to vector<8x1xi32>
    %84 = arith.cmpi slt, %83, %3 : vector<8x1xi32>
    %85 = vector.shape_cast %84 : vector<8x1xi1> to vector<8x1xi1>
    %86 = vector.broadcast %85 : vector<8x1xi1> to vector<8x128xi1>
    %87 = arith.select %86, %82, %51 : vector<8x128xi1>, vector<8x128xf32>
    %c0_29 = arith.constant 0 : index
    %c0_30 = arith.constant 0 : index
    %88 = vector.load %arg7[%c0_29, %c0_30] : memref<8x128xf32, #tpu.memory_space<vmem>>, vector<8x128xf32>
    tpu.vector_store %arg7[%c0_29, %c0_30], %87 {strides = array<i32>} : memref<8x128xf32, #tpu.memory_space<vmem>>, vector<8x128xf32>,
    %89 = vector.shape_cast %84 : vector<8x1xi1> to vector<8x1xi1>
    %90 = vector.broadcast %89 : vector<8x1xi1> to vector<8x128xi1>
    %91 = arith.select %90, %80, %52 : vector<8x128xi1>, vector<8x128xf32>
    %c0_31 = arith.constant 0 : index
    %c0_32 = arith.constant 0 : index
    %92 = vector.load %arg8[%c0_31, %c0_32] : memref<8x128xf32, #tpu.memory_space<vmem>>, vector<8x128xf32>
    tpu.vector_store %arg8[%c0_31, %c0_32], %91 {strides = array<i32>} : memref<8x128xf32, #tpu.memory_space<vmem>>, vector<8x128xf32>,
    %c2_i32 = arith.constant 2 : i32
    %c8_i32_33 = arith.constant 8 : i32
    %93 = arith.muli %arg0, %c8_i32_33 : i32
    %94 = arith.addi %93, %c2_i32 : i32
    %c0_34 = arith.constant 0 : index
    %c0_35 = arith.constant 0 : index
    %95 = vector.load %arg7[%c0_34, %c0_35] : memref<8x128xf32, #tpu.memory_space<vmem>>, vector<8x128xf32>
    %c0_36 = arith.constant 0 : index
    %c0_37 = arith.constant 0 : index
    %96 = vector.load %arg8[%c0_36, %c0_37] : memref<8x128xf32, #tpu.memory_space<vmem>>, vector<8x128xf32>
    %97 = arith.index_cast %c2_i32 : i32 to index
    %c0_38 = arith.constant 0 : index
    %c0_39 = arith.constant 0 : index
    %98 = vector.load %arg1[%97, %c0_38, %c0_39] : memref<8x8x512xf32, #tpu.memory_space<vmem>>, vector<1x8x512xf32>
    %99 = vector.shape_cast %98 : vector<1x8x512xf32> to vector<8x512xf32>
    %cst_40 = arith.constant dense<0.000000e+00> : vector<8x512xf32>
    %100 = tpu.matmul %95, %4, %cst_40 {dimension_numbers = #tpu.dot_dimension_numbers<[1], [0], [0], [1], [0, 0, 1, 1], [], []>} : vector<8x128xf32>, vector<128x512xf32>, vector<8x512xf32> -> vector<8x512xf32>
    %101 = arith.addf %99, %100 : vector<8x512xf32>
    %102 = vector.extract_strided_slice %101 {offsets = [0, 0], sizes = [8, 128], strides = [1, 1]} : vector<8x512xf32> to vector<8x128xf32>
    %103 = arith.negf %102 : vector<8x128xf32>
    %104 = math.exp %103 : vector<8x128xf32>
    %cst_41 = arith.constant 1.000000e+00 : f32
    %105 = vector.broadcast %cst_41 : f32 to vector<8x128xf32>
    %106 = arith.addf %105, %104 : vector<8x128xf32>
    %107 = arith.divf %105, %106 : vector<8x128xf32>
    %108 = vector.extract_strided_slice %101 {offsets = [0, 128], sizes = [8, 128], strides = [1, 1]} : vector<8x512xf32> to vector<8x128xf32>
    %109 = arith.negf %108 : vector<8x128xf32>
    %110 = math.exp %109 : vector<8x128xf32>
    %cst_42 = arith.constant 1.000000e+00 : f32
    %111 = vector.broadcast %cst_42 : f32 to vector<8x128xf32>
    %112 = arith.addf %111, %110 : vector<8x128xf32>
    %113 = arith.divf %111, %112 : vector<8x128xf32>
    %114 = vector.extract_strided_slice %101 {offsets = [0, 256], sizes = [8, 128], strides = [1, 1]} : vector<8x512xf32> to vector<8x128xf32>
    %115 = math.tanh %114 : vector<8x128xf32>
    %116 = vector.extract_strided_slice %101 {offsets = [0, 384], sizes = [8, 128], strides = [1, 1]} : vector<8x512xf32> to vector<8x128xf32>
    %117 = arith.negf %116 : vector<8x128xf32>
    %118 = math.exp %117 : vector<8x128xf32>
    %cst_43 = arith.constant 1.000000e+00 : f32
    %119 = vector.broadcast %cst_43 : f32 to vector<8x128xf32>
    %120 = arith.addf %119, %118 : vector<8x128xf32>
    %121 = arith.divf %119, %120 : vector<8x128xf32>
    %122 = arith.mulf %113, %96 : vector<8x128xf32>
    %123 = arith.mulf %107, %115 : vector<8x128xf32>
    %124 = arith.addf %122, %123 : vector<8x128xf32>
    %125 = math.tanh %124 : vector<8x128xf32>
    %126 = arith.mulf %121, %125 : vector<8x128xf32>
    %127 = vector.broadcast %94 : i32 to vector<8x1xi32>
    %128 = arith.cmpi slt, %127, %3 : vector<8x1xi32>
    %129 = vector.shape_cast %128 : vector<8x1xi1> to vector<8x1xi1>
    %130 = vector.broadcast %129 : vector<8x1xi1> to vector<8x128xi1>
    %131 = arith.select %130, %126, %95 : vector<8x128xi1>, vector<8x128xf32>
    %c0_44 = arith.constant 0 : index
    %c0_45 = arith.constant 0 : index
    %132 = vector.load %arg7[%c0_44, %c0_45] : memref<8x128xf32, #tpu.memory_space<vmem>>, vector<8x128xf32>
    tpu.vector_store %arg7[%c0_44, %c0_45], %131 {strides = array<i32>} : memref<8x128xf32, #tpu.memory_space<vmem>>, vector<8x128xf32>,
    %133 = vector.shape_cast %128 : vector<8x1xi1> to vector<8x1xi1>
    %134 = vector.broadcast %133 : vector<8x1xi1> to vector<8x128xi1>
    %135 = arith.select %134, %124, %96 : vector<8x128xi1>, vector<8x128xf32>
    %c0_46 = arith.constant 0 : index
    %c0_47 = arith.constant 0 : index
    %136 = vector.load %arg8[%c0_46, %c0_47] : memref<8x128xf32, #tpu.memory_space<vmem>>, vector<8x128xf32>
    tpu.vector_store %arg8[%c0_46, %c0_47], %135 {strides = array<i32>} : memref<8x128xf32, #tpu.memory_space<vmem>>, vector<8x128xf32>,
    %c3_i32 = arith.constant 3 : i32
    %c8_i32_48 = arith.constant 8 : i32
    %137 = arith.muli %arg0, %c8_i32_48 : i32
    %138 = arith.addi %137, %c3_i32 : i32
    %c0_49 = arith.constant 0 : index
    %c0_50 = arith.constant 0 : index
    %139 = vector.load %arg7[%c0_49, %c0_50] : memref<8x128xf32, #tpu.memory_space<vmem>>, vector<8x128xf32>
    %c0_51 = arith.constant 0 : index
    %c0_52 = arith.constant 0 : index
    %140 = vector.load %arg8[%c0_51, %c0_52] : memref<8x128xf32, #tpu.memory_space<vmem>>, vector<8x128xf32>
    %141 = arith.index_cast %c3_i32 : i32 to index
    %c0_53 = arith.constant 0 : index
    %c0_54 = arith.constant 0 : index
    %142 = vector.load %arg1[%141, %c0_53, %c0_54] : memref<8x8x512xf32, #tpu.memory_space<vmem>>, vector<1x8x512xf32>
    %143 = vector.shape_cast %142 : vector<1x8x512xf32> to vector<8x512xf32>
    %cst_55 = arith.constant dense<0.000000e+00> : vector<8x512xf32>
    %144 = tpu.matmul %139, %4, %cst_55 {dimension_numbers = #tpu.dot_dimension_numbers<[1], [0], [0], [1], [0, 0, 1, 1], [], []>} : vector<8x128xf32>, vector<128x512xf32>, vector<8x512xf32> -> vector<8x512xf32>
    %145 = arith.addf %143, %144 : vector<8x512xf32>
    %146 = vector.extract_strided_slice %145 {offsets = [0, 0], sizes = [8, 128], strides = [1, 1]} : vector<8x512xf32> to vector<8x128xf32>
    %147 = arith.negf %146 : vector<8x128xf32>
    %148 = math.exp %147 : vector<8x128xf32>
    %cst_56 = arith.constant 1.000000e+00 : f32
    %149 = vector.broadcast %cst_56 : f32 to vector<8x128xf32>
    %150 = arith.addf %149, %148 : vector<8x128xf32>
    %151 = arith.divf %149, %150 : vector<8x128xf32>
    %152 = vector.extract_strided_slice %145 {offsets = [0, 128], sizes = [8, 128], strides = [1, 1]} : vector<8x512xf32> to vector<8x128xf32>
    %153 = arith.negf %152 : vector<8x128xf32>
    %154 = math.exp %153 : vector<8x128xf32>
    %cst_57 = arith.constant 1.000000e+00 : f32
    %155 = vector.broadcast %cst_57 : f32 to vector<8x128xf32>
    %156 = arith.addf %155, %154 : vector<8x128xf32>
    %157 = arith.divf %155, %156 : vector<8x128xf32>
    %158 = vector.extract_strided_slice %145 {offsets = [0, 256], sizes = [8, 128], strides = [1, 1]} : vector<8x512xf32> to vector<8x128xf32>
    %159 = math.tanh %158 : vector<8x128xf32>
    %160 = vector.extract_strided_slice %145 {offsets = [0, 384], sizes = [8, 128], strides = [1, 1]} : vector<8x512xf32> to vector<8x128xf32>
    %161 = arith.negf %160 : vector<8x128xf32>
    %162 = math.exp %161 : vector<8x128xf32>
    %cst_58 = arith.constant 1.000000e+00 : f32
    %163 = vector.broadcast %cst_58 : f32 to vector<8x128xf32>
    %164 = arith.addf %163, %162 : vector<8x128xf32>
    %165 = arith.divf %163, %164 : vector<8x128xf32>
    %166 = arith.mulf %157, %140 : vector<8x128xf32>
    %167 = arith.mulf %151, %159 : vector<8x128xf32>
    %168 = arith.addf %166, %167 : vector<8x128xf32>
    %169 = math.tanh %168 : vector<8x128xf32>
    %170 = arith.mulf %165, %169 : vector<8x128xf32>
    %171 = vector.broadcast %138 : i32 to vector<8x1xi32>
    %172 = arith.cmpi slt, %171, %3 : vector<8x1xi32>
    %173 = vector.shape_cast %172 : vector<8x1xi1> to vector<8x1xi1>
    %174 = vector.broadcast %173 : vector<8x1xi1> to vector<8x128xi1>
    %175 = arith.select %174, %170, %139 : vector<8x128xi1>, vector<8x128xf32>
    %c0_59 = arith.constant 0 : index
    %c0_60 = arith.constant 0 : index
    %176 = vector.load %arg7[%c0_59, %c0_60] : memref<8x128xf32, #tpu.memory_space<vmem>>, vector<8x128xf32>
    tpu.vector_store %arg7[%c0_59, %c0_60], %175 {strides = array<i32>} : memref<8x128xf32, #tpu.memory_space<vmem>>, vector<8x128xf32>,
    %177 = vector.shape_cast %172 : vector<8x1xi1> to vector<8x1xi1>
    %178 = vector.broadcast %177 : vector<8x1xi1> to vector<8x128xi1>
    %179 = arith.select %178, %168, %140 : vector<8x128xi1>, vector<8x128xf32>
    %c0_61 = arith.constant 0 : index
    %c0_62 = arith.constant 0 : index
    %180 = vector.load %arg8[%c0_61, %c0_62] : memref<8x128xf32, #tpu.memory_space<vmem>>, vector<8x128xf32>
    tpu.vector_store %arg8[%c0_61, %c0_62], %179 {strides = array<i32>} : memref<8x128xf32, #tpu.memory_space<vmem>>, vector<8x128xf32>,
    %c4_i32 = arith.constant 4 : i32
    %c8_i32_63 = arith.constant 8 : i32
    %181 = arith.muli %arg0, %c8_i32_63 : i32
    %182 = arith.addi %181, %c4_i32 : i32
    %c0_64 = arith.constant 0 : index
    %c0_65 = arith.constant 0 : index
    %183 = vector.load %arg7[%c0_64, %c0_65] : memref<8x128xf32, #tpu.memory_space<vmem>>, vector<8x128xf32>
    %c0_66 = arith.constant 0 : index
    %c0_67 = arith.constant 0 : index
    %184 = vector.load %arg8[%c0_66, %c0_67] : memref<8x128xf32, #tpu.memory_space<vmem>>, vector<8x128xf32>
    %185 = arith.index_cast %c4_i32 : i32 to index
    %c0_68 = arith.constant 0 : index
    %c0_69 = arith.constant 0 : index
    %186 = vector.load %arg1[%185, %c0_68, %c0_69] : memref<8x8x512xf32, #tpu.memory_space<vmem>>, vector<1x8x512xf32>
    %187 = vector.shape_cast %186 : vector<1x8x512xf32> to vector<8x512xf32>
    %cst_70 = arith.constant dense<0.000000e+00> : vector<8x512xf32>
    %188 = tpu.matmul %183, %4, %cst_70 {dimension_numbers = #tpu.dot_dimension_numbers<[1], [0], [0], [1], [0, 0, 1, 1], [], []>} : vector<8x128xf32>, vector<128x512xf32>, vector<8x512xf32> -> vector<8x512xf32>
    %189 = arith.addf %187, %188 : vector<8x512xf32>
    %190 = vector.extract_strided_slice %189 {offsets = [0, 0], sizes = [8, 128], strides = [1, 1]} : vector<8x512xf32> to vector<8x128xf32>
    %191 = arith.negf %190 : vector<8x128xf32>
    %192 = math.exp %191 : vector<8x128xf32>
    %cst_71 = arith.constant 1.000000e+00 : f32
    %193 = vector.broadcast %cst_71 : f32 to vector<8x128xf32>
    %194 = arith.addf %193, %192 : vector<8x128xf32>
    %195 = arith.divf %193, %194 : vector<8x128xf32>
    %196 = vector.extract_strided_slice %189 {offsets = [0, 128], sizes = [8, 128], strides = [1, 1]} : vector<8x512xf32> to vector<8x128xf32>
    %197 = arith.negf %196 : vector<8x128xf32>
    %198 = math.exp %197 : vector<8x128xf32>
    %cst_72 = arith.constant 1.000000e+00 : f32
    %199 = vector.broadcast %cst_72 : f32 to vector<8x128xf32>
    %200 = arith.addf %199, %198 : vector<8x128xf32>
    %201 = arith.divf %199, %200 : vector<8x128xf32>
    %202 = vector.extract_strided_slice %189 {offsets = [0, 256], sizes = [8, 128], strides = [1, 1]} : vector<8x512xf32> to vector<8x128xf32>
    %203 = math.tanh %202 : vector<8x128xf32>
    %204 = vector.extract_strided_slice %189 {offsets = [0, 384], sizes = [8, 128], strides = [1, 1]} : vector<8x512xf32> to vector<8x128xf32>
    %205 = arith.negf %204 : vector<8x128xf32>
    %206 = math.exp %205 : vector<8x128xf32>
    %cst_73 = arith.constant 1.000000e+00 : f32
    %207 = vector.broadcast %cst_73 : f32 to vector<8x128xf32>
    %208 = arith.addf %207, %206 : vector<8x128xf32>
    %209 = arith.divf %207, %208 : vector<8x128xf32>
    %210 = arith.mulf %201, %184 : vector<8x128xf32>
    %211 = arith.mulf %195, %203 : vector<8x128xf32>
    %212 = arith.addf %210, %211 : vector<8x128xf32>
    %213 = math.tanh %212 : vector<8x128xf32>
    %214 = arith.mulf %209, %213 : vector<8x128xf32>
    %215 = vector.broadcast %182 : i32 to vector<8x1xi32>
    %216 = arith.cmpi slt, %215, %3 : vector<8x1xi32>
    %217 = vector.shape_cast %216 : vector<8x1xi1> to vector<8x1xi1>
    %218 = vector.broadcast %217 : vector<8x1xi1> to vector<8x128xi1>
    %219 = arith.select %218, %214, %183 : vector<8x128xi1>, vector<8x128xf32>
    %c0_74 = arith.constant 0 : index
    %c0_75 = arith.constant 0 : index
    %220 = vector.load %arg7[%c0_74, %c0_75] : memref<8x128xf32, #tpu.memory_space<vmem>>, vector<8x128xf32>
    tpu.vector_store %arg7[%c0_74, %c0_75], %219 {strides = array<i32>} : memref<8x128xf32, #tpu.memory_space<vmem>>, vector<8x128xf32>,
    %221 = vector.shape_cast %216 : vector<8x1xi1> to vector<8x1xi1>
    %222 = vector.broadcast %221 : vector<8x1xi1> to vector<8x128xi1>
    %223 = arith.select %222, %212, %184 : vector<8x128xi1>, vector<8x128xf32>
    %c0_76 = arith.constant 0 : index
    %c0_77 = arith.constant 0 : index
    %224 = vector.load %arg8[%c0_76, %c0_77] : memref<8x128xf32, #tpu.memory_space<vmem>>, vector<8x128xf32>
    tpu.vector_store %arg8[%c0_76, %c0_77], %223 {strides = array<i32>} : memref<8x128xf32, #tpu.memory_space<vmem>>, vector<8x128xf32>,
    %c5_i32 = arith.constant 5 : i32
    %c8_i32_78 = arith.constant 8 : i32
    %225 = arith.muli %arg0, %c8_i32_78 : i32
    %226 = arith.addi %225, %c5_i32 : i32
    %c0_79 = arith.constant 0 : index
    %c0_80 = arith.constant 0 : index
    %227 = vector.load %arg7[%c0_79, %c0_80] : memref<8x128xf32, #tpu.memory_space<vmem>>, vector<8x128xf32>
    %c0_81 = arith.constant 0 : index
    %c0_82 = arith.constant 0 : index
    %228 = vector.load %arg8[%c0_81, %c0_82] : memref<8x128xf32, #tpu.memory_space<vmem>>, vector<8x128xf32>
    %229 = arith.index_cast %c5_i32 : i32 to index
    %c0_83 = arith.constant 0 : index
    %c0_84 = arith.constant 0 : index
    %230 = vector.load %arg1[%229, %c0_83, %c0_84] : memref<8x8x512xf32, #tpu.memory_space<vmem>>, vector<1x8x512xf32>
    %231 = vector.shape_cast %230 : vector<1x8x512xf32> to vector<8x512xf32>
    %cst_85 = arith.constant dense<0.000000e+00> : vector<8x512xf32>
    %232 = tpu.matmul %227, %4, %cst_85 {dimension_numbers = #tpu.dot_dimension_numbers<[1], [0], [0], [1], [0, 0, 1, 1], [], []>} : vector<8x128xf32>, vector<128x512xf32>, vector<8x512xf32> -> vector<8x512xf32>
    %233 = arith.addf %231, %232 : vector<8x512xf32>
    %234 = vector.extract_strided_slice %233 {offsets = [0, 0], sizes = [8, 128], strides = [1, 1]} : vector<8x512xf32> to vector<8x128xf32>
    %235 = arith.negf %234 : vector<8x128xf32>
    %236 = math.exp %235 : vector<8x128xf32>
    %cst_86 = arith.constant 1.000000e+00 : f32
    %237 = vector.broadcast %cst_86 : f32 to vector<8x128xf32>
    %238 = arith.addf %237, %236 : vector<8x128xf32>
    %239 = arith.divf %237, %238 : vector<8x128xf32>
    %240 = vector.extract_strided_slice %233 {offsets = [0, 128], sizes = [8, 128], strides = [1, 1]} : vector<8x512xf32> to vector<8x128xf32>
    %241 = arith.negf %240 : vector<8x128xf32>
    %242 = math.exp %241 : vector<8x128xf32>
    %cst_87 = arith.constant 1.000000e+00 : f32
    %243 = vector.broadcast %cst_87 : f32 to vector<8x128xf32>
    %244 = arith.addf %243, %242 : vector<8x128xf32>
    %245 = arith.divf %243, %244 : vector<8x128xf32>
    %246 = vector.extract_strided_slice %233 {offsets = [0, 256], sizes = [8, 128], strides = [1, 1]} : vector<8x512xf32> to vector<8x128xf32>
    %247 = math.tanh %246 : vector<8x128xf32>
    %248 = vector.extract_strided_slice %233 {offsets = [0, 384], sizes = [8, 128], strides = [1, 1]} : vector<8x512xf32> to vector<8x128xf32>
    %249 = arith.negf %248 : vector<8x128xf32>
    %250 = math.exp %249 : vector<8x128xf32>
    %cst_88 = arith.constant 1.000000e+00 : f32
    %251 = vector.broadcast %cst_88 : f32 to vector<8x128xf32>
    %252 = arith.addf %251, %250 : vector<8x128xf32>
    %253 = arith.divf %251, %252 : vector<8x128xf32>
    %254 = arith.mulf %245, %228 : vector<8x128xf32>
    %255 = arith.mulf %239, %247 : vector<8x128xf32>
    %256 = arith.addf %254, %255 : vector<8x128xf32>
    %257 = math.tanh %256 : vector<8x128xf32>
    %258 = arith.mulf %253, %257 : vector<8x128xf32>
    %259 = vector.broadcast %226 : i32 to vector<8x1xi32>
    %260 = arith.cmpi slt, %259, %3 : vector<8x1xi32>
    %261 = vector.shape_cast %260 : vector<8x1xi1> to vector<8x1xi1>
    %262 = vector.broadcast %261 : vector<8x1xi1> to vector<8x128xi1>
    %263 = arith.select %262, %258, %227 : vector<8x128xi1>, vector<8x128xf32>
    %c0_89 = arith.constant 0 : index
    %c0_90 = arith.constant 0 : index
    %264 = vector.load %arg7[%c0_89, %c0_90] : memref<8x128xf32, #tpu.memory_space<vmem>>, vector<8x128xf32>
    tpu.vector_store %arg7[%c0_89, %c0_90], %263 {strides = array<i32>} : memref<8x128xf32, #tpu.memory_space<vmem>>, vector<8x128xf32>,
    %265 = vector.shape_cast %260 : vector<8x1xi1> to vector<8x1xi1>
    %266 = vector.broadcast %265 : vector<8x1xi1> to vector<8x128xi1>
    %267 = arith.select %266, %256, %228 : vector<8x128xi1>, vector<8x128xf32>
    %c0_91 = arith.constant 0 : index
    %c0_92 = arith.constant 0 : index
    %268 = vector.load %arg8[%c0_91, %c0_92] : memref<8x128xf32, #tpu.memory_space<vmem>>, vector<8x128xf32>
    tpu.vector_store %arg8[%c0_91, %c0_92], %267 {strides = array<i32>} : memref<8x128xf32, #tpu.memory_space<vmem>>, vector<8x128xf32>,
    %c6_i32 = arith.constant 6 : i32
    %c8_i32_93 = arith.constant 8 : i32
    %269 = arith.muli %arg0, %c8_i32_93 : i32
    %270 = arith.addi %269, %c6_i32 : i32
    %c0_94 = arith.constant 0 : index
    %c0_95 = arith.constant 0 : index
    %271 = vector.load %arg7[%c0_94, %c0_95] : memref<8x128xf32, #tpu.memory_space<vmem>>, vector<8x128xf32>
    %c0_96 = arith.constant 0 : index
    %c0_97 = arith.constant 0 : index
    %272 = vector.load %arg8[%c0_96, %c0_97] : memref<8x128xf32, #tpu.memory_space<vmem>>, vector<8x128xf32>
    %273 = arith.index_cast %c6_i32 : i32 to index
    %c0_98 = arith.constant 0 : index
    %c0_99 = arith.constant 0 : index
    %274 = vector.load %arg1[%273, %c0_98, %c0_99] : memref<8x8x512xf32, #tpu.memory_space<vmem>>, vector<1x8x512xf32>
    %275 = vector.shape_cast %274 : vector<1x8x512xf32> to vector<8x512xf32>
    %cst_100 = arith.constant dense<0.000000e+00> : vector<8x512xf32>
    %276 = tpu.matmul %271, %4, %cst_100 {dimension_numbers = #tpu.dot_dimension_numbers<[1], [0], [0], [1], [0, 0, 1, 1], [], []>} : vector<8x128xf32>, vector<128x512xf32>, vector<8x512xf32> -> vector<8x512xf32>
    %277 = arith.addf %275, %276 : vector<8x512xf32>
    %278 = vector.extract_strided_slice %277 {offsets = [0, 0], sizes = [8, 128], strides = [1, 1]} : vector<8x512xf32> to vector<8x128xf32>
    %279 = arith.negf %278 : vector<8x128xf32>
    %280 = math.exp %279 : vector<8x128xf32>
    %cst_101 = arith.constant 1.000000e+00 : f32
    %281 = vector.broadcast %cst_101 : f32 to vector<8x128xf32>
    %282 = arith.addf %281, %280 : vector<8x128xf32>
    %283 = arith.divf %281, %282 : vector<8x128xf32>
    %284 = vector.extract_strided_slice %277 {offsets = [0, 128], sizes = [8, 128], strides = [1, 1]} : vector<8x512xf32> to vector<8x128xf32>
    %285 = arith.negf %284 : vector<8x128xf32>
    %286 = math.exp %285 : vector<8x128xf32>
    %cst_102 = arith.constant 1.000000e+00 : f32
    %287 = vector.broadcast %cst_102 : f32 to vector<8x128xf32>
    %288 = arith.addf %287, %286 : vector<8x128xf32>
    %289 = arith.divf %287, %288 : vector<8x128xf32>
    %290 = vector.extract_strided_slice %277 {offsets = [0, 256], sizes = [8, 128], strides = [1, 1]} : vector<8x512xf32> to vector<8x128xf32>
    %291 = math.tanh %290 : vector<8x128xf32>
    %292 = vector.extract_strided_slice %277 {offsets = [0, 384], sizes = [8, 128], strides = [1, 1]} : vector<8x512xf32> to vector<8x128xf32>
    %293 = arith.negf %292 : vector<8x128xf32>
    %294 = math.exp %293 : vector<8x128xf32>
    %cst_103 = arith.constant 1.000000e+00 : f32
    %295 = vector.broadcast %cst_103 : f32 to vector<8x128xf32>
    %296 = arith.addf %295, %294 : vector<8x128xf32>
    %297 = arith.divf %295, %296 : vector<8x128xf32>
    %298 = arith.mulf %289, %272 : vector<8x128xf32>
    %299 = arith.mulf %283, %291 : vector<8x128xf32>
    %300 = arith.addf %298, %299 : vector<8x128xf32>
    %301 = math.tanh %300 : vector<8x128xf32>
    %302 = arith.mulf %297, %301 : vector<8x128xf32>
    %303 = vector.broadcast %270 : i32 to vector<8x1xi32>
    %304 = arith.cmpi slt, %303, %3 : vector<8x1xi32>
    %305 = vector.shape_cast %304 : vector<8x1xi1> to vector<8x1xi1>
    %306 = vector.broadcast %305 : vector<8x1xi1> to vector<8x128xi1>
    %307 = arith.select %306, %302, %271 : vector<8x128xi1>, vector<8x128xf32>
    %c0_104 = arith.constant 0 : index
    %c0_105 = arith.constant 0 : index
    %308 = vector.load %arg7[%c0_104, %c0_105] : memref<8x128xf32, #tpu.memory_space<vmem>>, vector<8x128xf32>
    tpu.vector_store %arg7[%c0_104, %c0_105], %307 {strides = array<i32>} : memref<8x128xf32, #tpu.memory_space<vmem>>, vector<8x128xf32>,
    %309 = vector.shape_cast %304 : vector<8x1xi1> to vector<8x1xi1>
    %310 = vector.broadcast %309 : vector<8x1xi1> to vector<8x128xi1>
    %311 = arith.select %310, %300, %272 : vector<8x128xi1>, vector<8x128xf32>
    %c0_106 = arith.constant 0 : index
    %c0_107 = arith.constant 0 : index
    %312 = vector.load %arg8[%c0_106, %c0_107] : memref<8x128xf32, #tpu.memory_space<vmem>>, vector<8x128xf32>
    tpu.vector_store %arg8[%c0_106, %c0_107], %311 {strides = array<i32>} : memref<8x128xf32, #tpu.memory_space<vmem>>, vector<8x128xf32>,
    %c7_i32 = arith.constant 7 : i32
    %c8_i32_108 = arith.constant 8 : i32
    %313 = arith.muli %arg0, %c8_i32_108 : i32
    %314 = arith.addi %313, %c7_i32 : i32
    %c0_109 = arith.constant 0 : index
    %c0_110 = arith.constant 0 : index
    %315 = vector.load %arg7[%c0_109, %c0_110] : memref<8x128xf32, #tpu.memory_space<vmem>>, vector<8x128xf32>
    %c0_111 = arith.constant 0 : index
    %c0_112 = arith.constant 0 : index
    %316 = vector.load %arg8[%c0_111, %c0_112] : memref<8x128xf32, #tpu.memory_space<vmem>>, vector<8x128xf32>
    %317 = arith.index_cast %c7_i32 : i32 to index
    %c0_113 = arith.constant 0 : index
    %c0_114 = arith.constant 0 : index
    %318 = vector.load %arg1[%317, %c0_113, %c0_114] : memref<8x8x512xf32, #tpu.memory_space<vmem>>, vector<1x8x512xf32>
    %319 = vector.shape_cast %318 : vector<1x8x512xf32> to vector<8x512xf32>
    %cst_115 = arith.constant dense<0.000000e+00> : vector<8x512xf32>
    %320 = tpu.matmul %315, %4, %cst_115 {dimension_numbers = #tpu.dot_dimension_numbers<[1], [0], [0], [1], [0, 0, 1, 1], [], []>} : vector<8x128xf32>, vector<128x512xf32>, vector<8x512xf32> -> vector<8x512xf32>
    %321 = arith.addf %319, %320 : vector<8x512xf32>
    %322 = vector.extract_strided_slice %321 {offsets = [0, 0], sizes = [8, 128], strides = [1, 1]} : vector<8x512xf32> to vector<8x128xf32>
    %323 = arith.negf %322 : vector<8x128xf32>
    %324 = math.exp %323 : vector<8x128xf32>
    %cst_116 = arith.constant 1.000000e+00 : f32
    %325 = vector.broadcast %cst_116 : f32 to vector<8x128xf32>
    %326 = arith.addf %325, %324 : vector<8x128xf32>
    %327 = arith.divf %325, %326 : vector<8x128xf32>
    %328 = vector.extract_strided_slice %321 {offsets = [0, 128], sizes = [8, 128], strides = [1, 1]} : vector<8x512xf32> to vector<8x128xf32>
    %329 = arith.negf %328 : vector<8x128xf32>
    %330 = math.exp %329 : vector<8x128xf32>
    %cst_117 = arith.constant 1.000000e+00 : f32
    %331 = vector.broadcast %cst_117 : f32 to vector<8x128xf32>
    %332 = arith.addf %331, %330 : vector<8x128xf32>
    %333 = arith.divf %331, %332 : vector<8x128xf32>
    %334 = vector.extract_strided_slice %321 {offsets = [0, 256], sizes = [8, 128], strides = [1, 1]} : vector<8x512xf32> to vector<8x128xf32>
    %335 = math.tanh %334 : vector<8x128xf32>
    %336 = vector.extract_strided_slice %321 {offsets = [0, 384], sizes = [8, 128], strides = [1, 1]} : vector<8x512xf32> to vector<8x128xf32>
    %337 = arith.negf %336 : vector<8x128xf32>
    %338 = math.exp %337 : vector<8x128xf32>
    %cst_118 = arith.constant 1.000000e+00 : f32
    %339 = vector.broadcast %cst_118 : f32 to vector<8x128xf32>
    %340 = arith.addf %339, %338 : vector<8x128xf32>
    %341 = arith.divf %339, %340 : vector<8x128xf32>
    %342 = arith.mulf %333, %316 : vector<8x128xf32>
    %343 = arith.mulf %327, %335 : vector<8x128xf32>
    %344 = arith.addf %342, %343 : vector<8x128xf32>
    %345 = math.tanh %344 : vector<8x128xf32>
    %346 = arith.mulf %341, %345 : vector<8x128xf32>
    %347 = vector.broadcast %314 : i32 to vector<8x1xi32>
    %348 = arith.cmpi slt, %347, %3 : vector<8x1xi32>
    %349 = vector.shape_cast %348 : vector<8x1xi1> to vector<8x1xi1>
    %350 = vector.broadcast %349 : vector<8x1xi1> to vector<8x128xi1>
    %351 = arith.select %350, %346, %315 : vector<8x128xi1>, vector<8x128xf32>
    %c0_119 = arith.constant 0 : index
    %c0_120 = arith.constant 0 : index
    %352 = vector.load %arg7[%c0_119, %c0_120] : memref<8x128xf32, #tpu.memory_space<vmem>>, vector<8x128xf32>
    tpu.vector_store %arg7[%c0_119, %c0_120], %351 {strides = array<i32>} : memref<8x128xf32, #tpu.memory_space<vmem>>, vector<8x128xf32>,
    %353 = vector.shape_cast %348 : vector<8x1xi1> to vector<8x1xi1>
    %354 = vector.broadcast %353 : vector<8x1xi1> to vector<8x128xi1>
    %355 = arith.select %354, %344, %316 : vector<8x128xi1>, vector<8x128xf32>
    %c0_121 = arith.constant 0 : index
    %c0_122 = arith.constant 0 : index
    %356 = vector.load %arg8[%c0_121, %c0_122] : memref<8x128xf32, #tpu.memory_space<vmem>>, vector<8x128xf32>
    tpu.vector_store %arg8[%c0_121, %c0_122], %355 {strides = array<i32>} : memref<8x128xf32, #tpu.memory_space<vmem>>, vector<8x128xf32>,
    %c8_i32_123 = arith.constant 8 : i32
    %c0_i32_124 = arith.constant 0 : i32
    %357 = arith.cmpi eq, %arg0, %c0_i32_124 : i32
    %358 = arith.extui %357 : i1 to i32
    %c0_i32_125 = arith.constant 0 : i32
    %359 = arith.cmpi ne, %358, %c0_i32_125 : i32
    scf.if %359 {
      %c0_126 = arith.constant 0 : index
      %c0_127 = arith.constant 0 : index
      %360 = vector.load %arg7[%c0_126, %c0_127] : memref<8x128xf32, #tpu.memory_space<vmem>>, vector<8x128xf32>
      %c0_128 = arith.constant 0 : index
      %c0_129 = arith.constant 0 : index
      %361 = vector.load %arg6[%c0_128, %c0_129] : memref<8x128xf32, #tpu.memory_space<vmem>>, vector<8x128xf32>
      tpu.vector_store %arg6[%c0_128, %c0_129], %360 {strides = array<i32>} : memref<8x128xf32, #tpu.memory_space<vmem>>, vector<8x128xf32>,
    } else {
    }
    return
  }
  func.func @transform_0(%arg0: i32) -> (i32, i32, i32) {
    %c0_i32 = arith.constant 0 : i32
    %c0_i32_0 = arith.constant 0 : i32
    %c0_i32_1 = arith.constant 0 : i32
    return %arg0, %c0_i32, %c0_i32_0 : i32, i32, i32
  }
  func.func @transform_1(%arg0: i32) -> (i32, i32) {
    %c0_i32 = arith.constant 0 : i32
    %c0_i32_0 = arith.constant 0 : i32
    %c0_i32_1 = arith.constant 0 : i32
    return %c0_i32, %c0_i32_0 : i32, i32
  }
  func.func @transform_2(%arg0: i32) -> (i32, i32) {
    %c0_i32 = arith.constant 0 : i32
    %c0_i32_0 = arith.constant 0 : i32
    %c0_i32_1 = arith.constant 0 : i32
    return %c0_i32, %c0_i32_0 : i32, i32
  }
  func.func @transform_3(%arg0: i32) -> (i32, i32) {
    %c0_i32 = arith.constant 0 : i32
    %c0_i32_0 = arith.constant 0 : i32
    %c0_i32_1 = arith.constant 0 : i32
    return %c0_i32, %c0_i32_0 : i32, i32
  }
  func.func @transform_4(%arg0: i32) -> (i32, i32) {
    %c0_i32 = arith.constant 0 : i32
    %c0_i32_0 = arith.constant 0 : i32
    %c0_i32_1 = arith.constant 0 : i32
    return %c0_i32, %c0_i32_0 : i32, i32
  }
  func.func @transform_5(%arg0: i32) -> (i32, i32) {
    %c0_i32 = arith.constant 0 : i32
    %c0_i32_0 = arith.constant 0 : i32
    %c0_i32_1 = arith.constant 0 : i32
    return %c0_i32, %c0_i32_0 : i32, i32
  }
}

module attributes {stable_mosaic.version = 11 : i64} {
  func.func @linear_kernel(%arg0: memref<8x128xf32, #tpu.memory_space<vmem>>, %arg1: memref<128x256xf32, #tpu.memory_space<vmem>>, %arg2: memref<1x256xf32, #tpu.memory_space<vmem>>, %arg3: memref<8x256xf32, #tpu.memory_space<vmem>>) attributes {dimension_semantics = [], scalar_prefetch = 0 : i64, scratch_operands = 0 : i64, tpu.core_type = #tpu.core_type<tc>} {
    %c0 = arith.constant 0 : index
    %c0_0 = arith.constant 0 : index
    %0 = vector.load %arg0[%c0, %c0_0] : memref<8x128xf32, #tpu.memory_space<vmem>>, vector<8x128xf32>
    %c0_1 = arith.constant 0 : index
    %c0_2 = arith.constant 0 : index
    %1 = vector.load %arg1[%c0_1, %c0_2] : memref<128x256xf32, #tpu.memory_space<vmem>>, vector<128x256xf32>
    %cst = arith.constant dense<0.000000e+00> : vector<8x256xf32>
    %2 = tpu.matmul %0, %1, %cst {dimension_numbers = #tpu.dot_dimension_numbers<[1], [0], [0], [1], [0, 0, 1, 1], [], []>} : vector<8x128xf32>, vector<128x256xf32>, vector<8x256xf32> -> vector<8x256xf32>
    %c0_3 = arith.constant 0 : index
    %c0_4 = arith.constant 0 : index
    %3 = vector.load %arg2[%c0_3, %c0_4] : memref<1x256xf32, #tpu.memory_space<vmem>>, vector<1x256xf32>
    %4 = vector.broadcast %3 : vector<1x256xf32> to vector<8x256xf32>
    %5 = arith.addf %2, %4 : vector<8x256xf32>
    %c0_5 = arith.constant 0 : index
    %c0_6 = arith.constant 0 : index
    %6 = vector.load %arg3[%c0_5, %c0_6] : memref<8x256xf32, #tpu.memory_space<vmem>>, vector<8x256xf32>
    tpu.vector_store %arg3[%c0_5, %c0_6], %5 {strides = array<i32>} : memref<8x256xf32, #tpu.memory_space<vmem>>, vector<8x256xf32>,
    return
  }
}

module attributes {stable_mosaic.version = 11 : i64} {
  func.func @linear_kernel(%arg0: memref<8x128xf32, #tpu.memory_space<vmem>>, %arg1: memref<128x256xf32, #tpu.memory_space<vmem>>, %arg2: memref<1x256xf32, #tpu.memory_space<vmem>>, %arg3: memref<8x256xf32, #tpu.memory_space<vmem>>) attributes {dimension_semantics = [], scalar_prefetch = 0 : i64, scratch_operands = 0 : i64, tpu.core_type = #tpu.core_type<tc>} {
    %c0 = arith.constant 0 : index
    %c0_0 = arith.constant 0 : index
    %0 = vector.load %arg0[%c0, %c0_0] : memref<8x128xf32, #tpu.memory_space<vmem>>, vector<8x128xf32>
    %c0_1 = arith.constant 0 : index
    %c0_2 = arith.constant 0 : index
    %1 = vector.load %arg1[%c0_1, %c0_2] : memref<128x256xf32, #tpu.memory_space<vmem>>, vector<128x256xf32>
    %cst = arith.constant dense<0.000000e+00> : vector<8x256xf32>
    %2 = tpu.matmul %0, %1, %cst {dimension_numbers = #tpu.dot_dimension_numbers<[1], [0], [0], [1], [0, 0, 1, 1], [], []>} : vector<8x128xf32>, vector<128x256xf32>, vector<8x256xf32> -> vector<8x256xf32>
    %c0_3 = arith.constant 0 : index
    %c0_4 = arith.constant 0 : index
    %3 = vector.load %arg2[%c0_3, %c0_4] : memref<1x256xf32, #tpu.memory_space<vmem>>, vector<1x256xf32>
    %4 = vector.broadcast %3 : vector<1x256xf32> to vector<8x256xf32>
    %5 = arith.addf %2, %4 : vector<8x256xf32>
    %6 = math.tanh %5 : vector<8x256xf32>
    %c0_5 = arith.constant 0 : index
    %c0_6 = arith.constant 0 : index
    %7 = vector.load %arg3[%c0_5, %c0_6] : memref<8x256xf32, #tpu.memory_space<vmem>>, vector<8x256xf32>
    tpu.vector_store %arg3[%c0_5, %c0_6], %6 {strides = array<i32>} : memref<8x256xf32, #tpu.memory_space<vmem>>, vector<8x256xf32>,
    return
  }
}

module attributes {stable_mosaic.version = 11 : i64} {
  func.func @linear_kernel(%arg0: memref<8x128xf32, #tpu.memory_space<vmem>>, %arg1: memref<128x512xf32, #tpu.memory_space<vmem>>, %arg2: memref<1x512xf32, #tpu.memory_space<vmem>>, %arg3: memref<8x512xf32, #tpu.memory_space<vmem>>) attributes {dimension_semantics = [], scalar_prefetch = 0 : i64, scratch_operands = 0 : i64, tpu.core_type = #tpu.core_type<tc>} {
    %c0 = arith.constant 0 : index
    %c0_0 = arith.constant 0 : index
    %0 = vector.load %arg0[%c0, %c0_0] : memref<8x128xf32, #tpu.memory_space<vmem>>, vector<8x128xf32>
    %c0_1 = arith.constant 0 : index
    %c0_2 = arith.constant 0 : index
    %1 = vector.load %arg1[%c0_1, %c0_2] : memref<128x512xf32, #tpu.memory_space<vmem>>, vector<128x512xf32>
    %cst = arith.constant dense<0.000000e+00> : vector<8x512xf32>
    %2 = tpu.matmul %0, %1, %cst {dimension_numbers = #tpu.dot_dimension_numbers<[1], [0], [0], [1], [0, 0, 1, 1], [], []>} : vector<8x128xf32>, vector<128x512xf32>, vector<8x512xf32> -> vector<8x512xf32>
    %c0_3 = arith.constant 0 : index
    %c0_4 = arith.constant 0 : index
    %3 = vector.load %arg2[%c0_3, %c0_4] : memref<1x512xf32, #tpu.memory_space<vmem>>, vector<1x512xf32>
    %4 = vector.broadcast %3 : vector<1x512xf32> to vector<8x512xf32>
    %5 = arith.addf %2, %4 : vector<8x512xf32>
    %c0_5 = arith.constant 0 : index
    %c0_6 = arith.constant 0 : index
    %6 = vector.load %arg3[%c0_5, %c0_6] : memref<8x512xf32, #tpu.memory_space<vmem>>, vector<8x512xf32>
    tpu.vector_store %arg3[%c0_5, %c0_6], %5 {strides = array<i32>} : memref<8x512xf32, #tpu.memory_space<vmem>>, vector<8x512xf32>,
    return
  }
}

module attributes {stable_mosaic.version = 11 : i64} {
  func.func @lstm_decode_kernel(%arg0: i32, %arg1: memref<8x8x512xf32, #tpu.memory_space<vmem>>, %arg2: memref<8x512xf32, #tpu.memory_space<vmem>>, %arg3: memref<128x512xf32, #tpu.memory_space<vmem>>, %arg4: memref<8x128xf32, #tpu.memory_space<vmem>>, %arg5: memref<8x128xf32, #tpu.memory_space<vmem>>, %arg6: memref<8x1xi32, #tpu.memory_space<vmem>>, %arg7: memref<128x128xf32, #tpu.memory_space<vmem>>, %arg8: memref<1x128xf32, #tpu.memory_space<vmem>>, %arg9: memref<8x8x128xf32, #tpu.memory_space<vmem>>, %arg10: memref<8x128xf32, #tpu.memory_space<vmem>>, %arg11: memref<8x128xf32, #tpu.memory_space<vmem>>) attributes {dimension_semantics = [#tpu.dimension_semantics<arbitrary>], iteration_bounds = array<i64: 1>, scalar_prefetch = 0 : i64, scratch_operands = 2 : i64, tpu.core_type = #tpu.core_type<tc>, window_params = [{transform_indices = @transform_0, window_bounds = array<i64: 8, 8, 512>}, {pipeline_mode = #tpu.pipeline_mode<synchronous>, transform_indices = @transform_1, window_bounds = array<i64: 8, 512>}, {pipeline_mode = #tpu.pipeline_mode<synchronous>, transform_indices = @transform_2, window_bounds = array<i64: 128, 512>}, {pipeline_mode = #tpu.pipeline_mode<synchronous>, transform_indices = @transform_3, window_bounds = array<i64: 8, 128>}, {pipeline_mode = #tpu.pipeline_mode<synchronous>, transform_indices = @transform_4, window_bounds = array<i64: 8, 128>}, {pipeline_mode = #tpu.pipeline_mode<synchronous>, transform_indices = @transform_5, window_bounds = array<i64: 8, 1>}, {pipeline_mode = #tpu.pipeline_mode<synchronous>, transform_indices = @transform_6, window_bounds = array<i64: 128, 128>}, {pipeline_mode = #tpu.pipeline_mode<synchronous>, transform_indices = @transform_7, window_bounds = array<i64: 1, 128>}, {transform_indices = @transform_8, window_bounds = array<i64: 8, 8, 128>}]} {
    %c0_i32 = arith.constant 0 : i32
    %0 = arith.cmpi eq, %arg0, %c0_i32 : i32
    %1 = arith.extui %0 : i1 to i32
    %c0_i32_0 = arith.constant 0 : i32
    %2 = arith.cmpi ne, %1, %c0_i32_0 : i32
    scf.if %2 {
      %c0_154 = arith.constant 0 : index
      %c0_155 = arith.constant 0 : index
      %424 = vector.load %arg4[%c0_154, %c0_155] : memref<8x128xf32, #tpu.memory_space<vmem>>, vector<8x128xf32>
      %c0_156 = arith.constant 0 : index
      %c0_157 = arith.constant 0 : index
      %425 = vector.load %arg10[%c0_156, %c0_157] : memref<8x128xf32, #tpu.memory_space<vmem>>, vector<8x128xf32>
      tpu.vector_store %arg10[%c0_156, %c0_157], %424 {strides = array<i32>} : memref<8x128xf32, #tpu.memory_space<vmem>>, vector<8x128xf32>,
      %c0_158 = arith.constant 0 : index
      %c0_159 = arith.constant 0 : index
      %426 = vector.load %arg5[%c0_158, %c0_159] : memref<8x128xf32, #tpu.memory_space<vmem>>, vector<8x128xf32>
      %c0_160 = arith.constant 0 : index
      %c0_161 = arith.constant 0 : index
      %427 = vector.load %arg11[%c0_160, %c0_161] : memref<8x128xf32, #tpu.memory_space<vmem>>, vector<8x128xf32>
      tpu.vector_store %arg11[%c0_160, %c0_161], %426 {strides = array<i32>} : memref<8x128xf32, #tpu.memory_space<vmem>>, vector<8x128xf32>,
    } else {
    }
    %c0 = arith.constant 0 : index
    %c0_1 = arith.constant 0 : index
    %3 = vector.load %arg6[%c0, %c0_1] : memref<8x1xi32, #tpu.memory_space<vmem>>, vector<8x1xi32>
    %c0_2 = arith.constant 0 : index
    %c0_3 = arith.constant 0 : index
    %4 = vector.load %arg3[%c0_2, %c0_3] : memref<128x512xf32, #tpu.memory_space<vmem>>, vector<128x512xf32>
    %c0_4 = arith.constant 0 : index
    %c0_5 = arith.constant 0 : index
    %5 = vector.load %arg2[%c0_4, %c0_5] : memref<8x512xf32, #tpu.memory_space<vmem>>, vector<8x512xf32>
    %c0_6 = arith.constant 0 : index
    %c0_7 = arith.constant 0 : index
    %6 = vector.load %arg7[%c0_6, %c0_7] : memref<128x128xf32, #tpu.memory_space<vmem>>, vector<128x128xf32>
    %c0_8 = arith.constant 0 : index
    %c0_9 = arith.constant 0 : index
    %7 = vector.load %arg8[%c0_8, %c0_9] : memref<1x128xf32, #tpu.memory_space<vmem>>, vector<1x128xf32>
    %c0_i32_10 = arith.constant 0 : i32
    %c8_i32 = arith.constant 8 : i32
    %8 = arith.muli %arg0, %c8_i32 : i32
    %9 = arith.addi %8, %c0_i32_10 : i32
    %c0_11 = arith.constant 0 : index
    %c0_12 = arith.constant 0 : index
    %10 = vector.load %arg10[%c0_11, %c0_12] : memref<8x128xf32, #tpu.memory_space<vmem>>, vector<8x128xf32>
    %c0_13 = arith.constant 0 : index
    %c0_14 = arith.constant 0 : index
    %11 = vector.load %arg11[%c0_13, %c0_14] : memref<8x128xf32, #tpu.memory_space<vmem>>, vector<8x128xf32>
    %12 = arith.index_cast %c0_i32_10 : i32 to index
    %c0_15 = arith.constant 0 : index
    %c0_16 = arith.constant 0 : index
    %13 = vector.load %arg1[%12, %c0_15, %c0_16] : memref<8x8x512xf32, #tpu.memory_space<vmem>>, vector<1x8x512xf32>
    %14 = vector.shape_cast %13 : vector<1x8x512xf32> to vector<8x512xf32>
    %15 = arith.addf %14, %5 : vector<8x512xf32>
    %cst = arith.constant dense<0.000000e+00> : vector<8x512xf32>
    %16 = tpu.matmul %10, %4, %cst {dimension_numbers = #tpu.dot_dimension_numbers<[1], [0], [0], [1], [0, 0, 1, 1], [], []>} : vector<8x128xf32>, vector<128x512xf32>, vector<8x512xf32> -> vector<8x512xf32>
    %17 = arith.addf %15, %16 : vector<8x512xf32>
    %18 = vector.extract_strided_slice %17 {offsets = [0, 0], sizes = [8, 128], strides = [1, 1]} : vector<8x512xf32> to vector<8x128xf32>
    %19 = arith.negf %18 : vector<8x128xf32>
    %20 = math.exp %19 : vector<8x128xf32>
    %cst_17 = arith.constant 1.000000e+00 : f32
    %21 = vector.broadcast %cst_17 : f32 to vector<8x128xf32>
    %22 = arith.addf %21, %20 : vector<8x128xf32>
    %23 = arith.divf %21, %22 : vector<8x128xf32>
    %24 = vector.extract_strided_slice %17 {offsets = [0, 128], sizes = [8, 128], strides = [1, 1]} : vector<8x512xf32> to vector<8x128xf32>
    %25 = arith.negf %24 : vector<8x128xf32>
    %26 = math.exp %25 : vector<8x128xf32>
    %cst_18 = arith.constant 1.000000e+00 : f32
    %27 = vector.broadcast %cst_18 : f32 to vector<8x128xf32>
    %28 = arith.addf %27, %26 : vector<8x128xf32>
    %29 = arith.divf %27, %28 : vector<8x128xf32>
    %30 = vector.extract_strided_slice %17 {offsets = [0, 256], sizes = [8, 128], strides = [1, 1]} : vector<8x512xf32> to vector<8x128xf32>
    %31 = math.tanh %30 : vector<8x128xf32>
    %32 = vector.extract_strided_slice %17 {offsets = [0, 384], sizes = [8, 128], strides = [1, 1]} : vector<8x512xf32> to vector<8x128xf32>
    %33 = arith.negf %32 : vector<8x128xf32>
    %34 = math.exp %33 : vector<8x128xf32>
    %cst_19 = arith.constant 1.000000e+00 : f32
    %35 = vector.broadcast %cst_19 : f32 to vector<8x128xf32>
    %36 = arith.addf %35, %34 : vector<8x128xf32>
    %37 = arith.divf %35, %36 : vector<8x128xf32>
    %38 = arith.mulf %29, %11 : vector<8x128xf32>
    %39 = arith.mulf %23, %31 : vector<8x128xf32>
    %40 = arith.addf %38, %39 : vector<8x128xf32>
    %41 = math.tanh %40 : vector<8x128xf32>
    %42 = arith.mulf %37, %41 : vector<8x128xf32>
    %43 = vector.broadcast %9 : i32 to vector<8x1xi32>
    %44 = arith.cmpi slt, %43, %3 : vector<8x1xi32>
    %45 = vector.shape_cast %44 : vector<8x1xi1> to vector<8x1xi1>
    %46 = vector.broadcast %45 : vector<8x1xi1> to vector<8x128xi1>
    %47 = arith.select %46, %42, %10 : vector<8x128xi1>, vector<8x128xf32>
    %48 = vector.shape_cast %44 : vector<8x1xi1> to vector<8x1xi1>
    %49 = vector.broadcast %48 : vector<8x1xi1> to vector<8x128xi1>
    %50 = arith.select %49, %40, %11 : vector<8x128xi1>, vector<8x128xf32>
    %c0_20 = arith.constant 0 : index
    %c0_21 = arith.constant 0 : index
    %51 = vector.load %arg10[%c0_20, %c0_21] : memref<8x128xf32, #tpu.memory_space<vmem>>, vector<8x128xf32>
    tpu.vector_store %arg10[%c0_20, %c0_21], %47 {strides = array<i32>} : memref<8x128xf32, #tpu.memory_space<vmem>>, vector<8x128xf32>,
    %c0_22 = arith.constant 0 : index
    %c0_23 = arith.constant 0 : index
    %52 = vector.load %arg11[%c0_22, %c0_23] : memref<8x128xf32, #tpu.memory_space<vmem>>, vector<8x128xf32>
    tpu.vector_store %arg11[%c0_22, %c0_23], %50 {strides = array<i32>} : memref<8x128xf32, #tpu.memory_space<vmem>>, vector<8x128xf32>,
    %cst_24 = arith.constant dense<0.000000e+00> : vector<8x128xf32>
    %53 = tpu.matmul %47, %6, %cst_24 {dimension_numbers = #tpu.dot_dimension_numbers<[1], [0], [0], [1], [0, 0, 1, 1], [], []>} : vector<8x128xf32>, vector<128x128xf32>, vector<8x128xf32> -> vector<8x128xf32>
    %54 = vector.broadcast %7 : vector<1x128xf32> to vector<8x128xf32>
    %55 = arith.addf %53, %54 : vector<8x128xf32>
    %56 = arith.index_cast %c0_i32_10 : i32 to index
    %c0_25 = arith.constant 0 : index
    %c0_26 = arith.constant 0 : index
    %57 = vector.load %arg9[%56, %c0_25, %c0_26] : memref<8x8x128xf32, #tpu.memory_space<vmem>>, vector<1x8x128xf32>
    %58 = vector.shape_cast %57 : vector<1x8x128xf32> to vector<8x128xf32>
    %59 = vector.shape_cast %55 : vector<8x128xf32> to vector<1x8x128xf32>
    tpu.vector_store %arg9[%56, %c0_25, %c0_26], %59 {strides = array<i32>} : memref<8x8x128xf32, #tpu.memory_space<vmem>>, vector<1x8x128xf32>,
    %c1_i32 = arith.constant 1 : i32
    %c8_i32_27 = arith.constant 8 : i32
    %60 = arith.muli %arg0, %c8_i32_27 : i32
    %61 = arith.addi %60, %c1_i32 : i32
    %c0_28 = arith.constant 0 : index
    %c0_29 = arith.constant 0 : index
    %62 = vector.load %arg10[%c0_28, %c0_29] : memref<8x128xf32, #tpu.memory_space<vmem>>, vector<8x128xf32>
    %c0_30 = arith.constant 0 : index
    %c0_31 = arith.constant 0 : index
    %63 = vector.load %arg11[%c0_30, %c0_31] : memref<8x128xf32, #tpu.memory_space<vmem>>, vector<8x128xf32>
    %64 = arith.index_cast %c1_i32 : i32 to index
    %c0_32 = arith.constant 0 : index
    %c0_33 = arith.constant 0 : index
    %65 = vector.load %arg1[%64, %c0_32, %c0_33] : memref<8x8x512xf32, #tpu.memory_space<vmem>>, vector<1x8x512xf32>
    %66 = vector.shape_cast %65 : vector<1x8x512xf32> to vector<8x512xf32>
    %67 = arith.addf %66, %5 : vector<8x512xf32>
    %cst_34 = arith.constant dense<0.000000e+00> : vector<8x512xf32>
    %68 = tpu.matmul %62, %4, %cst_34 {dimension_numbers = #tpu.dot_dimension_numbers<[1], [0], [0], [1], [0, 0, 1, 1], [], []>} : vector<8x128xf32>, vector<128x512xf32>, vector<8x512xf32> -> vector<8x512xf32>
    %69 = arith.addf %67, %68 : vector<8x512xf32>
    %70 = vector.extract_strided_slice %69 {offsets = [0, 0], sizes = [8, 128], strides = [1, 1]} : vector<8x512xf32> to vector<8x128xf32>
    %71 = arith.negf %70 : vector<8x128xf32>
    %72 = math.exp %71 : vector<8x128xf32>
    %cst_35 = arith.constant 1.000000e+00 : f32
    %73 = vector.broadcast %cst_35 : f32 to vector<8x128xf32>
    %74 = arith.addf %73, %72 : vector<8x128xf32>
    %75 = arith.divf %73, %74 : vector<8x128xf32>
    %76 = vector.extract_strided_slice %69 {offsets = [0, 128], sizes = [8, 128], strides = [1, 1]} : vector<8x512xf32> to vector<8x128xf32>
    %77 = arith.negf %76 : vector<8x128xf32>
    %78 = math.exp %77 : vector<8x128xf32>
    %cst_36 = arith.constant 1.000000e+00 : f32
    %79 = vector.broadcast %cst_36 : f32 to vector<8x128xf32>
    %80 = arith.addf %79, %78 : vector<8x128xf32>
    %81 = arith.divf %79, %80 : vector<8x128xf32>
    %82 = vector.extract_strided_slice %69 {offsets = [0, 256], sizes = [8, 128], strides = [1, 1]} : vector<8x512xf32> to vector<8x128xf32>
    %83 = math.tanh %82 : vector<8x128xf32>
    %84 = vector.extract_strided_slice %69 {offsets = [0, 384], sizes = [8, 128], strides = [1, 1]} : vector<8x512xf32> to vector<8x128xf32>
    %85 = arith.negf %84 : vector<8x128xf32>
    %86 = math.exp %85 : vector<8x128xf32>
    %cst_37 = arith.constant 1.000000e+00 : f32
    %87 = vector.broadcast %cst_37 : f32 to vector<8x128xf32>
    %88 = arith.addf %87, %86 : vector<8x128xf32>
    %89 = arith.divf %87, %88 : vector<8x128xf32>
    %90 = arith.mulf %81, %63 : vector<8x128xf32>
    %91 = arith.mulf %75, %83 : vector<8x128xf32>
    %92 = arith.addf %90, %91 : vector<8x128xf32>
    %93 = math.tanh %92 : vector<8x128xf32>
    %94 = arith.mulf %89, %93 : vector<8x128xf32>
    %95 = vector.broadcast %61 : i32 to vector<8x1xi32>
    %96 = arith.cmpi slt, %95, %3 : vector<8x1xi32>
    %97 = vector.shape_cast %96 : vector<8x1xi1> to vector<8x1xi1>
    %98 = vector.broadcast %97 : vector<8x1xi1> to vector<8x128xi1>
    %99 = arith.select %98, %94, %62 : vector<8x128xi1>, vector<8x128xf32>
    %100 = vector.shape_cast %96 : vector<8x1xi1> to vector<8x1xi1>
    %101 = vector.broadcast %100 : vector<8x1xi1> to vector<8x128xi1>
    %102 = arith.select %101, %92, %63 : vector<8x128xi1>, vector<8x128xf32>
    %c0_38 = arith.constant 0 : index
    %c0_39 = arith.constant 0 : index
    %103 = vector.load %arg10[%c0_38, %c0_39] : memref<8x128xf32, #tpu.memory_space<vmem>>, vector<8x128xf32>
    tpu.vector_store %arg10[%c0_38, %c0_39], %99 {strides = array<i32>} : memref<8x128xf32, #tpu.memory_space<vmem>>, vector<8x128xf32>,
    %c0_40 = arith.constant 0 : index
    %c0_41 = arith.constant 0 : index
    %104 = vector.load %arg11[%c0_40, %c0_41] : memref<8x128xf32, #tpu.memory_space<vmem>>, vector<8x128xf32>
    tpu.vector_store %arg11[%c0_40, %c0_41], %102 {strides = array<i32>} : memref<8x128xf32, #tpu.memory_space<vmem>>, vector<8x128xf32>,
    %cst_42 = arith.constant dense<0.000000e+00> : vector<8x128xf32>
    %105 = tpu.matmul %99, %6, %cst_42 {dimension_numbers = #tpu.dot_dimension_numbers<[1], [0], [0], [1], [0, 0, 1, 1], [], []>} : vector<8x128xf32>, vector<128x128xf32>, vector<8x128xf32> -> vector<8x128xf32>
    %106 = vector.broadcast %7 : vector<1x128xf32> to vector<8x128xf32>
    %107 = arith.addf %105, %106 : vector<8x128xf32>
    %108 = arith.index_cast %c1_i32 : i32 to index
    %c0_43 = arith.constant 0 : index
    %c0_44 = arith.constant 0 : index
    %109 = vector.load %arg9[%108, %c0_43, %c0_44] : memref<8x8x128xf32, #tpu.memory_space<vmem>>, vector<1x8x128xf32>
    %110 = vector.shape_cast %109 : vector<1x8x128xf32> to vector<8x128xf32>
    %111 = vector.shape_cast %107 : vector<8x128xf32> to vector<1x8x128xf32>
    tpu.vector_store %arg9[%108, %c0_43, %c0_44], %111 {strides = array<i32>} : memref<8x8x128xf32, #tpu.memory_space<vmem>>, vector<1x8x128xf32>,
    %c2_i32 = arith.constant 2 : i32
    %c8_i32_45 = arith.constant 8 : i32
    %112 = arith.muli %arg0, %c8_i32_45 : i32
    %113 = arith.addi %112, %c2_i32 : i32
    %c0_46 = arith.constant 0 : index
    %c0_47 = arith.constant 0 : index
    %114 = vector.load %arg10[%c0_46, %c0_47] : memref<8x128xf32, #tpu.memory_space<vmem>>, vector<8x128xf32>
    %c0_48 = arith.constant 0 : index
    %c0_49 = arith.constant 0 : index
    %115 = vector.load %arg11[%c0_48, %c0_49] : memref<8x128xf32, #tpu.memory_space<vmem>>, vector<8x128xf32>
    %116 = arith.index_cast %c2_i32 : i32 to index
    %c0_50 = arith.constant 0 : index
    %c0_51 = arith.constant 0 : index
    %117 = vector.load %arg1[%116, %c0_50, %c0_51] : memref<8x8x512xf32, #tpu.memory_space<vmem>>, vector<1x8x512xf32>
    %118 = vector.shape_cast %117 : vector<1x8x512xf32> to vector<8x512xf32>
    %119 = arith.addf %118, %5 : vector<8x512xf32>
    %cst_52 = arith.constant dense<0.000000e+00> : vector<8x512xf32>
    %120 = tpu.matmul %114, %4, %cst_52 {dimension_numbers = #tpu.dot_dimension_numbers<[1], [0], [0], [1], [0, 0, 1, 1], [], []>} : vector<8x128xf32>, vector<128x512xf32>, vector<8x512xf32> -> vector<8x512xf32>
    %121 = arith.addf %119, %120 : vector<8x512xf32>
    %122 = vector.extract_strided_slice %121 {offsets = [0, 0], sizes = [8, 128], strides = [1, 1]} : vector<8x512xf32> to vector<8x128xf32>
    %123 = arith.negf %122 : vector<8x128xf32>
    %124 = math.exp %123 : vector<8x128xf32>
    %cst_53 = arith.constant 1.000000e+00 : f32
    %125 = vector.broadcast %cst_53 : f32 to vector<8x128xf32>
    %126 = arith.addf %125, %124 : vector<8x128xf32>
    %127 = arith.divf %125, %126 : vector<8x128xf32>
    %128 = vector.extract_strided_slice %121 {offsets = [0, 128], sizes = [8, 128], strides = [1, 1]} : vector<8x512xf32> to vector<8x128xf32>
    %129 = arith.negf %128 : vector<8x128xf32>
    %130 = math.exp %129 : vector<8x128xf32>
    %cst_54 = arith.constant 1.000000e+00 : f32
    %131 = vector.broadcast %cst_54 : f32 to vector<8x128xf32>
    %132 = arith.addf %131, %130 : vector<8x128xf32>
    %133 = arith.divf %131, %132 : vector<8x128xf32>
    %134 = vector.extract_strided_slice %121 {offsets = [0, 256], sizes = [8, 128], strides = [1, 1]} : vector<8x512xf32> to vector<8x128xf32>
    %135 = math.tanh %134 : vector<8x128xf32>
    %136 = vector.extract_strided_slice %121 {offsets = [0, 384], sizes = [8, 128], strides = [1, 1]} : vector<8x512xf32> to vector<8x128xf32>
    %137 = arith.negf %136 : vector<8x128xf32>
    %138 = math.exp %137 : vector<8x128xf32>
    %cst_55 = arith.constant 1.000000e+00 : f32
    %139 = vector.broadcast %cst_55 : f32 to vector<8x128xf32>
    %140 = arith.addf %139, %138 : vector<8x128xf32>
    %141 = arith.divf %139, %140 : vector<8x128xf32>
    %142 = arith.mulf %133, %115 : vector<8x128xf32>
    %143 = arith.mulf %127, %135 : vector<8x128xf32>
    %144 = arith.addf %142, %143 : vector<8x128xf32>
    %145 = math.tanh %144 : vector<8x128xf32>
    %146 = arith.mulf %141, %145 : vector<8x128xf32>
    %147 = vector.broadcast %113 : i32 to vector<8x1xi32>
    %148 = arith.cmpi slt, %147, %3 : vector<8x1xi32>
    %149 = vector.shape_cast %148 : vector<8x1xi1> to vector<8x1xi1>
    %150 = vector.broadcast %149 : vector<8x1xi1> to vector<8x128xi1>
    %151 = arith.select %150, %146, %114 : vector<8x128xi1>, vector<8x128xf32>
    %152 = vector.shape_cast %148 : vector<8x1xi1> to vector<8x1xi1>
    %153 = vector.broadcast %152 : vector<8x1xi1> to vector<8x128xi1>
    %154 = arith.select %153, %144, %115 : vector<8x128xi1>, vector<8x128xf32>
    %c0_56 = arith.constant 0 : index
    %c0_57 = arith.constant 0 : index
    %155 = vector.load %arg10[%c0_56, %c0_57] : memref<8x128xf32, #tpu.memory_space<vmem>>, vector<8x128xf32>
    tpu.vector_store %arg10[%c0_56, %c0_57], %151 {strides = array<i32>} : memref<8x128xf32, #tpu.memory_space<vmem>>, vector<8x128xf32>,
    %c0_58 = arith.constant 0 : index
    %c0_59 = arith.constant 0 : index
    %156 = vector.load %arg11[%c0_58, %c0_59] : memref<8x128xf32, #tpu.memory_space<vmem>>, vector<8x128xf32>
    tpu.vector_store %arg11[%c0_58, %c0_59], %154 {strides = array<i32>} : memref<8x128xf32, #tpu.memory_space<vmem>>, vector<8x128xf32>,
    %cst_60 = arith.constant dense<0.000000e+00> : vector<8x128xf32>
    %157 = tpu.matmul %151, %6, %cst_60 {dimension_numbers = #tpu.dot_dimension_numbers<[1], [0], [0], [1], [0, 0, 1, 1], [], []>} : vector<8x128xf32>, vector<128x128xf32>, vector<8x128xf32> -> vector<8x128xf32>
    %158 = vector.broadcast %7 : vector<1x128xf32> to vector<8x128xf32>
    %159 = arith.addf %157, %158 : vector<8x128xf32>
    %160 = arith.index_cast %c2_i32 : i32 to index
    %c0_61 = arith.constant 0 : index
    %c0_62 = arith.constant 0 : index
    %161 = vector.load %arg9[%160, %c0_61, %c0_62] : memref<8x8x128xf32, #tpu.memory_space<vmem>>, vector<1x8x128xf32>
    %162 = vector.shape_cast %161 : vector<1x8x128xf32> to vector<8x128xf32>
    %163 = vector.shape_cast %159 : vector<8x128xf32> to vector<1x8x128xf32>
    tpu.vector_store %arg9[%160, %c0_61, %c0_62], %163 {strides = array<i32>} : memref<8x8x128xf32, #tpu.memory_space<vmem>>, vector<1x8x128xf32>,
    %c3_i32 = arith.constant 3 : i32
    %c8_i32_63 = arith.constant 8 : i32
    %164 = arith.muli %arg0, %c8_i32_63 : i32
    %165 = arith.addi %164, %c3_i32 : i32
    %c0_64 = arith.constant 0 : index
    %c0_65 = arith.constant 0 : index
    %166 = vector.load %arg10[%c0_64, %c0_65] : memref<8x128xf32, #tpu.memory_space<vmem>>, vector<8x128xf32>
    %c0_66 = arith.constant 0 : index
    %c0_67 = arith.constant 0 : index
    %167 = vector.load %arg11[%c0_66, %c0_67] : memref<8x128xf32, #tpu.memory_space<vmem>>, vector<8x128xf32>
    %168 = arith.index_cast %c3_i32 : i32 to index
    %c0_68 = arith.constant 0 : index
    %c0_69 = arith.constant 0 : index
    %169 = vector.load %arg1[%168, %c0_68, %c0_69] : memref<8x8x512xf32, #tpu.memory_space<vmem>>, vector<1x8x512xf32>
    %170 = vector.shape_cast %169 : vector<1x8x512xf32> to vector<8x512xf32>
    %171 = arith.addf %170, %5 : vector<8x512xf32>
    %cst_70 = arith.constant dense<0.000000e+00> : vector<8x512xf32>
    %172 = tpu.matmul %166, %4, %cst_70 {dimension_numbers = #tpu.dot_dimension_numbers<[1], [0], [0], [1], [0, 0, 1, 1], [], []>} : vector<8x128xf32>, vector<128x512xf32>, vector<8x512xf32> -> vector<8x512xf32>
    %173 = arith.addf %171, %172 : vector<8x512xf32>
    %174 = vector.extract_strided_slice %173 {offsets = [0, 0], sizes = [8, 128], strides = [1, 1]} : vector<8x512xf32> to vector<8x128xf32>
    %175 = arith.negf %174 : vector<8x128xf32>
    %176 = math.exp %175 : vector<8x128xf32>
    %cst_71 = arith.constant 1.000000e+00 : f32
    %177 = vector.broadcast %cst_71 : f32 to vector<8x128xf32>
    %178 = arith.addf %177, %176 : vector<8x128xf32>
    %179 = arith.divf %177, %178 : vector<8x128xf32>
    %180 = vector.extract_strided_slice %173 {offsets = [0, 128], sizes = [8, 128], strides = [1, 1]} : vector<8x512xf32> to vector<8x128xf32>
    %181 = arith.negf %180 : vector<8x128xf32>
    %182 = math.exp %181 : vector<8x128xf32>
    %cst_72 = arith.constant 1.000000e+00 : f32
    %183 = vector.broadcast %cst_72 : f32 to vector<8x128xf32>
    %184 = arith.addf %183, %182 : vector<8x128xf32>
    %185 = arith.divf %183, %184 : vector<8x128xf32>
    %186 = vector.extract_strided_slice %173 {offsets = [0, 256], sizes = [8, 128], strides = [1, 1]} : vector<8x512xf32> to vector<8x128xf32>
    %187 = math.tanh %186 : vector<8x128xf32>
    %188 = vector.extract_strided_slice %173 {offsets = [0, 384], sizes = [8, 128], strides = [1, 1]} : vector<8x512xf32> to vector<8x128xf32>
    %189 = arith.negf %188 : vector<8x128xf32>
    %190 = math.exp %189 : vector<8x128xf32>
    %cst_73 = arith.constant 1.000000e+00 : f32
    %191 = vector.broadcast %cst_73 : f32 to vector<8x128xf32>
    %192 = arith.addf %191, %190 : vector<8x128xf32>
    %193 = arith.divf %191, %192 : vector<8x128xf32>
    %194 = arith.mulf %185, %167 : vector<8x128xf32>
    %195 = arith.mulf %179, %187 : vector<8x128xf32>
    %196 = arith.addf %194, %195 : vector<8x128xf32>
    %197 = math.tanh %196 : vector<8x128xf32>
    %198 = arith.mulf %193, %197 : vector<8x128xf32>
    %199 = vector.broadcast %165 : i32 to vector<8x1xi32>
    %200 = arith.cmpi slt, %199, %3 : vector<8x1xi32>
    %201 = vector.shape_cast %200 : vector<8x1xi1> to vector<8x1xi1>
    %202 = vector.broadcast %201 : vector<8x1xi1> to vector<8x128xi1>
    %203 = arith.select %202, %198, %166 : vector<8x128xi1>, vector<8x128xf32>
    %204 = vector.shape_cast %200 : vector<8x1xi1> to vector<8x1xi1>
    %205 = vector.broadcast %204 : vector<8x1xi1> to vector<8x128xi1>
    %206 = arith.select %205, %196, %167 : vector<8x128xi1>, vector<8x128xf32>
    %c0_74 = arith.constant 0 : index
    %c0_75 = arith.constant 0 : index
    %207 = vector.load %arg10[%c0_74, %c0_75] : memref<8x128xf32, #tpu.memory_space<vmem>>, vector<8x128xf32>
    tpu.vector_store %arg10[%c0_74, %c0_75], %203 {strides = array<i32>} : memref<8x128xf32, #tpu.memory_space<vmem>>, vector<8x128xf32>,
    %c0_76 = arith.constant 0 : index
    %c0_77 = arith.constant 0 : index
    %208 = vector.load %arg11[%c0_76, %c0_77] : memref<8x128xf32, #tpu.memory_space<vmem>>, vector<8x128xf32>
    tpu.vector_store %arg11[%c0_76, %c0_77], %206 {strides = array<i32>} : memref<8x128xf32, #tpu.memory_space<vmem>>, vector<8x128xf32>,
    %cst_78 = arith.constant dense<0.000000e+00> : vector<8x128xf32>
    %209 = tpu.matmul %203, %6, %cst_78 {dimension_numbers = #tpu.dot_dimension_numbers<[1], [0], [0], [1], [0, 0, 1, 1], [], []>} : vector<8x128xf32>, vector<128x128xf32>, vector<8x128xf32> -> vector<8x128xf32>
    %210 = vector.broadcast %7 : vector<1x128xf32> to vector<8x128xf32>
    %211 = arith.addf %209, %210 : vector<8x128xf32>
    %212 = arith.index_cast %c3_i32 : i32 to index
    %c0_79 = arith.constant 0 : index
    %c0_80 = arith.constant 0 : index
    %213 = vector.load %arg9[%212, %c0_79, %c0_80] : memref<8x8x128xf32, #tpu.memory_space<vmem>>, vector<1x8x128xf32>
    %214 = vector.shape_cast %213 : vector<1x8x128xf32> to vector<8x128xf32>
    %215 = vector.shape_cast %211 : vector<8x128xf32> to vector<1x8x128xf32>
    tpu.vector_store %arg9[%212, %c0_79, %c0_80], %215 {strides = array<i32>} : memref<8x8x128xf32, #tpu.memory_space<vmem>>, vector<1x8x128xf32>,
    %c4_i32 = arith.constant 4 : i32
    %c8_i32_81 = arith.constant 8 : i32
    %216 = arith.muli %arg0, %c8_i32_81 : i32
    %217 = arith.addi %216, %c4_i32 : i32
    %c0_82 = arith.constant 0 : index
    %c0_83 = arith.constant 0 : index
    %218 = vector.load %arg10[%c0_82, %c0_83] : memref<8x128xf32, #tpu.memory_space<vmem>>, vector<8x128xf32>
    %c0_84 = arith.constant 0 : index
    %c0_85 = arith.constant 0 : index
    %219 = vector.load %arg11[%c0_84, %c0_85] : memref<8x128xf32, #tpu.memory_space<vmem>>, vector<8x128xf32>
    %220 = arith.index_cast %c4_i32 : i32 to index
    %c0_86 = arith.constant 0 : index
    %c0_87 = arith.constant 0 : index
    %221 = vector.load %arg1[%220, %c0_86, %c0_87] : memref<8x8x512xf32, #tpu.memory_space<vmem>>, vector<1x8x512xf32>
    %222 = vector.shape_cast %221 : vector<1x8x512xf32> to vector<8x512xf32>
    %223 = arith.addf %222, %5 : vector<8x512xf32>
    %cst_88 = arith.constant dense<0.000000e+00> : vector<8x512xf32>
    %224 = tpu.matmul %218, %4, %cst_88 {dimension_numbers = #tpu.dot_dimension_numbers<[1], [0], [0], [1], [0, 0, 1, 1], [], []>} : vector<8x128xf32>, vector<128x512xf32>, vector<8x512xf32> -> vector<8x512xf32>
    %225 = arith.addf %223, %224 : vector<8x512xf32>
    %226 = vector.extract_strided_slice %225 {offsets = [0, 0], sizes = [8, 128], strides = [1, 1]} : vector<8x512xf32> to vector<8x128xf32>
    %227 = arith.negf %226 : vector<8x128xf32>
    %228 = math.exp %227 : vector<8x128xf32>
    %cst_89 = arith.constant 1.000000e+00 : f32
    %229 = vector.broadcast %cst_89 : f32 to vector<8x128xf32>
    %230 = arith.addf %229, %228 : vector<8x128xf32>
    %231 = arith.divf %229, %230 : vector<8x128xf32>
    %232 = vector.extract_strided_slice %225 {offsets = [0, 128], sizes = [8, 128], strides = [1, 1]} : vector<8x512xf32> to vector<8x128xf32>
    %233 = arith.negf %232 : vector<8x128xf32>
    %234 = math.exp %233 : vector<8x128xf32>
    %cst_90 = arith.constant 1.000000e+00 : f32
    %235 = vector.broadcast %cst_90 : f32 to vector<8x128xf32>
    %236 = arith.addf %235, %234 : vector<8x128xf32>
    %237 = arith.divf %235, %236 : vector<8x128xf32>
    %238 = vector.extract_strided_slice %225 {offsets = [0, 256], sizes = [8, 128], strides = [1, 1]} : vector<8x512xf32> to vector<8x128xf32>
    %239 = math.tanh %238 : vector<8x128xf32>
    %240 = vector.extract_strided_slice %225 {offsets = [0, 384], sizes = [8, 128], strides = [1, 1]} : vector<8x512xf32> to vector<8x128xf32>
    %241 = arith.negf %240 : vector<8x128xf32>
    %242 = math.exp %241 : vector<8x128xf32>
    %cst_91 = arith.constant 1.000000e+00 : f32
    %243 = vector.broadcast %cst_91 : f32 to vector<8x128xf32>
    %244 = arith.addf %243, %242 : vector<8x128xf32>
    %245 = arith.divf %243, %244 : vector<8x128xf32>
    %246 = arith.mulf %237, %219 : vector<8x128xf32>
    %247 = arith.mulf %231, %239 : vector<8x128xf32>
    %248 = arith.addf %246, %247 : vector<8x128xf32>
    %249 = math.tanh %248 : vector<8x128xf32>
    %250 = arith.mulf %245, %249 : vector<8x128xf32>
    %251 = vector.broadcast %217 : i32 to vector<8x1xi32>
    %252 = arith.cmpi slt, %251, %3 : vector<8x1xi32>
    %253 = vector.shape_cast %252 : vector<8x1xi1> to vector<8x1xi1>
    %254 = vector.broadcast %253 : vector<8x1xi1> to vector<8x128xi1>
    %255 = arith.select %254, %250, %218 : vector<8x128xi1>, vector<8x128xf32>
    %256 = vector.shape_cast %252 : vector<8x1xi1> to vector<8x1xi1>
    %257 = vector.broadcast %256 : vector<8x1xi1> to vector<8x128xi1>
    %258 = arith.select %257, %248, %219 : vector<8x128xi1>, vector<8x128xf32>
    %c0_92 = arith.constant 0 : index
    %c0_93 = arith.constant 0 : index
    %259 = vector.load %arg10[%c0_92, %c0_93] : memref<8x128xf32, #tpu.memory_space<vmem>>, vector<8x128xf32>
    tpu.vector_store %arg10[%c0_92, %c0_93], %255 {strides = array<i32>} : memref<8x128xf32, #tpu.memory_space<vmem>>, vector<8x128xf32>,
    %c0_94 = arith.constant 0 : index
    %c0_95 = arith.constant 0 : index
    %260 = vector.load %arg11[%c0_94, %c0_95] : memref<8x128xf32, #tpu.memory_space<vmem>>, vector<8x128xf32>
    tpu.vector_store %arg11[%c0_94, %c0_95], %258 {strides = array<i32>} : memref<8x128xf32, #tpu.memory_space<vmem>>, vector<8x128xf32>,
    %cst_96 = arith.constant dense<0.000000e+00> : vector<8x128xf32>
    %261 = tpu.matmul %255, %6, %cst_96 {dimension_numbers = #tpu.dot_dimension_numbers<[1], [0], [0], [1], [0, 0, 1, 1], [], []>} : vector<8x128xf32>, vector<128x128xf32>, vector<8x128xf32> -> vector<8x128xf32>
    %262 = vector.broadcast %7 : vector<1x128xf32> to vector<8x128xf32>
    %263 = arith.addf %261, %262 : vector<8x128xf32>
    %264 = arith.index_cast %c4_i32 : i32 to index
    %c0_97 = arith.constant 0 : index
    %c0_98 = arith.constant 0 : index
    %265 = vector.load %arg9[%264, %c0_97, %c0_98] : memref<8x8x128xf32, #tpu.memory_space<vmem>>, vector<1x8x128xf32>
    %266 = vector.shape_cast %265 : vector<1x8x128xf32> to vector<8x128xf32>
    %267 = vector.shape_cast %263 : vector<8x128xf32> to vector<1x8x128xf32>
    tpu.vector_store %arg9[%264, %c0_97, %c0_98], %267 {strides = array<i32>} : memref<8x8x128xf32, #tpu.memory_space<vmem>>, vector<1x8x128xf32>,
    %c5_i32 = arith.constant 5 : i32
    %c8_i32_99 = arith.constant 8 : i32
    %268 = arith.muli %arg0, %c8_i32_99 : i32
    %269 = arith.addi %268, %c5_i32 : i32
    %c0_100 = arith.constant 0 : index
    %c0_101 = arith.constant 0 : index
    %270 = vector.load %arg10[%c0_100, %c0_101] : memref<8x128xf32, #tpu.memory_space<vmem>>, vector<8x128xf32>
    %c0_102 = arith.constant 0 : index
    %c0_103 = arith.constant 0 : index
    %271 = vector.load %arg11[%c0_102, %c0_103] : memref<8x128xf32, #tpu.memory_space<vmem>>, vector<8x128xf32>
    %272 = arith.index_cast %c5_i32 : i32 to index
    %c0_104 = arith.constant 0 : index
    %c0_105 = arith.constant 0 : index
    %273 = vector.load %arg1[%272, %c0_104, %c0_105] : memref<8x8x512xf32, #tpu.memory_space<vmem>>, vector<1x8x512xf32>
    %274 = vector.shape_cast %273 : vector<1x8x512xf32> to vector<8x512xf32>
    %275 = arith.addf %274, %5 : vector<8x512xf32>
    %cst_106 = arith.constant dense<0.000000e+00> : vector<8x512xf32>
    %276 = tpu.matmul %270, %4, %cst_106 {dimension_numbers = #tpu.dot_dimension_numbers<[1], [0], [0], [1], [0, 0, 1, 1], [], []>} : vector<8x128xf32>, vector<128x512xf32>, vector<8x512xf32> -> vector<8x512xf32>
    %277 = arith.addf %275, %276 : vector<8x512xf32>
    %278 = vector.extract_strided_slice %277 {offsets = [0, 0], sizes = [8, 128], strides = [1, 1]} : vector<8x512xf32> to vector<8x128xf32>
    %279 = arith.negf %278 : vector<8x128xf32>
    %280 = math.exp %279 : vector<8x128xf32>
    %cst_107 = arith.constant 1.000000e+00 : f32
    %281 = vector.broadcast %cst_107 : f32 to vector<8x128xf32>
    %282 = arith.addf %281, %280 : vector<8x128xf32>
    %283 = arith.divf %281, %282 : vector<8x128xf32>
    %284 = vector.extract_strided_slice %277 {offsets = [0, 128], sizes = [8, 128], strides = [1, 1]} : vector<8x512xf32> to vector<8x128xf32>
    %285 = arith.negf %284 : vector<8x128xf32>
    %286 = math.exp %285 : vector<8x128xf32>
    %cst_108 = arith.constant 1.000000e+00 : f32
    %287 = vector.broadcast %cst_108 : f32 to vector<8x128xf32>
    %288 = arith.addf %287, %286 : vector<8x128xf32>
    %289 = arith.divf %287, %288 : vector<8x128xf32>
    %290 = vector.extract_strided_slice %277 {offsets = [0, 256], sizes = [8, 128], strides = [1, 1]} : vector<8x512xf32> to vector<8x128xf32>
    %291 = math.tanh %290 : vector<8x128xf32>
    %292 = vector.extract_strided_slice %277 {offsets = [0, 384], sizes = [8, 128], strides = [1, 1]} : vector<8x512xf32> to vector<8x128xf32>
    %293 = arith.negf %292 : vector<8x128xf32>
    %294 = math.exp %293 : vector<8x128xf32>
    %cst_109 = arith.constant 1.000000e+00 : f32
    %295 = vector.broadcast %cst_109 : f32 to vector<8x128xf32>
    %296 = arith.addf %295, %294 : vector<8x128xf32>
    %297 = arith.divf %295, %296 : vector<8x128xf32>
    %298 = arith.mulf %289, %271 : vector<8x128xf32>
    %299 = arith.mulf %283, %291 : vector<8x128xf32>
    %300 = arith.addf %298, %299 : vector<8x128xf32>
    %301 = math.tanh %300 : vector<8x128xf32>
    %302 = arith.mulf %297, %301 : vector<8x128xf32>
    %303 = vector.broadcast %269 : i32 to vector<8x1xi32>
    %304 = arith.cmpi slt, %303, %3 : vector<8x1xi32>
    %305 = vector.shape_cast %304 : vector<8x1xi1> to vector<8x1xi1>
    %306 = vector.broadcast %305 : vector<8x1xi1> to vector<8x128xi1>
    %307 = arith.select %306, %302, %270 : vector<8x128xi1>, vector<8x128xf32>
    %308 = vector.shape_cast %304 : vector<8x1xi1> to vector<8x1xi1>
    %309 = vector.broadcast %308 : vector<8x1xi1> to vector<8x128xi1>
    %310 = arith.select %309, %300, %271 : vector<8x128xi1>, vector<8x128xf32>
    %c0_110 = arith.constant 0 : index
    %c0_111 = arith.constant 0 : index
    %311 = vector.load %arg10[%c0_110, %c0_111] : memref<8x128xf32, #tpu.memory_space<vmem>>, vector<8x128xf32>
    tpu.vector_store %arg10[%c0_110, %c0_111], %307 {strides = array<i32>} : memref<8x128xf32, #tpu.memory_space<vmem>>, vector<8x128xf32>,
    %c0_112 = arith.constant 0 : index
    %c0_113 = arith.constant 0 : index
    %312 = vector.load %arg11[%c0_112, %c0_113] : memref<8x128xf32, #tpu.memory_space<vmem>>, vector<8x128xf32>
    tpu.vector_store %arg11[%c0_112, %c0_113], %310 {strides = array<i32>} : memref<8x128xf32, #tpu.memory_space<vmem>>, vector<8x128xf32>,
    %cst_114 = arith.constant dense<0.000000e+00> : vector<8x128xf32>
    %313 = tpu.matmul %307, %6, %cst_114 {dimension_numbers = #tpu.dot_dimension_numbers<[1], [0], [0], [1], [0, 0, 1, 1], [], []>} : vector<8x128xf32>, vector<128x128xf32>, vector<8x128xf32> -> vector<8x128xf32>
    %314 = vector.broadcast %7 : vector<1x128xf32> to vector<8x128xf32>
    %315 = arith.addf %313, %314 : vector<8x128xf32>
    %316 = arith.index_cast %c5_i32 : i32 to index
    %c0_115 = arith.constant 0 : index
    %c0_116 = arith.constant 0 : index
    %317 = vector.load %arg9[%316, %c0_115, %c0_116] : memref<8x8x128xf32, #tpu.memory_space<vmem>>, vector<1x8x128xf32>
    %318 = vector.shape_cast %317 : vector<1x8x128xf32> to vector<8x128xf32>
    %319 = vector.shape_cast %315 : vector<8x128xf32> to vector<1x8x128xf32>
    tpu.vector_store %arg9[%316, %c0_115, %c0_116], %319 {strides = array<i32>} : memref<8x8x128xf32, #tpu.memory_space<vmem>>, vector<1x8x128xf32>,
    %c6_i32 = arith.constant 6 : i32
    %c8_i32_117 = arith.constant 8 : i32
    %320 = arith.muli %arg0, %c8_i32_117 : i32
    %321 = arith.addi %320, %c6_i32 : i32
    %c0_118 = arith.constant 0 : index
    %c0_119 = arith.constant 0 : index
    %322 = vector.load %arg10[%c0_118, %c0_119] : memref<8x128xf32, #tpu.memory_space<vmem>>, vector<8x128xf32>
    %c0_120 = arith.constant 0 : index
    %c0_121 = arith.constant 0 : index
    %323 = vector.load %arg11[%c0_120, %c0_121] : memref<8x128xf32, #tpu.memory_space<vmem>>, vector<8x128xf32>
    %324 = arith.index_cast %c6_i32 : i32 to index
    %c0_122 = arith.constant 0 : index
    %c0_123 = arith.constant 0 : index
    %325 = vector.load %arg1[%324, %c0_122, %c0_123] : memref<8x8x512xf32, #tpu.memory_space<vmem>>, vector<1x8x512xf32>
    %326 = vector.shape_cast %325 : vector<1x8x512xf32> to vector<8x512xf32>
    %327 = arith.addf %326, %5 : vector<8x512xf32>
    %cst_124 = arith.constant dense<0.000000e+00> : vector<8x512xf32>
    %328 = tpu.matmul %322, %4, %cst_124 {dimension_numbers = #tpu.dot_dimension_numbers<[1], [0], [0], [1], [0, 0, 1, 1], [], []>} : vector<8x128xf32>, vector<128x512xf32>, vector<8x512xf32> -> vector<8x512xf32>
    %329 = arith.addf %327, %328 : vector<8x512xf32>
    %330 = vector.extract_strided_slice %329 {offsets = [0, 0], sizes = [8, 128], strides = [1, 1]} : vector<8x512xf32> to vector<8x128xf32>
    %331 = arith.negf %330 : vector<8x128xf32>
    %332 = math.exp %331 : vector<8x128xf32>
    %cst_125 = arith.constant 1.000000e+00 : f32
    %333 = vector.broadcast %cst_125 : f32 to vector<8x128xf32>
    %334 = arith.addf %333, %332 : vector<8x128xf32>
    %335 = arith.divf %333, %334 : vector<8x128xf32>
    %336 = vector.extract_strided_slice %329 {offsets = [0, 128], sizes = [8, 128], strides = [1, 1]} : vector<8x512xf32> to vector<8x128xf32>
    %337 = arith.negf %336 : vector<8x128xf32>
    %338 = math.exp %337 : vector<8x128xf32>
    %cst_126 = arith.constant 1.000000e+00 : f32
    %339 = vector.broadcast %cst_126 : f32 to vector<8x128xf32>
    %340 = arith.addf %339, %338 : vector<8x128xf32>
    %341 = arith.divf %339, %340 : vector<8x128xf32>
    %342 = vector.extract_strided_slice %329 {offsets = [0, 256], sizes = [8, 128], strides = [1, 1]} : vector<8x512xf32> to vector<8x128xf32>
    %343 = math.tanh %342 : vector<8x128xf32>
    %344 = vector.extract_strided_slice %329 {offsets = [0, 384], sizes = [8, 128], strides = [1, 1]} : vector<8x512xf32> to vector<8x128xf32>
    %345 = arith.negf %344 : vector<8x128xf32>
    %346 = math.exp %345 : vector<8x128xf32>
    %cst_127 = arith.constant 1.000000e+00 : f32
    %347 = vector.broadcast %cst_127 : f32 to vector<8x128xf32>
    %348 = arith.addf %347, %346 : vector<8x128xf32>
    %349 = arith.divf %347, %348 : vector<8x128xf32>
    %350 = arith.mulf %341, %323 : vector<8x128xf32>
    %351 = arith.mulf %335, %343 : vector<8x128xf32>
    %352 = arith.addf %350, %351 : vector<8x128xf32>
    %353 = math.tanh %352 : vector<8x128xf32>
    %354 = arith.mulf %349, %353 : vector<8x128xf32>
    %355 = vector.broadcast %321 : i32 to vector<8x1xi32>
    %356 = arith.cmpi slt, %355, %3 : vector<8x1xi32>
    %357 = vector.shape_cast %356 : vector<8x1xi1> to vector<8x1xi1>
    %358 = vector.broadcast %357 : vector<8x1xi1> to vector<8x128xi1>
    %359 = arith.select %358, %354, %322 : vector<8x128xi1>, vector<8x128xf32>
    %360 = vector.shape_cast %356 : vector<8x1xi1> to vector<8x1xi1>
    %361 = vector.broadcast %360 : vector<8x1xi1> to vector<8x128xi1>
    %362 = arith.select %361, %352, %323 : vector<8x128xi1>, vector<8x128xf32>
    %c0_128 = arith.constant 0 : index
    %c0_129 = arith.constant 0 : index
    %363 = vector.load %arg10[%c0_128, %c0_129] : memref<8x128xf32, #tpu.memory_space<vmem>>, vector<8x128xf32>
    tpu.vector_store %arg10[%c0_128, %c0_129], %359 {strides = array<i32>} : memref<8x128xf32, #tpu.memory_space<vmem>>, vector<8x128xf32>,
    %c0_130 = arith.constant 0 : index
    %c0_131 = arith.constant 0 : index
    %364 = vector.load %arg11[%c0_130, %c0_131] : memref<8x128xf32, #tpu.memory_space<vmem>>, vector<8x128xf32>
    tpu.vector_store %arg11[%c0_130, %c0_131], %362 {strides = array<i32>} : memref<8x128xf32, #tpu.memory_space<vmem>>, vector<8x128xf32>,
    %cst_132 = arith.constant dense<0.000000e+00> : vector<8x128xf32>
    %365 = tpu.matmul %359, %6, %cst_132 {dimension_numbers = #tpu.dot_dimension_numbers<[1], [0], [0], [1], [0, 0, 1, 1], [], []>} : vector<8x128xf32>, vector<128x128xf32>, vector<8x128xf32> -> vector<8x128xf32>
    %366 = vector.broadcast %7 : vector<1x128xf32> to vector<8x128xf32>
    %367 = arith.addf %365, %366 : vector<8x128xf32>
    %368 = arith.index_cast %c6_i32 : i32 to index
    %c0_133 = arith.constant 0 : index
    %c0_134 = arith.constant 0 : index
    %369 = vector.load %arg9[%368, %c0_133, %c0_134] : memref<8x8x128xf32, #tpu.memory_space<vmem>>, vector<1x8x128xf32>
    %370 = vector.shape_cast %369 : vector<1x8x128xf32> to vector<8x128xf32>
    %371 = vector.shape_cast %367 : vector<8x128xf32> to vector<1x8x128xf32>
    tpu.vector_store %arg9[%368, %c0_133, %c0_134], %371 {strides = array<i32>} : memref<8x8x128xf32, #tpu.memory_space<vmem>>, vector<1x8x128xf32>,
    %c7_i32 = arith.constant 7 : i32
    %c8_i32_135 = arith.constant 8 : i32
    %372 = arith.muli %arg0, %c8_i32_135 : i32
    %373 = arith.addi %372, %c7_i32 : i32
    %c0_136 = arith.constant 0 : index
    %c0_137 = arith.constant 0 : index
    %374 = vector.load %arg10[%c0_136, %c0_137] : memref<8x128xf32, #tpu.memory_space<vmem>>, vector<8x128xf32>
    %c0_138 = arith.constant 0 : index
    %c0_139 = arith.constant 0 : index
    %375 = vector.load %arg11[%c0_138, %c0_139] : memref<8x128xf32, #tpu.memory_space<vmem>>, vector<8x128xf32>
    %376 = arith.index_cast %c7_i32 : i32 to index
    %c0_140 = arith.constant 0 : index
    %c0_141 = arith.constant 0 : index
    %377 = vector.load %arg1[%376, %c0_140, %c0_141] : memref<8x8x512xf32, #tpu.memory_space<vmem>>, vector<1x8x512xf32>
    %378 = vector.shape_cast %377 : vector<1x8x512xf32> to vector<8x512xf32>
    %379 = arith.addf %378, %5 : vector<8x512xf32>
    %cst_142 = arith.constant dense<0.000000e+00> : vector<8x512xf32>
    %380 = tpu.matmul %374, %4, %cst_142 {dimension_numbers = #tpu.dot_dimension_numbers<[1], [0], [0], [1], [0, 0, 1, 1], [], []>} : vector<8x128xf32>, vector<128x512xf32>, vector<8x512xf32> -> vector<8x512xf32>
    %381 = arith.addf %379, %380 : vector<8x512xf32>
    %382 = vector.extract_strided_slice %381 {offsets = [0, 0], sizes = [8, 128], strides = [1, 1]} : vector<8x512xf32> to vector<8x128xf32>
    %383 = arith.negf %382 : vector<8x128xf32>
    %384 = math.exp %383 : vector<8x128xf32>
    %cst_143 = arith.constant 1.000000e+00 : f32
    %385 = vector.broadcast %cst_143 : f32 to vector<8x128xf32>
    %386 = arith.addf %385, %384 : vector<8x128xf32>
    %387 = arith.divf %385, %386 : vector<8x128xf32>
    %388 = vector.extract_strided_slice %381 {offsets = [0, 128], sizes = [8, 128], strides = [1, 1]} : vector<8x512xf32> to vector<8x128xf32>
    %389 = arith.negf %388 : vector<8x128xf32>
    %390 = math.exp %389 : vector<8x128xf32>
    %cst_144 = arith.constant 1.000000e+00 : f32
    %391 = vector.broadcast %cst_144 : f32 to vector<8x128xf32>
    %392 = arith.addf %391, %390 : vector<8x128xf32>
    %393 = arith.divf %391, %392 : vector<8x128xf32>
    %394 = vector.extract_strided_slice %381 {offsets = [0, 256], sizes = [8, 128], strides = [1, 1]} : vector<8x512xf32> to vector<8x128xf32>
    %395 = math.tanh %394 : vector<8x128xf32>
    %396 = vector.extract_strided_slice %381 {offsets = [0, 384], sizes = [8, 128], strides = [1, 1]} : vector<8x512xf32> to vector<8x128xf32>
    %397 = arith.negf %396 : vector<8x128xf32>
    %398 = math.exp %397 : vector<8x128xf32>
    %cst_145 = arith.constant 1.000000e+00 : f32
    %399 = vector.broadcast %cst_145 : f32 to vector<8x128xf32>
    %400 = arith.addf %399, %398 : vector<8x128xf32>
    %401 = arith.divf %399, %400 : vector<8x128xf32>
    %402 = arith.mulf %393, %375 : vector<8x128xf32>
    %403 = arith.mulf %387, %395 : vector<8x128xf32>
    %404 = arith.addf %402, %403 : vector<8x128xf32>
    %405 = math.tanh %404 : vector<8x128xf32>
    %406 = arith.mulf %401, %405 : vector<8x128xf32>
    %407 = vector.broadcast %373 : i32 to vector<8x1xi32>
    %408 = arith.cmpi slt, %407, %3 : vector<8x1xi32>
    %409 = vector.shape_cast %408 : vector<8x1xi1> to vector<8x1xi1>
    %410 = vector.broadcast %409 : vector<8x1xi1> to vector<8x128xi1>
    %411 = arith.select %410, %406, %374 : vector<8x128xi1>, vector<8x128xf32>
    %412 = vector.shape_cast %408 : vector<8x1xi1> to vector<8x1xi1>
    %413 = vector.broadcast %412 : vector<8x1xi1> to vector<8x128xi1>
    %414 = arith.select %413, %404, %375 : vector<8x128xi1>, vector<8x128xf32>
    %c0_146 = arith.constant 0 : index
    %c0_147 = arith.constant 0 : index
    %415 = vector.load %arg10[%c0_146, %c0_147] : memref<8x128xf32, #tpu.memory_space<vmem>>, vector<8x128xf32>
    tpu.vector_store %arg10[%c0_146, %c0_147], %411 {strides = array<i32>} : memref<8x128xf32, #tpu.memory_space<vmem>>, vector<8x128xf32>,
    %c0_148 = arith.constant 0 : index
    %c0_149 = arith.constant 0 : index
    %416 = vector.load %arg11[%c0_148, %c0_149] : memref<8x128xf32, #tpu.memory_space<vmem>>, vector<8x128xf32>
    tpu.vector_store %arg11[%c0_148, %c0_149], %414 {strides = array<i32>} : memref<8x128xf32, #tpu.memory_space<vmem>>, vector<8x128xf32>,
    %cst_150 = arith.constant dense<0.000000e+00> : vector<8x128xf32>
    %417 = tpu.matmul %411, %6, %cst_150 {dimension_numbers = #tpu.dot_dimension_numbers<[1], [0], [0], [1], [0, 0, 1, 1], [], []>} : vector<8x128xf32>, vector<128x128xf32>, vector<8x128xf32> -> vector<8x128xf32>
    %418 = vector.broadcast %7 : vector<1x128xf32> to vector<8x128xf32>
    %419 = arith.addf %417, %418 : vector<8x128xf32>
    %420 = arith.index_cast %c7_i32 : i32 to index
    %c0_151 = arith.constant 0 : index
    %c0_152 = arith.constant 0 : index
    %421 = vector.load %arg9[%420, %c0_151, %c0_152] : memref<8x8x128xf32, #tpu.memory_space<vmem>>, vector<1x8x128xf32>
    %422 = vector.shape_cast %421 : vector<1x8x128xf32> to vector<8x128xf32>
    %423 = vector.shape_cast %419 : vector<8x128xf32> to vector<1x8x128xf32>
    tpu.vector_store %arg9[%420, %c0_151, %c0_152], %423 {strides = array<i32>} : memref<8x8x128xf32, #tpu.memory_space<vmem>>, vector<1x8x128xf32>,
    %c8_i32_153 = arith.constant 8 : i32
    return
  }
  func.func @transform_0(%arg0: i32) -> (i32, i32, i32) {
    %c0_i32 = arith.constant 0 : i32
    %c0_i32_0 = arith.constant 0 : i32
    %c0_i32_1 = arith.constant 0 : i32
    return %arg0, %c0_i32, %c0_i32_0 : i32, i32, i32
  }
  func.func @transform_1(%arg0: i32) -> (i32, i32) {
    %c0_i32 = arith.constant 0 : i32
    %c0_i32_0 = arith.constant 0 : i32
    %c0_i32_1 = arith.constant 0 : i32
    return %c0_i32, %c0_i32_0 : i32, i32
  }
  func.func @transform_2(%arg0: i32) -> (i32, i32) {
    %c0_i32 = arith.constant 0 : i32
    %c0_i32_0 = arith.constant 0 : i32
    %c0_i32_1 = arith.constant 0 : i32
    return %c0_i32, %c0_i32_0 : i32, i32
  }
  func.func @transform_3(%arg0: i32) -> (i32, i32) {
    %c0_i32 = arith.constant 0 : i32
    %c0_i32_0 = arith.constant 0 : i32
    %c0_i32_1 = arith.constant 0 : i32
    return %c0_i32, %c0_i32_0 : i32, i32
  }
  func.func @transform_4(%arg0: i32) -> (i32, i32) {
    %c0_i32 = arith.constant 0 : i32
    %c0_i32_0 = arith.constant 0 : i32
    %c0_i32_1 = arith.constant 0 : i32
    return %c0_i32, %c0_i32_0 : i32, i32
  }
  func.func @transform_5(%arg0: i32) -> (i32, i32) {
    %c0_i32 = arith.constant 0 : i32
    %c0_i32_0 = arith.constant 0 : i32
    %c0_i32_1 = arith.constant 0 : i32
    return %c0_i32, %c0_i32_0 : i32, i32
  }
  func.func @transform_6(%arg0: i32) -> (i32, i32) {
    %c0_i32 = arith.constant 0 : i32
    %c0_i32_0 = arith.constant 0 : i32
    %c0_i32_1 = arith.constant 0 : i32
    return %c0_i32, %c0_i32_0 : i32, i32
  }
  func.func @transform_7(%arg0: i32) -> (i32, i32) {
    %c0_i32 = arith.constant 0 : i32
    %c0_i32_0 = arith.constant 0 : i32
    %c0_i32_1 = arith.constant 0 : i32
    return %c0_i32, %c0_i32_0 : i32, i32
  }
  func.func @transform_8(%arg0: i32) -> (i32, i32, i32) {
    %c0_i32 = arith.constant 0 : i32
    %c0_i32_0 = arith.constant 0 : i32
    %c0_i32_1 = arith.constant 0 : i32
    return %arg0, %c0_i32, %c0_i32_0 : i32, i32, i32
  }
}

</mosaic_0001>

<llo_original>
// kernel: sketch_rnn_forward.7
$region0: #{sketch_rnn_forward.7}
  #allocation0 [shape = 'u32[]', space=smem, size = 0x4, offset = 0x4, fixed_abs, tag = 'smem constant byte address 0x4 - core index']
  #allocation1 [shape = 'u32[144,128]{1,0:T(1,128)}', space=vmem, size = 0x12000, scoped, tag = 'internal scratch']
  %s0 = inlined_call_operand.vmem [shape: f32[64,5], index: 0, kind: input, shape index: {}]
  %s1 = inlined_call_operand.vmem [shape: f32[5,512], index: 1, kind: input, shape index: {}]
  %s2 = inlined_call_operand.vmem [shape: f32[1,512], index: 2, kind: input, shape index: {}]
  %s3 = inlined_call_operand.vmem [shape: f32[64,512], index: 3, kind: output, shape index: {}]
  %s4 = sld [smem:[#allocation0]]
  $region22: #{sketch_rnn_forward.7} parent=0
    _
  %s6 = ssub.s32 1, %s4
  %s7 = scalar_select 0, %s6, %s4
  // Predicated region
  $region2: #{sketch_rnn_forward.7} parent=0 // pred_check
    _
  $region3: #{sketch_rnn_forward.7} parent=0 // pred_check_branch
    %9 = sbr.rel (0) target = $region5
  $region4: #{sketch_rnn_forward.7} parent=0 // pred_region
    _
  $region5: #{sketch_rnn_forward.7} parent=0 // pred_fallthru
    _
  // Predicated region
  $region6: #{sketch_rnn_forward.7} parent=0 // pred_check
    _
  $region7: #{sketch_rnn_forward.7} parent=0 // pred_check_branch
    %11 = sbr.rel (0) target = $region9
  $region8: #{sketch_rnn_forward.7} parent=0 // pred_region
    _
  $region9: #{sketch_rnn_forward.7} parent=0 // pred_fallthru
    _
  // Predicated region
  $region10: #{sketch_rnn_forward.7} parent=0 // pred_check
    _
  $region11: #{sketch_rnn_forward.7} parent=0 // pred_check_branch
    %13 = sbr.rel (0) target = $region13
  $region12: #{sketch_rnn_forward.7} parent=0 // pred_region
    _
  $region13: #{sketch_rnn_forward.7} parent=0 // pred_fallthru
    _
  %v14 = vld [vmem:[%s0] sm:$0xff]
  %v15 = vld [vmem:[%s0 + $0x8] sm:$0xff]
  %v16 = vld [vmem:[%s0 + $0x10] sm:$0xff]
  %v17 = vld [vmem:[%s0 + $0x18] sm:$0xff]
  %v18 = vld [vmem:[%s0 + $0x20] sm:$0xff]
  %v19 = vld [vmem:[%s0 + $0x28] sm:$0xff]
  %v20 = vld [vmem:[%s0 + $0x30] sm:$0xff]
  %v21 = vld [vmem:[%s0 + $0x38] sm:$0xff]
  %v22 = vld [vmem:[%s1] sm:$0x1f]
  %v23 = vld [vmem:[%s1 + $0x8] sm:$0x1f]
  %v24 = vld [vmem:[%s1 + $0x10] sm:$0x1f]
  %v25 = vld [vmem:[%s1 + $0x18] sm:$0x1f]
  %v26 = vld [vmem:[%s2] sm:$0xf]
  %v28 = vlaneseq
  %v29 = vshrl.u32 %v28, 7
  %v30 = vsub.s32 0, %v29
  %v31 = vrot.slane %v26, %v30
  %v32 = vlaneseq
  %v33 = vshrl.u32 %v32, 7
  %v34 = vsub.s32 1, %v33
  %v35 = vrot.slane %v26, %v34
  %v36 = vlaneseq
  %v37 = vshrl.u32 %v36, 7
  %v38 = vsub.s32 2, %v37
  %v39 = vrot.slane %v26, %v38
  %v40 = vlaneseq
  %v41 = vshrl.u32 %v40, 7
  %v42 = vsub.s32 3, %v41
  %v43 = vrot.slane %v26, %v42
  %vm48 = vcmask 39936
  %v50 = vsel %vm48, %v14, 0
  %v53 = vsel %vm48, %v15, 0
  %v56 = vsel %vm48, %v16, 0
  %v59 = vsel %vm48, %v17, 0
  %v62 = vsel %vm48, %v18, 0
  %v65 = vsel %vm48, %v19, 0
  %v68 = vsel %vm48, %v20, 0
  %v71 = vsel %vm48, %v21, 0
  %vm73 = vcmask 1044480
  %v75 = vsel %vm73, %v22, 0
  %v78 = vsel %vm73, %v23, 0
  %v81 = vsel %vm73, %v24, 0
  %v84 = vsel %vm73, %v25, 0
  %86 = vmatprep.subr.mxu0 0.0
  %87 = vmatpush1.msra.mxu0 0.0
  %88 = vmatprep.subr.mxu0 0.0
  %89 = vmatpush1.msra.mxu0 0.0
  %90 = vmatprep.subr.mxu0 0.0
  %91 = vmatpush1.msra.mxu0 0.0
  %92 = vmatprep.subr.mxu0 0.0
  %93 = vmatpush1.msra.mxu0 0.0
  %94 = vmatprep.subr.mxu0 0.0
  %95 = vmatpush1.msra.mxu0 0.0
  %96 = vmatprep.subr.mxu0 0.0
  %97 = vmatpush1.msra.mxu0 0.0
  %98 = vmatprep.subr.mxu0 0.0
  %99 = vmatpush1.msra.mxu0 0.0
  %100 = vmatprep.subr.mxu0 0.0
  %101 = vmatpush1.msra.mxu0 0.0
  %102 = vmatprep.subr.mxu0 0.0
  %103 = vmatpush1.msra.mxu0 0.0
  %104 = vmatprep.subr.mxu0 0.0
  %105 = vmatpush1.msra.mxu0 0.0
  %106 = vmatprep.subr.mxu0 0.0
  %107 = vmatpush1.msra.mxu0 0.0
  %108 = vmatprep.subr.mxu0 0.0
  %109 = vmatpush1.msra.mxu0 0.0
  %110 = vmatprep.subr.mxu0 0.0
  %111 = vmatpush1.msra.mxu0 0.0
  %112 = vmatprep.subr.mxu0 0.0
  %113 = vmatpush1.msra.mxu0 0.0
  %114 = vmatprep.subr.mxu0 0.0
  %115 = vmatpush1.msra.mxu0 0.0
  %116 = vmatprep.subr.mxu0 %v78
  %117 = vmatpush1.msra.mxu0 %v75
  %118 = vmatprep.subr.mxu0 0.0
  %119 = vmatpush2.msra.mxu0 0.0
  %120 = vmatprep.subr.mxu0 0.0
  %121 = vmatpush2.msra.mxu0 0.0
  %122 = vmatprep.subr.mxu0 0.0
  %123 = vmatpush2.msra.mxu0 0.0
  %124 = vmatprep.subr.mxu0 0.0
  %125 = vmatpush2.msra.mxu0 0.0
  %126 = vmatprep.subr.mxu0 0.0
  %127 = vmatpush2.msra.mxu0 0.0
  %128 = vmatprep.subr.mxu0 0.0
  %129 = vmatpush2.msra.mxu0 0.0
  %130 = vmatprep.subr.mxu0 0.0
  %131 = vmatpush2.msra.mxu0 0.0
  %132 = vmatprep.subr.mxu0 0.0
  %133 = vmatpush2.msra.mxu0 0.0
  %134 = vmatprep.subr.mxu0 0.0
  %135 = vmatpush2.msra.mxu0 0.0
  %136 = vmatprep.subr.mxu0 0.0
  %137 = vmatpush2.msra.mxu0 0.0
  %138 = vmatprep.subr.mxu0 0.0
  %139 = vmatpush2.msra.mxu0 0.0
  %140 = vmatprep.subr.mxu0 0.0
  %141 = vmatpush2.msra.mxu0 0.0
  %142 = vmatprep.subr.mxu0 0.0
  %143 = vmatpush2.msra.mxu0 0.0
  %144 = vmatprep.subr.mxu0 0.0
  %145 = vmatpush2.msra.mxu0 0.0
  %146 = vmatprep.subr.mxu0 0.0
  %147 = vmatpush2.msra.mxu0 0.0
  %148 = vmatprep.subr.mxu0 0.0
  %149 = vmatpush2.msra.mxu0 0.0
  %150 = vmatprep.mubr.f32.mxu0 0.0
  %151 = vmatmul.mubr.f32.gmra.mxu0 %v50
  %v152 = vpop.f32.mrf.mxu0
  %v153 = vadd.f32 %v31, %v152
  %v154 = vpop.f32.mrf.mxu0
  %v155 = vadd.f32 %v35, %v154
  %156 = vmatprep.mubr.f32.mxu0 0.0
  %157 = vmatmul.mubr.f32.gmra.mxu0 %v53
  %v158 = vpop.f32.mrf.mxu0
  %v159 = vadd.f32 %v31, %v158
  %v160 = vpop.f32.mrf.mxu0
  %v161 = vadd.f32 %v35, %v160
  %162 = vmatprep.mubr.f32.mxu0 0.0
  %163 = vmatmul.mubr.f32.gmra.mxu0 %v56
  %v164 = vpop.f32.mrf.mxu0
  %v165 = vadd.f32 %v31, %v164
  %v166 = vpop.f32.mrf.mxu0
  %v167 = vadd.f32 %v35, %v166
  %168 = vmatprep.mubr.f32.mxu0 0.0
  %169 = vmatmul.mubr.f32.gmra.mxu0 %v59
  %v170 = vpop.f32.mrf.mxu0
  %v171 = vadd.f32 %v31, %v170
  %v172 = vpop.f32.mrf.mxu0
  %v173 = vadd.f32 %v35, %v172
  %174 = vmatprep.mubr.f32.mxu0 0.0
  %175 = vmatmul.mubr.f32.gmra.mxu0 %v62
  %v176 = vpop.f32.mrf.mxu0
  %v177 = vadd.f32 %v31, %v176
  %v178 = vpop.f32.mrf.mxu0
  %v179 = vadd.f32 %v35, %v178
  %180 = vmatprep.mubr.f32.mxu0 0.0
  %181 = vmatmul.mubr.f32.gmra.mxu0 %v65
  %v182 = vpop.f32.mrf.mxu0
  %v183 = vadd.f32 %v31, %v182
  %v184 = vpop.f32.mrf.mxu0
  %v185 = vadd.f32 %v35, %v184
  %186 = vmatprep.mubr.f32.mxu0 0.0
  %187 = vmatmul.mubr.f32.gmra.mxu0 %v68
  %v188 = vpop.f32.mrf.mxu0
  %v189 = vadd.f32 %v31, %v188
  %v190 = vpop.f32.mrf.mxu0
  %v191 = vadd.f32 %v35, %v190
  %192 = vmatprep.mubr.f32.mxu0 0.0
  %193 = vmatmul.mubr.f32.gmra.mxu0 %v71
  %v194 = vpop.f32.mrf.mxu0
  %v195 = vadd.f32 %v31, %v194
  %v196 = vpop.f32.mrf.mxu0
  %v197 = vadd.f32 %v35, %v196
  %198 = vdwg.mxu0
  %199 = vmatprep.subr.mxu0 0.0
  %200 = vmatpush1.msra.mxu0 0.0
  %201 = vmatprep.subr.mxu0 0.0
  %202 = vmatpush1.msra.mxu0 0.0
  %203 = vmatprep.subr.mxu0 0.0
  %204 = vmatpush1.msra.mxu0 0.0
  %205 = vmatprep.subr.mxu0 0.0
  %206 = vmatpush1.msra.mxu0 0.0
  %207 = vmatprep.subr.mxu0 0.0
  %208 = vmatpush1.msra.mxu0 0.0
  %209 = vmatprep.subr.mxu0 0.0
  %210 = vmatpush1.msra.mxu0 0.0
  %211 = vmatprep.subr.mxu0 0.0
  %212 = vmatpush1.msra.mxu0 0.0
  %213 = vmatprep.subr.mxu0 0.0
  %214 = vmatpush1.msra.mxu0 0.0
  %215 = vmatprep.subr.mxu0 0.0
  %216 = vmatpush1.msra.mxu0 0.0
  %217 = vmatprep.subr.mxu0 0.0
  %218 = vmatpush1.msra.mxu0 0.0
  %219 = vmatprep.subr.mxu0 0.0
  %220 = vmatpush1.msra.mxu0 0.0
  %221 = vmatprep.subr.mxu0 0.0
  %222 = vmatpush1.msra.mxu0 0.0
  %223 = vmatprep.subr.mxu0 0.0
  %224 = vmatpush1.msra.mxu0 0.0
  %225 = vmatprep.subr.mxu0 0.0
  %226 = vmatpush1.msra.mxu0 0.0
  %227 = vmatprep.subr.mxu0 0.0
  %228 = vmatpush1.msra.mxu0 0.0
  %229 = vmatprep.subr.mxu0 %v84
  %230 = vmatpush1.msra.mxu0 %v81
  %231 = vmatprep.subr.mxu0 0.0
  %232 = vmatpush2.msra.mxu0 0.0
  %233 = vmatprep.subr.mxu0 0.0
  %234 = vmatpush2.msra.mxu0 0.0
  %235 = vmatprep.subr.mxu0 0.0
  %236 = vmatpush2.msra.mxu0 0.0
  %237 = vmatprep.subr.mxu0 0.0
  %238 = vmatpush2.msra.mxu0 0.0
  %239 = vmatprep.subr.mxu0 0.0
  %240 = vmatpush2.msra.mxu0 0.0
  %241 = vmatprep.subr.mxu0 0.0
  %242 = vmatpush2.msra.mxu0 0.0
  %243 = vmatprep.subr.mxu0 0.0
  %244 = vmatpush2.msra.mxu0 0.0
  %245 = vmatprep.subr.mxu0 0.0
  %246 = vmatpush2.msra.mxu0 0.0
  %247 = vmatprep.subr.mxu0 0.0
  %248 = vmatpush2.msra.mxu0 0.0
  %249 = vmatprep.subr.mxu0 0.0
  %250 = vmatpush2.msra.mxu0 0.0
  %251 = vmatprep.subr.mxu0 0.0
  %252 = vmatpush2.msra.mxu0 0.0
  %253 = vmatprep.subr.mxu0 0.0
  %254 = vmatpush2.msra.mxu0 0.0
  %255 = vmatprep.subr.mxu0 0.0
  %256 = vmatpush2.msra.mxu0 0.0
  %257 = vmatprep.subr.mxu0 0.0
  %258 = vmatpush2.msra.mxu0 0.0
  %259 = vmatprep.subr.mxu0 0.0
  %260 = vmatpush2.msra.mxu0 0.0
  %261 = vmatprep.subr.mxu0 0.0
  %262 = vmatpush2.msra.mxu0 0.0
  %263 = vmatprep.mubr.f32.mxu0 0.0
  %264 = vmatmul.mubr.f32.gmra.mxu0 %v50
  %v265 = vpop.f32.mrf.mxu0
  %v266 = vadd.f32 %v39, %v265
  %v267 = vpop.f32.mrf.mxu0
  %v268 = vadd.f32 %v43, %v267
  %269 = vmatprep.mubr.f32.mxu0 0.0
  %270 = vmatmul.mubr.f32.gmra.mxu0 %v53
  %v271 = vpop.f32.mrf.mxu0
  %v272 = vadd.f32 %v39, %v271
  %v273 = vpop.f32.mrf.mxu0
  %v274 = vadd.f32 %v43, %v273
  %275 = vmatprep.mubr.f32.mxu0 0.0
  %276 = vmatmul.mubr.f32.gmra.mxu0 %v56
  %v277 = vpop.f32.mrf.mxu0
  %v278 = vadd.f32 %v39, %v277
  %v279 = vpop.f32.mrf.mxu0
  %v280 = vadd.f32 %v43, %v279
  %281 = vmatprep.mubr.f32.mxu0 0.0
  %282 = vmatmul.mubr.f32.gmra.mxu0 %v59
  %v283 = vpop.f32.mrf.mxu0
  %v284 = vadd.f32 %v39, %v283
  %v285 = vpop.f32.mrf.mxu0
  %v286 = vadd.f32 %v43, %v285
  %287 = vmatprep.mubr.f32.mxu0 0.0
  %288 = vmatmul.mubr.f32.gmra.mxu0 %v62
  %v289 = vpop.f32.mrf.mxu0
  %v290 = vadd.f32 %v39, %v289
  %v291 = vpop.f32.mrf.mxu0
  %v292 = vadd.f32 %v43, %v291
  %293 = vmatprep.mubr.f32.mxu0 0.0
  %294 = vmatmul.mubr.f32.gmra.mxu0 %v65
  %v295 = vpop.f32.mrf.mxu0
  %v296 = vadd.f32 %v39, %v295
  %v297 = vpop.f32.mrf.mxu0
  %v298 = vadd.f32 %v43, %v297
  %299 = vmatprep.mubr.f32.mxu0 0.0
  %300 = vmatmul.mubr.f32.gmra.mxu0 %v68
  %v301 = vpop.f32.mrf.mxu0
  %v302 = vadd.f32 %v39, %v301
  %v303 = vpop.f32.mrf.mxu0
  %v304 = vadd.f32 %v43, %v303
  %305 = vmatprep.mubr.f32.mxu0 0.0
  %306 = vmatmul.mubr.f32.gmra.mxu0 %v71
  %v307 = vpop.f32.mrf.mxu0
  %v308 = vadd.f32 %v39, %v307
  %v309 = vpop.f32.mrf.mxu0
  %v310 = vadd.f32 %v43, %v309
  %311 = vdwg.mxu0
  %312 = vst [vmem:[%s3] sm:$0xff] %v153
  %313 = vst [vmem:[%s3 + $0x8] sm:$0xff] %v155
  %314 = vst [vmem:[%s3 + $0x10] sm:$0xff] %v266
  %315 = vst [vmem:[%s3 + $0x18] sm:$0xff] %v268
  %316 = vst [vmem:[%s3 + $0x20] sm:$0xff] %v159
  %317 = vst [vmem:[%s3 + $0x28] sm:$0xff] %v161
  %318 = vst [vmem:[%s3 + $0x30] sm:$0xff] %v272
  %319 = vst [vmem:[%s3 + $0x38] sm:$0xff] %v274
  %320 = vst [vmem:[%s3 + $0x40] sm:$0xff] %v165
  %321 = vst [vmem:[%s3 + $0x48] sm:$0xff] %v167
  %322 = vst [vmem:[%s3 + $0x50] sm:$0xff] %v278
  %323 = vst [vmem:[%s3 + $0x58] sm:$0xff] %v280
  %324 = vst [vmem:[%s3 + $0x60] sm:$0xff] %v171
  %325 = vst [vmem:[%s3 + $0x68] sm:$0xff] %v173
  %326 = vst [vmem:[%s3 + $0x70] sm:$0xff] %v284
  %327 = vst [vmem:[%s3 + $0x78] sm:$0xff] %v286
  %328 = vst [vmem:[%s3 + $0x80] sm:$0xff] %v177
  %329 = vst [vmem:[%s3 + $0x88] sm:$0xff] %v179
  %330 = vst [vmem:[%s3 + $0x90] sm:$0xff] %v290
  %331 = vst [vmem:[%s3 + $0x98] sm:$0xff] %v292
  %332 = vst [vmem:[%s3 + $0xa0] sm:$0xff] %v183
  %333 = vst [vmem:[%s3 + $0xa8] sm:$0xff] %v185
  %334 = vst [vmem:[%s3 + $0xb0] sm:$0xff] %v296
  %335 = vst [vmem:[%s3 + $0xb8] sm:$0xff] %v298
  %336 = vst [vmem:[%s3 + $0xc0] sm:$0xff] %v189
  %337 = vst [vmem:[%s3 + $0xc8] sm:$0xff] %v191
  %338 = vst [vmem:[%s3 + $0xd0] sm:$0xff] %v302
  %339 = vst [vmem:[%s3 + $0xd8] sm:$0xff] %v304
  %340 = vst [vmem:[%s3 + $0xe0] sm:$0xff] %v195
  %341 = vst [vmem:[%s3 + $0xe8] sm:$0xff] %v197
  %342 = vst [vmem:[%s3 + $0xf0] sm:$0xff] %v308
  %343 = vst [vmem:[%s3 + $0xf8] sm:$0xff] %v310
  // Predicated region
  $region14: #{sketch_rnn_forward.7} parent=0 // pred_check
    _
  $region15: #{sketch_rnn_forward.7} parent=0 // pred_check_branch
    %345 = sbr.rel (0) target = $region17
  $region16: #{sketch_rnn_forward.7} parent=0 // pred_region
    _
  $region17: #{sketch_rnn_forward.7} parent=0 // pred_fallthru
    _
  // Predicated region
  $region18: #{sketch_rnn_forward.7} parent=0 // pred_check
    _
  $region19: #{sketch_rnn_forward.7} parent=0 // pred_check_branch
    %347 = sbr.rel (0) target = $region21
  $region20: #{sketch_rnn_forward.7} parent=0 // pred_region
    _
  $region21: #{sketch_rnn_forward.7} parent=0 // pred_fallthru
    _

// kernel: sketch_rnn_forward.9
$region0: #{sketch_rnn_forward.9}
  #allocation0 [shape = 'u32[]', space=smem, size = 0x4, offset = 0x4, fixed_abs, tag = 'smem constant byte address 0x4 - core index']
  #allocation1 [shape = 'u32[144,128]{1,0:T(1,128)}', space=vmem, size = 0x12000, scoped, tag = 'internal scratch']
  %s0 = inlined_call_operand.vmem [shape: f32[8,128], index: 0, kind: input, shape index: {}]
  %s1 = inlined_call_operand.vmem [shape: f32[128,256], index: 1, kind: input, shape index: {}]
  %s2 = inlined_call_operand.vmem [shape: f32[1,256], index: 2, kind: input, shape index: {}]
  %s3 = inlined_call_operand.vmem [shape: f32[8,256], index: 3, kind: output, shape index: {}]
  %s4 = sld [smem:[#allocation0]]
  $region22: #{sketch_rnn_forward.9} parent=0
    _
  %s6 = ssub.s32 1, %s4
  %s7 = scalar_select 0, %s6, %s4
  // Predicated region
  $region2: #{sketch_rnn_forward.9} parent=0 // pred_check
    _
  $region3: #{sketch_rnn_forward.9} parent=0 // pred_check_branch
    %9 = sbr.rel (0) target = $region5
  $region4: #{sketch_rnn_forward.9} parent=0 // pred_region
    _
  $region5: #{sketch_rnn_forward.9} parent=0 // pred_fallthru
    _
  // Predicated region
  $region6: #{sketch_rnn_forward.9} parent=0 // pred_check
    _
  $region7: #{sketch_rnn_forward.9} parent=0 // pred_check_branch
    %11 = sbr.rel (0) target = $region9
  $region8: #{sketch_rnn_forward.9} parent=0 // pred_region
    _
  $region9: #{sketch_rnn_forward.9} parent=0 // pred_fallthru
    _
  // Predicated region
  $region10: #{sketch_rnn_forward.9} parent=0 // pred_check
    _
  $region11: #{sketch_rnn_forward.9} parent=0 // pred_check_branch
    %13 = sbr.rel (0) target = $region13
  $region12: #{sketch_rnn_forward.9} parent=0 // pred_region
    _
  $region13: #{sketch_rnn_forward.9} parent=0 // pred_fallthru
    _
  %v14 = vld [vmem:[%s0] sm:$0xff]
  %v15 = vld [vmem:[%s1] sm:$0xff]
  %v16 = vld [vmem:[%s1 + $0x8] sm:$0xff]
  %v17 = vld [vmem:[%s1 + $0x10] sm:$0xff]
  %v18 = vld [vmem:[%s1 + $0x18] sm:$0xff]
  %v19 = vld [vmem:[%s1 + $0x20] sm:$0xff]
  %v20 = vld [vmem:[%s1 + $0x28] sm:$0xff]
  %v21 = vld [vmem:[%s1 + $0x30] sm:$0xff]
  %v22 = vld [vmem:[%s1 + $0x38] sm:$0xff]
  %v23 = vld [vmem:[%s1 + $0x40] sm:$0xff]
  %v24 = vld [vmem:[%s1 + $0x48] sm:$0xff]
  %v25 = vld [vmem:[%s1 + $0x50] sm:$0xff]
  %v26 = vld [vmem:[%s1 + $0x58] sm:$0xff]
  %v27 = vld [vmem:[%s1 + $0x60] sm:$0xff]
  %v28 = vld [vmem:[%s1 + $0x68] sm:$0xff]
  %v29 = vld [vmem:[%s1 + $0x70] sm:$0xff]
  %v30 = vld [vmem:[%s1 + $0x78] sm:$0xff]
  %v31 = vld [vmem:[%s1 + $0x80] sm:$0xff]
  %v32 = vld [vmem:[%s1 + $0x88] sm:$0xff]
  %v33 = vld [vmem:[%s1 + $0x90] sm:$0xff]
  %v34 = vld [vmem:[%s1 + $0x98] sm:$0xff]
  %v35 = vld [vmem:[%s1 + $0xa0] sm:$0xff]
  %v36 = vld [vmem:[%s1 + $0xa8] sm:$0xff]
  %v37 = vld [vmem:[%s1 + $0xb0] sm:$0xff]
  %v38 = vld [vmem:[%s1 + $0xb8] sm:$0xff]
  %v39 = vld [vmem:[%s1 + $0xc0] sm:$0xff]
  %v40 = vld [vmem:[%s1 + $0xc8] sm:$0xff]
  %v41 = vld [vmem:[%s1 + $0xd0] sm:$0xff]
  %v42 = vld [vmem:[%s1 + $0xd8] sm:$0xff]
  %v43 = vld [vmem:[%s1 + $0xe0] sm:$0xff]
  %v44 = vld [vmem:[%s1 + $0xe8] sm:$0xff]
  %v45 = vld [vmem:[%s1 + $0xf0] sm:$0xff]
  %v46 = vld [vmem:[%s1 + $0xf8] sm:$0xff]
  %v47 = vld [vmem:[%s2] sm:$0x3]
  %v49 = vlaneseq
  %v50 = vshrl.u32 %v49, 7
  %v51 = vsub.s32 0, %v50
  %v52 = vrot.slane %v47, %v51
  %v53 = vlaneseq
  %v54 = vshrl.u32 %v53, 7
  %v55 = vsub.s32 1, %v54
  %v56 = vrot.slane %v47, %v55
  %59 = vmatprep.subr.mxu0 %v46
  %60 = vmatpush1.msra.mxu0 %v45
  %61 = vmatprep.subr.mxu0 %v44
  %62 = vmatpush1.msra.mxu0 %v43
  %63 = vmatprep.subr.mxu0 %v42
  %64 = vmatpush1.msra.mxu0 %v41
  %65 = vmatprep.subr.mxu0 %v40
  %66 = vmatpush1.msra.mxu0 %v39
  %67 = vmatprep.subr.mxu0 %v38
  %68 = vmatpush1.msra.mxu0 %v37
  %69 = vmatprep.subr.mxu0 %v36
  %70 = vmatpush1.msra.mxu0 %v35
  %71 = vmatprep.subr.mxu0 %v34
  %72 = vmatpush1.msra.mxu0 %v33
  %73 = vmatprep.subr.mxu0 %v32
  %74 = vmatpush1.msra.mxu0 %v31
  %75 = vmatprep.subr.mxu0 %v30
  %76 = vmatpush1.msra.mxu0 %v29
  %77 = vmatprep.subr.mxu0 %v28
  %78 = vmatpush1.msra.mxu0 %v27
  %79 = vmatprep.subr.mxu0 %v26
  %80 = vmatpush1.msra.mxu0 %v25
  %81 = vmatprep.subr.mxu0 %v24
  %82 = vmatpush1.msra.mxu0 %v23
  %83 = vmatprep.subr.mxu0 %v22
  %84 = vmatpush1.msra.mxu0 %v21
  %85 = vmatprep.subr.mxu0 %v20
  %86 = vmatpush1.msra.mxu0 %v19
  %87 = vmatprep.subr.mxu0 %v18
  %88 = vmatpush1.msra.mxu0 %v17
  %89 = vmatprep.subr.mxu0 %v16
  %90 = vmatpush1.msra.mxu0 %v15
  %91 = vmatprep.subr.mxu0 0.0
  %92 = vmatpush2.msra.mxu0 0.0
  %93 = vmatprep.subr.mxu0 0.0
  %94 = vmatpush2.msra.mxu0 0.0
  %95 = vmatprep.subr.mxu0 0.0
  %96 = vmatpush2.msra.mxu0 0.0
  %97 = vmatprep.subr.mxu0 0.0
  %98 = vmatpush2.msra.mxu0 0.0
  %99 = vmatprep.subr.mxu0 0.0
  %100 = vmatpush2.msra.mxu0 0.0
  %101 = vmatprep.subr.mxu0 0.0
  %102 = vmatpush2.msra.mxu0 0.0
  %103 = vmatprep.subr.mxu0 0.0
  %104 = vmatpush2.msra.mxu0 0.0
  %105 = vmatprep.subr.mxu0 0.0
  %106 = vmatpush2.msra.mxu0 0.0
  %107 = vmatprep.subr.mxu0 0.0
  %108 = vmatpush2.msra.mxu0 0.0
  %109 = vmatprep.subr.mxu0 0.0
  %110 = vmatpush2.msra.mxu0 0.0
  %111 = vmatprep.subr.mxu0 0.0
  %112 = vmatpush2.msra.mxu0 0.0
  %113 = vmatprep.subr.mxu0 0.0
  %114 = vmatpush2.msra.mxu0 0.0
  %115 = vmatprep.subr.mxu0 0.0
  %116 = vmatpush2.msra.mxu0 0.0
  %117 = vmatprep.subr.mxu0 0.0
  %118 = vmatpush2.msra.mxu0 0.0
  %119 = vmatprep.subr.mxu0 0.0
  %120 = vmatpush2.msra.mxu0 0.0
  %121 = vmatprep.subr.mxu0 0.0
  %122 = vmatpush2.msra.mxu0 0.0
  %123 = vmatprep.mubr.f32.mxu0 0.0
  %124 = vmatmul.mubr.f32.gmra.mxu0 %v14
  %v125 = vpop.f32.mrf.mxu0
  %v126 = vadd.f32 %v52, %v125
  %v127 = vpop.f32.mrf.mxu0
  %v128 = vadd.f32 %v56, %v127
  %129 = vdwg.mxu0
  %130 = vst [vmem:[%s3] sm:$0xff] %v126
  %131 = vst [vmem:[%s3 + $0x8] sm:$0xff] %v128
  // Predicated region
  $region14: #{sketch_rnn_forward.9} parent=0 // pred_check
    _
  $region15: #{sketch_rnn_forward.9} parent=0 // pred_check_branch
    %133 = sbr.rel (0) target = $region17
  $region16: #{sketch_rnn_forward.9} parent=0 // pred_region
    _
  $region17: #{sketch_rnn_forward.9} parent=0 // pred_fallthru
    _
  // Predicated region
  $region18: #{sketch_rnn_forward.9} parent=0 // pred_check
    _
  $region19: #{sketch_rnn_forward.9} parent=0 // pred_check_branch
    %135 = sbr.rel (0) target = $region21
  $region20: #{sketch_rnn_forward.9} parent=0 // pred_region
    _
  $region21: #{sketch_rnn_forward.9} parent=0 // pred_fallthru
    _

// kernel: sketch_rnn_forward.8
$region0: #{sketch_rnn_forward.8}
  #allocation0 [shape = 'u32[]', space=smem, size = 0x4, offset = 0x4, fixed_abs, tag = 'smem constant byte address 0x4 - core index']
  #allocation1 [shape = 'u32[144,128]{1,0:T(1,128)}', space=vmem, size = 0x12000, scoped, tag = 'internal scratch']
  #allocation2 [shape = 'f32[8,128]{1,0:T(8,128)}', space=vmem, size = 0x1000, scoped, tag = 'scratch operand']
  #allocation3 [shape = 'f32[8,128]{1,0:T(8,128)}', space=vmem, size = 0x1000, scoped, tag = 'scratch operand']
  %s0 = inlined_call_operand.vmem [shape: f32[8,8,512], index: 0, kind: input, shape index: {}]
  %s1 = inlined_call_operand.vmem [shape: f32[128,512], index: 1, kind: input, shape index: {}]
  %s2 = inlined_call_operand.vmem [shape: f32[8,128], index: 2, kind: input, shape index: {}, may-alias: {2,3}]
  %s3 = inlined_call_operand.vmem [shape: f32[8,128], index: 3, kind: input, shape index: {}, may-alias: {2,3}]
  %s4 = inlined_call_operand.vmem [shape: s32[8,1], index: 4, kind: input, shape index: {}]
  %s5 = inlined_call_operand.vmem [shape: f32[8,128], index: 5, kind: output, shape index: {}]
  %s6 = sld [smem:[#allocation0]]
  $region38: #{sketch_rnn_forward.8} parent=0
    _
  %s8 = ssub.s32 1, %s6
  %s9 = scalar_select 0, %s8, %s6
  // Predicated region
  $region2: #{sketch_rnn_forward.8} parent=0 // pred_check
    _
  $region3: #{sketch_rnn_forward.8} parent=0 // pred_check_branch
    %11 = sbr.rel (0) target = $region5
  $region4: #{sketch_rnn_forward.8} parent=0 // pred_region
    _
  $region5: #{sketch_rnn_forward.8} parent=0 // pred_fallthru
    _
  // Predicated region
  $region6: #{sketch_rnn_forward.8} parent=0 // pred_check
    _
  $region7: #{sketch_rnn_forward.8} parent=0 // pred_check_branch
    %13 = sbr.rel (0) target = $region9
  $region8: #{sketch_rnn_forward.8} parent=0 // pred_region
    _
  $region9: #{sketch_rnn_forward.8} parent=0 // pred_fallthru
    _
  // Predicated region
  $region10: #{sketch_rnn_forward.8} parent=0 // pred_check
    _
  $region11: #{sketch_rnn_forward.8} parent=0 // pred_check_branch
    %15 = sbr.rel (0) target = $region13
  $region12: #{sketch_rnn_forward.8} parent=0 // pred_region
    _
  $region13: #{sketch_rnn_forward.8} parent=0 // pred_fallthru
    _
  // Predicated region
  $region14: #{sketch_rnn_forward.8} parent=0 // pred_check
    _
  $region15: #{sketch_rnn_forward.8} parent=0 // pred_check_branch
    %17 = sbr.rel (0) target = $region17
  $region16: #{sketch_rnn_forward.8} parent=0 // pred_region
    _
  $region17: #{sketch_rnn_forward.8} parent=0 // pred_fallthru
    _
  // Predicated region
  $region18: #{sketch_rnn_forward.8} parent=0 // pred_check
    _
  $region19: #{sketch_rnn_forward.8} parent=0 // pred_check_branch
    %19 = sbr.rel (0) target = $region21
  $region20: #{sketch_rnn_forward.8} parent=0 // pred_region
    _
  $region21: #{sketch_rnn_forward.8} parent=0 // pred_fallthru
    _
  %p20 = scmp.eq.s32.totalorder 0, 0
  // Predicated region
  $region22: #{sketch_rnn_forward.8} parent=0 // pred_check
    %p21 = pneg %p20
  $region23: #{sketch_rnn_forward.8} parent=0 // pred_check_branch
    %23 = sbr.rel (%p21) target = $region25
  $region24: #{sketch_rnn_forward.8} parent=0 // pred_region
    %v24 = vld [vmem:[%s2] sm:$0xff]
    %25 = vst [vmem:[#allocation2] sm:$0xff] %v24
    %v26 = vld [vmem:[%s3] sm:$0xff]
    %27 = vst [vmem:[#allocation3] sm:$0xff] %v26
  $region25: #{sketch_rnn_forward.8} parent=0 // pred_fallthru
    _
  %v28 = vld [vmem:[%s4] sm:$0xff]
  %v29 = vld [vmem:[%s1] sm:$0xff]
  %v30 = vld [vmem:[%s1 + $0x8] sm:$0xff]
  %v31 = vld [vmem:[%s1 + $0x10] sm:$0xff]
  %v32 = vld [vmem:[%s1 + $0x18] sm:$0xff]
  %v33 = vld [vmem:[%s1 + $0x20] sm:$0xff]
  %v34 = vld [vmem:[%s1 + $0x28] sm:$0xff]
  %v35 = vld [vmem:[%s1 + $0x30] sm:$0xff]
  %v36 = vld [vmem:[%s1 + $0x38] sm:$0xff]
  %v37 = vld [vmem:[%s1 + $0x40] sm:$0xff]
  %v38 = vld [vmem:[%s1 + $0x48] sm:$0xff]
  %v39 = vld [vmem:[%s1 + $0x50] sm:$0xff]
  %v40 = vld [vmem:[%s1 + $0x58] sm:$0xff]
  %v41 = vld [vmem:[%s1 + $0x60] sm:$0xff]
  %v42 = vld [vmem:[%s1 + $0x68] sm:$0xff]
  %v43 = vld [vmem:[%s1 + $0x70] sm:$0xff]
  %v44 = vld [vmem:[%s1 + $0x78] sm:$0xff]
  %v45 = vld [vmem:[%s1 + $0x80] sm:$0xff]
  %v46 = vld [vmem:[%s1 + $0x88] sm:$0xff]
  %v47 = vld [vmem:[%s1 + $0x90] sm:$0xff]
  %v48 = vld [vmem:[%s1 + $0x98] sm:$0xff]
  %v49 = vld [vmem:[%s1 + $0xa0] sm:$0xff]
  %v50 = vld [vmem:[%s1 + $0xa8] sm:$0xff]
  %v51 = vld [vmem:[%s1 + $0xb0] sm:$0xff]
  %v52 = vld [vmem:[%s1 + $0xb8] sm:$0xff]
  %v53 = vld [vmem:[%s1 + $0xc0] sm:$0xff]
  %v54 = vld [vmem:[%s1 + $0xc8] sm:$0xff]
  %v55 = vld [vmem:[%s1 + $0xd0] sm:$0xff]
  %v56 = vld [vmem:[%s1 + $0xd8] sm:$0xff]
  %v57 = vld [vmem:[%s1 + $0xe0] sm:$0xff]
  %v58 = vld [vmem:[%s1 + $0xe8] sm:$0xff]
  %v59 = vld [vmem:[%s1 + $0xf0] sm:$0xff]
  %v60 = vld [vmem:[%s1 + $0xf8] sm:$0xff]
  %v61 = vld [vmem:[%s1 + $0x100] sm:$0xff]
  %v62 = vld [vmem:[%s1 + $0x108] sm:$0xff]
  %v63 = vld [vmem:[%s1 + $0x110] sm:$0xff]
  %v64 = vld [vmem:[%s1 + $0x118] sm:$0xff]
  %v65 = vld [vmem:[%s1 + $0x120] sm:$0xff]
  %v66 = vld [vmem:[%s1 + $0x128] sm:$0xff]
  %v67 = vld [vmem:[%s1 + $0x130] sm:$0xff]
  %v68 = vld [vmem:[%s1 + $0x138] sm:$0xff]
  %v69 = vld [vmem:[%s1 + $0x140] sm:$0xff]
  %v70 = vld [vmem:[%s1 + $0x148] sm:$0xff]
  %v71 = vld [vmem:[%s1 + $0x150] sm:$0xff]
  %v72 = vld [vmem:[%s1 + $0x158] sm:$0xff]
  %v73 = vld [vmem:[%s1 + $0x160] sm:$0xff]
  %v74 = vld [vmem:[%s1 + $0x168] sm:$0xff]
  %v75 = vld [vmem:[%s1 + $0x170] sm:$0xff]
  %v76 = vld [vmem:[%s1 + $0x178] sm:$0xff]
  %v77 = vld [vmem:[%s1 + $0x180] sm:$0xff]
  %v78 = vld [vmem:[%s1 + $0x188] sm:$0xff]
  %v79 = vld [vmem:[%s1 + $0x190] sm:$0xff]
  %v80 = vld [vmem:[%s1 + $0x198] sm:$0xff]
  %v81 = vld [vmem:[%s1 + $0x1a0] sm:$0xff]
  %v82 = vld [vmem:[%s1 + $0x1a8] sm:$0xff]
  %v83 = vld [vmem:[%s1 + $0x1b0] sm:$0xff]
  %v84 = vld [vmem:[%s1 + $0x1b8] sm:$0xff]
  %v85 = vld [vmem:[%s1 + $0x1c0] sm:$0xff]
  %v86 = vld [vmem:[%s1 + $0x1c8] sm:$0xff]
  %v87 = vld [vmem:[%s1 + $0x1d0] sm:$0xff]
  %v88 = vld [vmem:[%s1 + $0x1d8] sm:$0xff]
  %v89 = vld [vmem:[%s1 + $0x1e0] sm:$0xff]
  %v90 = vld [vmem:[%s1 + $0x1e8] sm:$0xff]
  %v91 = vld [vmem:[%s1 + $0x1f0] sm:$0xff]
  %v92 = vld [vmem:[%s1 + $0x1f8] sm:$0xff]
  %s93 = smul.u32 0, 8
  %v94 = vld [vmem:[#allocation2] sm:$0xff]
  %v95 = vld [vmem:[#allocation3] sm:$0xff]
  %v96 = vld [vmem:[%s0] sm:$0xff]
  %v97 = vld [vmem:[%s0 + $0x8] sm:$0xff]
  %v98 = vld [vmem:[%s0 + $0x10] sm:$0xff]
  %v99 = vld [vmem:[%s0 + $0x18] sm:$0xff]
  %100 = vmatprep.subr.mxu0 %v90
  %101 = vmatpush1.msra.mxu0 %v89
  %102 = vmatprep.subr.mxu0 %v86
  %103 = vmatpush1.msra.mxu0 %v85
  %104 = vmatprep.subr.mxu0 %v82
  %105 = vmatpush1.msra.mxu0 %v81
  %106 = vmatprep.subr.mxu0 %v78
  %107 = vmatpush1.msra.mxu0 %v77
  %108 = vmatprep.subr.mxu0 %v74
  %109 = vmatpush1.msra.mxu0 %v73
  %110 = vmatprep.subr.mxu0 %v70
  %111 = vmatpush1.msra.mxu0 %v69
  %112 = vmatprep.subr.mxu0 %v66
  %113 = vmatpush1.msra.mxu0 %v65
  %114 = vmatprep.subr.mxu0 %v62
  %115 = vmatpush1.msra.mxu0 %v61
  %116 = vmatprep.subr.mxu0 %v58
  %117 = vmatpush1.msra.mxu0 %v57
  %118 = vmatprep.subr.mxu0 %v54
  %119 = vmatpush1.msra.mxu0 %v53
  %120 = vmatprep.subr.mxu0 %v50
  %121 = vmatpush1.msra.mxu0 %v49
  %122 = vmatprep.subr.mxu0 %v46
  %123 = vmatpush1.msra.mxu0 %v45
  %124 = vmatprep.subr.mxu0 %v42
  %125 = vmatpush1.msra.mxu0 %v41
  %126 = vmatprep.subr.mxu0 %v38
  %127 = vmatpush1.msra.mxu0 %v37
  %128 = vmatprep.subr.mxu0 %v34
  %129 = vmatpush1.msra.mxu0 %v33
  %130 = vmatprep.subr.mxu0 %v30
  %131 = vmatpush1.msra.mxu0 %v29
  %132 = vmatprep.subr.mxu0 0.0
  %133 = vmatpush2.msra.mxu0 0.0
  %134 = vmatprep.subr.mxu0 0.0
  %135 = vmatpush2.msra.mxu0 0.0
  %136 = vmatprep.subr.mxu0 0.0
  %137 = vmatpush2.msra.mxu0 0.0
  %138 = vmatprep.subr.mxu0 0.0
  %139 = vmatpush2.msra.mxu0 0.0
  %140 = vmatprep.subr.mxu0 0.0
  %141 = vmatpush2.msra.mxu0 0.0
  %142 = vmatprep.subr.mxu0 0.0
  %143 = vmatpush2.msra.mxu0 0.0
  %144 = vmatprep.subr.mxu0 0.0
  %145 = vmatpush2.msra.mxu0 0.0
  %146 = vmatprep.subr.mxu0 0.0
  %147 = vmatpush2.msra.mxu0 0.0
  %148 = vmatprep.subr.mxu0 0.0
  %149 = vmatpush2.msra.mxu0 0.0
  %150 = vmatprep.subr.mxu0 0.0
  %151 = vmatpush2.msra.mxu0 0.0
  %152 = vmatprep.subr.mxu0 0.0
  %153 = vmatpush2.msra.mxu0 0.0
  %154 = vmatprep.subr.mxu0 0.0
  %155 = vmatpush2.msra.mxu0 0.0
  %156 = vmatprep.subr.mxu0 0.0
  %157 = vmatpush2.msra.mxu0 0.0
  %158 = vmatprep.subr.mxu0 0.0
  %159 = vmatpush2.msra.mxu0 0.0
  %160 = vmatprep.subr.mxu0 0.0
  %161 = vmatpush2.msra.mxu0 0.0
  %162 = vmatprep.subr.mxu0 0.0
  %163 = vmatpush2.msra.mxu0 0.0
  %164 = vmatprep.mubr.f32.mxu0 0.0
  %165 = vmatmul.mubr.f32.gmra.mxu0 %v94
  %v166 = vpop.f32.mrf.mxu0
  %v167 = vadd.f32 0.0, %v166
  %v168 = vpop.f32.mrf.mxu0
  %v169 = vadd.f32 0.0, %v168
  %170 = vdwg.mxu0
  %171 = vmatprep.subr.mxu0 %v92
  %172 = vmatpush1.msra.mxu0 %v91
  %173 = vmatprep.subr.mxu0 %v88
  %174 = vmatpush1.msra.mxu0 %v87
  %175 = vmatprep.subr.mxu0 %v84
  %176 = vmatpush1.msra.mxu0 %v83
  %177 = vmatprep.subr.mxu0 %v80
  %178 = vmatpush1.msra.mxu0 %v79
  %179 = vmatprep.subr.mxu0 %v76
  %180 = vmatpush1.msra.mxu0 %v75
  %181 = vmatprep.subr.mxu0 %v72
  %182 = vmatpush1.msra.mxu0 %v71
  %183 = vmatprep.subr.mxu0 %v68
  %184 = vmatpush1.msra.mxu0 %v67
  %185 = vmatprep.subr.mxu0 %v64
  %186 = vmatpush1.msra.mxu0 %v63
  %187 = vmatprep.subr.mxu0 %v60
  %188 = vmatpush1.msra.mxu0 %v59
  %189 = vmatprep.subr.mxu0 %v56
  %190 = vmatpush1.msra.mxu0 %v55
  %191 = vmatprep.subr.mxu0 %v52
  %192 = vmatpush1.msra.mxu0 %v51
  %193 = vmatprep.subr.mxu0 %v48
  %194 = vmatpush1.msra.mxu0 %v47
  %195 = vmatprep.subr.mxu0 %v44
  %196 = vmatpush1.msra.mxu0 %v43
  %197 = vmatprep.subr.mxu0 %v40
  %198 = vmatpush1.msra.mxu0 %v39
  %199 = vmatprep.subr.mxu0 %v36
  %200 = vmatpush1.msra.mxu0 %v35
  %201 = vmatprep.subr.mxu0 %v32
  %202 = vmatpush1.msra.mxu0 %v31
  %203 = vmatprep.subr.mxu0 0.0
  %204 = vmatpush2.msra.mxu0 0.0
  %205 = vmatprep.subr.mxu0 0.0
  %206 = vmatpush2.msra.mxu0 0.0
  %207 = vmatprep.subr.mxu0 0.0
  %208 = vmatpush2.msra.mxu0 0.0
  %209 = vmatprep.subr.mxu0 0.0
  %210 = vmatpush2.msra.mxu0 0.0
  %211 = vmatprep.subr.mxu0 0.0
  %212 = vmatpush2.msra.mxu0 0.0
  %213 = vmatprep.subr.mxu0 0.0
  %214 = vmatpush2.msra.mxu0 0.0
  %215 = vmatprep.subr.mxu0 0.0
  %216 = vmatpush2.msra.mxu0 0.0
  %217 = vmatprep.subr.mxu0 0.0
  %218 = vmatpush2.msra.mxu0 0.0
  %219 = vmatprep.subr.mxu0 0.0
  %220 = vmatpush2.msra.mxu0 0.0
  %221 = vmatprep.subr.mxu0 0.0
  %222 = vmatpush2.msra.mxu0 0.0
  %223 = vmatprep.subr.mxu0 0.0
  %224 = vmatpush2.msra.mxu0 0.0
  %225 = vmatprep.subr.mxu0 0.0
  %226 = vmatpush2.msra.mxu0 0.0
  %227 = vmatprep.subr.mxu0 0.0
  %228 = vmatpush2.msra.mxu0 0.0
  %229 = vmatprep.subr.mxu0 0.0
  %230 = vmatpush2.msra.mxu0 0.0
  %231 = vmatprep.subr.mxu0 0.0
  %232 = vmatpush2.msra.mxu0 0.0
  %233 = vmatprep.subr.mxu0 0.0
  %234 = vmatpush2.msra.mxu0 0.0
  %235 = vmatprep.mubr.f32.mxu0 0.0
  %236 = vmatmul.mubr.f32.gmra.mxu0 %v94
  %v237 = vpop.f32.mrf.mxu0
  %v238 = vadd.f32 0.0, %v237
  %v239 = vpop.f32.mrf.mxu0
  %v240 = vadd.f32 0.0, %v239
  %241 = vdwg.mxu0
  %v242 = vadd.f32 %v96, %v167
  %v243 = vadd.f32 %v97, %v169
  %v244 = vadd.f32 %v98, %v238
  %v245 = vadd.f32 %v99, %v240
  %v246 = vxor.u32 %v242, 2147483648
  %v247 = vmul.f32 %v246, 1.442695
  %v248 = vpow.pop %v247
  %v249 = vadd.f32 %v248, 1.0
  %v250 = vrcp.pop %v249
  %v251 = vmul.f32 1.0, %v250
  %v252 = vxor.u32 %v243, 2147483648
  %v253 = vmul.f32 %v252, 1.442695
  %v254 = vpow.pop %v253
  %v255 = vadd.f32 %v254, 1.0
  %v256 = vrcp.pop %v255
  %v257 = vmul.f32 1.0, %v256
  %v258 = vtanh.pop %v244
  %v259 = vxor.u32 %v245, 2147483648
  %v260 = vmul.f32 %v259, 1.442695
  %v261 = vpow.pop %v260
  %v262 = vadd.f32 %v261, 1.0
  %v263 = vrcp.pop %v262
  %v264 = vmul.f32 1.0, %v263
  %v265 = vmul.f32 %v257, %v95
  %v266 = vmul.f32 %v251, %v258
  %v267 = vadd.f32 %v265, %v266
  %v268 = vtanh.pop %v267
  %v269 = vmul.f32 %v264, %v268
  %v270 = vstv %s93
  %vm271 = vcmp.lt.s32.totalorder %v270, %v28
  %v272 = vsel %vm271, 1, 0
  %273 = vset.pattern.permute.xlu0 0
  %274 = vperm.xlu0 %273, %v272
  %v275 = vpop.permute.xlu0 %274
  %vm276 = vcmp.eq.s32.totalorder %v275, 1
  %v277 = vsel %vm276, %v269, %v94
  %278 = vst [vmem:[#allocation2] sm:$0xff] %v277
  %v279 = vsel %vm276, %v267, %v95
  %280 = vst [vmem:[#allocation3] sm:$0xff] %v279
  %s281 = sadd.s32 %s93, 1
  %v282 = vld [vmem:[#allocation2] sm:$0xff]
  %v283 = vld [vmem:[#allocation3] sm:$0xff]
  %s284 = scalar_lea.vmem %s0, 32
  %v285 = vld [vmem:[%s284] sm:$0xff]
  %v286 = vld [vmem:[%s284 + $0x8] sm:$0xff]
  %v287 = vld [vmem:[%s284 + $0x10] sm:$0xff]
  %v288 = vld [vmem:[%s284 + $0x18] sm:$0xff]
  %289 = vmatprep.subr.mxu0 %v90
  %290 = vmatpush1.msra.mxu0 %v89
  %291 = vmatprep.subr.mxu0 %v86
  %292 = vmatpush1.msra.mxu0 %v85
  %293 = vmatprep.subr.mxu0 %v82
  %294 = vmatpush1.msra.mxu0 %v81
  %295 = vmatprep.subr.mxu0 %v78
  %296 = vmatpush1.msra.mxu0 %v77
  %297 = vmatprep.subr.mxu0 %v74
  %298 = vmatpush1.msra.mxu0 %v73
  %299 = vmatprep.subr.mxu0 %v70
  %300 = vmatpush1.msra.mxu0 %v69
  %301 = vmatprep.subr.mxu0 %v66
  %302 = vmatpush1.msra.mxu0 %v65
  %303 = vmatprep.subr.mxu0 %v62
  %304 = vmatpush1.msra.mxu0 %v61
  %305 = vmatprep.subr.mxu0 %v58
  %306 = vmatpush1.msra.mxu0 %v57
  %307 = vmatprep.subr.mxu0 %v54
  %308 = vmatpush1.msra.mxu0 %v53
  %309 = vmatprep.subr.mxu0 %v50
  %310 = vmatpush1.msra.mxu0 %v49
  %311 = vmatprep.subr.mxu0 %v46
  %312 = vmatpush1.msra.mxu0 %v45
  %313 = vmatprep.subr.mxu0 %v42
  %314 = vmatpush1.msra.mxu0 %v41
  %315 = vmatprep.subr.mxu0 %v38
  %316 = vmatpush1.msra.mxu0 %v37
  %317 = vmatprep.subr.mxu0 %v34
  %318 = vmatpush1.msra.mxu0 %v33
  %319 = vmatprep.subr.mxu0 %v30
  %320 = vmatpush1.msra.mxu0 %v29
  %321 = vmatprep.subr.mxu0 0.0
  %322 = vmatpush2.msra.mxu0 0.0
  %323 = vmatprep.subr.mxu0 0.0
  %324 = vmatpush2.msra.mxu0 0.0
  %325 = vmatprep.subr.mxu0 0.0
  %326 = vmatpush2.msra.mxu0 0.0
  %327 = vmatprep.subr.mxu0 0.0
  %328 = vmatpush2.msra.mxu0 0.0
  %329 = vmatprep.subr.mxu0 0.0
  %330 = vmatpush2.msra.mxu0 0.0
  %331 = vmatprep.subr.mxu0 0.0
  %332 = vmatpush2.msra.mxu0 0.0
  %333 = vmatprep.subr.mxu0 0.0
  %334 = vmatpush2.msra.mxu0 0.0
  %335 = vmatprep.subr.mxu0 0.0
  %336 = vmatpush2.msra.mxu0 0.0
  %337 = vmatprep.subr.mxu0 0.0
  %338 = vmatpush2.msra.mxu0 0.0
  %339 = vmatprep.subr.mxu0 0.0
  %340 = vmatpush2.msra.mxu0 0.0
  %341 = vmatprep.subr.mxu0 0.0
  %342 = vmatpush2.msra.mxu0 0.0
  %343 = vmatprep.subr.mxu0 0.0
  %344 = vmatpush2.msra.mxu0 0.0
  %345 = vmatprep.subr.mxu0 0.0
  %346 = vmatpush2.msra.mxu0 0.0
  %347 = vmatprep.subr.mxu0 0.0
  %348 = vmatpush2.msra.mxu0 0.0
  %349 = vmatprep.subr.mxu0 0.0
  %350 = vmatpush2.msra.mxu0 0.0
  %351 = vmatprep.subr.mxu0 0.0
  %352 = vmatpush2.msra.mxu0 0.0
  %353 = vmatprep.mubr.f32.mxu0 0.0
  %354 = vmatmul.mubr.f32.gmra.mxu0 %v282
  %v355 = vpop.f32.mrf.mxu0
  %v356 = vadd.f32 0.0, %v355
  %v357 = vpop.f32.mrf.mxu0
  %v358 = vadd.f32 0.0, %v357
  %359 = vdwg.mxu0
  %360 = vmatprep.subr.mxu0 %v92
  %361 = vmatpush1.msra.mxu0 %v91
  %362 = vmatprep.subr.mxu0 %v88
  %363 = vmatpush1.msra.mxu0 %v87
  %364 = vmatprep.subr.mxu0 %v84
  %365 = vmatpush1.msra.mxu0 %v83
  %366 = vmatprep.subr.mxu0 %v80
  %367 = vmatpush1.msra.mxu0 %v79
  %368 = vmatprep.subr.mxu0 %v76
  %369 = vmatpush1.msra.mxu0 %v75
  %370 = vmatprep.subr.mxu0 %v72
  %371 = vmatpush1.msra.mxu0 %v71
  %372 = vmatprep.subr.mxu0 %v68
  %373 = vmatpush1.msra.mxu0 %v67
  %374 = vmatprep.subr.mxu0 %v64
  %375 = vmatpush1.msra.mxu0 %v63
  %376 = vmatprep.subr.mxu0 %v60
  %377 = vmatpush1.msra.mxu0 %v59
  %378 = vmatprep.subr.mxu0 %v56
  %379 = vmatpush1.msra.mxu0 %v55
  %380 = vmatprep.subr.mxu0 %v52
  %381 = vmatpush1.msra.mxu0 %v51
  %382 = vmatprep.subr.mxu0 %v48
  %383 = vmatpush1.msra.mxu0 %v47
  %384 = vmatprep.subr.mxu0 %v44
  %385 = vmatpush1.msra.mxu0 %v43
  %386 = vmatprep.subr.mxu0 %v40
  %387 = vmatpush1.msra.mxu0 %v39
  %388 = vmatprep.subr.mxu0 %v36
  %389 = vmatpush1.msra.mxu0 %v35
  %390 = vmatprep.subr.mxu0 %v32
  %391 = vmatpush1.msra.mxu0 %v31
  %392 = vmatprep.subr.mxu0 0.0
  %393 = vmatpush2.msra.mxu0 0.0
  %394 = vmatprep.subr.mxu0 0.0
  %395 = vmatpush2.msra.mxu0 0.0
  %396 = vmatprep.subr.mxu0 0.0
  %397 = vmatpush2.msra.mxu0 0.0
  %398 = vmatprep.subr.mxu0 0.0
  %399 = vmatpush2.msra.mxu0 0.0
  %400 = vmatprep.subr.mxu0 0.0
  %401 = vmatpush2.msra.mxu0 0.0
  %402 = vmatprep.subr.mxu0 0.0
  %403 = vmatpush2.msra.mxu0 0.0
  %404 = vmatprep.subr.mxu0 0.0
  %405 = vmatpush2.msra.mxu0 0.0
  %406 = vmatprep.subr.mxu0 0.0
  %407 = vmatpush2.msra.mxu0 0.0
  %408 = vmatprep.subr.mxu0 0.0
  %409 = vmatpush2.msra.mxu0 0.0
  %410 = vmatprep.subr.mxu0 0.0
  %411 = vmatpush2.msra.mxu0 0.0
  %412 = vmatprep.subr.mxu0 0.0
  %413 = vmatpush2.msra.mxu0 0.0
  %414 = vmatprep.subr.mxu0 0.0
  %415 = vmatpush2.msra.mxu0 0.0
  %416 = vmatprep.subr.mxu0 0.0
  %417 = vmatpush2.msra.mxu0 0.0
  %418 = vmatprep.subr.mxu0 0.0
  %419 = vmatpush2.msra.mxu0 0.0
  %420 = vmatprep.subr.mxu0 0.0
  %421 = vmatpush2.msra.mxu0 0.0
  %422 = vmatprep.subr.mxu0 0.0
  %423 = vmatpush2.msra.mxu0 0.0
  %424 = vmatprep.mubr.f32.mxu0 0.0
  %425 = vmatmul.mubr.f32.gmra.mxu0 %v282
  %v426 = vpop.f32.mrf.mxu0
  %v427 = vadd.f32 0.0, %v426
  %v428 = vpop.f32.mrf.mxu0
  %v429 = vadd.f32 0.0, %v428
  %430 = vdwg.mxu0
  %v431 = vadd.f32 %v285, %v356
  %v432 = vadd.f32 %v286, %v358
  %v433 = vadd.f32 %v287, %v427
  %v434 = vadd.f32 %v288, %v429
  %v435 = vxor.u32 %v431, 2147483648
  %v436 = vmul.f32 %v435, 1.442695
  %v437 = vpow.pop %v436
  %v438 = vadd.f32 %v437, 1.0
  %v439 = vrcp.pop %v438
  %v440 = vmul.f32 1.0, %v439
  %v441 = vxor.u32 %v432, 2147483648
  %v442 = vmul.f32 %v441, 1.442695
  %v443 = vpow.pop %v442
  %v444 = vadd.f32 %v443, 1.0
  %v445 = vrcp.pop %v444
  %v446 = vmul.f32 1.0, %v445
  %v447 = vtanh.pop %v433
  %v448 = vxor.u32 %v434, 2147483648
  %v449 = vmul.f32 %v448, 1.442695
  %v450 = vpow.pop %v449
  %v451 = vadd.f32 %v450, 1.0
  %v452 = vrcp.pop %v451
  %v453 = vmul.f32 1.0, %v452
  %v454 = vmul.f32 %v446, %v283
  %v455 = vmul.f32 %v440, %v447
  %v456 = vadd.f32 %v454, %v455
  %v457 = vtanh.pop %v456
  %v458 = vmul.f32 %v453, %v457
  %v459 = vstv %s281
  %vm460 = vcmp.lt.s32.totalorder %v459, %v28
  %v461 = vsel %vm460, 1, 0
  %462 = vset.pattern.permute.xlu0 0
  %463 = vperm.xlu0 %462, %v461
  %v464 = vpop.permute.xlu0 %463
  %vm465 = vcmp.eq.s32.totalorder %v464, 1
  %v466 = vsel %vm465, %v458, %v282
  %467 = vst [vmem:[#allocation2] sm:$0xff] %v466
  %v468 = vsel %vm465, %v456, %v283
  %469 = vst [vmem:[#allocation3] sm:$0xff] %v468
  %s470 = sadd.s32 %s93, 2
  %v471 = vld [vmem:[#allocation2] sm:$0xff]
  %v472 = vld [vmem:[#allocation3] sm:$0xff]
  %s473 = scalar_lea.vmem %s0, 64
  %v474 = vld [vmem:[%s473] sm:$0xff]
  %v475 = vld [vmem:[%s473 + $0x8] sm:$0xff]
  %v476 = vld [vmem:[%s473 + $0x10] sm:$0xff]
  %v477 = vld [vmem:[%s473 + $0x18] sm:$0xff]
  %478 = vmatprep.subr.mxu0 %v90
  %479 = vmatpush1.msra.mxu0 %v89
  %480 = vmatprep.subr.mxu0 %v86
  %481 = vmatpush1.msra.mxu0 %v85
  %482 = vmatprep.subr.mxu0 %v82
  %483 = vmatpush1.msra.mxu0 %v81
  %484 = vmatprep.subr.mxu0 %v78
  %485 = vmatpush1.msra.mxu0 %v77
  %486 = vmatprep.subr.mxu0 %v74
  %487 = vmatpush1.msra.mxu0 %v73
  %488 = vmatprep.subr.mxu0 %v70
  %489 = vmatpush1.msra.mxu0 %v69
  %490 = vmatprep.subr.mxu0 %v66
  %491 = vmatpush1.msra.mxu0 %v65
  %492 = vmatprep.subr.mxu0 %v62
  %493 = vmatpush1.msra.mxu0 %v61
  %494 = vmatprep.subr.mxu0 %v58
  %495 = vmatpush1.msra.mxu0 %v57
  %496 = vmatprep.subr.mxu0 %v54
  %497 = vmatpush1.msra.mxu0 %v53
  %498 = vmatprep.subr.mxu0 %v50
  %499 = vmatpush1.msra.mxu0 %v49
  %500 = vmatprep.subr.mxu0 %v46
  %501 = vmatpush1.msra.mxu0 %v45
  %502 = vmatprep.subr.mxu0 %v42
  %503 = vmatpush1.msra.mxu0 %v41
  %504 = vmatprep.subr.mxu0 %v38
  %505 = vmatpush1.msra.mxu0 %v37
  %506 = vmatprep.subr.mxu0 %v34
  %507 = vmatpush1.msra.mxu0 %v33
  %508 = vmatprep.subr.mxu0 %v30
  %509 = vmatpush1.msra.mxu0 %v29
  %510 = vmatprep.subr.mxu0 0.0
  %511 = vmatpush2.msra.mxu0 0.0
  %512 = vmatprep.subr.mxu0 0.0
  %513 = vmatpush2.msra.mxu0 0.0
  %514 = vmatprep.subr.mxu0 0.0
  %515 = vmatpush2.msra.mxu0 0.0
  %516 = vmatprep.subr.mxu0 0.0
  %517 = vmatpush2.msra.mxu0 0.0
  %518 = vmatprep.subr.mxu0 0.0
  %519 = vmatpush2.msra.mxu0 0.0
  %520 = vmatprep.subr.mxu0 0.0
  %521 = vmatpush2.msra.mxu0 0.0
  %522 = vmatprep.subr.mxu0 0.0
  %523 = vmatpush2.msra.mxu0 0.0
  %524 = vmatprep.subr.mxu0 0.0
  %525 = vmatpush2.msra.mxu0 0.0
  %526 = vmatprep.subr.mxu0 0.0
  %527 = vmatpush2.msra.mxu0 0.0
  %528 = vmatprep.subr.mxu0 0.0
  %529 = vmatpush2.msra.mxu0 0.0
  %530 = vmatprep.subr.mxu0 0.0
  %531 = vmatpush2.msra.mxu0 0.0
  %532 = vmatprep.subr.mxu0 0.0
  %533 = vmatpush2.msra.mxu0 0.0
  %534 = vmatprep.subr.mxu0 0.0
  %535 = vmatpush2.msra.mxu0 0.0
  %536 = vmatprep.subr.mxu0 0.0
  %537 = vmatpush2.msra.mxu0 0.0
  %538 = vmatprep.subr.mxu0 0.0
  %539 = vmatpush2.msra.mxu0 0.0
  %540 = vmatprep.subr.mxu0 0.0
  %541 = vmatpush2.msra.mxu0 0.0
  %542 = vmatprep.mubr.f32.mxu0 0.0
  %543 = vmatmul.mubr.f32.gmra.mxu0 %v471
  %v544 = vpop.f32.mrf.mxu0
  %v545 = vadd.f32 0.0, %v544
  %v546 = vpop.f32.mrf.mxu0
  %v547 = vadd.f32 0.0, %v546
  %548 = vdwg.mxu0
  %549 = vmatprep.subr.mxu0 %v92
  %550 = vmatpush1.msra.mxu0 %v91
  %551 = vmatprep.subr.mxu0 %v88
  %552 = vmatpush1.msra.mxu0 %v87
  %553 = vmatprep.subr.mxu0 %v84
  %554 = vmatpush1.msra.mxu0 %v83
  %555 = vmatprep.subr.mxu0 %v80
  %556 = vmatpush1.msra.mxu0 %v79
  %557 = vmatprep.subr.mxu0 %v76
  %558 = vmatpush1.msra.mxu0 %v75
  %559 = vmatprep.subr.mxu0 %v72
  %560 = vmatpush1.msra.mxu0 %v71
  %561 = vmatprep.subr.mxu0 %v68
  %562 = vmatpush1.msra.mxu0 %v67
  %563 = vmatprep.subr.mxu0 %v64
  %564 = vmatpush1.msra.mxu0 %v63
  %565 = vmatprep.subr.mxu0 %v60
  %566 = vmatpush1.msra.mxu0 %v59
  %567 = vmatprep.subr.mxu0 %v56
  %568 = vmatpush1.msra.mxu0 %v55
  %569 = vmatprep.subr.mxu0 %v52
  %570 = vmatpush1.msra.mxu0 %v51
  %571 = vmatprep.subr.mxu0 %v48
  %572 = vmatpush1.msra.mxu0 %v47
  %573 = vmatprep.subr.mxu0 %v44
  %574 = vmatpush1.msra.mxu0 %v43
  %575 = vmatprep.subr.mxu0 %v40
  %576 = vmatpush1.msra.mxu0 %v39
  %577 = vmatprep.subr.mxu0 %v36
  %578 = vmatpush1.msra.mxu0 %v35
  %579 = vmatprep.subr.mxu0 %v32
  %580 = vmatpush1.msra.mxu0 %v31
  %581 = vmatprep.subr.mxu0 0.0
  %582 = vmatpush2.msra.mxu0 0.0
  %583 = vmatprep.subr.mxu0 0.0
  %584 = vmatpush2.msra.mxu0 0.0
  %585 = vmatprep.subr.mxu0 0.0
  %586 = vmatpush2.msra.mxu0 0.0
  %587 = vmatprep.subr.mxu0 0.0
  %588 = vmatpush2.msra.mxu0 0.0
  %589 = vmatprep.subr.mxu0 0.0
  %590 = vmatpush2.msra.mxu0 0.0
  %591 = vmatprep.subr.mxu0 0.0
  %592 = vmatpush2.msra.mxu0 0.0
  %593 = vmatprep.subr.mxu0 0.0
  %594 = vmatpush2.msra.mxu0 0.0
  %595 = vmatprep.subr.mxu0 0.0
  %596 = vmatpush2.msra.mxu0 0.0
  %597 = vmatprep.subr.mxu0 0.0
  %598 = vmatpush2.msra.mxu0 0.0
  %599 = vmatprep.subr.mxu0 0.0
  %600 = vmatpush2.msra.mxu0 0.0
  %601 = vmatprep.subr.mxu0 0.0
  %602 = vmatpush2.msra.mxu0 0.0
  %603 = vmatprep.subr.mxu0 0.0
  %604 = vmatpush2.msra.mxu0 0.0
  %605 = vmatprep.subr.mxu0 0.0
  %606 = vmatpush2.msra.mxu0 0.0
  %607 = vmatprep.subr.mxu0 0.0
  %608 = vmatpush2.msra.mxu0 0.0
  %609 = vmatprep.subr.mxu0 0.0
  %610 = vmatpush2.msra.mxu0 0.0
  %611 = vmatprep.subr.mxu0 0.0
  %612 = vmatpush2.msra.mxu0 0.0
  %613 = vmatprep.mubr.f32.mxu0 0.0
  %614 = vmatmul.mubr.f32.gmra.mxu0 %v471
  %v615 = vpop.f32.mrf.mxu0
  %v616 = vadd.f32 0.0, %v615
  %v617 = vpop.f32.mrf.mxu0
  %v618 = vadd.f32 0.0, %v617
  %619 = vdwg.mxu0
  %v620 = vadd.f32 %v474, %v545
  %v621 = vadd.f32 %v475, %v547
  %v622 = vadd.f32 %v476, %v616
  %v623 = vadd.f32 %v477, %v618
  %v624 = vxor.u32 %v620, 2147483648
  %v625 = vmul.f32 %v624, 1.442695
  %v626 = vpow.pop %v625
  %v627 = vadd.f32 %v626, 1.0
  %v628 = vrcp.pop %v627
  %v629 = vmul.f32 1.0, %v628
  %v630 = vxor.u32 %v621, 2147483648
  %v631 = vmul.f32 %v630, 1.442695
  %v632 = vpow.pop %v631
  %v633 = vadd.f32 %v632, 1.0
  %v634 = vrcp.pop %v633
  %v635 = vmul.f32 1.0, %v634
  %v636 = vtanh.pop %v622
  %v637 = vxor.u32 %v623, 2147483648
  %v638 = vmul.f32 %v637, 1.442695
  %v639 = vpow.pop %v638
  %v640 = vadd.f32 %v639, 1.0
  %v641 = vrcp.pop %v640
  %v642 = vmul.f32 1.0, %v641
  %v643 = vmul.f32 %v635, %v472
  %v644 = vmul.f32 %v629, %v636
  %v645 = vadd.f32 %v643, %v644
  %v646 = vtanh.pop %v645
  %v647 = vmul.f32 %v642, %v646
  %v648 = vstv %s470
  %vm649 = vcmp.lt.s32.totalorder %v648, %v28
  %v650 = vsel %vm649, 1, 0
  %651 = vset.pattern.permute.xlu0 0
  %652 = vperm.xlu0 %651, %v650
  %v653 = vpop.permute.xlu0 %652
  %vm654 = vcmp.eq.s32.totalorder %v653, 1
  %v655 = vsel %vm654, %v647, %v471
  %656 = vst [vmem:[#allocation2] sm:$0xff] %v655
  %v657 = vsel %vm654, %v645, %v472
  %658 = vst [vmem:[#allocation3] sm:$0xff] %v657
  %s659 = sadd.s32 %s93, 3
  %v660 = vld [vmem:[#allocation2] sm:$0xff]
  %v661 = vld [vmem:[#allocation3] sm:$0xff]
  %s662 = scalar_lea.vmem %s0, 96
  %v663 = vld [vmem:[%s662] sm:$0xff]
  %v664 = vld [vmem:[%s662 + $0x8] sm:$0xff]
  %v665 = vld [vmem:[%s662 + $0x10] sm:$0xff]
  %v666 = vld [vmem:[%s662 + $0x18] sm:$0xff]
  %667 = vmatprep.subr.mxu0 %v90
  %668 = vmatpush1.msra.mxu0 %v89
  %669 = vmatprep.subr.mxu0 %v86
  %670 = vmatpush1.msra.mxu0 %v85
  %671 = vmatprep.subr.mxu0 %v82
  %672 = vmatpush1.msra.mxu0 %v81
  %673 = vmatprep.subr.mxu0 %v78
  %674 = vmatpush1.msra.mxu0 %v77
  %675 = vmatprep.subr.mxu0 %v74
  %676 = vmatpush1.msra.mxu0 %v73
  %677 = vmatprep.subr.mxu0 %v70
  %678 = vmatpush1.msra.mxu0 %v69
  %679 = vmatprep.subr.mxu0 %v66
  %680 = vmatpush1.msra.mxu0 %v65
  %681 = vmatprep.subr.mxu0 %v62
  %682 = vmatpush1.msra.mxu0 %v61
  %683 = vmatprep.subr.mxu0 %v58
  %684 = vmatpush1.msra.mxu0 %v57
  %685 = vmatprep.subr.mxu0 %v54
  %686 = vmatpush1.msra.mxu0 %v53
  %687 = vmatprep.subr.mxu0 %v50
  %688 = vmatpush1.msra.mxu0 %v49
  %689 = vmatprep.subr.mxu0 %v46
  %690 = vmatpush1.msra.mxu0 %v45
  %691 = vmatprep.subr.mxu0 %v42
  %692 = vmatpush1.msra.mxu0 %v41
  %693 = vmatprep.subr.mxu0 %v38
  %694 = vmatpush1.msra.mxu0 %v37
  %695 = vmatprep.subr.mxu0 %v34
  %696 = vmatpush1.msra.mxu0 %v33
  %697 = vmatprep.subr.mxu0 %v30
  %698 = vmatpush1.msra.mxu0 %v29
  %699 = vmatprep.subr.mxu0 0.0
  %700 = vmatpush2.msra.mxu0 0.0
  %701 = vmatprep.subr.mxu0 0.0
  %702 = vmatpush2.msra.mxu0 0.0
  %703 = vmatprep.subr.mxu0 0.0
  %704 = vmatpush2.msra.mxu0 0.0
  %705 = vmatprep.subr.mxu0 0.0
  %706 = vmatpush2.msra.mxu0 0.0
  %707 = vmatprep.subr.mxu0 0.0
  %708 = vmatpush2.msra.mxu0 0.0
  %709 = vmatprep.subr.mxu0 0.0
  %710 = vmatpush2.msra.mxu0 0.0
  %711 = vmatprep.subr.mxu0 0.0
  %712 = vmatpush2.msra.mxu0 0.0
  %713 = vmatprep.subr.mxu0 0.0
  %714 = vmatpush2.msra.mxu0 0.0
  %715 = vmatprep.subr.mxu0 0.0
  %716 = vmatpush2.msra.mxu0 0.0
  %717 = vmatprep.subr.mxu0 0.0
  %718 = vmatpush2.msra.mxu0 0.0
  %719 = vmatprep.subr.mxu0 0.0
  %720 = vmatpush2.msra.mxu0 0.0
  %721 = vmatprep.subr.mxu0 0.0
  %722 = vmatpush2.msra.mxu0 0.0
  %723 = vmatprep.subr.mxu0 0.0
  %724 = vmatpush2.msra.mxu0 0.0
  %725 = vmatprep.subr.mxu0 0.0
  %726 = vmatpush2.msra.mxu0 0.0
  %727 = vmatprep.subr.mxu0 0.0
  %728 = vmatpush2.msra.mxu0 0.0
  %729 = vmatprep.subr.mxu0 0.0
  %730 = vmatpush2.msra.mxu0 0.0
  %731 = vmatprep.mubr.f32.mxu0 0.0
  %732 = vmatmul.mubr.f32.gmra.mxu0 %v660
  %v733 = vpop.f32.mrf.mxu0
  %v734 = vadd.f32 0.0, %v733
  %v735 = vpop.f32.mrf.mxu0
  %v736 = vadd.f32 0.0, %v735
  %737 = vdwg.mxu0
  %738 = vmatprep.subr.mxu0 %v92
  %739 = vmatpush1.msra.mxu0 %v91
  %740 = vmatprep.subr.mxu0 %v88
  %741 = vmatpush1.msra.mxu0 %v87
  %742 = vmatprep.subr.mxu0 %v84
  %743 = vmatpush1.msra.mxu0 %v83
  %744 = vmatprep.subr.mxu0 %v80
  %745 = vmatpush1.msra.mxu0 %v79
  %746 = vmatprep.subr.mxu0 %v76
  %747 = vmatpush1.msra.mxu0 %v75
  %748 = vmatprep.subr.mxu0 %v72
  %749 = vmatpush1.msra.mxu0 %v71
  %750 = vmatprep.subr.mxu0 %v68
  %751 = vmatpush1.msra.mxu0 %v67
  %752 = vmatprep.subr.mxu0 %v64
  %753 = vmatpush1.msra.mxu0 %v63
  %754 = vmatprep.subr.mxu0 %v60
  %755 = vmatpush1.msra.mxu0 %v59
  %756 = vmatprep.subr.mxu0 %v56
  %757 = vmatpush1.msra.mxu0 %v55
  %758 = vmatprep.subr.mxu0 %v52
  %759 = vmatpush1.msra.mxu0 %v51
  %760 = vmatprep.subr.mxu0 %v48
  %761 = vmatpush1.msra.mxu0 %v47
  %762 = vmatprep.subr.mxu0 %v44
  %763 = vmatpush1.msra.mxu0 %v43
  %764 = vmatprep.subr.mxu0 %v40
  %765 = vmatpush1.msra.mxu0 %v39
  %766 = vmatprep.subr.mxu0 %v36
  %767 = vmatpush1.msra.mxu0 %v35
  %768 = vmatprep.subr.mxu0 %v32
  %769 = vmatpush1.msra.mxu0 %v31
  %770 = vmatprep.subr.mxu0 0.0
  %771 = vmatpush2.msra.mxu0 0.0
  %772 = vmatprep.subr.mxu0 0.0
  %773 = vmatpush2.msra.mxu0 0.0
  %774 = vmatprep.subr.mxu0 0.0
  %775 = vmatpush2.msra.mxu0 0.0
  %776 = vmatprep.subr.mxu0 0.0
  %777 = vmatpush2.msra.mxu0 0.0
  %778 = vmatprep.subr.mxu0 0.0
  %779 = vmatpush2.msra.mxu0 0.0
  %780 = vmatprep.subr.mxu0 0.0
  %781 = vmatpush2.msra.mxu0 0.0
  %782 = vmatprep.subr.mxu0 0.0
  %783 = vmatpush2.msra.mxu0 0.0
  %784 = vmatprep.subr.mxu0 0.0
  %785 = vmatpush2.msra.mxu0 0.0
  %786 = vmatprep.subr.mxu0 0.0
  %787 = vmatpush2.msra.mxu0 0.0
  %788 = vmatprep.subr.mxu0 0.0
  %789 = vmatpush2.msra.mxu0 0.0
  %790 = vmatprep.subr.mxu0 0.0
  %791 = vmatpush2.msra.mxu0 0.0
  %792 = vmatprep.subr.mxu0 0.0
  %793 = vmatpush2.msra.mxu0 0.0
  %794 = vmatprep.subr.mxu0 0.0
  %795 = vmatpush2.msra.mxu0 0.0
  %796 = vmatprep.subr.mxu0 0.0
  %797 = vmatpush2.msra.mxu0 0.0
  %798 = vmatprep.subr.mxu0 0.0
  %799 = vmatpush2.msra.mxu0 0.0
  %800 = vmatprep.subr.mxu0 0.0
  %801 = vmatpush2.msra.mxu0 0.0
  %802 = vmatprep.mubr.f32.mxu0 0.0
  %803 = vmatmul.mubr.f32.gmra.mxu0 %v660
  %v804 = vpop.f32.mrf.mxu0
  %v805 = vadd.f32 0.0, %v804
  %v806 = vpop.f32.mrf.mxu0
  %v807 = vadd.f32 0.0, %v806
  %808 = vdwg.mxu0
  %v809 = vadd.f32 %v663, %v734
  %v810 = vadd.f32 %v664, %v736
  %v811 = vadd.f32 %v665, %v805
  %v812 = vadd.f32 %v666, %v807
  %v813 = vxor.u32 %v809, 2147483648
  %v814 = vmul.f32 %v813, 1.442695
  %v815 = vpow.pop %v814
  %v816 = vadd.f32 %v815, 1.0
  %v817 = vrcp.pop %v816
  %v818 = vmul.f32 1.0, %v817
  %v819 = vxor.u32 %v810, 2147483648
  %v820 = vmul.f32 %v819, 1.442695
  %v821 = vpow.pop %v820
  %v822 = vadd.f32 %v821, 1.0
  %v823 = vrcp.pop %v822
  %v824 = vmul.f32 1.0, %v823
  %v825 = vtanh.pop %v811
  %v826 = vxor.u32 %v812, 2147483648
  %v827 = vmul.f32 %v826, 1.442695
  %v828 = vpow.pop %v827
  %v829 = vadd.f32 %v828, 1.0
  %v830 = vrcp.pop %v829
  %v831 = vmul.f32 1.0, %v830
  %v832 = vmul.f32 %v824, %v661
  %v833 = vmul.f32 %v818, %v825
  %v834 = vadd.f32 %v832, %v833
  %v835 = vtanh.pop %v834
  %v836 = vmul.f32 %v831, %v835
  %v837 = vstv %s659
  %vm838 = vcmp.lt.s32.totalorder %v837, %v28
  %v839 = vsel %vm838, 1, 0
  %840 = vset.pattern.permute.xlu0 0
  %841 = vperm.xlu0 %840, %v839
  %v842 = vpop.permute.xlu0 %841
  %vm843 = vcmp.eq.s32.totalorder %v842, 1
  %v844 = vsel %vm843, %v836, %v660
  %845 = vst [vmem:[#allocation2] sm:$0xff] %v844
  %v846 = vsel %vm843, %v834, %v661
  %847 = vst [vmem:[#allocation3] sm:$0xff] %v846
  %s848 = sadd.s32 %s93, 4
  %v849 = vld [vmem:[#allocation2] sm:$0xff]
  %v850 = vld [vmem:[#allocation3] sm:$0xff]
  %s851 = scalar_lea.vmem %s0, 128
  %v852 = vld [vmem:[%s851] sm:$0xff]
  %v853 = vld [vmem:[%s851 + $0x8] sm:$0xff]
  %v854 = vld [vmem:[%s851 + $0x10] sm:$0xff]
  %v855 = vld [vmem:[%s851 + $0x18] sm:$0xff]
  %856 = vmatprep.subr.mxu0 %v90
  %857 = vmatpush1.msra.mxu0 %v89
  %858 = vmatprep.subr.mxu0 %v86
  %859 = vmatpush1.msra.mxu0 %v85
  %860 = vmatprep.subr.mxu0 %v82
  %861 = vmatpush1.msra.mxu0 %v81
  %862 = vmatprep.subr.mxu0 %v78
  %863 = vmatpush1.msra.mxu0 %v77
  %864 = vmatprep.subr.mxu0 %v74
  %865 = vmatpush1.msra.mxu0 %v73
  %866 = vmatprep.subr.mxu0 %v70
  %867 = vmatpush1.msra.mxu0 %v69
  %868 = vmatprep.subr.mxu0 %v66
  %869 = vmatpush1.msra.mxu0 %v65
  %870 = vmatprep.subr.mxu0 %v62
  %871 = vmatpush1.msra.mxu0 %v61
  %872 = vmatprep.subr.mxu0 %v58
  %873 = vmatpush1.msra.mxu0 %v57
  %874 = vmatprep.subr.mxu0 %v54
  %875 = vmatpush1.msra.mxu0 %v53
  %876 = vmatprep.subr.mxu0 %v50
  %877 = vmatpush1.msra.mxu0 %v49
  %878 = vmatprep.subr.mxu0 %v46
  %879 = vmatpush1.msra.mxu0 %v45
  %880 = vmatprep.subr.mxu0 %v42
  %881 = vmatpush1.msra.mxu0 %v41
  %882 = vmatprep.subr.mxu0 %v38
  %883 = vmatpush1.msra.mxu0 %v37
  %884 = vmatprep.subr.mxu0 %v34
  %885 = vmatpush1.msra.mxu0 %v33
  %886 = vmatprep.subr.mxu0 %v30
  %887 = vmatpush1.msra.mxu0 %v29
  %888 = vmatprep.subr.mxu0 0.0
  %889 = vmatpush2.msra.mxu0 0.0
  %890 = vmatprep.subr.mxu0 0.0
  %891 = vmatpush2.msra.mxu0 0.0
  %892 = vmatprep.subr.mxu0 0.0
  %893 = vmatpush2.msra.mxu0 0.0
  %894 = vmatprep.subr.mxu0 0.0
  %895 = vmatpush2.msra.mxu0 0.0
  %896 = vmatprep.subr.mxu0 0.0
  %897 = vmatpush2.msra.mxu0 0.0
  %898 = vmatprep.subr.mxu0 0.0
  %899 = vmatpush2.msra.mxu0 0.0
  %900 = vmatprep.subr.mxu0 0.0
  %901 = vmatpush2.msra.mxu0 0.0
  %902 = vmatprep.subr.mxu0 0.0
  %903 = vmatpush2.msra.mxu0 0.0
  %904 = vmatprep.subr.mxu0 0.0
  %905 = vmatpush2.msra.mxu0 0.0
  %906 = vmatprep.subr.mxu0 0.0
  %907 = vmatpush2.msra.mxu0 0.0
  %908 = vmatprep.subr.mxu0 0.0
  %909 = vmatpush2.msra.mxu0 0.0
  %910 = vmatprep.subr.mxu0 0.0
  %911 = vmatpush2.msra.mxu0 0.0
  %912 = vmatprep.subr.mxu0 0.0
  %913 = vmatpush2.msra.mxu0 0.0
  %914 = vmatprep.subr.mxu0 0.0
  %915 = vmatpush2.msra.mxu0 0.0
  %916 = vmatprep.subr.mxu0 0.0
  %917 = vmatpush2.msra.mxu0 0.0
  %918 = vmatprep.subr.mxu0 0.0
  %919 = vmatpush2.msra.mxu0 0.0
  %920 = vmatprep.mubr.f32.mxu0 0.0
  %921 = vmatmul.mubr.f32.gmra.mxu0 %v849
  %v922 = vpop.f32.mrf.mxu0
  %v923 = vadd.f32 0.0, %v922
  %v924 = vpop.f32.mrf.mxu0
  %v925 = vadd.f32 0.0, %v924
  %926 = vdwg.mxu0
  %927 = vmatprep.subr.mxu0 %v92
  %928 = vmatpush1.msra.mxu0 %v91
  %929 = vmatprep.subr.mxu0 %v88
  %930 = vmatpush1.msra.mxu0 %v87
  %931 = vmatprep.subr.mxu0 %v84
  %932 = vmatpush1.msra.mxu0 %v83
  %933 = vmatprep.subr.mxu0 %v80
  %934 = vmatpush1.msra.mxu0 %v79
  %935 = vmatprep.subr.mxu0 %v76
  %936 = vmatpush1.msra.mxu0 %v75
  %937 = vmatprep.subr.mxu0 %v72
  %938 = vmatpush1.msra.mxu0 %v71
  %939 = vmatprep.subr.mxu0 %v68
  %940 = vmatpush1.msra.mxu0 %v67
  %941 = vmatprep.subr.mxu0 %v64
  %942 = vmatpush1.msra.mxu0 %v63
  %943 = vmatprep.subr.mxu0 %v60
  %944 = vmatpush1.msra.mxu0 %v59
  %945 = vmatprep.subr.mxu0 %v56
  %946 = vmatpush1.msra.mxu0 %v55
  %947 = vmatprep.subr.mxu0 %v52
  %948 = vmatpush1.msra.mxu0 %v51
  %949 = vmatprep.subr.mxu0 %v48
  %950 = vmatpush1.msra.mxu0 %v47
  %951 = vmatprep.subr.mxu0 %v44
  %952 = vmatpush1.msra.mxu0 %v43
  %953 = vmatprep.subr.mxu0 %v40
  %954 = vmatpush1.msra.mxu0 %v39
  %955 = vmatprep.subr.mxu0 %v36
  %956 = vmatpush1.msra.mxu0 %v35
  %957 = vmatprep.subr.mxu0 %v32
  %958 = vmatpush1.msra.mxu0 %v31
  %959 = vmatprep.subr.mxu0 0.0
  %960 = vmatpush2.msra.mxu0 0.0
  %961 = vmatprep.subr.mxu0 0.0
  %962 = vmatpush2.msra.mxu0 0.0
  %963 = vmatprep.subr.mxu0 0.0
  %964 = vmatpush2.msra.mxu0 0.0
  %965 = vmatprep.subr.mxu0 0.0
  %966 = vmatpush2.msra.mxu0 0.0
  %967 = vmatprep.subr.mxu0 0.0
  %968 = vmatpush2.msra.mxu0 0.0
  %969 = vmatprep.subr.mxu0 0.0
  %970 = vmatpush2.msra.mxu0 0.0
  %971 = vmatprep.subr.mxu0 0.0
  %972 = vmatpush2.msra.mxu0 0.0
  %973 = vmatprep.subr.mxu0 0.0
  %974 = vmatpush2.msra.mxu0 0.0
  %975 = vmatprep.subr.mxu0 0.0
  %976 = vmatpush2.msra.mxu0 0.0
  %977 = vmatprep.subr.mxu0 0.0
  %978 = vmatpush2.msra.mxu0 0.0
  %979 = vmatprep.subr.mxu0 0.0
  %980 = vmatpush2.msra.mxu0 0.0
  %981 = vmatprep.subr.mxu0 0.0
  %982 = vmatpush2.msra.mxu0 0.0
  %983 = vmatprep.subr.mxu0 0.0
  %984 = vmatpush2.msra.mxu0 0.0
  %985 = vmatprep.subr.mxu0 0.0
  %986 = vmatpush2.msra.mxu0 0.0
  %987 = vmatprep.subr.mxu0 0.0
  %988 = vmatpush2.msra.mxu0 0.0
  %989 = vmatprep.subr.mxu0 0.0
  %990 = vmatpush2.msra.mxu0 0.0
  %991 = vmatprep.mubr.f32.mxu0 0.0
  %992 = vmatmul.mubr.f32.gmra.mxu0 %v849
  %v993 = vpop.f32.mrf.mxu0
  %v994 = vadd.f32 0.0, %v993
  %v995 = vpop.f32.mrf.mxu0
  %v996 = vadd.f32 0.0, %v995
  %997 = vdwg.mxu0
  %v998 = vadd.f32 %v852, %v923
  %v999 = vadd.f32 %v853, %v925
  %v1000 = vadd.f32 %v854, %v994
  %v1001 = vadd.f32 %v855, %v996
  %v1002 = vxor.u32 %v998, 2147483648
  %v1003 = vmul.f32 %v1002, 1.442695
  %v1004 = vpow.pop %v1003
  %v1005 = vadd.f32 %v1004, 1.0
  %v1006 = vrcp.pop %v1005
  %v1007 = vmul.f32 1.0, %v1006
  %v1008 = vxor.u32 %v999, 2147483648
  %v1009 = vmul.f32 %v1008, 1.442695
  %v1010 = vpow.pop %v1009
  %v1011 = vadd.f32 %v1010, 1.0
  %v1012 = vrcp.pop %v1011
  %v1013 = vmul.f32 1.0, %v1012
  %v1014 = vtanh.pop %v1000
  %v1015 = vxor.u32 %v1001, 2147483648
  %v1016 = vmul.f32 %v1015, 1.442695
  %v1017 = vpow.pop %v1016
  %v1018 = vadd.f32 %v1017, 1.0
  %v1019 = vrcp.pop %v1018
  %v1020 = vmul.f32 1.0, %v1019
  %v1021 = vmul.f32 %v1013, %v850
  %v1022 = vmul.f32 %v1007, %v1014
  %v1023 = vadd.f32 %v1021, %v1022
  %v1024 = vtanh.pop %v1023
  %v1025 = vmul.f32 %v1020, %v1024
  %v1026 = vstv %s848
  %vm1027 = vcmp.lt.s32.totalorder %v1026, %v28
  %v1028 = vsel %vm1027, 1, 0
  %1029 = vset.pattern.permute.xlu0 0
  %1030 = vperm.xlu0 %1029, %v1028
  %v1031 = vpop.permute.xlu0 %1030
  %vm1032 = vcmp.eq.s32.totalorder %v1031, 1
  %v1033 = vsel %vm1032, %v1025, %v849
  %1034 = vst [vmem:[#allocation2] sm:$0xff] %v1033
  %v1035 = vsel %vm1032, %v1023, %v850
  %1036 = vst [vmem:[#allocation3] sm:$0xff] %v1035
  %s1037 = sadd.s32 %s93, 5
  %v1038 = vld [vmem:[#allocation2] sm:$0xff]
  %v1039 = vld [vmem:[#allocation3] sm:$0xff]
  %s1040 = scalar_lea.vmem %s0, 160
  %v1041 = vld [vmem:[%s1040] sm:$0xff]
  %v1042 = vld [vmem:[%s1040 + $0x8] sm:$0xff]
  %v1043 = vld [vmem:[%s1040 + $0x10] sm:$0xff]
  %v1044 = vld [vmem:[%s1040 + $0x18] sm:$0xff]
  %1045 = vmatprep.subr.mxu0 %v90
  %1046 = vmatpush1.msra.mxu0 %v89
  %1047 = vmatprep.subr.mxu0 %v86
  %1048 = vmatpush1.msra.mxu0 %v85
  %1049 = vmatprep.subr.mxu0 %v82
  %1050 = vmatpush1.msra.mxu0 %v81
  %1051 = vmatprep.subr.mxu0 %v78
  %1052 = vmatpush1.msra.mxu0 %v77
  %1053 = vmatprep.subr.mxu0 %v74
  %1054 = vmatpush1.msra.mxu0 %v73
  %1055 = vmatprep.subr.mxu0 %v70
  %1056 = vmatpush1.msra.mxu0 %v69
  %1057 = vmatprep.subr.mxu0 %v66
  %1058 = vmatpush1.msra.mxu0 %v65
  %1059 = vmatprep.subr.mxu0 %v62
  %1060 = vmatpush1.msra.mxu0 %v61
  %1061 = vmatprep.subr.mxu0 %v58
  %1062 = vmatpush1.msra.mxu0 %v57
  %1063 = vmatprep.subr.mxu0 %v54
  %1064 = vmatpush1.msra.mxu0 %v53
  %1065 = vmatprep.subr.mxu0 %v50
  %1066 = vmatpush1.msra.mxu0 %v49
  %1067 = vmatprep.subr.mxu0 %v46
  %1068 = vmatpush1.msra.mxu0 %v45
  %1069 = vmatprep.subr.mxu0 %v42
  %1070 = vmatpush1.msra.mxu0 %v41
  %1071 = vmatprep.subr.mxu0 %v38
  %1072 = vmatpush1.msra.mxu0 %v37
  %1073 = vmatprep.subr.mxu0 %v34
  %1074 = vmatpush1.msra.mxu0 %v33
  %1075 = vmatprep.subr.mxu0 %v30
  %1076 = vmatpush1.msra.mxu0 %v29
  %1077 = vmatprep.subr.mxu0 0.0
  %1078 = vmatpush2.msra.mxu0 0.0
  %1079 = vmatprep.subr.mxu0 0.0
  %1080 = vmatpush2.msra.mxu0 0.0
  %1081 = vmatprep.subr.mxu0 0.0
  %1082 = vmatpush2.msra.mxu0 0.0
  %1083 = vmatprep.subr.mxu0 0.0
  %1084 = vmatpush2.msra.mxu0 0.0
  %1085 = vmatprep.subr.mxu0 0.0
  %1086 = vmatpush2.msra.mxu0 0.0
  %1087 = vmatprep.subr.mxu0 0.0
  %1088 = vmatpush2.msra.mxu0 0.0
  %1089 = vmatprep.subr.mxu0 0.0
  %1090 = vmatpush2.msra.mxu0 0.0
  %1091 = vmatprep.subr.mxu0 0.0
  %1092 = vmatpush2.msra.mxu0 0.0
  %1093 = vmatprep.subr.mxu0 0.0
  %1094 = vmatpush2.msra.mxu0 0.0
  %1095 = vmatprep.subr.mxu0 0.0
  %1096 = vmatpush2.msra.mxu0 0.0
  %1097 = vmatprep.subr.mxu0 0.0
  %1098 = vmatpush2.msra.mxu0 0.0
  %1099 = vmatprep.subr.mxu0 0.0
  %1100 = vmatpush2.msra.mxu0 0.0
  %1101 = vmatprep.subr.mxu0 0.0
  %1102 = vmatpush2.msra.mxu0 0.0
  %1103 = vmatprep.subr.mxu0 0.0
  %1104 = vmatpush2.msra.mxu0 0.0
  %1105 = vmatprep.subr.mxu0 0.0
  %1106 = vmatpush2.msra.mxu0 0.0
  %1107 = vmatprep.subr.mxu0 0.0
  %1108 = vmatpush2.msra.mxu0 0.0
  %1109 = vmatprep.mubr.f32.mxu0 0.0
  %1110 = vmatmul.mubr.f32.gmra.mxu0 %v1038
  %v1111 = vpop.f32.mrf.mxu0
  %v1112 = vadd.f32 0.0, %v1111
  %v1113 = vpop.f32.mrf.mxu0
  %v1114 = vadd.f32 0.0, %v1113
  %1115 = vdwg.mxu0
  %1116 = vmatprep.subr.mxu0 %v92
  %1117 = vmatpush1.msra.mxu0 %v91
  %1118 = vmatprep.subr.mxu0 %v88
  %1119 = vmatpush1.msra.mxu0 %v87
  %1120 = vmatprep.subr.mxu0 %v84
  %1121 = vmatpush1.msra.mxu0 %v83
  %1122 = vmatprep.subr.mxu0 %v80
  %1123 = vmatpush1.msra.mxu0 %v79
  %1124 = vmatprep.subr.mxu0 %v76
  %1125 = vmatpush1.msra.mxu0 %v75
  %1126 = vmatprep.subr.mxu0 %v72
  %1127 = vmatpush1.msra.mxu0 %v71
  %1128 = vmatprep.subr.mxu0 %v68
  %1129 = vmatpush1.msra.mxu0 %v67
  %1130 = vmatprep.subr.mxu0 %v64
  %1131 = vmatpush1.msra.mxu0 %v63
  %1132 = vmatprep.subr.mxu0 %v60
  %1133 = vmatpush1.msra.mxu0 %v59
  %1134 = vmatprep.subr.mxu0 %v56
  %1135 = vmatpush1.msra.mxu0 %v55
  %1136 = vmatprep.subr.mxu0 %v52
  %1137 = vmatpush1.msra.mxu0 %v51
  %1138 = vmatprep.subr.mxu0 %v48
  %1139 = vmatpush1.msra.mxu0 %v47
  %1140 = vmatprep.subr.mxu0 %v44
  %1141 = vmatpush1.msra.mxu0 %v43
  %1142 = vmatprep.subr.mxu0 %v40
  %1143 = vmatpush1.msra.mxu0 %v39
  %1144 = vmatprep.subr.mxu0 %v36
  %1145 = vmatpush1.msra.mxu0 %v35
  %1146 = vmatprep.subr.mxu0 %v32
  %1147 = vmatpush1.msra.mxu0 %v31
  %1148 = vmatprep.subr.mxu0 0.0
  %1149 = vmatpush2.msra.mxu0 0.0
  %1150 = vmatprep.subr.mxu0 0.0
  %1151 = vmatpush2.msra.mxu0 0.0
  %1152 = vmatprep.subr.mxu0 0.0
  %1153 = vmatpush2.msra.mxu0 0.0
  %1154 = vmatprep.subr.mxu0 0.0
  %1155 = vmatpush2.msra.mxu0 0.0
  %1156 = vmatprep.subr.mxu0 0.0
  %1157 = vmatpush2.msra.mxu0 0.0
  %1158 = vmatprep.subr.mxu0 0.0
  %1159 = vmatpush2.msra.mxu0 0.0
  %1160 = vmatprep.subr.mxu0 0.0
  %1161 = vmatpush2.msra.mxu0 0.0
  %1162 = vmatprep.subr.mxu0 0.0
  %1163 = vmatpush2.msra.mxu0 0.0
  %1164 = vmatprep.subr.mxu0 0.0
  %1165 = vmatpush2.msra.mxu0 0.0
  %1166 = vmatprep.subr.mxu0 0.0
  %1167 = vmatpush2.msra.mxu0 0.0
  %1168 = vmatprep.subr.mxu0 0.0
  %1169 = vmatpush2.msra.mxu0 0.0
  %1170 = vmatprep.subr.mxu0 0.0
  %1171 = vmatpush2.msra.mxu0 0.0
  %1172 = vmatprep.subr.mxu0 0.0
  %1173 = vmatpush2.msra.mxu0 0.0
  %1174 = vmatprep.subr.mxu0 0.0
  %1175 = vmatpush2.msra.mxu0 0.0
  %1176 = vmatprep.subr.mxu0 0.0
  %1177 = vmatpush2.msra.mxu0 0.0
  %1178 = vmatprep.subr.mxu0 0.0
  %1179 = vmatpush2.msra.mxu0 0.0
  %1180 = vmatprep.mubr.f32.mxu0 0.0
  %1181 = vmatmul.mubr.f32.gmra.mxu0 %v1038
  %v1182 = vpop.f32.mrf.mxu0
  %v1183 = vadd.f32 0.0, %v1182
  %v1184 = vpop.f32.mrf.mxu0
  %v1185 = vadd.f32 0.0, %v1184
  %1186 = vdwg.mxu0
  %v1187 = vadd.f32 %v1041, %v1112
  %v1188 = vadd.f32 %v1042, %v1114
  %v1189 = vadd.f32 %v1043, %v1183
  %v1190 = vadd.f32 %v1044, %v1185
  %v1191 = vxor.u32 %v1187, 2147483648
  %v1192 = vmul.f32 %v1191, 1.442695
  %v1193 = vpow.pop %v1192
  %v1194 = vadd.f32 %v1193, 1.0
  %v1195 = vrcp.pop %v1194
  %v1196 = vmul.f32 1.0, %v1195
  %v1197 = vxor.u32 %v1188, 2147483648
  %v1198 = vmul.f32 %v1197, 1.442695
  %v1199 = vpow.pop %v1198
  %v1200 = vadd.f32 %v1199, 1.0
  %v1201 = vrcp.pop %v1200
  %v1202 = vmul.f32 1.0, %v1201
  %v1203 = vtanh.pop %v1189
  %v1204 = vxor.u32 %v1190, 2147483648
  %v1205 = vmul.f32 %v1204, 1.442695
  %v1206 = vpow.pop %v1205
  %v1207 = vadd.f32 %v1206, 1.0
  %v1208 = vrcp.pop %v1207
  %v1209 = vmul.f32 1.0, %v1208
  %v1210 = vmul.f32 %v1202, %v1039
  %v1211 = vmul.f32 %v1196, %v1203
  %v1212 = vadd.f32 %v1210, %v1211
  %v1213 = vtanh.pop %v1212
  %v1214 = vmul.f32 %v1209, %v1213
  %v1215 = vstv %s1037
  %vm1216 = vcmp.lt.s32.totalorder %v1215, %v28
  %v1217 = vsel %vm1216, 1, 0
  %1218 = vset.pattern.permute.xlu0 0
  %1219 = vperm.xlu0 %1218, %v1217
  %v1220 = vpop.permute.xlu0 %1219
  %vm1221 = vcmp.eq.s32.totalorder %v1220, 1
  %v1222 = vsel %vm1221, %v1214, %v1038
  %1223 = vst [vmem:[#allocation2] sm:$0xff] %v1222
  %v1224 = vsel %vm1221, %v1212, %v1039
  %1225 = vst [vmem:[#allocation3] sm:$0xff] %v1224
  %s1226 = sadd.s32 %s93, 6
  %v1227 = vld [vmem:[#allocation2] sm:$0xff]
  %v1228 = vld [vmem:[#allocation3] sm:$0xff]
  %s1229 = scalar_lea.vmem %s0, 192
  %v1230 = vld [vmem:[%s1229] sm:$0xff]
  %v1231 = vld [vmem:[%s1229 + $0x8] sm:$0xff]
  %v1232 = vld [vmem:[%s1229 + $0x10] sm:$0xff]
  %v1233 = vld [vmem:[%s1229 + $0x18] sm:$0xff]
  %1234 = vmatprep.subr.mxu0 %v90
  %1235 = vmatpush1.msra.mxu0 %v89
  %1236 = vmatprep.subr.mxu0 %v86
  %1237 = vmatpush1.msra.mxu0 %v85
  %1238 = vmatprep.subr.mxu0 %v82
  %1239 = vmatpush1.msra.mxu0 %v81
  %1240 = vmatprep.subr.mxu0 %v78
  %1241 = vmatpush1.msra.mxu0 %v77
  %1242 = vmatprep.subr.mxu0 %v74
  %1243 = vmatpush1.msra.mxu0 %v73
  %1244 = vmatprep.subr.mxu0 %v70
  %1245 = vmatpush1.msra.mxu0 %v69
  %1246 = vmatprep.subr.mxu0 %v66
  %1247 = vmatpush1.msra.mxu0 %v65
  %1248 = vmatprep.subr.mxu0 %v62
  %1249 = vmatpush1.msra.mxu0 %v61
  %1250 = vmatprep.subr.mxu0 %v58
  %1251 = vmatpush1.msra.mxu0 %v57
  %1252 = vmatprep.subr.mxu0 %v54
  %1253 = vmatpush1.msra.mxu0 %v53
  %1254 = vmatprep.subr.mxu0 %v50
  %1255 = vmatpush1.msra.mxu0 %v49
  %1256 = vmatprep.subr.mxu0 %v46
  %1257 = vmatpush1.msra.mxu0 %v45
  %1258 = vmatprep.subr.mxu0 %v42
  %1259 = vmatpush1.msra.mxu0 %v41
  %1260 = vmatprep.subr.mxu0 %v38
  %1261 = vmatpush1.msra.mxu0 %v37
  %1262 = vmatprep.subr.mxu0 %v34
  %1263 = vmatpush1.msra.mxu0 %v33
  %1264 = vmatprep.subr.mxu0 %v30
  %1265 = vmatpush1.msra.mxu0 %v29
  %1266 = vmatprep.subr.mxu0 0.0
  %1267 = vmatpush2.msra.mxu0 0.0
  %1268 = vmatprep.subr.mxu0 0.0
  %1269 = vmatpush2.msra.mxu0 0.0
  %1270 = vmatprep.subr.mxu0 0.0
  %1271 = vmatpush2.msra.mxu0 0.0
  %1272 = vmatprep.subr.mxu0 0.0
  %1273 = vmatpush2.msra.mxu0 0.0
  %1274 = vmatprep.subr.mxu0 0.0
  %1275 = vmatpush2.msra.mxu0 0.0
  %1276 = vmatprep.subr.mxu0 0.0
  %1277 = vmatpush2.msra.mxu0 0.0
  %1278 = vmatprep.subr.mxu0 0.0
  %1279 = vmatpush2.msra.mxu0 0.0
  %1280 = vmatprep.subr.mxu0 0.0
  %1281 = vmatpush2.msra.mxu0 0.0
  %1282 = vmatprep.subr.mxu0 0.0
  %1283 = vmatpush2.msra.mxu0 0.0
  %1284 = vmatprep.subr.mxu0 0.0
  %1285 = vmatpush2.msra.mxu0 0.0
  %1286 = vmatprep.subr.mxu0 0.0
  %1287 = vmatpush2.msra.mxu0 0.0
  %1288 = vmatprep.subr.mxu0 0.0
  %1289 = vmatpush2.msra.mxu0 0.0
  %1290 = vmatprep.subr.mxu0 0.0
  %1291 = vmatpush2.msra.mxu0 0.0
  %1292 = vmatprep.subr.mxu0 0.0
  %1293 = vmatpush2.msra.mxu0 0.0
  %1294 = vmatprep.subr.mxu0 0.0
  %1295 = vmatpush2.msra.mxu0 0.0
  %1296 = vmatprep.subr.mxu0 0.0
  %1297 = vmatpush2.msra.mxu0 0.0
  %1298 = vmatprep.mubr.f32.mxu0 0.0
  %1299 = vmatmul.mubr.f32.gmra.mxu0 %v1227
  %v1300 = vpop.f32.mrf.mxu0
  %v1301 = vadd.f32 0.0, %v1300
  %v1302 = vpop.f32.mrf.mxu0
  %v1303 = vadd.f32 0.0, %v1302
  %1304 = vdwg.mxu0
  %1305 = vmatprep.subr.mxu0 %v92
  %1306 = vmatpush1.msra.mxu0 %v91
  %1307 = vmatprep.subr.mxu0 %v88
  %1308 = vmatpush1.msra.mxu0 %v87
  %1309 = vmatprep.subr.mxu0 %v84
  %1310 = vmatpush1.msra.mxu0 %v83
  %1311 = vmatprep.subr.mxu0 %v80
  %1312 = vmatpush1.msra.mxu0 %v79
  %1313 = vmatprep.subr.mxu0 %v76
  %1314 = vmatpush1.msra.mxu0 %v75
  %1315 = vmatprep.subr.mxu0 %v72
  %1316 = vmatpush1.msra.mxu0 %v71
  %1317 = vmatprep.subr.mxu0 %v68
  %1318 = vmatpush1.msra.mxu0 %v67
  %1319 = vmatprep.subr.mxu0 %v64
  %1320 = vmatpush1.msra.mxu0 %v63
  %1321 = vmatprep.subr.mxu0 %v60
  %1322 = vmatpush1.msra.mxu0 %v59
  %1323 = vmatprep.subr.mxu0 %v56
  %1324 = vmatpush1.msra.mxu0 %v55
  %1325 = vmatprep.subr.mxu0 %v52
  %1326 = vmatpush1.msra.mxu0 %v51
  %1327 = vmatprep.subr.mxu0 %v48
  %1328 = vmatpush1.msra.mxu0 %v47
  %1329 = vmatprep.subr.mxu0 %v44
  %1330 = vmatpush1.msra.mxu0 %v43
  %1331 = vmatprep.subr.mxu0 %v40
  %1332 = vmatpush1.msra.mxu0 %v39
  %1333 = vmatprep.subr.mxu0 %v36
  %1334 = vmatpush1.msra.mxu0 %v35
  %1335 = vmatprep.subr.mxu0 %v32
  %1336 = vmatpush1.msra.mxu0 %v31
  %1337 = vmatprep.subr.mxu0 0.0
  %1338 = vmatpush2.msra.mxu0 0.0
  %1339 = vmatprep.subr.mxu0 0.0
  %1340 = vmatpush2.msra.mxu0 0.0
  %1341 = vmatprep.subr.mxu0 0.0
  %1342 = vmatpush2.msra.mxu0 0.0
  %1343 = vmatprep.subr.mxu0 0.0
  %1344 = vmatpush2.msra.mxu0 0.0
  %1345 = vmatprep.subr.mxu0 0.0
  %1346 = vmatpush2.msra.mxu0 0.0
  %1347 = vmatprep.subr.mxu0 0.0
  %1348 = vmatpush2.msra.mxu0 0.0
  %1349 = vmatprep.subr.mxu0 0.0
  %1350 = vmatpush2.msra.mxu0 0.0
  %1351 = vmatprep.subr.mxu0 0.0
  %1352 = vmatpush2.msra.mxu0 0.0
  %1353 = vmatprep.subr.mxu0 0.0
  %1354 = vmatpush2.msra.mxu0 0.0
  %1355 = vmatprep.subr.mxu0 0.0
  %1356 = vmatpush2.msra.mxu0 0.0
  %1357 = vmatprep.subr.mxu0 0.0
  %1358 = vmatpush2.msra.mxu0 0.0
  %1359 = vmatprep.subr.mxu0 0.0
  %1360 = vmatpush2.msra.mxu0 0.0
  %1361 = vmatprep.subr.mxu0 0.0
  %1362 = vmatpush2.msra.mxu0 0.0
  %1363 = vmatprep.subr.mxu0 0.0
  %1364 = vmatpush2.msra.mxu0 0.0
  %1365 = vmatprep.subr.mxu0 0.0
  %1366 = vmatpush2.msra.mxu0 0.0
  %1367 = vmatprep.subr.mxu0 0.0
  %1368 = vmatpush2.msra.mxu0 0.0
  %1369 = vmatprep.mubr.f32.mxu0 0.0
  %1370 = vmatmul.mubr.f32.gmra.mxu0 %v1227
  %v1371 = vpop.f32.mrf.mxu0
  %v1372 = vadd.f32 0.0, %v1371
  %v1373 = vpop.f32.mrf.mxu0
  %v1374 = vadd.f32 0.0, %v1373
  %1375 = vdwg.mxu0
  %v1376 = vadd.f32 %v1230, %v1301
  %v1377 = vadd.f32 %v1231, %v1303
  %v1378 = vadd.f32 %v1232, %v1372
  %v1379 = vadd.f32 %v1233, %v1374
  %v1380 = vxor.u32 %v1376, 2147483648
  %v1381 = vmul.f32 %v1380, 1.442695
  %v1382 = vpow.pop %v1381
  %v1383 = vadd.f32 %v1382, 1.0
  %v1384 = vrcp.pop %v1383
  %v1385 = vmul.f32 1.0, %v1384
  %v1386 = vxor.u32 %v1377, 2147483648
  %v1387 = vmul.f32 %v1386, 1.442695
  %v1388 = vpow.pop %v1387
  %v1389 = vadd.f32 %v1388, 1.0
  %v1390 = vrcp.pop %v1389
  %v1391 = vmul.f32 1.0, %v1390
  %v1392 = vtanh.pop %v1378
  %v1393 = vxor.u32 %v1379, 2147483648
  %v1394 = vmul.f32 %v1393, 1.442695
  %v1395 = vpow.pop %v1394
  %v1396 = vadd.f32 %v1395, 1.0
  %v1397 = vrcp.pop %v1396
  %v1398 = vmul.f32 1.0, %v1397
  %v1399 = vmul.f32 %v1391, %v1228
  %v1400 = vmul.f32 %v1385, %v1392
  %v1401 = vadd.f32 %v1399, %v1400
  %v1402 = vtanh.pop %v1401
  %v1403 = vmul.f32 %v1398, %v1402
  %v1404 = vstv %s1226
  %vm1405 = vcmp.lt.s32.totalorder %v1404, %v28
  %v1406 = vsel %vm1405, 1, 0
  %1407 = vset.pattern.permute.xlu0 0
  %1408 = vperm.xlu0 %1407, %v1406
  %v1409 = vpop.permute.xlu0 %1408
  %vm1410 = vcmp.eq.s32.totalorder %v1409, 1
  %v1411 = vsel %vm1410, %v1403, %v1227
  %1412 = vst [vmem:[#allocation2] sm:$0xff] %v1411
  %v1413 = vsel %vm1410, %v1401, %v1228
  %1414 = vst [vmem:[#allocation3] sm:$0xff] %v1413
  %s1415 = sadd.s32 %s93, 7
  %v1416 = vld [vmem:[#allocation2] sm:$0xff]
  %v1417 = vld [vmem:[#allocation3] sm:$0xff]
  %s1418 = scalar_lea.vmem %s0, 224
  %v1419 = vld [vmem:[%s1418] sm:$0xff]
  %v1420 = vld [vmem:[%s1418 + $0x8] sm:$0xff]
  %v1421 = vld [vmem:[%s1418 + $0x10] sm:$0xff]
  %v1422 = vld [vmem:[%s1418 + $0x18] sm:$0xff]
  %1423 = vmatprep.subr.mxu0 %v90
  %1424 = vmatpush1.msra.mxu0 %v89
  %1425 = vmatprep.subr.mxu0 %v86
  %1426 = vmatpush1.msra.mxu0 %v85
  %1427 = vmatprep.subr.mxu0 %v82
  %1428 = vmatpush1.msra.mxu0 %v81
  %1429 = vmatprep.subr.mxu0 %v78
  %1430 = vmatpush1.msra.mxu0 %v77
  %1431 = vmatprep.subr.mxu0 %v74
  %1432 = vmatpush1.msra.mxu0 %v73
  %1433 = vmatprep.subr.mxu0 %v70
  %1434 = vmatpush1.msra.mxu0 %v69
  %1435 = vmatprep.subr.mxu0 %v66
  %1436 = vmatpush1.msra.mxu0 %v65
  %1437 = vmatprep.subr.mxu0 %v62
  %1438 = vmatpush1.msra.mxu0 %v61
  %1439 = vmatprep.subr.mxu0 %v58
  %1440 = vmatpush1.msra.mxu0 %v57
  %1441 = vmatprep.subr.mxu0 %v54
  %1442 = vmatpush1.msra.mxu0 %v53
  %1443 = vmatprep.subr.mxu0 %v50
  %1444 = vmatpush1.msra.mxu0 %v49
  %1445 = vmatprep.subr.mxu0 %v46
  %1446 = vmatpush1.msra.mxu0 %v45
  %1447 = vmatprep.subr.mxu0 %v42
  %1448 = vmatpush1.msra.mxu0 %v41
  %1449 = vmatprep.subr.mxu0 %v38
  %1450 = vmatpush1.msra.mxu0 %v37
  %1451 = vmatprep.subr.mxu0 %v34
  %1452 = vmatpush1.msra.mxu0 %v33
  %1453 = vmatprep.subr.mxu0 %v30
  %1454 = vmatpush1.msra.mxu0 %v29
  %1455 = vmatprep.subr.mxu0 0.0
  %1456 = vmatpush2.msra.mxu0 0.0
  %1457 = vmatprep.subr.mxu0 0.0
  %1458 = vmatpush2.msra.mxu0 0.0
  %1459 = vmatprep.subr.mxu0 0.0
  %1460 = vmatpush2.msra.mxu0 0.0
  %1461 = vmatprep.subr.mxu0 0.0
  %1462 = vmatpush2.msra.mxu0 0.0
  %1463 = vmatprep.subr.mxu0 0.0
  %1464 = vmatpush2.msra.mxu0 0.0
  %1465 = vmatprep.subr.mxu0 0.0
  %1466 = vmatpush2.msra.mxu0 0.0
  %1467 = vmatprep.subr.mxu0 0.0
  %1468 = vmatpush2.msra.mxu0 0.0
  %1469 = vmatprep.subr.mxu0 0.0
  %1470 = vmatpush2.msra.mxu0 0.0
  %1471 = vmatprep.subr.mxu0 0.0
  %1472 = vmatpush2.msra.mxu0 0.0
  %1473 = vmatprep.subr.mxu0 0.0
  %1474 = vmatpush2.msra.mxu0 0.0
  %1475 = vmatprep.subr.mxu0 0.0
  %1476 = vmatpush2.msra.mxu0 0.0
  %1477 = vmatprep.subr.mxu0 0.0
  %1478 = vmatpush2.msra.mxu0 0.0
  %1479 = vmatprep.subr.mxu0 0.0
  %1480 = vmatpush2.msra.mxu0 0.0
  %1481 = vmatprep.subr.mxu0 0.0
  %1482 = vmatpush2.msra.mxu0 0.0
  %1483 = vmatprep.subr.mxu0 0.0
  %1484 = vmatpush2.msra.mxu0 0.0
  %1485 = vmatprep.subr.mxu0 0.0
  %1486 = vmatpush2.msra.mxu0 0.0
  %1487 = vmatprep.mubr.f32.mxu0 0.0
  %1488 = vmatmul.mubr.f32.gmra.mxu0 %v1416
  %v1489 = vpop.f32.mrf.mxu0
  %v1490 = vadd.f32 0.0, %v1489
  %v1491 = vpop.f32.mrf.mxu0
  %v1492 = vadd.f32 0.0, %v1491
  %1493 = vdwg.mxu0
  %1494 = vmatprep.subr.mxu0 %v92
  %1495 = vmatpush1.msra.mxu0 %v91
  %1496 = vmatprep.subr.mxu0 %v88
  %1497 = vmatpush1.msra.mxu0 %v87
  %1498 = vmatprep.subr.mxu0 %v84
  %1499 = vmatpush1.msra.mxu0 %v83
  %1500 = vmatprep.subr.mxu0 %v80
  %1501 = vmatpush1.msra.mxu0 %v79
  %1502 = vmatprep.subr.mxu0 %v76
  %1503 = vmatpush1.msra.mxu0 %v75
  %1504 = vmatprep.subr.mxu0 %v72
  %1505 = vmatpush1.msra.mxu0 %v71
  %1506 = vmatprep.subr.mxu0 %v68
  %1507 = vmatpush1.msra.mxu0 %v67
  %1508 = vmatprep.subr.mxu0 %v64
  %1509 = vmatpush1.msra.mxu0 %v63
  %1510 = vmatprep.subr.mxu0 %v60
  %1511 = vmatpush1.msra.mxu0 %v59
  %1512 = vmatprep.subr.mxu0 %v56
  %1513 = vmatpush1.msra.mxu0 %v55
  %1514 = vmatprep.subr.mxu0 %v52
  %1515 = vmatpush1.msra.mxu0 %v51
  %1516 = vmatprep.subr.mxu0 %v48
  %1517 = vmatpush1.msra.mxu0 %v47
  %1518 = vmatprep.subr.mxu0 %v44
  %1519 = vmatpush1.msra.mxu0 %v43
  %1520 = vmatprep.subr.mxu0 %v40
  %1521 = vmatpush1.msra.mxu0 %v39
  %1522 = vmatprep.subr.mxu0 %v36
  %1523 = vmatpush1.msra.mxu0 %v35
  %1524 = vmatprep.subr.mxu0 %v32
  %1525 = vmatpush1.msra.mxu0 %v31
  %1526 = vmatprep.subr.mxu0 0.0
  %1527 = vmatpush2.msra.mxu0 0.0
  %1528 = vmatprep.subr.mxu0 0.0
  %1529 = vmatpush2.msra.mxu0 0.0
  %1530 = vmatprep.subr.mxu0 0.0
  %1531 = vmatpush2.msra.mxu0 0.0
  %1532 = vmatprep.subr.mxu0 0.0
  %1533 = vmatpush2.msra.mxu0 0.0
  %1534 = vmatprep.subr.mxu0 0.0
  %1535 = vmatpush2.msra.mxu0 0.0
  %1536 = vmatprep.subr.mxu0 0.0
  %1537 = vmatpush2.msra.mxu0 0.0
  %1538 = vmatprep.subr.mxu0 0.0
  %1539 = vmatpush2.msra.mxu0 0.0
  %1540 = vmatprep.subr.mxu0 0.0
  %1541 = vmatpush2.msra.mxu0 0.0
  %1542 = vmatprep.subr.mxu0 0.0
  %1543 = vmatpush2.msra.mxu0 0.0
  %1544 = vmatprep.subr.mxu0 0.0
  %1545 = vmatpush2.msra.mxu0 0.0
  %1546 = vmatprep.subr.mxu0 0.0
  %1547 = vmatpush2.msra.mxu0 0.0
  %1548 = vmatprep.subr.mxu0 0.0
  %1549 = vmatpush2.msra.mxu0 0.0
  %1550 = vmatprep.subr.mxu0 0.0
  %1551 = vmatpush2.msra.mxu0 0.0
  %1552 = vmatprep.subr.mxu0 0.0
  %1553 = vmatpush2.msra.mxu0 0.0
  %1554 = vmatprep.subr.mxu0 0.0
  %1555 = vmatpush2.msra.mxu0 0.0
  %1556 = vmatprep.subr.mxu0 0.0
  %1557 = vmatpush2.msra.mxu0 0.0
  %1558 = vmatprep.mubr.f32.mxu0 0.0
  %1559 = vmatmul.mubr.f32.gmra.mxu0 %v1416
  %v1560 = vpop.f32.mrf.mxu0
  %v1561 = vadd.f32 0.0, %v1560
  %v1562 = vpop.f32.mrf.mxu0
  %v1563 = vadd.f32 0.0, %v1562
  %1564 = vdwg.mxu0
  %v1565 = vadd.f32 %v1419, %v1490
  %v1566 = vadd.f32 %v1420, %v1492
  %v1567 = vadd.f32 %v1421, %v1561
  %v1568 = vadd.f32 %v1422, %v1563
  %v1569 = vxor.u32 %v1565, 2147483648
  %v1570 = vmul.f32 %v1569, 1.442695
  %v1571 = vpow.pop %v1570
  %v1572 = vadd.f32 %v1571, 1.0
  %v1573 = vrcp.pop %v1572
  %v1574 = vmul.f32 1.0, %v1573
  %v1575 = vxor.u32 %v1566, 2147483648
  %v1576 = vmul.f32 %v1575, 1.442695
  %v1577 = vpow.pop %v1576
  %v1578 = vadd.f32 %v1577, 1.0
  %v1579 = vrcp.pop %v1578
  %v1580 = vmul.f32 1.0, %v1579
  %v1581 = vtanh.pop %v1567
  %v1582 = vxor.u32 %v1568, 2147483648
  %v1583 = vmul.f32 %v1582, 1.442695
  %v1584 = vpow.pop %v1583
  %v1585 = vadd.f32 %v1584, 1.0
  %v1586 = vrcp.pop %v1585
  %v1587 = vmul.f32 1.0, %v1586
  %v1588 = vmul.f32 %v1580, %v1417
  %v1589 = vmul.f32 %v1574, %v1581
  %v1590 = vadd.f32 %v1588, %v1589
  %v1591 = vtanh.pop %v1590
  %v1592 = vmul.f32 %v1587, %v1591
  %v1593 = vstv %s1415
  %vm1594 = vcmp.lt.s32.totalorder %v1593, %v28
  %v1595 = vsel %vm1594, 1, 0
  %1596 = vset.pattern.permute.xlu0 0
  %1597 = vperm.xlu0 %1596, %v1595
  %v1598 = vpop.permute.xlu0 %1597
  %vm1599 = vcmp.eq.s32.totalorder %v1598, 1
  %v1600 = vsel %vm1599, %v1592, %v1416
  %1601 = vst [vmem:[#allocation2] sm:$0xff] %v1600
  %v1602 = vsel %vm1599, %v1590, %v1417
  %1603 = vst [vmem:[#allocation3] sm:$0xff] %v1602
  // Predicated region
  $region26: #{sketch_rnn_forward.8} parent=0 // pred_check
    %p1604 = pneg %p20
  $region27: #{sketch_rnn_forward.8} parent=0 // pred_check_branch
    %1606 = sbr.rel (%p1604) target = $region29
  $region28: #{sketch_rnn_forward.8} parent=0 // pred_region
    %v1607 = vld [vmem:[#allocation2] sm:$0xff]
    %1608 = vst [vmem:[%s5] sm:$0xff] %v1607
  $region29: #{sketch_rnn_forward.8} parent=0 // pred_fallthru
    _
  // Predicated region
  $region30: #{sketch_rnn_forward.8} parent=0 // pred_check
    _
  $region31: #{sketch_rnn_forward.8} parent=0 // pred_check_branch
    %1610 = sbr.rel (0) target = $region33
  $region32: #{sketch_rnn_forward.8} parent=0 // pred_region
    _
  $region33: #{sketch_rnn_forward.8} parent=0 // pred_fallthru
    _
  // Predicated region
  $region34: #{sketch_rnn_forward.8} parent=0 // pred_check
    _
  $region35: #{sketch_rnn_forward.8} parent=0 // pred_check_branch
    %1612 = sbr.rel (0) target = $region37
  $region36: #{sketch_rnn_forward.8} parent=0 // pred_region
    _
  $region37: #{sketch_rnn_forward.8} parent=0 // pred_fallthru
    _

// kernel: sketch_rnn_forward.12
$region0: #{sketch_rnn_forward.12}
  #allocation0 [shape = 'u32[]', space=smem, size = 0x4, offset = 0x4, fixed_abs, tag = 'smem constant byte address 0x4 - core index']
  #allocation1 [shape = 'u32[144,128]{1,0:T(1,128)}', space=vmem, size = 0x12000, scoped, tag = 'internal scratch']
  %s0 = inlined_call_operand.vmem [shape: f32[8,128], index: 0, kind: input, shape index: {}]
  %s1 = inlined_call_operand.vmem [shape: f32[128,256], index: 1, kind: input, shape index: {}]
  %s2 = inlined_call_operand.vmem [shape: f32[1,256], index: 2, kind: input, shape index: {}]
  %s3 = inlined_call_operand.vmem [shape: f32[8,256], index: 3, kind: output, shape index: {}]
  %s4 = sld [smem:[#allocation0]]
  $region22: #{sketch_rnn_forward.12} parent=0
    _
  %s6 = ssub.s32 1, %s4
  %s7 = scalar_select 0, %s6, %s4
  // Predicated region
  $region2: #{sketch_rnn_forward.12} parent=0 // pred_check
    _
  $region3: #{sketch_rnn_forward.12} parent=0 // pred_check_branch
    %9 = sbr.rel (0) target = $region5
  $region4: #{sketch_rnn_forward.12} parent=0 // pred_region
    _
  $region5: #{sketch_rnn_forward.12} parent=0 // pred_fallthru
    _
  // Predicated region
  $region6: #{sketch_rnn_forward.12} parent=0 // pred_check
    _
  $region7: #{sketch_rnn_forward.12} parent=0 // pred_check_branch
    %11 = sbr.rel (0) target = $region9
  $region8: #{sketch_rnn_forward.12} parent=0 // pred_region
    _
  $region9: #{sketch_rnn_forward.12} parent=0 // pred_fallthru
    _
  // Predicated region
  $region10: #{sketch_rnn_forward.12} parent=0 // pred_check
    _
  $region11: #{sketch_rnn_forward.12} parent=0 // pred_check_branch
    %13 = sbr.rel (0) target = $region13
  $region12: #{sketch_rnn_forward.12} parent=0 // pred_region
    _
  $region13: #{sketch_rnn_forward.12} parent=0 // pred_fallthru
    _
  %v14 = vld [vmem:[%s0] sm:$0xff]
  %v15 = vld [vmem:[%s1] sm:$0xff]
  %v16 = vld [vmem:[%s1 + $0x8] sm:$0xff]
  %v17 = vld [vmem:[%s1 + $0x10] sm:$0xff]
  %v18 = vld [vmem:[%s1 + $0x18] sm:$0xff]
  %v19 = vld [vmem:[%s1 + $0x20] sm:$0xff]
  %v20 = vld [vmem:[%s1 + $0x28] sm:$0xff]
  %v21 = vld [vmem:[%s1 + $0x30] sm:$0xff]
  %v22 = vld [vmem:[%s1 + $0x38] sm:$0xff]
  %v23 = vld [vmem:[%s1 + $0x40] sm:$0xff]
  %v24 = vld [vmem:[%s1 + $0x48] sm:$0xff]
  %v25 = vld [vmem:[%s1 + $0x50] sm:$0xff]
  %v26 = vld [vmem:[%s1 + $0x58] sm:$0xff]
  %v27 = vld [vmem:[%s1 + $0x60] sm:$0xff]
  %v28 = vld [vmem:[%s1 + $0x68] sm:$0xff]
  %v29 = vld [vmem:[%s1 + $0x70] sm:$0xff]
  %v30 = vld [vmem:[%s1 + $0x78] sm:$0xff]
  %v31 = vld [vmem:[%s1 + $0x80] sm:$0xff]
  %v32 = vld [vmem:[%s1 + $0x88] sm:$0xff]
  %v33 = vld [vmem:[%s1 + $0x90] sm:$0xff]
  %v34 = vld [vmem:[%s1 + $0x98] sm:$0xff]
  %v35 = vld [vmem:[%s1 + $0xa0] sm:$0xff]
  %v36 = vld [vmem:[%s1 + $0xa8] sm:$0xff]
  %v37 = vld [vmem:[%s1 + $0xb0] sm:$0xff]
  %v38 = vld [vmem:[%s1 + $0xb8] sm:$0xff]
  %v39 = vld [vmem:[%s1 + $0xc0] sm:$0xff]
  %v40 = vld [vmem:[%s1 + $0xc8] sm:$0xff]
  %v41 = vld [vmem:[%s1 + $0xd0] sm:$0xff]
  %v42 = vld [vmem:[%s1 + $0xd8] sm:$0xff]
  %v43 = vld [vmem:[%s1 + $0xe0] sm:$0xff]
  %v44 = vld [vmem:[%s1 + $0xe8] sm:$0xff]
  %v45 = vld [vmem:[%s1 + $0xf0] sm:$0xff]
  %v46 = vld [vmem:[%s1 + $0xf8] sm:$0xff]
  %v47 = vld [vmem:[%s2] sm:$0x3]
  %v49 = vlaneseq
  %v50 = vshrl.u32 %v49, 7
  %v51 = vsub.s32 0, %v50
  %v52 = vrot.slane %v47, %v51
  %v53 = vlaneseq
  %v54 = vshrl.u32 %v53, 7
  %v55 = vsub.s32 1, %v54
  %v56 = vrot.slane %v47, %v55
  %59 = vmatprep.subr.mxu0 %v46
  %60 = vmatpush1.msra.mxu0 %v45
  %61 = vmatprep.subr.mxu0 %v44
  %62 = vmatpush1.msra.mxu0 %v43
  %63 = vmatprep.subr.mxu0 %v42
  %64 = vmatpush1.msra.mxu0 %v41
  %65 = vmatprep.subr.mxu0 %v40
  %66 = vmatpush1.msra.mxu0 %v39
  %67 = vmatprep.subr.mxu0 %v38
  %68 = vmatpush1.msra.mxu0 %v37
  %69 = vmatprep.subr.mxu0 %v36
  %70 = vmatpush1.msra.mxu0 %v35
  %71 = vmatprep.subr.mxu0 %v34
  %72 = vmatpush1.msra.mxu0 %v33
  %73 = vmatprep.subr.mxu0 %v32
  %74 = vmatpush1.msra.mxu0 %v31
  %75 = vmatprep.subr.mxu0 %v30
  %76 = vmatpush1.msra.mxu0 %v29
  %77 = vmatprep.subr.mxu0 %v28
  %78 = vmatpush1.msra.mxu0 %v27
  %79 = vmatprep.subr.mxu0 %v26
  %80 = vmatpush1.msra.mxu0 %v25
  %81 = vmatprep.subr.mxu0 %v24
  %82 = vmatpush1.msra.mxu0 %v23
  %83 = vmatprep.subr.mxu0 %v22
  %84 = vmatpush1.msra.mxu0 %v21
  %85 = vmatprep.subr.mxu0 %v20
  %86 = vmatpush1.msra.mxu0 %v19
  %87 = vmatprep.subr.mxu0 %v18
  %88 = vmatpush1.msra.mxu0 %v17
  %89 = vmatprep.subr.mxu0 %v16
  %90 = vmatpush1.msra.mxu0 %v15
  %91 = vmatprep.subr.mxu0 0.0
  %92 = vmatpush2.msra.mxu0 0.0
  %93 = vmatprep.subr.mxu0 0.0
  %94 = vmatpush2.msra.mxu0 0.0
  %95 = vmatprep.subr.mxu0 0.0
  %96 = vmatpush2.msra.mxu0 0.0
  %97 = vmatprep.subr.mxu0 0.0
  %98 = vmatpush2.msra.mxu0 0.0
  %99 = vmatprep.subr.mxu0 0.0
  %100 = vmatpush2.msra.mxu0 0.0
  %101 = vmatprep.subr.mxu0 0.0
  %102 = vmatpush2.msra.mxu0 0.0
  %103 = vmatprep.subr.mxu0 0.0
  %104 = vmatpush2.msra.mxu0 0.0
  %105 = vmatprep.subr.mxu0 0.0
  %106 = vmatpush2.msra.mxu0 0.0
  %107 = vmatprep.subr.mxu0 0.0
  %108 = vmatpush2.msra.mxu0 0.0
  %109 = vmatprep.subr.mxu0 0.0
  %110 = vmatpush2.msra.mxu0 0.0
  %111 = vmatprep.subr.mxu0 0.0
  %112 = vmatpush2.msra.mxu0 0.0
  %113 = vmatprep.subr.mxu0 0.0
  %114 = vmatpush2.msra.mxu0 0.0
  %115 = vmatprep.subr.mxu0 0.0
  %116 = vmatpush2.msra.mxu0 0.0
  %117 = vmatprep.subr.mxu0 0.0
  %118 = vmatpush2.msra.mxu0 0.0
  %119 = vmatprep.subr.mxu0 0.0
  %120 = vmatpush2.msra.mxu0 0.0
  %121 = vmatprep.subr.mxu0 0.0
  %122 = vmatpush2.msra.mxu0 0.0
  %123 = vmatprep.mubr.f32.mxu0 0.0
  %124 = vmatmul.mubr.f32.gmra.mxu0 %v14
  %v125 = vpop.f32.mrf.mxu0
  %v126 = vadd.f32 %v52, %v125
  %v127 = vpop.f32.mrf.mxu0
  %v128 = vadd.f32 %v56, %v127
  %129 = vdwg.mxu0
  %v130 = vtanh.pop %v126
  %v131 = vtanh.pop %v128
  %132 = vst [vmem:[%s3] sm:$0xff] %v130
  %133 = vst [vmem:[%s3 + $0x8] sm:$0xff] %v131
  // Predicated region
  $region14: #{sketch_rnn_forward.12} parent=0 // pred_check
    _
  $region15: #{sketch_rnn_forward.12} parent=0 // pred_check_branch
    %135 = sbr.rel (0) target = $region17
  $region16: #{sketch_rnn_forward.12} parent=0 // pred_region
    _
  $region17: #{sketch_rnn_forward.12} parent=0 // pred_fallthru
    _
  // Predicated region
  $region18: #{sketch_rnn_forward.12} parent=0 // pred_check
    _
  $region19: #{sketch_rnn_forward.12} parent=0 // pred_check_branch
    %137 = sbr.rel (0) target = $region21
  $region20: #{sketch_rnn_forward.12} parent=0 // pred_region
    _
  $region21: #{sketch_rnn_forward.12} parent=0 // pred_fallthru
    _

// kernel: sketch_rnn_forward.11
$region0: #{sketch_rnn_forward.11}
  #allocation0 [shape = 'u32[]', space=smem, size = 0x4, offset = 0x4, fixed_abs, tag = 'smem constant byte address 0x4 - core index']
  #allocation1 [shape = 'u32[144,128]{1,0:T(1,128)}', space=vmem, size = 0x12000, scoped, tag = 'internal scratch']
  %s0 = inlined_call_operand.vmem [shape: f32[8,128], index: 0, kind: input, shape index: {}]
  %s1 = inlined_call_operand.vmem [shape: f32[128,512], index: 1, kind: input, shape index: {}]
  %s2 = inlined_call_operand.vmem [shape: f32[1,512], index: 2, kind: input, shape index: {}]
  %s3 = inlined_call_operand.vmem [shape: f32[8,512], index: 3, kind: output, shape index: {}]
  %s4 = sld [smem:[#allocation0]]
  $region22: #{sketch_rnn_forward.11} parent=0
    _
  %s6 = ssub.s32 1, %s4
  %s7 = scalar_select 0, %s6, %s4
  // Predicated region
  $region2: #{sketch_rnn_forward.11} parent=0 // pred_check
    _
  $region3: #{sketch_rnn_forward.11} parent=0 // pred_check_branch
    %9 = sbr.rel (0) target = $region5
  $region4: #{sketch_rnn_forward.11} parent=0 // pred_region
    _
  $region5: #{sketch_rnn_forward.11} parent=0 // pred_fallthru
    _
  // Predicated region
  $region6: #{sketch_rnn_forward.11} parent=0 // pred_check
    _
  $region7: #{sketch_rnn_forward.11} parent=0 // pred_check_branch
    %11 = sbr.rel (0) target = $region9
  $region8: #{sketch_rnn_forward.11} parent=0 // pred_region
    _
  $region9: #{sketch_rnn_forward.11} parent=0 // pred_fallthru
    _
  // Predicated region
  $region10: #{sketch_rnn_forward.11} parent=0 // pred_check
    _
  $region11: #{sketch_rnn_forward.11} parent=0 // pred_check_branch
    %13 = sbr.rel (0) target = $region13
  $region12: #{sketch_rnn_forward.11} parent=0 // pred_region
    _
  $region13: #{sketch_rnn_forward.11} parent=0 // pred_fallthru
    _
  %v14 = vld [vmem:[%s0] sm:$0xff]
  %v15 = vld [vmem:[%s1] sm:$0xff]
  %v16 = vld [vmem:[%s1 + $0x8] sm:$0xff]
  %v17 = vld [vmem:[%s1 + $0x10] sm:$0xff]
  %v18 = vld [vmem:[%s1 + $0x18] sm:$0xff]
  %v19 = vld [vmem:[%s1 + $0x20] sm:$0xff]
  %v20 = vld [vmem:[%s1 + $0x28] sm:$0xff]
  %v21 = vld [vmem:[%s1 + $0x30] sm:$0xff]
  %v22 = vld [vmem:[%s1 + $0x38] sm:$0xff]
  %v23 = vld [vmem:[%s1 + $0x40] sm:$0xff]
  %v24 = vld [vmem:[%s1 + $0x48] sm:$0xff]
  %v25 = vld [vmem:[%s1 + $0x50] sm:$0xff]
  %v26 = vld [vmem:[%s1 + $0x58] sm:$0xff]
  %v27 = vld [vmem:[%s1 + $0x60] sm:$0xff]
  %v28 = vld [vmem:[%s1 + $0x68] sm:$0xff]
  %v29 = vld [vmem:[%s1 + $0x70] sm:$0xff]
  %v30 = vld [vmem:[%s1 + $0x78] sm:$0xff]
  %v31 = vld [vmem:[%s1 + $0x80] sm:$0xff]
  %v32 = vld [vmem:[%s1 + $0x88] sm:$0xff]
  %v33 = vld [vmem:[%s1 + $0x90] sm:$0xff]
  %v34 = vld [vmem:[%s1 + $0x98] sm:$0xff]
  %v35 = vld [vmem:[%s1 + $0xa0] sm:$0xff]
  %v36 = vld [vmem:[%s1 + $0xa8] sm:$0xff]
  %v37 = vld [vmem:[%s1 + $0xb0] sm:$0xff]
  %v38 = vld [vmem:[%s1 + $0xb8] sm:$0xff]
  %v39 = vld [vmem:[%s1 + $0xc0] sm:$0xff]
  %v40 = vld [vmem:[%s1 + $0xc8] sm:$0xff]
  %v41 = vld [vmem:[%s1 + $0xd0] sm:$0xff]
  %v42 = vld [vmem:[%s1 + $0xd8] sm:$0xff]
  %v43 = vld [vmem:[%s1 + $0xe0] sm:$0xff]
  %v44 = vld [vmem:[%s1 + $0xe8] sm:$0xff]
  %v45 = vld [vmem:[%s1 + $0xf0] sm:$0xff]
  %v46 = vld [vmem:[%s1 + $0xf8] sm:$0xff]
  %v47 = vld [vmem:[%s1 + $0x100] sm:$0xff]
  %v48 = vld [vmem:[%s1 + $0x108] sm:$0xff]
  %v49 = vld [vmem:[%s1 + $0x110] sm:$0xff]
  %v50 = vld [vmem:[%s1 + $0x118] sm:$0xff]
  %v51 = vld [vmem:[%s1 + $0x120] sm:$0xff]
  %v52 = vld [vmem:[%s1 + $0x128] sm:$0xff]
  %v53 = vld [vmem:[%s1 + $0x130] sm:$0xff]
  %v54 = vld [vmem:[%s1 + $0x138] sm:$0xff]
  %v55 = vld [vmem:[%s1 + $0x140] sm:$0xff]
  %v56 = vld [vmem:[%s1 + $0x148] sm:$0xff]
  %v57 = vld [vmem:[%s1 + $0x150] sm:$0xff]
  %v58 = vld [vmem:[%s1 + $0x158] sm:$0xff]
  %v59 = vld [vmem:[%s1 + $0x160] sm:$0xff]
  %v60 = vld [vmem:[%s1 + $0x168] sm:$0xff]
  %v61 = vld [vmem:[%s1 + $0x170] sm:$0xff]
  %v62 = vld [vmem:[%s1 + $0x178] sm:$0xff]
  %v63 = vld [vmem:[%s1 + $0x180] sm:$0xff]
  %v64 = vld [vmem:[%s1 + $0x188] sm:$0xff]
  %v65 = vld [vmem:[%s1 + $0x190] sm:$0xff]
  %v66 = vld [vmem:[%s1 + $0x198] sm:$0xff]
  %v67 = vld [vmem:[%s1 + $0x1a0] sm:$0xff]
  %v68 = vld [vmem:[%s1 + $0x1a8] sm:$0xff]
  %v69 = vld [vmem:[%s1 + $0x1b0] sm:$0xff]
  %v70 = vld [vmem:[%s1 + $0x1b8] sm:$0xff]
  %v71 = vld [vmem:[%s1 + $0x1c0] sm:$0xff]
  %v72 = vld [vmem:[%s1 + $0x1c8] sm:$0xff]
  %v73 = vld [vmem:[%s1 + $0x1d0] sm:$0xff]
  %v74 = vld [vmem:[%s1 + $0x1d8] sm:$0xff]
  %v75 = vld [vmem:[%s1 + $0x1e0] sm:$0xff]
  %v76 = vld [vmem:[%s1 + $0x1e8] sm:$0xff]
  %v77 = vld [vmem:[%s1 + $0x1f0] sm:$0xff]
  %v78 = vld [vmem:[%s1 + $0x1f8] sm:$0xff]
  %v79 = vld [vmem:[%s2] sm:$0xf]
  %v81 = vlaneseq
  %v82 = vshrl.u32 %v81, 7
  %v83 = vsub.s32 0, %v82
  %v84 = vrot.slane %v79, %v83
  %v85 = vlaneseq
  %v86 = vshrl.u32 %v85, 7
  %v87 = vsub.s32 1, %v86
  %v88 = vrot.slane %v79, %v87
  %v89 = vlaneseq
  %v90 = vshrl.u32 %v89, 7
  %v91 = vsub.s32 2, %v90
  %v92 = vrot.slane %v79, %v91
  %v93 = vlaneseq
  %v94 = vshrl.u32 %v93, 7
  %v95 = vsub.s32 3, %v94
  %v96 = vrot.slane %v79, %v95
  %101 = vmatprep.subr.mxu0 %v76
  %102 = vmatpush1.msra.mxu0 %v75
  %103 = vmatprep.subr.mxu0 %v72
  %104 = vmatpush1.msra.mxu0 %v71
  %105 = vmatprep.subr.mxu0 %v68
  %106 = vmatpush1.msra.mxu0 %v67
  %107 = vmatprep.subr.mxu0 %v64
  %108 = vmatpush1.msra.mxu0 %v63
  %109 = vmatprep.subr.mxu0 %v60
  %110 = vmatpush1.msra.mxu0 %v59
  %111 = vmatprep.subr.mxu0 %v56
  %112 = vmatpush1.msra.mxu0 %v55
  %113 = vmatprep.subr.mxu0 %v52
  %114 = vmatpush1.msra.mxu0 %v51
  %115 = vmatprep.subr.mxu0 %v48
  %116 = vmatpush1.msra.mxu0 %v47
  %117 = vmatprep.subr.mxu0 %v44
  %118 = vmatpush1.msra.mxu0 %v43
  %119 = vmatprep.subr.mxu0 %v40
  %120 = vmatpush1.msra.mxu0 %v39
  %121 = vmatprep.subr.mxu0 %v36
  %122 = vmatpush1.msra.mxu0 %v35
  %123 = vmatprep.subr.mxu0 %v32
  %124 = vmatpush1.msra.mxu0 %v31
  %125 = vmatprep.subr.mxu0 %v28
  %126 = vmatpush1.msra.mxu0 %v27
  %127 = vmatprep.subr.mxu0 %v24
  %128 = vmatpush1.msra.mxu0 %v23
  %129 = vmatprep.subr.mxu0 %v20
  %130 = vmatpush1.msra.mxu0 %v19
  %131 = vmatprep.subr.mxu0 %v16
  %132 = vmatpush1.msra.mxu0 %v15
  %133 = vmatprep.subr.mxu0 0.0
  %134 = vmatpush2.msra.mxu0 0.0
  %135 = vmatprep.subr.mxu0 0.0
  %136 = vmatpush2.msra.mxu0 0.0
  %137 = vmatprep.subr.mxu0 0.0
  %138 = vmatpush2.msra.mxu0 0.0
  %139 = vmatprep.subr.mxu0 0.0
  %140 = vmatpush2.msra.mxu0 0.0
  %141 = vmatprep.subr.mxu0 0.0
  %142 = vmatpush2.msra.mxu0 0.0
  %143 = vmatprep.subr.mxu0 0.0
  %144 = vmatpush2.msra.mxu0 0.0
  %145 = vmatprep.subr.mxu0 0.0
  %146 = vmatpush2.msra.mxu0 0.0
  %147 = vmatprep.subr.mxu0 0.0
  %148 = vmatpush2.msra.mxu0 0.0
  %149 = vmatprep.subr.mxu0 0.0
  %150 = vmatpush2.msra.mxu0 0.0
  %151 = vmatprep.subr.mxu0 0.0
  %152 = vmatpush2.msra.mxu0 0.0
  %153 = vmatprep.subr.mxu0 0.0
  %154 = vmatpush2.msra.mxu0 0.0
  %155 = vmatprep.subr.mxu0 0.0
  %156 = vmatpush2.msra.mxu0 0.0
  %157 = vmatprep.subr.mxu0 0.0
  %158 = vmatpush2.msra.mxu0 0.0
  %159 = vmatprep.subr.mxu0 0.0
  %160 = vmatpush2.msra.mxu0 0.0
  %161 = vmatprep.subr.mxu0 0.0
  %162 = vmatpush2.msra.mxu0 0.0
  %163 = vmatprep.subr.mxu0 0.0
  %164 = vmatpush2.msra.mxu0 0.0
  %165 = vmatprep.mubr.f32.mxu0 0.0
  %166 = vmatmul.mubr.f32.gmra.mxu0 %v14
  %v167 = vpop.f32.mrf.mxu0
  %v168 = vadd.f32 %v84, %v167
  %v169 = vpop.f32.mrf.mxu0
  %v170 = vadd.f32 %v88, %v169
  %171 = vdwg.mxu0
  %172 = vmatprep.subr.mxu0 %v78
  %173 = vmatpush1.msra.mxu0 %v77
  %174 = vmatprep.subr.mxu0 %v74
  %175 = vmatpush1.msra.mxu0 %v73
  %176 = vmatprep.subr.mxu0 %v70
  %177 = vmatpush1.msra.mxu0 %v69
  %178 = vmatprep.subr.mxu0 %v66
  %179 = vmatpush1.msra.mxu0 %v65
  %180 = vmatprep.subr.mxu0 %v62
  %181 = vmatpush1.msra.mxu0 %v61
  %182 = vmatprep.subr.mxu0 %v58
  %183 = vmatpush1.msra.mxu0 %v57
  %184 = vmatprep.subr.mxu0 %v54
  %185 = vmatpush1.msra.mxu0 %v53
  %186 = vmatprep.subr.mxu0 %v50
  %187 = vmatpush1.msra.mxu0 %v49
  %188 = vmatprep.subr.mxu0 %v46
  %189 = vmatpush1.msra.mxu0 %v45
  %190 = vmatprep.subr.mxu0 %v42
  %191 = vmatpush1.msra.mxu0 %v41
  %192 = vmatprep.subr.mxu0 %v38
  %193 = vmatpush1.msra.mxu0 %v37
  %194 = vmatprep.subr.mxu0 %v34
  %195 = vmatpush1.msra.mxu0 %v33
  %196 = vmatprep.subr.mxu0 %v30
  %197 = vmatpush1.msra.mxu0 %v29
  %198 = vmatprep.subr.mxu0 %v26
  %199 = vmatpush1.msra.mxu0 %v25
  %200 = vmatprep.subr.mxu0 %v22
  %201 = vmatpush1.msra.mxu0 %v21
  %202 = vmatprep.subr.mxu0 %v18
  %203 = vmatpush1.msra.mxu0 %v17
  %204 = vmatprep.subr.mxu0 0.0
  %205 = vmatpush2.msra.mxu0 0.0
  %206 = vmatprep.subr.mxu0 0.0
  %207 = vmatpush2.msra.mxu0 0.0
  %208 = vmatprep.subr.mxu0 0.0
  %209 = vmatpush2.msra.mxu0 0.0
  %210 = vmatprep.subr.mxu0 0.0
  %211 = vmatpush2.msra.mxu0 0.0
  %212 = vmatprep.subr.mxu0 0.0
  %213 = vmatpush2.msra.mxu0 0.0
  %214 = vmatprep.subr.mxu0 0.0
  %215 = vmatpush2.msra.mxu0 0.0
  %216 = vmatprep.subr.mxu0 0.0
  %217 = vmatpush2.msra.mxu0 0.0
  %218 = vmatprep.subr.mxu0 0.0
  %219 = vmatpush2.msra.mxu0 0.0
  %220 = vmatprep.subr.mxu0 0.0
  %221 = vmatpush2.msra.mxu0 0.0
  %222 = vmatprep.subr.mxu0 0.0
  %223 = vmatpush2.msra.mxu0 0.0
  %224 = vmatprep.subr.mxu0 0.0
  %225 = vmatpush2.msra.mxu0 0.0
  %226 = vmatprep.subr.mxu0 0.0
  %227 = vmatpush2.msra.mxu0 0.0
  %228 = vmatprep.subr.mxu0 0.0
  %229 = vmatpush2.msra.mxu0 0.0
  %230 = vmatprep.subr.mxu0 0.0
  %231 = vmatpush2.msra.mxu0 0.0
  %232 = vmatprep.subr.mxu0 0.0
  %233 = vmatpush2.msra.mxu0 0.0
  %234 = vmatprep.subr.mxu0 0.0
  %235 = vmatpush2.msra.mxu0 0.0
  %236 = vmatprep.mubr.f32.mxu0 0.0
  %237 = vmatmul.mubr.f32.gmra.mxu0 %v14
  %v238 = vpop.f32.mrf.mxu0
  %v239 = vadd.f32 %v92, %v238
  %v240 = vpop.f32.mrf.mxu0
  %v241 = vadd.f32 %v96, %v240
  %242 = vdwg.mxu0
  %243 = vst [vmem:[%s3] sm:$0xff] %v168
  %244 = vst [vmem:[%s3 + $0x8] sm:$0xff] %v170
  %245 = vst [vmem:[%s3 + $0x10] sm:$0xff] %v239
  %246 = vst [vmem:[%s3 + $0x18] sm:$0xff] %v241
  // Predicated region
  $region14: #{sketch_rnn_forward.11} parent=0 // pred_check
    _
  $region15: #{sketch_rnn_forward.11} parent=0 // pred_check_branch
    %248 = sbr.rel (0) target = $region17
  $region16: #{sketch_rnn_forward.11} parent=0 // pred_region
    _
  $region17: #{sketch_rnn_forward.11} parent=0 // pred_fallthru
    _
  // Predicated region
  $region18: #{sketch_rnn_forward.11} parent=0 // pred_check
    _
  $region19: #{sketch_rnn_forward.11} parent=0 // pred_check_branch
    %250 = sbr.rel (0) target = $region21
  $region20: #{sketch_rnn_forward.11} parent=0 // pred_region
    _
  $region21: #{sketch_rnn_forward.11} parent=0 // pred_fallthru
    _

// kernel: sketch_rnn_forward.13
$region0: #{sketch_rnn_forward.13}
  #allocation0 [shape = 'u32[]', space=smem, size = 0x4, offset = 0x4, fixed_abs, tag = 'smem constant byte address 0x4 - core index']
  #allocation1 [shape = 'u32[144,128]{1,0:T(1,128)}', space=vmem, size = 0x12000, scoped, tag = 'internal scratch']
  #allocation2 [shape = 'f32[8,128]{1,0:T(8,128)}', space=vmem, size = 0x1000, scoped, tag = 'scratch operand']
  #allocation3 [shape = 'f32[8,128]{1,0:T(8,128)}', space=vmem, size = 0x1000, scoped, tag = 'scratch operand']
  %s0 = inlined_call_operand.vmem [shape: f32[8,8,512], index: 0, kind: input, shape index: {}]
  %s1 = inlined_call_operand.vmem [shape: f32[8,512], index: 1, kind: input, shape index: {}]
  %s2 = inlined_call_operand.vmem [shape: f32[128,512], index: 2, kind: input, shape index: {}]
  %s3 = inlined_call_operand.vmem [shape: f32[8,128], index: 3, kind: input, shape index: {}]
  %s4 = inlined_call_operand.vmem [shape: f32[8,128], index: 4, kind: input, shape index: {}]
  %s5 = inlined_call_operand.vmem [shape: s32[8,1], index: 5, kind: input, shape index: {}]
  %s6 = inlined_call_operand.vmem [shape: f32[128,128], index: 6, kind: input, shape index: {}]
  %s7 = inlined_call_operand.vmem [shape: f32[1,128], index: 7, kind: input, shape index: {}]
  %s8 = inlined_call_operand.vmem [shape: f32[8,8,128], index: 8, kind: output, shape index: {}]
  %s9 = sld [smem:[#allocation0]]
  $region46: #{sketch_rnn_forward.13} parent=0
    _
  %s11 = ssub.s32 1, %s9
  %s12 = scalar_select 0, %s11, %s9
  // Predicated region
  $region2: #{sketch_rnn_forward.13} parent=0 // pred_check
    _
  $region3: #{sketch_rnn_forward.13} parent=0 // pred_check_branch
    %14 = sbr.rel (0) target = $region5
  $region4: #{sketch_rnn_forward.13} parent=0 // pred_region
    _
  $region5: #{sketch_rnn_forward.13} parent=0 // pred_fallthru
    _
  // Predicated region
  $region6: #{sketch_rnn_forward.13} parent=0 // pred_check
    _
  $region7: #{sketch_rnn_forward.13} parent=0 // pred_check_branch
    %16 = sbr.rel (0) target = $region9
  $region8: #{sketch_rnn_forward.13} parent=0 // pred_region
    _
  $region9: #{sketch_rnn_forward.13} parent=0 // pred_fallthru
    _
  // Predicated region
  $region10: #{sketch_rnn_forward.13} parent=0 // pred_check
    _
  $region11: #{sketch_rnn_forward.13} parent=0 // pred_check_branch
    %18 = sbr.rel (0) target = $region13
  $region12: #{sketch_rnn_forward.13} parent=0 // pred_region
    _
  $region13: #{sketch_rnn_forward.13} parent=0 // pred_fallthru
    _
  // Predicated region
  $region14: #{sketch_rnn_forward.13} parent=0 // pred_check
    _
  $region15: #{sketch_rnn_forward.13} parent=0 // pred_check_branch
    %20 = sbr.rel (0) target = $region17
  $region16: #{sketch_rnn_forward.13} parent=0 // pred_region
    _
  $region17: #{sketch_rnn_forward.13} parent=0 // pred_fallthru
    _
  // Predicated region
  $region18: #{sketch_rnn_forward.13} parent=0 // pred_check
    _
  $region19: #{sketch_rnn_forward.13} parent=0 // pred_check_branch
    %22 = sbr.rel (0) target = $region21
  $region20: #{sketch_rnn_forward.13} parent=0 // pred_region
    _
  $region21: #{sketch_rnn_forward.13} parent=0 // pred_fallthru
    _
  // Predicated region
  $region22: #{sketch_rnn_forward.13} parent=0 // pred_check
    _
  $region23: #{sketch_rnn_forward.13} parent=0 // pred_check_branch
    %24 = sbr.rel (0) target = $region25
  $region24: #{sketch_rnn_forward.13} parent=0 // pred_region
    _
  $region25: #{sketch_rnn_forward.13} parent=0 // pred_fallthru
    _
  // Predicated region
  $region26: #{sketch_rnn_forward.13} parent=0 // pred_check
    _
  $region27: #{sketch_rnn_forward.13} parent=0 // pred_check_branch
    %26 = sbr.rel (0) target = $region29
  $region28: #{sketch_rnn_forward.13} parent=0 // pred_region
    _
  $region29: #{sketch_rnn_forward.13} parent=0 // pred_fallthru
    _
  // Predicated region
  $region30: #{sketch_rnn_forward.13} parent=0 // pred_check
    _
  $region31: #{sketch_rnn_forward.13} parent=0 // pred_check_branch
    %28 = sbr.rel (0) target = $region33
  $region32: #{sketch_rnn_forward.13} parent=0 // pred_region
    _
  $region33: #{sketch_rnn_forward.13} parent=0 // pred_fallthru
    _
  %p29 = scmp.eq.s32.totalorder 0, 0
  // Predicated region
  $region34: #{sketch_rnn_forward.13} parent=0 // pred_check
    %p30 = pneg %p29
  $region35: #{sketch_rnn_forward.13} parent=0 // pred_check_branch
    %32 = sbr.rel (%p30) target = $region37
  $region36: #{sketch_rnn_forward.13} parent=0 // pred_region
    %v33 = vld [vmem:[%s3] sm:$0xff]
    %34 = vst [vmem:[#allocation2] sm:$0xff] %v33
    %v35 = vld [vmem:[%s4] sm:$0xff]
    %36 = vst [vmem:[#allocation3] sm:$0xff] %v35
  $region37: #{sketch_rnn_forward.13} parent=0 // pred_fallthru
    _
  %v37 = vld [vmem:[%s5] sm:$0xff]
  %v38 = vld [vmem:[%s2] sm:$0xff]
  %v39 = vld [vmem:[%s2 + $0x8] sm:$0xff]
  %v40 = vld [vmem:[%s2 + $0x10] sm:$0xff]
  %v41 = vld [vmem:[%s2 + $0x18] sm:$0xff]
  %v42 = vld [vmem:[%s2 + $0x20] sm:$0xff]
  %v43 = vld [vmem:[%s2 + $0x28] sm:$0xff]
  %v44 = vld [vmem:[%s2 + $0x30] sm:$0xff]
  %v45 = vld [vmem:[%s2 + $0x38] sm:$0xff]
  %v46 = vld [vmem:[%s2 + $0x40] sm:$0xff]
  %v47 = vld [vmem:[%s2 + $0x48] sm:$0xff]
  %v48 = vld [vmem:[%s2 + $0x50] sm:$0xff]
  %v49 = vld [vmem:[%s2 + $0x58] sm:$0xff]
  %v50 = vld [vmem:[%s2 + $0x60] sm:$0xff]
  %v51 = vld [vmem:[%s2 + $0x68] sm:$0xff]
  %v52 = vld [vmem:[%s2 + $0x70] sm:$0xff]
  %v53 = vld [vmem:[%s2 + $0x78] sm:$0xff]
  %v54 = vld [vmem:[%s2 + $0x80] sm:$0xff]
  %v55 = vld [vmem:[%s2 + $0x88] sm:$0xff]
  %v56 = vld [vmem:[%s2 + $0x90] sm:$0xff]
  %v57 = vld [vmem:[%s2 + $0x98] sm:$0xff]
  %v58 = vld [vmem:[%s2 + $0xa0] sm:$0xff]
  %v59 = vld [vmem:[%s2 + $0xa8] sm:$0xff]
  %v60 = vld [vmem:[%s2 + $0xb0] sm:$0xff]
  %v61 = vld [vmem:[%s2 + $0xb8] sm:$0xff]
  %v62 = vld [vmem:[%s2 + $0xc0] sm:$0xff]
  %v63 = vld [vmem:[%s2 + $0xc8] sm:$0xff]
  %v64 = vld [vmem:[%s2 + $0xd0] sm:$0xff]
  %v65 = vld [vmem:[%s2 + $0xd8] sm:$0xff]
  %v66 = vld [vmem:[%s2 + $0xe0] sm:$0xff]
  %v67 = vld [vmem:[%s2 + $0xe8] sm:$0xff]
  %v68 = vld [vmem:[%s2 + $0xf0] sm:$0xff]
  %v69 = vld [vmem:[%s2 + $0xf8] sm:$0xff]
  %v70 = vld [vmem:[%s2 + $0x100] sm:$0xff]
  %v71 = vld [vmem:[%s2 + $0x108] sm:$0xff]
  %v72 = vld [vmem:[%s2 + $0x110] sm:$0xff]
  %v73 = vld [vmem:[%s2 + $0x118] sm:$0xff]
  %v74 = vld [vmem:[%s2 + $0x120] sm:$0xff]
  %v75 = vld [vmem:[%s2 + $0x128] sm:$0xff]
  %v76 = vld [vmem:[%s2 + $0x130] sm:$0xff]
  %v77 = vld [vmem:[%s2 + $0x138] sm:$0xff]
  %v78 = vld [vmem:[%s2 + $0x140] sm:$0xff]
  %v79 = vld [vmem:[%s2 + $0x148] sm:$0xff]
  %v80 = vld [vmem:[%s2 + $0x150] sm:$0xff]
  %v81 = vld [vmem:[%s2 + $0x158] sm:$0xff]
  %v82 = vld [vmem:[%s2 + $0x160] sm:$0xff]
  %v83 = vld [vmem:[%s2 + $0x168] sm:$0xff]
  %v84 = vld [vmem:[%s2 + $0x170] sm:$0xff]
  %v85 = vld [vmem:[%s2 + $0x178] sm:$0xff]
  %v86 = vld [vmem:[%s2 + $0x180] sm:$0xff]
  %v87 = vld [vmem:[%s2 + $0x188] sm:$0xff]
  %v88 = vld [vmem:[%s2 + $0x190] sm:$0xff]
  %v89 = vld [vmem:[%s2 + $0x198] sm:$0xff]
  %v90 = vld [vmem:[%s2 + $0x1a0] sm:$0xff]
  %v91 = vld [vmem:[%s2 + $0x1a8] sm:$0xff]
  %v92 = vld [vmem:[%s2 + $0x1b0] sm:$0xff]
  %v93 = vld [vmem:[%s2 + $0x1b8] sm:$0xff]
  %v94 = vld [vmem:[%s2 + $0x1c0] sm:$0xff]
  %v95 = vld [vmem:[%s2 + $0x1c8] sm:$0xff]
  %v96 = vld [vmem:[%s2 + $0x1d0] sm:$0xff]
  %v97 = vld [vmem:[%s2 + $0x1d8] sm:$0xff]
  %v98 = vld [vmem:[%s2 + $0x1e0] sm:$0xff]
  %v99 = vld [vmem:[%s2 + $0x1e8] sm:$0xff]
  %v100 = vld [vmem:[%s2 + $0x1f0] sm:$0xff]
  %v101 = vld [vmem:[%s2 + $0x1f8] sm:$0xff]
  %v102 = vld [vmem:[%s1] sm:$0xff]
  %v103 = vld [vmem:[%s1 + $0x8] sm:$0xff]
  %v104 = vld [vmem:[%s1 + $0x10] sm:$0xff]
  %v105 = vld [vmem:[%s1 + $0x18] sm:$0xff]
  %v106 = vld [vmem:[%s6] sm:$0xff]
  %v107 = vld [vmem:[%s6 + $0x8] sm:$0xff]
  %v108 = vld [vmem:[%s6 + $0x10] sm:$0xff]
  %v109 = vld [vmem:[%s6 + $0x18] sm:$0xff]
  %v110 = vld [vmem:[%s6 + $0x20] sm:$0xff]
  %v111 = vld [vmem:[%s6 + $0x28] sm:$0xff]
  %v112 = vld [vmem:[%s6 + $0x30] sm:$0xff]
  %v113 = vld [vmem:[%s6 + $0x38] sm:$0xff]
  %v114 = vld [vmem:[%s6 + $0x40] sm:$0xff]
  %v115 = vld [vmem:[%s6 + $0x48] sm:$0xff]
  %v116 = vld [vmem:[%s6 + $0x50] sm:$0xff]
  %v117 = vld [vmem:[%s6 + $0x58] sm:$0xff]
  %v118 = vld [vmem:[%s6 + $0x60] sm:$0xff]
  %v119 = vld [vmem:[%s6 + $0x68] sm:$0xff]
  %v120 = vld [vmem:[%s6 + $0x70] sm:$0xff]
  %v121 = vld [vmem:[%s6 + $0x78] sm:$0xff]
  %v122 = vld [vmem:[%s7] sm:$0x1]
  %s123 = smul.u32 0, 8
  %v124 = vld [vmem:[#allocation2] sm:$0xff]
  %v125 = vld [vmem:[#allocation3] sm:$0xff]
  %v126 = vld [vmem:[%s0] sm:$0xff]
  %v127 = vld [vmem:[%s0 + $0x8] sm:$0xff]
  %v128 = vld [vmem:[%s0 + $0x10] sm:$0xff]
  %v129 = vld [vmem:[%s0 + $0x18] sm:$0xff]
  %v130 = vadd.f32 %v126, %v102
  %v131 = vadd.f32 %v127, %v103
  %v132 = vadd.f32 %v128, %v104
  %v133 = vadd.f32 %v129, %v105
  %134 = vmatprep.subr.mxu0 %v99
  %135 = vmatpush1.msra.mxu0 %v98
  %136 = vmatprep.subr.mxu0 %v95
  %137 = vmatpush1.msra.mxu0 %v94
  %138 = vmatprep.subr.mxu0 %v91
  %139 = vmatpush1.msra.mxu0 %v90
  %140 = vmatprep.subr.mxu0 %v87
  %141 = vmatpush1.msra.mxu0 %v86
  %142 = vmatprep.subr.mxu0 %v83
  %143 = vmatpush1.msra.mxu0 %v82
  %144 = vmatprep.subr.mxu0 %v79
  %145 = vmatpush1.msra.mxu0 %v78
  %146 = vmatprep.subr.mxu0 %v75
  %147 = vmatpush1.msra.mxu0 %v74
  %148 = vmatprep.subr.mxu0 %v71
  %149 = vmatpush1.msra.mxu0 %v70
  %150 = vmatprep.subr.mxu0 %v67
  %151 = vmatpush1.msra.mxu0 %v66
  %152 = vmatprep.subr.mxu0 %v63
  %153 = vmatpush1.msra.mxu0 %v62
  %154 = vmatprep.subr.mxu0 %v59
  %155 = vmatpush1.msra.mxu0 %v58
  %156 = vmatprep.subr.mxu0 %v55
  %157 = vmatpush1.msra.mxu0 %v54
  %158 = vmatprep.subr.mxu0 %v51
  %159 = vmatpush1.msra.mxu0 %v50
  %160 = vmatprep.subr.mxu0 %v47
  %161 = vmatpush1.msra.mxu0 %v46
  %162 = vmatprep.subr.mxu0 %v43
  %163 = vmatpush1.msra.mxu0 %v42
  %164 = vmatprep.subr.mxu0 %v39
  %165 = vmatpush1.msra.mxu0 %v38
  %166 = vmatprep.subr.mxu0 0.0
  %167 = vmatpush2.msra.mxu0 0.0
  %168 = vmatprep.subr.mxu0 0.0
  %169 = vmatpush2.msra.mxu0 0.0
  %170 = vmatprep.subr.mxu0 0.0
  %171 = vmatpush2.msra.mxu0 0.0
  %172 = vmatprep.subr.mxu0 0.0
  %173 = vmatpush2.msra.mxu0 0.0
  %174 = vmatprep.subr.mxu0 0.0
  %175 = vmatpush2.msra.mxu0 0.0
  %176 = vmatprep.subr.mxu0 0.0
  %177 = vmatpush2.msra.mxu0 0.0
  %178 = vmatprep.subr.mxu0 0.0
  %179 = vmatpush2.msra.mxu0 0.0
  %180 = vmatprep.subr.mxu0 0.0
  %181 = vmatpush2.msra.mxu0 0.0
  %182 = vmatprep.subr.mxu0 0.0
  %183 = vmatpush2.msra.mxu0 0.0
  %184 = vmatprep.subr.mxu0 0.0
  %185 = vmatpush2.msra.mxu0 0.0
  %186 = vmatprep.subr.mxu0 0.0
  %187 = vmatpush2.msra.mxu0 0.0
  %188 = vmatprep.subr.mxu0 0.0
  %189 = vmatpush2.msra.mxu0 0.0
  %190 = vmatprep.subr.mxu0 0.0
  %191 = vmatpush2.msra.mxu0 0.0
  %192 = vmatprep.subr.mxu0 0.0
  %193 = vmatpush2.msra.mxu0 0.0
  %194 = vmatprep.subr.mxu0 0.0
  %195 = vmatpush2.msra.mxu0 0.0
  %196 = vmatprep.subr.mxu0 0.0
  %197 = vmatpush2.msra.mxu0 0.0
  %198 = vmatprep.mubr.f32.mxu0 0.0
  %199 = vmatmul.mubr.f32.gmra.mxu0 %v124
  %v200 = vpop.f32.mrf.mxu0
  %v201 = vadd.f32 0.0, %v200
  %v202 = vpop.f32.mrf.mxu0
  %v203 = vadd.f32 0.0, %v202
  %204 = vdwg.mxu0
  %205 = vmatprep.subr.mxu0 %v101
  %206 = vmatpush1.msra.mxu0 %v100
  %207 = vmatprep.subr.mxu0 %v97
  %208 = vmatpush1.msra.mxu0 %v96
  %209 = vmatprep.subr.mxu0 %v93
  %210 = vmatpush1.msra.mxu0 %v92
  %211 = vmatprep.subr.mxu0 %v89
  %212 = vmatpush1.msra.mxu0 %v88
  %213 = vmatprep.subr.mxu0 %v85
  %214 = vmatpush1.msra.mxu0 %v84
  %215 = vmatprep.subr.mxu0 %v81
  %216 = vmatpush1.msra.mxu0 %v80
  %217 = vmatprep.subr.mxu0 %v77
  %218 = vmatpush1.msra.mxu0 %v76
  %219 = vmatprep.subr.mxu0 %v73
  %220 = vmatpush1.msra.mxu0 %v72
  %221 = vmatprep.subr.mxu0 %v69
  %222 = vmatpush1.msra.mxu0 %v68
  %223 = vmatprep.subr.mxu0 %v65
  %224 = vmatpush1.msra.mxu0 %v64
  %225 = vmatprep.subr.mxu0 %v61
  %226 = vmatpush1.msra.mxu0 %v60
  %227 = vmatprep.subr.mxu0 %v57
  %228 = vmatpush1.msra.mxu0 %v56
  %229 = vmatprep.subr.mxu0 %v53
  %230 = vmatpush1.msra.mxu0 %v52
  %231 = vmatprep.subr.mxu0 %v49
  %232 = vmatpush1.msra.mxu0 %v48
  %233 = vmatprep.subr.mxu0 %v45
  %234 = vmatpush1.msra.mxu0 %v44
  %235 = vmatprep.subr.mxu0 %v41
  %236 = vmatpush1.msra.mxu0 %v40
  %237 = vmatprep.subr.mxu0 0.0
  %238 = vmatpush2.msra.mxu0 0.0
  %239 = vmatprep.subr.mxu0 0.0
  %240 = vmatpush2.msra.mxu0 0.0
  %241 = vmatprep.subr.mxu0 0.0
  %242 = vmatpush2.msra.mxu0 0.0
  %243 = vmatprep.subr.mxu0 0.0
  %244 = vmatpush2.msra.mxu0 0.0
  %245 = vmatprep.subr.mxu0 0.0
  %246 = vmatpush2.msra.mxu0 0.0
  %247 = vmatprep.subr.mxu0 0.0
  %248 = vmatpush2.msra.mxu0 0.0
  %249 = vmatprep.subr.mxu0 0.0
  %250 = vmatpush2.msra.mxu0 0.0
  %251 = vmatprep.subr.mxu0 0.0
  %252 = vmatpush2.msra.mxu0 0.0
  %253 = vmatprep.subr.mxu0 0.0
  %254 = vmatpush2.msra.mxu0 0.0
  %255 = vmatprep.subr.mxu0 0.0
  %256 = vmatpush2.msra.mxu0 0.0
  %257 = vmatprep.subr.mxu0 0.0
  %258 = vmatpush2.msra.mxu0 0.0
  %259 = vmatprep.subr.mxu0 0.0
  %260 = vmatpush2.msra.mxu0 0.0
  %261 = vmatprep.subr.mxu0 0.0
  %262 = vmatpush2.msra.mxu0 0.0
  %263 = vmatprep.subr.mxu0 0.0
  %264 = vmatpush2.msra.mxu0 0.0
  %265 = vmatprep.subr.mxu0 0.0
  %266 = vmatpush2.msra.mxu0 0.0
  %267 = vmatprep.subr.mxu0 0.0
  %268 = vmatpush2.msra.mxu0 0.0
  %269 = vmatprep.mubr.f32.mxu0 0.0
  %270 = vmatmul.mubr.f32.gmra.mxu0 %v124
  %v271 = vpop.f32.mrf.mxu0
  %v272 = vadd.f32 0.0, %v271
  %v273 = vpop.f32.mrf.mxu0
  %v274 = vadd.f32 0.0, %v273
  %275 = vdwg.mxu0
  %v276 = vadd.f32 %v130, %v201
  %v277 = vadd.f32 %v131, %v203
  %v278 = vadd.f32 %v132, %v272
  %v279 = vadd.f32 %v133, %v274
  %v280 = vxor.u32 %v276, 2147483648
  %v281 = vmul.f32 %v280, 1.442695
  %v282 = vpow.pop %v281
  %v283 = vadd.f32 %v282, 1.0
  %v284 = vrcp.pop %v283
  %v285 = vmul.f32 1.0, %v284
  %v286 = vxor.u32 %v277, 2147483648
  %v287 = vmul.f32 %v286, 1.442695
  %v288 = vpow.pop %v287
  %v289 = vadd.f32 %v288, 1.0
  %v290 = vrcp.pop %v289
  %v291 = vmul.f32 1.0, %v290
  %v292 = vtanh.pop %v278
  %v293 = vxor.u32 %v279, 2147483648
  %v294 = vmul.f32 %v293, 1.442695
  %v295 = vpow.pop %v294
  %v296 = vadd.f32 %v295, 1.0
  %v297 = vrcp.pop %v296
  %v298 = vmul.f32 1.0, %v297
  %v299 = vmul.f32 %v291, %v125
  %v300 = vmul.f32 %v285, %v292
  %v301 = vadd.f32 %v299, %v300
  %v302 = vtanh.pop %v301
  %v303 = vmul.f32 %v298, %v302
  %v304 = vstv %s123
  %vm305 = vcmp.lt.s32.totalorder %v304, %v37
  %v306 = vsel %vm305, 1, 0
  %307 = vset.pattern.permute.xlu0 0
  %308 = vperm.xlu0 %307, %v306
  %v309 = vpop.permute.xlu0 %308
  %vm310 = vcmp.eq.s32.totalorder %v309, 1
  %v311 = vsel %vm310, %v303, %v124
  %v312 = vsel %vm310, %v301, %v125
  %313 = vst [vmem:[#allocation2] sm:$0xff] %v311
  %314 = vst [vmem:[#allocation3] sm:$0xff] %v312
  %v316 = vlaneseq
  %v317 = vshrl.u32 %v316, 7
  %v318 = vsub.s32 0, %v317
  %v319 = vrot.slane %v122, %v318
  %321 = vmatprep.subr.mxu0 0.0
  %322 = vmatpush1.msra.mxu0 %v121
  %323 = vmatprep.subr.mxu0 0.0
  %324 = vmatpush1.msra.mxu0 %v120
  %325 = vmatprep.subr.mxu0 0.0
  %326 = vmatpush1.msra.mxu0 %v119
  %327 = vmatprep.subr.mxu0 0.0
  %328 = vmatpush1.msra.mxu0 %v118
  %329 = vmatprep.subr.mxu0 0.0
  %330 = vmatpush1.msra.mxu0 %v117
  %331 = vmatprep.subr.mxu0 0.0
  %332 = vmatpush1.msra.mxu0 %v116
  %333 = vmatprep.subr.mxu0 0.0
  %334 = vmatpush1.msra.mxu0 %v115
  %335 = vmatprep.subr.mxu0 0.0
  %336 = vmatpush1.msra.mxu0 %v114
  %337 = vmatprep.subr.mxu0 0.0
  %338 = vmatpush1.msra.mxu0 %v113
  %339 = vmatprep.subr.mxu0 0.0
  %340 = vmatpush1.msra.mxu0 %v112
  %341 = vmatprep.subr.mxu0 0.0
  %342 = vmatpush1.msra.mxu0 %v111
  %343 = vmatprep.subr.mxu0 0.0
  %344 = vmatpush1.msra.mxu0 %v110
  %345 = vmatprep.subr.mxu0 0.0
  %346 = vmatpush1.msra.mxu0 %v109
  %347 = vmatprep.subr.mxu0 0.0
  %348 = vmatpush1.msra.mxu0 %v108
  %349 = vmatprep.subr.mxu0 0.0
  %350 = vmatpush1.msra.mxu0 %v107
  %351 = vmatprep.subr.mxu0 0.0
  %352 = vmatpush1.msra.mxu0 %v106
  %353 = vmatprep.subr.mxu0 0.0
  %354 = vmatpush2.msra.mxu0 0.0
  %355 = vmatprep.subr.mxu0 0.0
  %356 = vmatpush2.msra.mxu0 0.0
  %357 = vmatprep.subr.mxu0 0.0
  %358 = vmatpush2.msra.mxu0 0.0
  %359 = vmatprep.subr.mxu0 0.0
  %360 = vmatpush2.msra.mxu0 0.0
  %361 = vmatprep.subr.mxu0 0.0
  %362 = vmatpush2.msra.mxu0 0.0
  %363 = vmatprep.subr.mxu0 0.0
  %364 = vmatpush2.msra.mxu0 0.0
  %365 = vmatprep.subr.mxu0 0.0
  %366 = vmatpush2.msra.mxu0 0.0
  %367 = vmatprep.subr.mxu0 0.0
  %368 = vmatpush2.msra.mxu0 0.0
  %369 = vmatprep.subr.mxu0 0.0
  %370 = vmatpush2.msra.mxu0 0.0
  %371 = vmatprep.subr.mxu0 0.0
  %372 = vmatpush2.msra.mxu0 0.0
  %373 = vmatprep.subr.mxu0 0.0
  %374 = vmatpush2.msra.mxu0 0.0
  %375 = vmatprep.subr.mxu0 0.0
  %376 = vmatpush2.msra.mxu0 0.0
  %377 = vmatprep.subr.mxu0 0.0
  %378 = vmatpush2.msra.mxu0 0.0
  %379 = vmatprep.subr.mxu0 0.0
  %380 = vmatpush2.msra.mxu0 0.0
  %381 = vmatprep.subr.mxu0 0.0
  %382 = vmatpush2.msra.mxu0 0.0
  %383 = vmatprep.subr.mxu0 0.0
  %384 = vmatpush2.msra.mxu0 0.0
  %385 = vmatprep.mubr.f32.mxu0 0.0
  %386 = vmatmul.mubr.f32.gmra.mxu0 %v311
  %v387 = vpop.f32.mrf.mxu0
  %v388 = vadd.f32 %v319, %v387
  %v389 = vpop.f32.mrf.mxu0
  %390 = vdwg.mxu0
  %391 = vst [vmem:[%s8] sm:$0xff] %v388
  %s392 = sadd.s32 %s123, 1
  %v393 = vld [vmem:[#allocation2] sm:$0xff]
  %v394 = vld [vmem:[#allocation3] sm:$0xff]
  %s395 = scalar_lea.vmem %s0, 32
  %v396 = vld [vmem:[%s395] sm:$0xff]
  %v397 = vld [vmem:[%s395 + $0x8] sm:$0xff]
  %v398 = vld [vmem:[%s395 + $0x10] sm:$0xff]
  %v399 = vld [vmem:[%s395 + $0x18] sm:$0xff]
  %v400 = vadd.f32 %v396, %v102
  %v401 = vadd.f32 %v397, %v103
  %v402 = vadd.f32 %v398, %v104
  %v403 = vadd.f32 %v399, %v105
  %404 = vmatprep.subr.mxu0 %v99
  %405 = vmatpush1.msra.mxu0 %v98
  %406 = vmatprep.subr.mxu0 %v95
  %407 = vmatpush1.msra.mxu0 %v94
  %408 = vmatprep.subr.mxu0 %v91
  %409 = vmatpush1.msra.mxu0 %v90
  %410 = vmatprep.subr.mxu0 %v87
  %411 = vmatpush1.msra.mxu0 %v86
  %412 = vmatprep.subr.mxu0 %v83
  %413 = vmatpush1.msra.mxu0 %v82
  %414 = vmatprep.subr.mxu0 %v79
  %415 = vmatpush1.msra.mxu0 %v78
  %416 = vmatprep.subr.mxu0 %v75
  %417 = vmatpush1.msra.mxu0 %v74
  %418 = vmatprep.subr.mxu0 %v71
  %419 = vmatpush1.msra.mxu0 %v70
  %420 = vmatprep.subr.mxu0 %v67
  %421 = vmatpush1.msra.mxu0 %v66
  %422 = vmatprep.subr.mxu0 %v63
  %423 = vmatpush1.msra.mxu0 %v62
  %424 = vmatprep.subr.mxu0 %v59
  %425 = vmatpush1.msra.mxu0 %v58
  %426 = vmatprep.subr.mxu0 %v55
  %427 = vmatpush1.msra.mxu0 %v54
  %428 = vmatprep.subr.mxu0 %v51
  %429 = vmatpush1.msra.mxu0 %v50
  %430 = vmatprep.subr.mxu0 %v47
  %431 = vmatpush1.msra.mxu0 %v46
  %432 = vmatprep.subr.mxu0 %v43
  %433 = vmatpush1.msra.mxu0 %v42
  %434 = vmatprep.subr.mxu0 %v39
  %435 = vmatpush1.msra.mxu0 %v38
  %436 = vmatprep.subr.mxu0 0.0
  %437 = vmatpush2.msra.mxu0 0.0
  %438 = vmatprep.subr.mxu0 0.0
  %439 = vmatpush2.msra.mxu0 0.0
  %440 = vmatprep.subr.mxu0 0.0
  %441 = vmatpush2.msra.mxu0 0.0
  %442 = vmatprep.subr.mxu0 0.0
  %443 = vmatpush2.msra.mxu0 0.0
  %444 = vmatprep.subr.mxu0 0.0
  %445 = vmatpush2.msra.mxu0 0.0
  %446 = vmatprep.subr.mxu0 0.0
  %447 = vmatpush2.msra.mxu0 0.0
  %448 = vmatprep.subr.mxu0 0.0
  %449 = vmatpush2.msra.mxu0 0.0
  %450 = vmatprep.subr.mxu0 0.0
  %451 = vmatpush2.msra.mxu0 0.0
  %452 = vmatprep.subr.mxu0 0.0
  %453 = vmatpush2.msra.mxu0 0.0
  %454 = vmatprep.subr.mxu0 0.0
  %455 = vmatpush2.msra.mxu0 0.0
  %456 = vmatprep.subr.mxu0 0.0
  %457 = vmatpush2.msra.mxu0 0.0
  %458 = vmatprep.subr.mxu0 0.0
  %459 = vmatpush2.msra.mxu0 0.0
  %460 = vmatprep.subr.mxu0 0.0
  %461 = vmatpush2.msra.mxu0 0.0
  %462 = vmatprep.subr.mxu0 0.0
  %463 = vmatpush2.msra.mxu0 0.0
  %464 = vmatprep.subr.mxu0 0.0
  %465 = vmatpush2.msra.mxu0 0.0
  %466 = vmatprep.subr.mxu0 0.0
  %467 = vmatpush2.msra.mxu0 0.0
  %468 = vmatprep.mubr.f32.mxu0 0.0
  %469 = vmatmul.mubr.f32.gmra.mxu0 %v393
  %v470 = vpop.f32.mrf.mxu0
  %v471 = vadd.f32 0.0, %v470
  %v472 = vpop.f32.mrf.mxu0
  %v473 = vadd.f32 0.0, %v472
  %474 = vdwg.mxu0
  %475 = vmatprep.subr.mxu0 %v101
  %476 = vmatpush1.msra.mxu0 %v100
  %477 = vmatprep.subr.mxu0 %v97
  %478 = vmatpush1.msra.mxu0 %v96
  %479 = vmatprep.subr.mxu0 %v93
  %480 = vmatpush1.msra.mxu0 %v92
  %481 = vmatprep.subr.mxu0 %v89
  %482 = vmatpush1.msra.mxu0 %v88
  %483 = vmatprep.subr.mxu0 %v85
  %484 = vmatpush1.msra.mxu0 %v84
  %485 = vmatprep.subr.mxu0 %v81
  %486 = vmatpush1.msra.mxu0 %v80
  %487 = vmatprep.subr.mxu0 %v77
  %488 = vmatpush1.msra.mxu0 %v76
  %489 = vmatprep.subr.mxu0 %v73
  %490 = vmatpush1.msra.mxu0 %v72
  %491 = vmatprep.subr.mxu0 %v69
  %492 = vmatpush1.msra.mxu0 %v68
  %493 = vmatprep.subr.mxu0 %v65
  %494 = vmatpush1.msra.mxu0 %v64
  %495 = vmatprep.subr.mxu0 %v61
  %496 = vmatpush1.msra.mxu0 %v60
  %497 = vmatprep.subr.mxu0 %v57
  %498 = vmatpush1.msra.mxu0 %v56
  %499 = vmatprep.subr.mxu0 %v53
  %500 = vmatpush1.msra.mxu0 %v52
  %501 = vmatprep.subr.mxu0 %v49
  %502 = vmatpush1.msra.mxu0 %v48
  %503 = vmatprep.subr.mxu0 %v45
  %504 = vmatpush1.msra.mxu0 %v44
  %505 = vmatprep.subr.mxu0 %v41
  %506 = vmatpush1.msra.mxu0 %v40
  %507 = vmatprep.subr.mxu0 0.0
  %508 = vmatpush2.msra.mxu0 0.0
  %509 = vmatprep.subr.mxu0 0.0
  %510 = vmatpush2.msra.mxu0 0.0
  %511 = vmatprep.subr.mxu0 0.0
  %512 = vmatpush2.msra.mxu0 0.0
  %513 = vmatprep.subr.mxu0 0.0
  %514 = vmatpush2.msra.mxu0 0.0
  %515 = vmatprep.subr.mxu0 0.0
  %516 = vmatpush2.msra.mxu0 0.0
  %517 = vmatprep.subr.mxu0 0.0
  %518 = vmatpush2.msra.mxu0 0.0
  %519 = vmatprep.subr.mxu0 0.0
  %520 = vmatpush2.msra.mxu0 0.0
  %521 = vmatprep.subr.mxu0 0.0
  %522 = vmatpush2.msra.mxu0 0.0
  %523 = vmatprep.subr.mxu0 0.0
  %524 = vmatpush2.msra.mxu0 0.0
  %525 = vmatprep.subr.mxu0 0.0
  %526 = vmatpush2.msra.mxu0 0.0
  %527 = vmatprep.subr.mxu0 0.0
  %528 = vmatpush2.msra.mxu0 0.0
  %529 = vmatprep.subr.mxu0 0.0
  %530 = vmatpush2.msra.mxu0 0.0
  %531 = vmatprep.subr.mxu0 0.0
  %532 = vmatpush2.msra.mxu0 0.0
  %533 = vmatprep.subr.mxu0 0.0
  %534 = vmatpush2.msra.mxu0 0.0
  %535 = vmatprep.subr.mxu0 0.0
  %536 = vmatpush2.msra.mxu0 0.0
  %537 = vmatprep.subr.mxu0 0.0
  %538 = vmatpush2.msra.mxu0 0.0
  %539 = vmatprep.mubr.f32.mxu0 0.0
  %540 = vmatmul.mubr.f32.gmra.mxu0 %v393
  %v541 = vpop.f32.mrf.mxu0
  %v542 = vadd.f32 0.0, %v541
  %v543 = vpop.f32.mrf.mxu0
  %v544 = vadd.f32 0.0, %v543
  %545 = vdwg.mxu0
  %v546 = vadd.f32 %v400, %v471
  %v547 = vadd.f32 %v401, %v473
  %v548 = vadd.f32 %v402, %v542
  %v549 = vadd.f32 %v403, %v544
  %v550 = vxor.u32 %v546, 2147483648
  %v551 = vmul.f32 %v550, 1.442695
  %v552 = vpow.pop %v551
  %v553 = vadd.f32 %v552, 1.0
  %v554 = vrcp.pop %v553
  %v555 = vmul.f32 1.0, %v554
  %v556 = vxor.u32 %v547, 2147483648
  %v557 = vmul.f32 %v556, 1.442695
  %v558 = vpow.pop %v557
  %v559 = vadd.f32 %v558, 1.0
  %v560 = vrcp.pop %v559
  %v561 = vmul.f32 1.0, %v560
  %v562 = vtanh.pop %v548
  %v563 = vxor.u32 %v549, 2147483648
  %v564 = vmul.f32 %v563, 1.442695
  %v565 = vpow.pop %v564
  %v566 = vadd.f32 %v565, 1.0
  %v567 = vrcp.pop %v566
  %v568 = vmul.f32 1.0, %v567
  %v569 = vmul.f32 %v561, %v394
  %v570 = vmul.f32 %v555, %v562
  %v571 = vadd.f32 %v569, %v570
  %v572 = vtanh.pop %v571
  %v573 = vmul.f32 %v568, %v572
  %v574 = vstv %s392
  %vm575 = vcmp.lt.s32.totalorder %v574, %v37
  %v576 = vsel %vm575, 1, 0
  %577 = vset.pattern.permute.xlu0 0
  %578 = vperm.xlu0 %577, %v576
  %v579 = vpop.permute.xlu0 %578
  %vm580 = vcmp.eq.s32.totalorder %v579, 1
  %v581 = vsel %vm580, %v573, %v393
  %v582 = vsel %vm580, %v571, %v394
  %583 = vst [vmem:[#allocation2] sm:$0xff] %v581
  %584 = vst [vmem:[#allocation3] sm:$0xff] %v582
  %585 = vmatprep.subr.mxu0 0.0
  %586 = vmatpush1.msra.mxu0 %v121
  %587 = vmatprep.subr.mxu0 0.0
  %588 = vmatpush1.msra.mxu0 %v120
  %589 = vmatprep.subr.mxu0 0.0
  %590 = vmatpush1.msra.mxu0 %v119
  %591 = vmatprep.subr.mxu0 0.0
  %592 = vmatpush1.msra.mxu0 %v118
  %593 = vmatprep.subr.mxu0 0.0
  %594 = vmatpush1.msra.mxu0 %v117
  %595 = vmatprep.subr.mxu0 0.0
  %596 = vmatpush1.msra.mxu0 %v116
  %597 = vmatprep.subr.mxu0 0.0
  %598 = vmatpush1.msra.mxu0 %v115
  %599 = vmatprep.subr.mxu0 0.0
  %600 = vmatpush1.msra.mxu0 %v114
  %601 = vmatprep.subr.mxu0 0.0
  %602 = vmatpush1.msra.mxu0 %v113
  %603 = vmatprep.subr.mxu0 0.0
  %604 = vmatpush1.msra.mxu0 %v112
  %605 = vmatprep.subr.mxu0 0.0
  %606 = vmatpush1.msra.mxu0 %v111
  %607 = vmatprep.subr.mxu0 0.0
  %608 = vmatpush1.msra.mxu0 %v110
  %609 = vmatprep.subr.mxu0 0.0
  %610 = vmatpush1.msra.mxu0 %v109
  %611 = vmatprep.subr.mxu0 0.0
  %612 = vmatpush1.msra.mxu0 %v108
  %613 = vmatprep.subr.mxu0 0.0
  %614 = vmatpush1.msra.mxu0 %v107
  %615 = vmatprep.subr.mxu0 0.0
  %616 = vmatpush1.msra.mxu0 %v106
  %617 = vmatprep.subr.mxu0 0.0
  %618 = vmatpush2.msra.mxu0 0.0
  %619 = vmatprep.subr.mxu0 0.0
  %620 = vmatpush2.msra.mxu0 0.0
  %621 = vmatprep.subr.mxu0 0.0
  %622 = vmatpush2.msra.mxu0 0.0
  %623 = vmatprep.subr.mxu0 0.0
  %624 = vmatpush2.msra.mxu0 0.0
  %625 = vmatprep.subr.mxu0 0.0
  %626 = vmatpush2.msra.mxu0 0.0
  %627 = vmatprep.subr.mxu0 0.0
  %628 = vmatpush2.msra.mxu0 0.0
  %629 = vmatprep.subr.mxu0 0.0
  %630 = vmatpush2.msra.mxu0 0.0
  %631 = vmatprep.subr.mxu0 0.0
  %632 = vmatpush2.msra.mxu0 0.0
  %633 = vmatprep.subr.mxu0 0.0
  %634 = vmatpush2.msra.mxu0 0.0
  %635 = vmatprep.subr.mxu0 0.0
  %636 = vmatpush2.msra.mxu0 0.0
  %637 = vmatprep.subr.mxu0 0.0
  %638 = vmatpush2.msra.mxu0 0.0
  %639 = vmatprep.subr.mxu0 0.0
  %640 = vmatpush2.msra.mxu0 0.0
  %641 = vmatprep.subr.mxu0 0.0
  %642 = vmatpush2.msra.mxu0 0.0
  %643 = vmatprep.subr.mxu0 0.0
  %644 = vmatpush2.msra.mxu0 0.0
  %645 = vmatprep.subr.mxu0 0.0
  %646 = vmatpush2.msra.mxu0 0.0
  %647 = vmatprep.subr.mxu0 0.0
  %648 = vmatpush2.msra.mxu0 0.0
  %649 = vmatprep.mubr.f32.mxu0 0.0
  %650 = vmatmul.mubr.f32.gmra.mxu0 %v581
  %v651 = vpop.f32.mrf.mxu0
  %v652 = vadd.f32 %v319, %v651
  %v653 = vpop.f32.mrf.mxu0
  %654 = vdwg.mxu0
  %s655 = scalar_lea.vmem %s8, 8
  %656 = vst [vmem:[%s655] sm:$0xff] %v652
  %s657 = sadd.s32 %s123, 2
  %v658 = vld [vmem:[#allocation2] sm:$0xff]
  %v659 = vld [vmem:[#allocation3] sm:$0xff]
  %s660 = scalar_lea.vmem %s0, 64
  %v661 = vld [vmem:[%s660] sm:$0xff]
  %v662 = vld [vmem:[%s660 + $0x8] sm:$0xff]
  %v663 = vld [vmem:[%s660 + $0x10] sm:$0xff]
  %v664 = vld [vmem:[%s660 + $0x18] sm:$0xff]
  %v665 = vadd.f32 %v661, %v102
  %v666 = vadd.f32 %v662, %v103
  %v667 = vadd.f32 %v663, %v104
  %v668 = vadd.f32 %v664, %v105
  %669 = vmatprep.subr.mxu0 %v99
  %670 = vmatpush1.msra.mxu0 %v98
  %671 = vmatprep.subr.mxu0 %v95
  %672 = vmatpush1.msra.mxu0 %v94
  %673 = vmatprep.subr.mxu0 %v91
  %674 = vmatpush1.msra.mxu0 %v90
  %675 = vmatprep.subr.mxu0 %v87
  %676 = vmatpush1.msra.mxu0 %v86
  %677 = vmatprep.subr.mxu0 %v83
  %678 = vmatpush1.msra.mxu0 %v82
  %679 = vmatprep.subr.mxu0 %v79
  %680 = vmatpush1.msra.mxu0 %v78
  %681 = vmatprep.subr.mxu0 %v75
  %682 = vmatpush1.msra.mxu0 %v74
  %683 = vmatprep.subr.mxu0 %v71
  %684 = vmatpush1.msra.mxu0 %v70
  %685 = vmatprep.subr.mxu0 %v67
  %686 = vmatpush1.msra.mxu0 %v66
  %687 = vmatprep.subr.mxu0 %v63
  %688 = vmatpush1.msra.mxu0 %v62
  %689 = vmatprep.subr.mxu0 %v59
  %690 = vmatpush1.msra.mxu0 %v58
  %691 = vmatprep.subr.mxu0 %v55
  %692 = vmatpush1.msra.mxu0 %v54
  %693 = vmatprep.subr.mxu0 %v51
  %694 = vmatpush1.msra.mxu0 %v50
  %695 = vmatprep.subr.mxu0 %v47
  %696 = vmatpush1.msra.mxu0 %v46
  %697 = vmatprep.subr.mxu0 %v43
  %698 = vmatpush1.msra.mxu0 %v42
  %699 = vmatprep.subr.mxu0 %v39
  %700 = vmatpush1.msra.mxu0 %v38
  %701 = vmatprep.subr.mxu0 0.0
  %702 = vmatpush2.msra.mxu0 0.0
  %703 = vmatprep.subr.mxu0 0.0
  %704 = vmatpush2.msra.mxu0 0.0
  %705 = vmatprep.subr.mxu0 0.0
  %706 = vmatpush2.msra.mxu0 0.0
  %707 = vmatprep.subr.mxu0 0.0
  %708 = vmatpush2.msra.mxu0 0.0
  %709 = vmatprep.subr.mxu0 0.0
  %710 = vmatpush2.msra.mxu0 0.0
  %711 = vmatprep.subr.mxu0 0.0
  %712 = vmatpush2.msra.mxu0 0.0
  %713 = vmatprep.subr.mxu0 0.0
  %714 = vmatpush2.msra.mxu0 0.0
  %715 = vmatprep.subr.mxu0 0.0
  %716 = vmatpush2.msra.mxu0 0.0
  %717 = vmatprep.subr.mxu0 0.0
  %718 = vmatpush2.msra.mxu0 0.0
  %719 = vmatprep.subr.mxu0 0.0
  %720 = vmatpush2.msra.mxu0 0.0
  %721 = vmatprep.subr.mxu0 0.0
  %722 = vmatpush2.msra.mxu0 0.0
  %723 = vmatprep.subr.mxu0 0.0
  %724 = vmatpush2.msra.mxu0 0.0
  %725 = vmatprep.subr.mxu0 0.0
  %726 = vmatpush2.msra.mxu0 0.0
  %727 = vmatprep.subr.mxu0 0.0
  %728 = vmatpush2.msra.mxu0 0.0
  %729 = vmatprep.subr.mxu0 0.0
  %730 = vmatpush2.msra.mxu0 0.0
  %731 = vmatprep.subr.mxu0 0.0
  %732 = vmatpush2.msra.mxu0 0.0
  %733 = vmatprep.mubr.f32.mxu0 0.0
  %734 = vmatmul.mubr.f32.gmra.mxu0 %v658
  %v735 = vpop.f32.mrf.mxu0
  %v736 = vadd.f32 0.0, %v735
  %v737 = vpop.f32.mrf.mxu0
  %v738 = vadd.f32 0.0, %v737
  %739 = vdwg.mxu0
  %740 = vmatprep.subr.mxu0 %v101
  %741 = vmatpush1.msra.mxu0 %v100
  %742 = vmatprep.subr.mxu0 %v97
  %743 = vmatpush1.msra.mxu0 %v96
  %744 = vmatprep.subr.mxu0 %v93
  %745 = vmatpush1.msra.mxu0 %v92
  %746 = vmatprep.subr.mxu0 %v89
  %747 = vmatpush1.msra.mxu0 %v88
  %748 = vmatprep.subr.mxu0 %v85
  %749 = vmatpush1.msra.mxu0 %v84
  %750 = vmatprep.subr.mxu0 %v81
  %751 = vmatpush1.msra.mxu0 %v80
  %752 = vmatprep.subr.mxu0 %v77
  %753 = vmatpush1.msra.mxu0 %v76
  %754 = vmatprep.subr.mxu0 %v73
  %755 = vmatpush1.msra.mxu0 %v72
  %756 = vmatprep.subr.mxu0 %v69
  %757 = vmatpush1.msra.mxu0 %v68
  %758 = vmatprep.subr.mxu0 %v65
  %759 = vmatpush1.msra.mxu0 %v64
  %760 = vmatprep.subr.mxu0 %v61
  %761 = vmatpush1.msra.mxu0 %v60
  %762 = vmatprep.subr.mxu0 %v57
  %763 = vmatpush1.msra.mxu0 %v56
  %764 = vmatprep.subr.mxu0 %v53
  %765 = vmatpush1.msra.mxu0 %v52
  %766 = vmatprep.subr.mxu0 %v49
  %767 = vmatpush1.msra.mxu0 %v48
  %768 = vmatprep.subr.mxu0 %v45
  %769 = vmatpush1.msra.mxu0 %v44
  %770 = vmatprep.subr.mxu0 %v41
  %771 = vmatpush1.msra.mxu0 %v40
  %772 = vmatprep.subr.mxu0 0.0
  %773 = vmatpush2.msra.mxu0 0.0
  %774 = vmatprep.subr.mxu0 0.0
  %775 = vmatpush2.msra.mxu0 0.0
  %776 = vmatprep.subr.mxu0 0.0
  %777 = vmatpush2.msra.mxu0 0.0
  %778 = vmatprep.subr.mxu0 0.0
  %779 = vmatpush2.msra.mxu0 0.0
  %780 = vmatprep.subr.mxu0 0.0
  %781 = vmatpush2.msra.mxu0 0.0
  %782 = vmatprep.subr.mxu0 0.0
  %783 = vmatpush2.msra.mxu0 0.0
  %784 = vmatprep.subr.mxu0 0.0
  %785 = vmatpush2.msra.mxu0 0.0
  %786 = vmatprep.subr.mxu0 0.0
  %787 = vmatpush2.msra.mxu0 0.0
  %788 = vmatprep.subr.mxu0 0.0
  %789 = vmatpush2.msra.mxu0 0.0
  %790 = vmatprep.subr.mxu0 0.0
  %791 = vmatpush2.msra.mxu0 0.0
  %792 = vmatprep.subr.mxu0 0.0
  %793 = vmatpush2.msra.mxu0 0.0
  %794 = vmatprep.subr.mxu0 0.0
  %795 = vmatpush2.msra.mxu0 0.0
  %796 = vmatprep.subr.mxu0 0.0
  %797 = vmatpush2.msra.mxu0 0.0
  %798 = vmatprep.subr.mxu0 0.0
  %799 = vmatpush2.msra.mxu0 0.0
  %800 = vmatprep.subr.mxu0 0.0
  %801 = vmatpush2.msra.mxu0 0.0
  %802 = vmatprep.subr.mxu0 0.0
  %803 = vmatpush2.msra.mxu0 0.0
  %804 = vmatprep.mubr.f32.mxu0 0.0
  %805 = vmatmul.mubr.f32.gmra.mxu0 %v658
  %v806 = vpop.f32.mrf.mxu0
  %v807 = vadd.f32 0.0, %v806
  %v808 = vpop.f32.mrf.mxu0
  %v809 = vadd.f32 0.0, %v808
  %810 = vdwg.mxu0
  %v811 = vadd.f32 %v665, %v736
  %v812 = vadd.f32 %v666, %v738
  %v813 = vadd.f32 %v667, %v807
  %v814 = vadd.f32 %v668, %v809
  %v815 = vxor.u32 %v811, 2147483648
  %v816 = vmul.f32 %v815, 1.442695
  %v817 = vpow.pop %v816
  %v818 = vadd.f32 %v817, 1.0
  %v819 = vrcp.pop %v818
  %v820 = vmul.f32 1.0, %v819
  %v821 = vxor.u32 %v812, 2147483648
  %v822 = vmul.f32 %v821, 1.442695
  %v823 = vpow.pop %v822
  %v824 = vadd.f32 %v823, 1.0
  %v825 = vrcp.pop %v824
  %v826 = vmul.f32 1.0, %v825
  %v827 = vtanh.pop %v813
  %v828 = vxor.u32 %v814, 2147483648
  %v829 = vmul.f32 %v828, 1.442695
  %v830 = vpow.pop %v829
  %v831 = vadd.f32 %v830, 1.0
  %v832 = vrcp.pop %v831
  %v833 = vmul.f32 1.0, %v832
  %v834 = vmul.f32 %v826, %v659
  %v835 = vmul.f32 %v820, %v827
  %v836 = vadd.f32 %v834, %v835
  %v837 = vtanh.pop %v836
  %v838 = vmul.f32 %v833, %v837
  %v839 = vstv %s657
  %vm840 = vcmp.lt.s32.totalorder %v839, %v37
  %v841 = vsel %vm840, 1, 0
  %842 = vset.pattern.permute.xlu0 0
  %843 = vperm.xlu0 %842, %v841
  %v844 = vpop.permute.xlu0 %843
  %vm845 = vcmp.eq.s32.totalorder %v844, 1
  %v846 = vsel %vm845, %v838, %v658
  %v847 = vsel %vm845, %v836, %v659
  %848 = vst [vmem:[#allocation2] sm:$0xff] %v846
  %849 = vst [vmem:[#allocation3] sm:$0xff] %v847
  %850 = vmatprep.subr.mxu0 0.0
  %851 = vmatpush1.msra.mxu0 %v121
  %852 = vmatprep.subr.mxu0 0.0
  %853 = vmatpush1.msra.mxu0 %v120
  %854 = vmatprep.subr.mxu0 0.0
  %855 = vmatpush1.msra.mxu0 %v119
  %856 = vmatprep.subr.mxu0 0.0
  %857 = vmatpush1.msra.mxu0 %v118
  %858 = vmatprep.subr.mxu0 0.0
  %859 = vmatpush1.msra.mxu0 %v117
  %860 = vmatprep.subr.mxu0 0.0
  %861 = vmatpush1.msra.mxu0 %v116
  %862 = vmatprep.subr.mxu0 0.0
  %863 = vmatpush1.msra.mxu0 %v115
  %864 = vmatprep.subr.mxu0 0.0
  %865 = vmatpush1.msra.mxu0 %v114
  %866 = vmatprep.subr.mxu0 0.0
  %867 = vmatpush1.msra.mxu0 %v113
  %868 = vmatprep.subr.mxu0 0.0
  %869 = vmatpush1.msra.mxu0 %v112
  %870 = vmatprep.subr.mxu0 0.0
  %871 = vmatpush1.msra.mxu0 %v111
  %872 = vmatprep.subr.mxu0 0.0
  %873 = vmatpush1.msra.mxu0 %v110
  %874 = vmatprep.subr.mxu0 0.0
  %875 = vmatpush1.msra.mxu0 %v109
  %876 = vmatprep.subr.mxu0 0.0
  %877 = vmatpush1.msra.mxu0 %v108
  %878 = vmatprep.subr.mxu0 0.0
  %879 = vmatpush1.msra.mxu0 %v107
  %880 = vmatprep.subr.mxu0 0.0
  %881 = vmatpush1.msra.mxu0 %v106
  %882 = vmatprep.subr.mxu0 0.0
  %883 = vmatpush2.msra.mxu0 0.0
  %884 = vmatprep.subr.mxu0 0.0
  %885 = vmatpush2.msra.mxu0 0.0
  %886 = vmatprep.subr.mxu0 0.0
  %887 = vmatpush2.msra.mxu0 0.0
  %888 = vmatprep.subr.mxu0 0.0
  %889 = vmatpush2.msra.mxu0 0.0
  %890 = vmatprep.subr.mxu0 0.0
  %891 = vmatpush2.msra.mxu0 0.0
  %892 = vmatprep.subr.mxu0 0.0
  %893 = vmatpush2.msra.mxu0 0.0
  %894 = vmatprep.subr.mxu0 0.0
  %895 = vmatpush2.msra.mxu0 0.0
  %896 = vmatprep.subr.mxu0 0.0
  %897 = vmatpush2.msra.mxu0 0.0
  %898 = vmatprep.subr.mxu0 0.0
  %899 = vmatpush2.msra.mxu0 0.0
  %900 = vmatprep.subr.mxu0 0.0
  %901 = vmatpush2.msra.mxu0 0.0
  %902 = vmatprep.subr.mxu0 0.0
  %903 = vmatpush2.msra.mxu0 0.0
  %904 = vmatprep.subr.mxu0 0.0
  %905 = vmatpush2.msra.mxu0 0.0
  %906 = vmatprep.subr.mxu0 0.0
  %907 = vmatpush2.msra.mxu0 0.0
  %908 = vmatprep.subr.mxu0 0.0
  %909 = vmatpush2.msra.mxu0 0.0
  %910 = vmatprep.subr.mxu0 0.0
  %911 = vmatpush2.msra.mxu0 0.0
  %912 = vmatprep.subr.mxu0 0.0
  %913 = vmatpush2.msra.mxu0 0.0
  %914 = vmatprep.mubr.f32.mxu0 0.0
  %915 = vmatmul.mubr.f32.gmra.mxu0 %v846
  %v916 = vpop.f32.mrf.mxu0
  %v917 = vadd.f32 %v319, %v916
  %v918 = vpop.f32.mrf.mxu0
  %919 = vdwg.mxu0
  %s920 = scalar_lea.vmem %s8, 16
  %921 = vst [vmem:[%s920] sm:$0xff] %v917
  %s922 = sadd.s32 %s123, 3
  %v923 = vld [vmem:[#allocation2] sm:$0xff]
  %v924 = vld [vmem:[#allocation3] sm:$0xff]
  %s925 = scalar_lea.vmem %s0, 96
  %v926 = vld [vmem:[%s925] sm:$0xff]
  %v927 = vld [vmem:[%s925 + $0x8] sm:$0xff]
  %v928 = vld [vmem:[%s925 + $0x10] sm:$0xff]
  %v929 = vld [vmem:[%s925 + $0x18] sm:$0xff]
  %v930 = vadd.f32 %v926, %v102
  %v931 = vadd.f32 %v927, %v103
  %v932 = vadd.f32 %v928, %v104
  %v933 = vadd.f32 %v929, %v105
  %934 = vmatprep.subr.mxu0 %v99
  %935 = vmatpush1.msra.mxu0 %v98
  %936 = vmatprep.subr.mxu0 %v95
  %937 = vmatpush1.msra.mxu0 %v94
  %938 = vmatprep.subr.mxu0 %v91
  %939 = vmatpush1.msra.mxu0 %v90
  %940 = vmatprep.subr.mxu0 %v87
  %941 = vmatpush1.msra.mxu0 %v86
  %942 = vmatprep.subr.mxu0 %v83
  %943 = vmatpush1.msra.mxu0 %v82
  %944 = vmatprep.subr.mxu0 %v79
  %945 = vmatpush1.msra.mxu0 %v78
  %946 = vmatprep.subr.mxu0 %v75
  %947 = vmatpush1.msra.mxu0 %v74
  %948 = vmatprep.subr.mxu0 %v71
  %949 = vmatpush1.msra.mxu0 %v70
  %950 = vmatprep.subr.mxu0 %v67
  %951 = vmatpush1.msra.mxu0 %v66
  %952 = vmatprep.subr.mxu0 %v63
  %953 = vmatpush1.msra.mxu0 %v62
  %954 = vmatprep.subr.mxu0 %v59
  %955 = vmatpush1.msra.mxu0 %v58
  %956 = vmatprep.subr.mxu0 %v55
  %957 = vmatpush1.msra.mxu0 %v54
  %958 = vmatprep.subr.mxu0 %v51
  %959 = vmatpush1.msra.mxu0 %v50
  %960 = vmatprep.subr.mxu0 %v47
  %961 = vmatpush1.msra.mxu0 %v46
  %962 = vmatprep.subr.mxu0 %v43
  %963 = vmatpush1.msra.mxu0 %v42
  %964 = vmatprep.subr.mxu0 %v39
  %965 = vmatpush1.msra.mxu0 %v38
  %966 = vmatprep.subr.mxu0 0.0
  %967 = vmatpush2.msra.mxu0 0.0
  %968 = vmatprep.subr.mxu0 0.0
  %969 = vmatpush2.msra.mxu0 0.0
  %970 = vmatprep.subr.mxu0 0.0
  %971 = vmatpush2.msra.mxu0 0.0
  %972 = vmatprep.subr.mxu0 0.0
  %973 = vmatpush2.msra.mxu0 0.0
  %974 = vmatprep.subr.mxu0 0.0
  %975 = vmatpush2.msra.mxu0 0.0
  %976 = vmatprep.subr.mxu0 0.0
  %977 = vmatpush2.msra.mxu0 0.0
  %978 = vmatprep.subr.mxu0 0.0
  %979 = vmatpush2.msra.mxu0 0.0
  %980 = vmatprep.subr.mxu0 0.0
  %981 = vmatpush2.msra.mxu0 0.0
  %982 = vmatprep.subr.mxu0 0.0
  %983 = vmatpush2.msra.mxu0 0.0
  %984 = vmatprep.subr.mxu0 0.0
  %985 = vmatpush2.msra.mxu0 0.0
  %986 = vmatprep.subr.mxu0 0.0
  %987 = vmatpush2.msra.mxu0 0.0
  %988 = vmatprep.subr.mxu0 0.0
  %989 = vmatpush2.msra.mxu0 0.0
  %990 = vmatprep.subr.mxu0 0.0
  %991 = vmatpush2.msra.mxu0 0.0
  %992 = vmatprep.subr.mxu0 0.0
  %993 = vmatpush2.msra.mxu0 0.0
  %994 = vmatprep.subr.mxu0 0.0
  %995 = vmatpush2.msra.mxu0 0.0
  %996 = vmatprep.subr.mxu0 0.0
  %997 = vmatpush2.msra.mxu0 0.0
  %998 = vmatprep.mubr.f32.mxu0 0.0
  %999 = vmatmul.mubr.f32.gmra.mxu0 %v923
  %v1000 = vpop.f32.mrf.mxu0
  %v1001 = vadd.f32 0.0, %v1000
  %v1002 = vpop.f32.mrf.mxu0
  %v1003 = vadd.f32 0.0, %v1002
  %1004 = vdwg.mxu0
  %1005 = vmatprep.subr.mxu0 %v101
  %1006 = vmatpush1.msra.mxu0 %v100
  %1007 = vmatprep.subr.mxu0 %v97
  %1008 = vmatpush1.msra.mxu0 %v96
  %1009 = vmatprep.subr.mxu0 %v93
  %1010 = vmatpush1.msra.mxu0 %v92
  %1011 = vmatprep.subr.mxu0 %v89
  %1012 = vmatpush1.msra.mxu0 %v88
  %1013 = vmatprep.subr.mxu0 %v85
  %1014 = vmatpush1.msra.mxu0 %v84
  %1015 = vmatprep.subr.mxu0 %v81
  %1016 = vmatpush1.msra.mxu0 %v80
  %1017 = vmatprep.subr.mxu0 %v77
  %1018 = vmatpush1.msra.mxu0 %v76
  %1019 = vmatprep.subr.mxu0 %v73
  %1020 = vmatpush1.msra.mxu0 %v72
  %1021 = vmatprep.subr.mxu0 %v69
  %1022 = vmatpush1.msra.mxu0 %v68
  %1023 = vmatprep.subr.mxu0 %v65
  %1024 = vmatpush1.msra.mxu0 %v64
  %1025 = vmatprep.subr.mxu0 %v61
  %1026 = vmatpush1.msra.mxu0 %v60
  %1027 = vmatprep.subr.mxu0 %v57
  %1028 = vmatpush1.msra.mxu0 %v56
  %1029 = vmatprep.subr.mxu0 %v53
  %1030 = vmatpush1.msra.mxu0 %v52
  %1031 = vmatprep.subr.mxu0 %v49
  %1032 = vmatpush1.msra.mxu0 %v48
  %1033 = vmatprep.subr.mxu0 %v45
  %1034 = vmatpush1.msra.mxu0 %v44
  %1035 = vmatprep.subr.mxu0 %v41
  %1036 = vmatpush1.msra.mxu0 %v40
  %1037 = vmatprep.subr.mxu0 0.0
  %1038 = vmatpush2.msra.mxu0 0.0
  %1039 = vmatprep.subr.mxu0 0.0
  %1040 = vmatpush2.msra.mxu0 0.0
  %1041 = vmatprep.subr.mxu0 0.0
  %1042 = vmatpush2.msra.mxu0 0.0
  %1043 = vmatprep.subr.mxu0 0.0
  %1044 = vmatpush2.msra.mxu0 0.0
  %1045 = vmatprep.subr.mxu0 0.0
  %1046 = vmatpush2.msra.mxu0 0.0
  %1047 = vmatprep.subr.mxu0 0.0
  %1048 = vmatpush2.msra.mxu0 0.0
  %1049 = vmatprep.subr.mxu0 0.0
  %1050 = vmatpush2.msra.mxu0 0.0
  %1051 = vmatprep.subr.mxu0 0.0
  %1052 = vmatpush2.msra.mxu0 0.0
  %1053 = vmatprep.subr.mxu0 0.0
  %1054 = vmatpush2.msra.mxu0 0.0
  %1055 = vmatprep.subr.mxu0 0.0
  %1056 = vmatpush2.msra.mxu0 0.0
  %1057 = vmatprep.subr.mxu0 0.0
  %1058 = vmatpush2.msra.mxu0 0.0
  %1059 = vmatprep.subr.mxu0 0.0
  %1060 = vmatpush2.msra.mxu0 0.0
  %1061 = vmatprep.subr.mxu0 0.0
  %1062 = vmatpush2.msra.mxu0 0.0
  %1063 = vmatprep.subr.mxu0 0.0
  %1064 = vmatpush2.msra.mxu0 0.0
  %1065 = vmatprep.subr.mxu0 0.0
  %1066 = vmatpush2.msra.mxu0 0.0
  %1067 = vmatprep.subr.mxu0 0.0
  %1068 = vmatpush2.msra.mxu0 0.0
  %1069 = vmatprep.mubr.f32.mxu0 0.0
  %1070 = vmatmul.mubr.f32.gmra.mxu0 %v923
  %v1071 = vpop.f32.mrf.mxu0
  %v1072 = vadd.f32 0.0, %v1071
  %v1073 = vpop.f32.mrf.mxu0
  %v1074 = vadd.f32 0.0, %v1073
  %1075 = vdwg.mxu0
  %v1076 = vadd.f32 %v930, %v1001
  %v1077 = vadd.f32 %v931, %v1003
  %v1078 = vadd.f32 %v932, %v1072
  %v1079 = vadd.f32 %v933, %v1074
  %v1080 = vxor.u32 %v1076, 2147483648
  %v1081 = vmul.f32 %v1080, 1.442695
  %v1082 = vpow.pop %v1081
  %v1083 = vadd.f32 %v1082, 1.0
  %v1084 = vrcp.pop %v1083
  %v1085 = vmul.f32 1.0, %v1084
  %v1086 = vxor.u32 %v1077, 2147483648
  %v1087 = vmul.f32 %v1086, 1.442695
  %v1088 = vpow.pop %v1087
  %v1089 = vadd.f32 %v1088, 1.0
  %v1090 = vrcp.pop %v1089
  %v1091 = vmul.f32 1.0, %v1090
  %v1092 = vtanh.pop %v1078
  %v1093 = vxor.u32 %v1079, 2147483648
  %v1094 = vmul.f32 %v1093, 1.442695
  %v1095 = vpow.pop %v1094
  %v1096 = vadd.f32 %v1095, 1.0
  %v1097 = vrcp.pop %v1096
  %v1098 = vmul.f32 1.0, %v1097
  %v1099 = vmul.f32 %v1091, %v924
  %v1100 = vmul.f32 %v1085, %v1092
  %v1101 = vadd.f32 %v1099, %v1100
  %v1102 = vtanh.pop %v1101
  %v1103 = vmul.f32 %v1098, %v1102
  %v1104 = vstv %s922
  %vm1105 = vcmp.lt.s32.totalorder %v1104, %v37
  %v1106 = vsel %vm1105, 1, 0
  %1107 = vset.pattern.permute.xlu0 0
  %1108 = vperm.xlu0 %1107, %v1106
  %v1109 = vpop.permute.xlu0 %1108
  %vm1110 = vcmp.eq.s32.totalorder %v1109, 1
  %v1111 = vsel %vm1110, %v1103, %v923
  %v1112 = vsel %vm1110, %v1101, %v924
  %1113 = vst [vmem:[#allocation2] sm:$0xff] %v1111
  %1114 = vst [vmem:[#allocation3] sm:$0xff] %v1112
  %1115 = vmatprep.subr.mxu0 0.0
  %1116 = vmatpush1.msra.mxu0 %v121
  %1117 = vmatprep.subr.mxu0 0.0
  %1118 = vmatpush1.msra.mxu0 %v120
  %1119 = vmatprep.subr.mxu0 0.0
  %1120 = vmatpush1.msra.mxu0 %v119
  %1121 = vmatprep.subr.mxu0 0.0
  %1122 = vmatpush1.msra.mxu0 %v118
  %1123 = vmatprep.subr.mxu0 0.0
  %1124 = vmatpush1.msra.mxu0 %v117
  %1125 = vmatprep.subr.mxu0 0.0
  %1126 = vmatpush1.msra.mxu0 %v116
  %1127 = vmatprep.subr.mxu0 0.0
  %1128 = vmatpush1.msra.mxu0 %v115
  %1129 = vmatprep.subr.mxu0 0.0
  %1130 = vmatpush1.msra.mxu0 %v114
  %1131 = vmatprep.subr.mxu0 0.0
  %1132 = vmatpush1.msra.mxu0 %v113
  %1133 = vmatprep.subr.mxu0 0.0
  %1134 = vmatpush1.msra.mxu0 %v112
  %1135 = vmatprep.subr.mxu0 0.0
  %1136 = vmatpush1.msra.mxu0 %v111
  %1137 = vmatprep.subr.mxu0 0.0
  %1138 = vmatpush1.msra.mxu0 %v110
  %1139 = vmatprep.subr.mxu0 0.0
  %1140 = vmatpush1.msra.mxu0 %v109
  %1141 = vmatprep.subr.mxu0 0.0
  %1142 = vmatpush1.msra.mxu0 %v108
  %1143 = vmatprep.subr.mxu0 0.0
  %1144 = vmatpush1.msra.mxu0 %v107
  %1145 = vmatprep.subr.mxu0 0.0
  %1146 = vmatpush1.msra.mxu0 %v106
  %1147 = vmatprep.subr.mxu0 0.0
  %1148 = vmatpush2.msra.mxu0 0.0
  %1149 = vmatprep.subr.mxu0 0.0
  %1150 = vmatpush2.msra.mxu0 0.0
  %1151 = vmatprep.subr.mxu0 0.0
  %1152 = vmatpush2.msra.mxu0 0.0
  %1153 = vmatprep.subr.mxu0 0.0
  %1154 = vmatpush2.msra.mxu0 0.0
  %1155 = vmatprep.subr.mxu0 0.0
  %1156 = vmatpush2.msra.mxu0 0.0
  %1157 = vmatprep.subr.mxu0 0.0
  %1158 = vmatpush2.msra.mxu0 0.0
  %1159 = vmatprep.subr.mxu0 0.0
  %1160 = vmatpush2.msra.mxu0 0.0
  %1161 = vmatprep.subr.mxu0 0.0
  %1162 = vmatpush2.msra.mxu0 0.0
  %1163 = vmatprep.subr.mxu0 0.0
  %1164 = vmatpush2.msra.mxu0 0.0
  %1165 = vmatprep.subr.mxu0 0.0
  %1166 = vmatpush2.msra.mxu0 0.0
  %1167 = vmatprep.subr.mxu0 0.0
  %1168 = vmatpush2.msra.mxu0 0.0
  %1169 = vmatprep.subr.mxu0 0.0
  %1170 = vmatpush2.msra.mxu0 0.0
  %1171 = vmatprep.subr.mxu0 0.0
  %1172 = vmatpush2.msra.mxu0 0.0
  %1173 = vmatprep.subr.mxu0 0.0
  %1174 = vmatpush2.msra.mxu0 0.0
  %1175 = vmatprep.subr.mxu0 0.0
  %1176 = vmatpush2.msra.mxu0 0.0
  %1177 = vmatprep.subr.mxu0 0.0
  %1178 = vmatpush2.msra.mxu0 0.0
  %1179 = vmatprep.mubr.f32.mxu0 0.0
  %1180 = vmatmul.mubr.f32.gmra.mxu0 %v1111
  %v1181 = vpop.f32.mrf.mxu0
  %v1182 = vadd.f32 %v319, %v1181
  %v1183 = vpop.f32.mrf.mxu0
  %1184 = vdwg.mxu0
  %s1185 = scalar_lea.vmem %s8, 24
  %1186 = vst [vmem:[%s1185] sm:$0xff] %v1182
  %s1187 = sadd.s32 %s123, 4
  %v1188 = vld [vmem:[#allocation2] sm:$0xff]
  %v1189 = vld [vmem:[#allocation3] sm:$0xff]
  %s1190 = scalar_lea.vmem %s0, 128
  %v1191 = vld [vmem:[%s1190] sm:$0xff]
  %v1192 = vld [vmem:[%s1190 + $0x8] sm:$0xff]
  %v1193 = vld [vmem:[%s1190 + $0x10] sm:$0xff]
  %v1194 = vld [vmem:[%s1190 + $0x18] sm:$0xff]
  %v1195 = vadd.f32 %v1191, %v102
  %v1196 = vadd.f32 %v1192, %v103
  %v1197 = vadd.f32 %v1193, %v104
  %v1198 = vadd.f32 %v1194, %v105
  %1199 = vmatprep.subr.mxu0 %v99
  %1200 = vmatpush1.msra.mxu0 %v98
  %1201 = vmatprep.subr.mxu0 %v95
  %1202 = vmatpush1.msra.mxu0 %v94
  %1203 = vmatprep.subr.mxu0 %v91
  %1204 = vmatpush1.msra.mxu0 %v90
  %1205 = vmatprep.subr.mxu0 %v87
  %1206 = vmatpush1.msra.mxu0 %v86
  %1207 = vmatprep.subr.mxu0 %v83
  %1208 = vmatpush1.msra.mxu0 %v82
  %1209 = vmatprep.subr.mxu0 %v79
  %1210 = vmatpush1.msra.mxu0 %v78
  %1211 = vmatprep.subr.mxu0 %v75
  %1212 = vmatpush1.msra.mxu0 %v74
  %1213 = vmatprep.subr.mxu0 %v71
  %1214 = vmatpush1.msra.mxu0 %v70
  %1215 = vmatprep.subr.mxu0 %v67
  %1216 = vmatpush1.msra.mxu0 %v66
  %1217 = vmatprep.subr.mxu0 %v63
  %1218 = vmatpush1.msra.mxu0 %v62
  %1219 = vmatprep.subr.mxu0 %v59
  %1220 = vmatpush1.msra.mxu0 %v58
  %1221 = vmatprep.subr.mxu0 %v55
  %1222 = vmatpush1.msra.mxu0 %v54
  %1223 = vmatprep.subr.mxu0 %v51
  %1224 = vmatpush1.msra.mxu0 %v50
  %1225 = vmatprep.subr.mxu0 %v47
  %1226 = vmatpush1.msra.mxu0 %v46
  %1227 = vmatprep.subr.mxu0 %v43
  %1228 = vmatpush1.msra.mxu0 %v42
  %1229 = vmatprep.subr.mxu0 %v39
  %1230 = vmatpush1.msra.mxu0 %v38
  %1231 = vmatprep.subr.mxu0 0.0
  %1232 = vmatpush2.msra.mxu0 0.0
  %1233 = vmatprep.subr.mxu0 0.0
  %1234 = vmatpush2.msra.mxu0 0.0
  %1235 = vmatprep.subr.mxu0 0.0
  %1236 = vmatpush2.msra.mxu0 0.0
  %1237 = vmatprep.subr.mxu0 0.0
  %1238 = vmatpush2.msra.mxu0 0.0
  %1239 = vmatprep.subr.mxu0 0.0
  %1240 = vmatpush2.msra.mxu0 0.0
  %1241 = vmatprep.subr.mxu0 0.0
  %1242 = vmatpush2.msra.mxu0 0.0
  %1243 = vmatprep.subr.mxu0 0.0
  %1244 = vmatpush2.msra.mxu0 0.0
  %1245 = vmatprep.subr.mxu0 0.0
  %1246 = vmatpush2.msra.mxu0 0.0
  %1247 = vmatprep.subr.mxu0 0.0
  %1248 = vmatpush2.msra.mxu0 0.0
  %1249 = vmatprep.subr.mxu0 0.0
  %1250 = vmatpush2.msra.mxu0 0.0
  %1251 = vmatprep.subr.mxu0 0.0
  %1252 = vmatpush2.msra.mxu0 0.0
  %1253 = vmatprep.subr.mxu0 0.0
  %1254 = vmatpush2.msra.mxu0 0.0
  %1255 = vmatprep.subr.mxu0 0.0
  %1256 = vmatpush2.msra.mxu0 0.0
  %1257 = vmatprep.subr.mxu0 0.0
  %1258 = vmatpush2.msra.mxu0 0.0
  %1259 = vmatprep.subr.mxu0 0.0
  %1260 = vmatpush2.msra.mxu0 0.0
  %1261 = vmatprep.subr.mxu0 0.0
  %1262 = vmatpush2.msra.mxu0 0.0
  %1263 = vmatprep.mubr.f32.mxu0 0.0
  %1264 = vmatmul.mubr.f32.gmra.mxu0 %v1188
  %v1265 = vpop.f32.mrf.mxu0
  %v1266 = vadd.f32 0.0, %v1265
  %v1267 = vpop.f32.mrf.mxu0
  %v1268 = vadd.f32 0.0, %v1267
  %1269 = vdwg.mxu0
  %1270 = vmatprep.subr.mxu0 %v101
  %1271 = vmatpush1.msra.mxu0 %v100
  %1272 = vmatprep.subr.mxu0 %v97
  %1273 = vmatpush1.msra.mxu0 %v96
  %1274 = vmatprep.subr.mxu0 %v93
  %1275 = vmatpush1.msra.mxu0 %v92
  %1276 = vmatprep.subr.mxu0 %v89
  %1277 = vmatpush1.msra.mxu0 %v88
  %1278 = vmatprep.subr.mxu0 %v85
  %1279 = vmatpush1.msra.mxu0 %v84
  %1280 = vmatprep.subr.mxu0 %v81
  %1281 = vmatpush1.msra.mxu0 %v80
  %1282 = vmatprep.subr.mxu0 %v77
  %1283 = vmatpush1.msra.mxu0 %v76
  %1284 = vmatprep.subr.mxu0 %v73
  %1285 = vmatpush1.msra.mxu0 %v72
  %1286 = vmatprep.subr.mxu0 %v69
  %1287 = vmatpush1.msra.mxu0 %v68
  %1288 = vmatprep.subr.mxu0 %v65
  %1289 = vmatpush1.msra.mxu0 %v64
  %1290 = vmatprep.subr.mxu0 %v61
  %1291 = vmatpush1.msra.mxu0 %v60
  %1292 = vmatprep.subr.mxu0 %v57
  %1293 = vmatpush1.msra.mxu0 %v56
  %1294 = vmatprep.subr.mxu0 %v53
  %1295 = vmatpush1.msra.mxu0 %v52
  %1296 = vmatprep.subr.mxu0 %v49
  %1297 = vmatpush1.msra.mxu0 %v48
  %1298 = vmatprep.subr.mxu0 %v45
  %1299 = vmatpush1.msra.mxu0 %v44
  %1300 = vmatprep.subr.mxu0 %v41
  %1301 = vmatpush1.msra.mxu0 %v40
  %1302 = vmatprep.subr.mxu0 0.0
  %1303 = vmatpush2.msra.mxu0 0.0
  %1304 = vmatprep.subr.mxu0 0.0
  %1305 = vmatpush2.msra.mxu0 0.0
  %1306 = vmatprep.subr.mxu0 0.0
  %1307 = vmatpush2.msra.mxu0 0.0
  %1308 = vmatprep.subr.mxu0 0.0
  %1309 = vmatpush2.msra.mxu0 0.0
  %1310 = vmatprep.subr.mxu0 0.0
  %1311 = vmatpush2.msra.mxu0 0.0
  %1312 = vmatprep.subr.mxu0 0.0
  %1313 = vmatpush2.msra.mxu0 0.0
  %1314 = vmatprep.subr.mxu0 0.0
  %1315 = vmatpush2.msra.mxu0 0.0
  %1316 = vmatprep.subr.mxu0 0.0
  %1317 = vmatpush2.msra.mxu0 0.0
  %1318 = vmatprep.subr.mxu0 0.0
  %1319 = vmatpush2.msra.mxu0 0.0
  %1320 = vmatprep.subr.mxu0 0.0
  %1321 = vmatpush2.msra.mxu0 0.0
  %1322 = vmatprep.subr.mxu0 0.0
  %1323 = vmatpush2.msra.mxu0 0.0
  %1324 = vmatprep.subr.mxu0 0.0
  %1325 = vmatpush2.msra.mxu0 0.0
  %1326 = vmatprep.subr.mxu0 0.0
  %1327 = vmatpush2.msra.mxu0 0.0
  %1328 = vmatprep.subr.mxu0 0.0
  %1329 = vmatpush2.msra.mxu0 0.0
  %1330 = vmatprep.subr.mxu0 0.0
  %1331 = vmatpush2.msra.mxu0 0.0
  %1332 = vmatprep.subr.mxu0 0.0
  %1333 = vmatpush2.msra.mxu0 0.0
  %1334 = vmatprep.mubr.f32.mxu0 0.0
  %1335 = vmatmul.mubr.f32.gmra.mxu0 %v1188
  %v1336 = vpop.f32.mrf.mxu0
  %v1337 = vadd.f32 0.0, %v1336
  %v1338 = vpop.f32.mrf.mxu0
  %v1339 = vadd.f32 0.0, %v1338
  %1340 = vdwg.mxu0
  %v1341 = vadd.f32 %v1195, %v1266
  %v1342 = vadd.f32 %v1196, %v1268
  %v1343 = vadd.f32 %v1197, %v1337
  %v1344 = vadd.f32 %v1198, %v1339
  %v1345 = vxor.u32 %v1341, 2147483648
  %v1346 = vmul.f32 %v1345, 1.442695
  %v1347 = vpow.pop %v1346
  %v1348 = vadd.f32 %v1347, 1.0
  %v1349 = vrcp.pop %v1348
  %v1350 = vmul.f32 1.0, %v1349
  %v1351 = vxor.u32 %v1342, 2147483648
  %v1352 = vmul.f32 %v1351, 1.442695
  %v1353 = vpow.pop %v1352
  %v1354 = vadd.f32 %v1353, 1.0
  %v1355 = vrcp.pop %v1354
  %v1356 = vmul.f32 1.0, %v1355
  %v1357 = vtanh.pop %v1343
  %v1358 = vxor.u32 %v1344, 2147483648
  %v1359 = vmul.f32 %v1358, 1.442695
  %v1360 = vpow.pop %v1359
  %v1361 = vadd.f32 %v1360, 1.0
  %v1362 = vrcp.pop %v1361
  %v1363 = vmul.f32 1.0, %v1362
  %v1364 = vmul.f32 %v1356, %v1189
  %v1365 = vmul.f32 %v1350, %v1357
  %v1366 = vadd.f32 %v1364, %v1365
  %v1367 = vtanh.pop %v1366
  %v1368 = vmul.f32 %v1363, %v1367
  %v1369 = vstv %s1187
  %vm1370 = vcmp.lt.s32.totalorder %v1369, %v37
  %v1371 = vsel %vm1370, 1, 0
  %1372 = vset.pattern.permute.xlu0 0
  %1373 = vperm.xlu0 %1372, %v1371
  %v1374 = vpop.permute.xlu0 %1373
  %vm1375 = vcmp.eq.s32.totalorder %v1374, 1
  %v1376 = vsel %vm1375, %v1368, %v1188
  %v1377 = vsel %vm1375, %v1366, %v1189
  %1378 = vst [vmem:[#allocation2] sm:$0xff] %v1376
  %1379 = vst [vmem:[#allocation3] sm:$0xff] %v1377
  %1380 = vmatprep.subr.mxu0 0.0
  %1381 = vmatpush1.msra.mxu0 %v121
  %1382 = vmatprep.subr.mxu0 0.0
  %1383 = vmatpush1.msra.mxu0 %v120
  %1384 = vmatprep.subr.mxu0 0.0
  %1385 = vmatpush1.msra.mxu0 %v119
  %1386 = vmatprep.subr.mxu0 0.0
  %1387 = vmatpush1.msra.mxu0 %v118
  %1388 = vmatprep.subr.mxu0 0.0
  %1389 = vmatpush1.msra.mxu0 %v117
  %1390 = vmatprep.subr.mxu0 0.0
  %1391 = vmatpush1.msra.mxu0 %v116
  %1392 = vmatprep.subr.mxu0 0.0
  %1393 = vmatpush1.msra.mxu0 %v115
  %1394 = vmatprep.subr.mxu0 0.0
  %1395 = vmatpush1.msra.mxu0 %v114
  %1396 = vmatprep.subr.mxu0 0.0
  %1397 = vmatpush1.msra.mxu0 %v113
  %1398 = vmatprep.subr.mxu0 0.0
  %1399 = vmatpush1.msra.mxu0 %v112
  %1400 = vmatprep.subr.mxu0 0.0
  %1401 = vmatpush1.msra.mxu0 %v111
  %1402 = vmatprep.subr.mxu0 0.0
  %1403 = vmatpush1.msra.mxu0 %v110
  %1404 = vmatprep.subr.mxu0 0.0
  %1405 = vmatpush1.msra.mxu0 %v109
  %1406 = vmatprep.subr.mxu0 0.0
  %1407 = vmatpush1.msra.mxu0 %v108
  %1408 = vmatprep.subr.mxu0 0.0
  %1409 = vmatpush1.msra.mxu0 %v107
  %1410 = vmatprep.subr.mxu0 0.0
  %1411 = vmatpush1.msra.mxu0 %v106
  %1412 = vmatprep.subr.mxu0 0.0
  %1413 = vmatpush2.msra.mxu0 0.0
  %1414 = vmatprep.subr.mxu0 0.0
  %1415 = vmatpush2.msra.mxu0 0.0
  %1416 = vmatprep.subr.mxu0 0.0
  %1417 = vmatpush2.msra.mxu0 0.0
  %1418 = vmatprep.subr.mxu0 0.0
  %1419 = vmatpush2.msra.mxu0 0.0
  %1420 = vmatprep.subr.mxu0 0.0
  %1421 = vmatpush2.msra.mxu0 0.0
  %1422 = vmatprep.subr.mxu0 0.0
  %1423 = vmatpush2.msra.mxu0 0.0
  %1424 = vmatprep.subr.mxu0 0.0
  %1425 = vmatpush2.msra.mxu0 0.0
  %1426 = vmatprep.subr.mxu0 0.0
  %1427 = vmatpush2.msra.mxu0 0.0
  %1428 = vmatprep.subr.mxu0 0.0
  %1429 = vmatpush2.msra.mxu0 0.0
  %1430 = vmatprep.subr.mxu0 0.0
  %1431 = vmatpush2.msra.mxu0 0.0
  %1432 = vmatprep.subr.mxu0 0.0
  %1433 = vmatpush2.msra.mxu0 0.0
  %1434 = vmatprep.subr.mxu0 0.0
  %1435 = vmatpush2.msra.mxu0 0.0
  %1436 = vmatprep.subr.mxu0 0.0
  %1437 = vmatpush2.msra.mxu0 0.0
  %1438 = vmatprep.subr.mxu0 0.0
  %1439 = vmatpush2.msra.mxu0 0.0
  %1440 = vmatprep.subr.mxu0 0.0
  %1441 = vmatpush2.msra.mxu0 0.0
  %1442 = vmatprep.subr.mxu0 0.0
  %1443 = vmatpush2.msra.mxu0 0.0
  %1444 = vmatprep.mubr.f32.mxu0 0.0
  %1445 = vmatmul.mubr.f32.gmra.mxu0 %v1376
  %v1446 = vpop.f32.mrf.mxu0
  %v1447 = vadd.f32 %v319, %v1446
  %v1448 = vpop.f32.mrf.mxu0
  %1449 = vdwg.mxu0
  %s1450 = scalar_lea.vmem %s8, 32
  %1451 = vst [vmem:[%s1450] sm:$0xff] %v1447
  %s1452 = sadd.s32 %s123, 5
  %v1453 = vld [vmem:[#allocation2] sm:$0xff]
  %v1454 = vld [vmem:[#allocation3] sm:$0xff]
  %s1455 = scalar_lea.vmem %s0, 160
  %v1456 = vld [vmem:[%s1455] sm:$0xff]
  %v1457 = vld [vmem:[%s1455 + $0x8] sm:$0xff]
  %v1458 = vld [vmem:[%s1455 + $0x10] sm:$0xff]
  %v1459 = vld [vmem:[%s1455 + $0x18] sm:$0xff]
  %v1460 = vadd.f32 %v1456, %v102
  %v1461 = vadd.f32 %v1457, %v103
  %v1462 = vadd.f32 %v1458, %v104
  %v1463 = vadd.f32 %v1459, %v105
  %1464 = vmatprep.subr.mxu0 %v99
  %1465 = vmatpush1.msra.mxu0 %v98
  %1466 = vmatprep.subr.mxu0 %v95
  %1467 = vmatpush1.msra.mxu0 %v94
  %1468 = vmatprep.subr.mxu0 %v91
  %1469 = vmatpush1.msra.mxu0 %v90
  %1470 = vmatprep.subr.mxu0 %v87
  %1471 = vmatpush1.msra.mxu0 %v86
  %1472 = vmatprep.subr.mxu0 %v83
  %1473 = vmatpush1.msra.mxu0 %v82
  %1474 = vmatprep.subr.mxu0 %v79
  %1475 = vmatpush1.msra.mxu0 %v78
  %1476 = vmatprep.subr.mxu0 %v75
  %1477 = vmatpush1.msra.mxu0 %v74
  %1478 = vmatprep.subr.mxu0 %v71
  %1479 = vmatpush1.msra.mxu0 %v70
  %1480 = vmatprep.subr.mxu0 %v67
  %1481 = vmatpush1.msra.mxu0 %v66
  %1482 = vmatprep.subr.mxu0 %v63
  %1483 = vmatpush1.msra.mxu0 %v62
  %1484 = vmatprep.subr.mxu0 %v59
  %1485 = vmatpush1.msra.mxu0 %v58
  %1486 = vmatprep.subr.mxu0 %v55
  %1487 = vmatpush1.msra.mxu0 %v54
  %1488 = vmatprep.subr.mxu0 %v51
  %1489 = vmatpush1.msra.mxu0 %v50
  %1490 = vmatprep.subr.mxu0 %v47
  %1491 = vmatpush1.msra.mxu0 %v46
  %1492 = vmatprep.subr.mxu0 %v43
  %1493 = vmatpush1.msra.mxu0 %v42
  %1494 = vmatprep.subr.mxu0 %v39
  %1495 = vmatpush1.msra.mxu0 %v38
  %1496 = vmatprep.subr.mxu0 0.0
  %1497 = vmatpush2.msra.mxu0 0.0
  %1498 = vmatprep.subr.mxu0 0.0
  %1499 = vmatpush2.msra.mxu0 0.0
  %1500 = vmatprep.subr.mxu0 0.0
  %1501 = vmatpush2.msra.mxu0 0.0
  %1502 = vmatprep.subr.mxu0 0.0
  %1503 = vmatpush2.msra.mxu0 0.0
  %1504 = vmatprep.subr.mxu0 0.0
  %1505 = vmatpush2.msra.mxu0 0.0
  %1506 = vmatprep.subr.mxu0 0.0
  %1507 = vmatpush2.msra.mxu0 0.0
  %1508 = vmatprep.subr.mxu0 0.0
  %1509 = vmatpush2.msra.mxu0 0.0
  %1510 = vmatprep.subr.mxu0 0.0
  %1511 = vmatpush2.msra.mxu0 0.0
  %1512 = vmatprep.subr.mxu0 0.0
  %1513 = vmatpush2.msra.mxu0 0.0
  %1514 = vmatprep.subr.mxu0 0.0
  %1515 = vmatpush2.msra.mxu0 0.0
  %1516 = vmatprep.subr.mxu0 0.0
  %1517 = vmatpush2.msra.mxu0 0.0
  %1518 = vmatprep.subr.mxu0 0.0
  %1519 = vmatpush2.msra.mxu0 0.0
  %1520 = vmatprep.subr.mxu0 0.0
  %1521 = vmatpush2.msra.mxu0 0.0
  %1522 = vmatprep.subr.mxu0 0.0
  %1523 = vmatpush2.msra.mxu0 0.0
  %1524 = vmatprep.subr.mxu0 0.0
  %1525 = vmatpush2.msra.mxu0 0.0
  %1526 = vmatprep.subr.mxu0 0.0
  %1527 = vmatpush2.msra.mxu0 0.0
  %1528 = vmatprep.mubr.f32.mxu0 0.0
  %1529 = vmatmul.mubr.f32.gmra.mxu0 %v1453
  %v1530 = vpop.f32.mrf.mxu0
  %v1531 = vadd.f32 0.0, %v1530
  %v1532 = vpop.f32.mrf.mxu0
  %v1533 = vadd.f32 0.0, %v1532
  %1534 = vdwg.mxu0
  %1535 = vmatprep.subr.mxu0 %v101
  %1536 = vmatpush1.msra.mxu0 %v100
  %1537 = vmatprep.subr.mxu0 %v97
  %1538 = vmatpush1.msra.mxu0 %v96
  %1539 = vmatprep.subr.mxu0 %v93
  %1540 = vmatpush1.msra.mxu0 %v92
  %1541 = vmatprep.subr.mxu0 %v89
  %1542 = vmatpush1.msra.mxu0 %v88
  %1543 = vmatprep.subr.mxu0 %v85
  %1544 = vmatpush1.msra.mxu0 %v84
  %1545 = vmatprep.subr.mxu0 %v81
  %1546 = vmatpush1.msra.mxu0 %v80
  %1547 = vmatprep.subr.mxu0 %v77
  %1548 = vmatpush1.msra.mxu0 %v76
  %1549 = vmatprep.subr.mxu0 %v73
  %1550 = vmatpush1.msra.mxu0 %v72
  %1551 = vmatprep.subr.mxu0 %v69
  %1552 = vmatpush1.msra.mxu0 %v68
  %1553 = vmatprep.subr.mxu0 %v65
  %1554 = vmatpush1.msra.mxu0 %v64
  %1555 = vmatprep.subr.mxu0 %v61
  %1556 = vmatpush1.msra.mxu0 %v60
  %1557 = vmatprep.subr.mxu0 %v57
  %1558 = vmatpush1.msra.mxu0 %v56
  %1559 = vmatprep.subr.mxu0 %v53
  %1560 = vmatpush1.msra.mxu0 %v52
  %1561 = vmatprep.subr.mxu0 %v49
  %1562 = vmatpush1.msra.mxu0 %v48
  %1563 = vmatprep.subr.mxu0 %v45
  %1564 = vmatpush1.msra.mxu0 %v44
  %1565 = vmatprep.subr.mxu0 %v41
  %1566 = vmatpush1.msra.mxu0 %v40
  %1567 = vmatprep.subr.mxu0 0.0
  %1568 = vmatpush2.msra.mxu0 0.0
  %1569 = vmatprep.subr.mxu0 0.0
  %1570 = vmatpush2.msra.mxu0 0.0
  %1571 = vmatprep.subr.mxu0 0.0
  %1572 = vmatpush2.msra.mxu0 0.0
  %1573 = vmatprep.subr.mxu0 0.0
  %1574 = vmatpush2.msra.mxu0 0.0
  %1575 = vmatprep.subr.mxu0 0.0
  %1576 = vmatpush2.msra.mxu0 0.0
  %1577 = vmatprep.subr.mxu0 0.0
  %1578 = vmatpush2.msra.mxu0 0.0
  %1579 = vmatprep.subr.mxu0 0.0
  %1580 = vmatpush2.msra.mxu0 0.0
  %1581 = vmatprep.subr.mxu0 0.0
  %1582 = vmatpush2.msra.mxu0 0.0
  %1583 = vmatprep.subr.mxu0 0.0
  %1584 = vmatpush2.msra.mxu0 0.0
  %1585 = vmatprep.subr.mxu0 0.0
  %1586 = vmatpush2.msra.mxu0 0.0
  %1587 = vmatprep.subr.mxu0 0.0
  %1588 = vmatpush2.msra.mxu0 0.0
  %1589 = vmatprep.subr.mxu0 0.0
  %1590 = vmatpush2.msra.mxu0 0.0
  %1591 = vmatprep.subr.mxu0 0.0
  %1592 = vmatpush2.msra.mxu0 0.0
  %1593 = vmatprep.subr.mxu0 0.0
  %1594 = vmatpush2.msra.mxu0 0.0
  %1595 = vmatprep.subr.mxu0 0.0
  %1596 = vmatpush2.msra.mxu0 0.0
  %1597 = vmatprep.subr.mxu0 0.0
  %1598 = vmatpush2.msra.mxu0 0.0
  %1599 = vmatprep.mubr.f32.mxu0 0.0
  %1600 = vmatmul.mubr.f32.gmra.mxu0 %v1453
  %v1601 = vpop.f32.mrf.mxu0
  %v1602 = vadd.f32 0.0, %v1601
  %v1603 = vpop.f32.mrf.mxu0
  %v1604 = vadd.f32 0.0, %v1603
  %1605 = vdwg.mxu0
  %v1606 = vadd.f32 %v1460, %v1531
  %v1607 = vadd.f32 %v1461, %v1533
  %v1608 = vadd.f32 %v1462, %v1602
  %v1609 = vadd.f32 %v1463, %v1604
  %v1610 = vxor.u32 %v1606, 2147483648
  %v1611 = vmul.f32 %v1610, 1.442695
  %v1612 = vpow.pop %v1611
  %v1613 = vadd.f32 %v1612, 1.0
  %v1614 = vrcp.pop %v1613
  %v1615 = vmul.f32 1.0, %v1614
  %v1616 = vxor.u32 %v1607, 2147483648
  %v1617 = vmul.f32 %v1616, 1.442695
  %v1618 = vpow.pop %v1617
  %v1619 = vadd.f32 %v1618, 1.0
  %v1620 = vrcp.pop %v1619
  %v1621 = vmul.f32 1.0, %v1620
  %v1622 = vtanh.pop %v1608
  %v1623 = vxor.u32 %v1609, 2147483648
  %v1624 = vmul.f32 %v1623, 1.442695
  %v1625 = vpow.pop %v1624
  %v1626 = vadd.f32 %v1625, 1.0
  %v1627 = vrcp.pop %v1626
  %v1628 = vmul.f32 1.0, %v1627
  %v1629 = vmul.f32 %v1621, %v1454
  %v1630 = vmul.f32 %v1615, %v1622
  %v1631 = vadd.f32 %v1629, %v1630
  %v1632 = vtanh.pop %v1631
  %v1633 = vmul.f32 %v1628, %v1632
  %v1634 = vstv %s1452
  %vm1635 = vcmp.lt.s32.totalorder %v1634, %v37
  %v1636 = vsel %vm1635, 1, 0
  %1637 = vset.pattern.permute.xlu0 0
  %1638 = vperm.xlu0 %1637, %v1636
  %v1639 = vpop.permute.xlu0 %1638
  %vm1640 = vcmp.eq.s32.totalorder %v1639, 1
  %v1641 = vsel %vm1640, %v1633, %v1453
  %v1642 = vsel %vm1640, %v1631, %v1454
  %1643 = vst [vmem:[#allocation2] sm:$0xff] %v1641
  %1644 = vst [vmem:[#allocation3] sm:$0xff] %v1642
  %1645 = vmatprep.subr.mxu0 0.0
  %1646 = vmatpush1.msra.mxu0 %v121
  %1647 = vmatprep.subr.mxu0 0.0
  %1648 = vmatpush1.msra.mxu0 %v120
  %1649 = vmatprep.subr.mxu0 0.0
  %1650 = vmatpush1.msra.mxu0 %v119
  %1651 = vmatprep.subr.mxu0 0.0
  %1652 = vmatpush1.msra.mxu0 %v118
  %1653 = vmatprep.subr.mxu0 0.0
  %1654 = vmatpush1.msra.mxu0 %v117
  %1655 = vmatprep.subr.mxu0 0.0
  %1656 = vmatpush1.msra.mxu0 %v116
  %1657 = vmatprep.subr.mxu0 0.0
  %1658 = vmatpush1.msra.mxu0 %v115
  %1659 = vmatprep.subr.mxu0 0.0
  %1660 = vmatpush1.msra.mxu0 %v114
  %1661 = vmatprep.subr.mxu0 0.0
  %1662 = vmatpush1.msra.mxu0 %v113
  %1663 = vmatprep.subr.mxu0 0.0
  %1664 = vmatpush1.msra.mxu0 %v112
  %1665 = vmatprep.subr.mxu0 0.0
  %1666 = vmatpush1.msra.mxu0 %v111
  %1667 = vmatprep.subr.mxu0 0.0
  %1668 = vmatpush1.msra.mxu0 %v110
  %1669 = vmatprep.subr.mxu0 0.0
  %1670 = vmatpush1.msra.mxu0 %v109
  %1671 = vmatprep.subr.mxu0 0.0
  %1672 = vmatpush1.msra.mxu0 %v108
  %1673 = vmatprep.subr.mxu0 0.0
  %1674 = vmatpush1.msra.mxu0 %v107
  %1675 = vmatprep.subr.mxu0 0.0
  %1676 = vmatpush1.msra.mxu0 %v106
  %1677 = vmatprep.subr.mxu0 0.0
  %1678 = vmatpush2.msra.mxu0 0.0
  %1679 = vmatprep.subr.mxu0 0.0
  %1680 = vmatpush2.msra.mxu0 0.0
  %1681 = vmatprep.subr.mxu0 0.0
  %1682 = vmatpush2.msra.mxu0 0.0
  %1683 = vmatprep.subr.mxu0 0.0
  %1684 = vmatpush2.msra.mxu0 0.0
  %1685 = vmatprep.subr.mxu0 0.0
  %1686 = vmatpush2.msra.mxu0 0.0
  %1687 = vmatprep.subr.mxu0 0.0
  %1688 = vmatpush2.msra.mxu0 0.0
  %1689 = vmatprep.subr.mxu0 0.0
  %1690 = vmatpush2.msra.mxu0 0.0
  %1691 = vmatprep.subr.mxu0 0.0
  %1692 = vmatpush2.msra.mxu0 0.0
  %1693 = vmatprep.subr.mxu0 0.0
  %1694 = vmatpush2.msra.mxu0 0.0
  %1695 = vmatprep.subr.mxu0 0.0
  %1696 = vmatpush2.msra.mxu0 0.0
  %1697 = vmatprep.subr.mxu0 0.0
  %1698 = vmatpush2.msra.mxu0 0.0
  %1699 = vmatprep.subr.mxu0 0.0
  %1700 = vmatpush2.msra.mxu0 0.0
  %1701 = vmatprep.subr.mxu0 0.0
  %1702 = vmatpush2.msra.mxu0 0.0
  %1703 = vmatprep.subr.mxu0 0.0
  %1704 = vmatpush2.msra.mxu0 0.0
  %1705 = vmatprep.subr.mxu0 0.0
  %1706 = vmatpush2.msra.mxu0 0.0
  %1707 = vmatprep.subr.mxu0 0.0
  %1708 = vmatpush2.msra.mxu0 0.0
  %1709 = vmatprep.mubr.f32.mxu0 0.0
  %1710 = vmatmul.mubr.f32.gmra.mxu0 %v1641
  %v1711 = vpop.f32.mrf.mxu0
  %v1712 = vadd.f32 %v319, %v1711
  %v1713 = vpop.f32.mrf.mxu0
  %1714 = vdwg.mxu0
  %s1715 = scalar_lea.vmem %s8, 40
  %1716 = vst [vmem:[%s1715] sm:$0xff] %v1712
  %s1717 = sadd.s32 %s123, 6
  %v1718 = vld [vmem:[#allocation2] sm:$0xff]
  %v1719 = vld [vmem:[#allocation3] sm:$0xff]
  %s1720 = scalar_lea.vmem %s0, 192
  %v1721 = vld [vmem:[%s1720] sm:$0xff]
  %v1722 = vld [vmem:[%s1720 + $0x8] sm:$0xff]
  %v1723 = vld [vmem:[%s1720 + $0x10] sm:$0xff]
  %v1724 = vld [vmem:[%s1720 + $0x18] sm:$0xff]
  %v1725 = vadd.f32 %v1721, %v102
  %v1726 = vadd.f32 %v1722, %v103
  %v1727 = vadd.f32 %v1723, %v104
  %v1728 = vadd.f32 %v1724, %v105
  %1729 = vmatprep.subr.mxu0 %v99
  %1730 = vmatpush1.msra.mxu0 %v98
  %1731 = vmatprep.subr.mxu0 %v95
  %1732 = vmatpush1.msra.mxu0 %v94
  %1733 = vmatprep.subr.mxu0 %v91
  %1734 = vmatpush1.msra.mxu0 %v90
  %1735 = vmatprep.subr.mxu0 %v87
  %1736 = vmatpush1.msra.mxu0 %v86
  %1737 = vmatprep.subr.mxu0 %v83
  %1738 = vmatpush1.msra.mxu0 %v82
  %1739 = vmatprep.subr.mxu0 %v79
  %1740 = vmatpush1.msra.mxu0 %v78
  %1741 = vmatprep.subr.mxu0 %v75
  %1742 = vmatpush1.msra.mxu0 %v74
  %1743 = vmatprep.subr.mxu0 %v71
  %1744 = vmatpush1.msra.mxu0 %v70
  %1745 = vmatprep.subr.mxu0 %v67
  %1746 = vmatpush1.msra.mxu0 %v66
  %1747 = vmatprep.subr.mxu0 %v63
  %1748 = vmatpush1.msra.mxu0 %v62
  %1749 = vmatprep.subr.mxu0 %v59
  %1750 = vmatpush1.msra.mxu0 %v58
  %1751 = vmatprep.subr.mxu0 %v55
  %1752 = vmatpush1.msra.mxu0 %v54
  %1753 = vmatprep.subr.mxu0 %v51
  %1754 = vmatpush1.msra.mxu0 %v50
  %1755 = vmatprep.subr.mxu0 %v47
  %1756 = vmatpush1.msra.mxu0 %v46
  %1757 = vmatprep.subr.mxu0 %v43
  %1758 = vmatpush1.msra.mxu0 %v42
  %1759 = vmatprep.subr.mxu0 %v39
  %1760 = vmatpush1.msra.mxu0 %v38
  %1761 = vmatprep.subr.mxu0 0.0
  %1762 = vmatpush2.msra.mxu0 0.0
  %1763 = vmatprep.subr.mxu0 0.0
  %1764 = vmatpush2.msra.mxu0 0.0
  %1765 = vmatprep.subr.mxu0 0.0
  %1766 = vmatpush2.msra.mxu0 0.0
  %1767 = vmatprep.subr.mxu0 0.0
  %1768 = vmatpush2.msra.mxu0 0.0
  %1769 = vmatprep.subr.mxu0 0.0
  %1770 = vmatpush2.msra.mxu0 0.0
  %1771 = vmatprep.subr.mxu0 0.0
  %1772 = vmatpush2.msra.mxu0 0.0
  %1773 = vmatprep.subr.mxu0 0.0
  %1774 = vmatpush2.msra.mxu0 0.0
  %1775 = vmatprep.subr.mxu0 0.0
  %1776 = vmatpush2.msra.mxu0 0.0
  %1777 = vmatprep.subr.mxu0 0.0
  %1778 = vmatpush2.msra.mxu0 0.0
  %1779 = vmatprep.subr.mxu0 0.0
  %1780 = vmatpush2.msra.mxu0 0.0
  %1781 = vmatprep.subr.mxu0 0.0
  %1782 = vmatpush2.msra.mxu0 0.0
  %1783 = vmatprep.subr.mxu0 0.0
  %1784 = vmatpush2.msra.mxu0 0.0
  %1785 = vmatprep.subr.mxu0 0.0
  %1786 = vmatpush2.msra.mxu0 0.0
  %1787 = vmatprep.subr.mxu0 0.0
  %1788 = vmatpush2.msra.mxu0 0.0
  %1789 = vmatprep.subr.mxu0 0.0
  %1790 = vmatpush2.msra.mxu0 0.0
  %1791 = vmatprep.subr.mxu0 0.0
  %1792 = vmatpush2.msra.mxu0 0.0
  %1793 = vmatprep.mubr.f32.mxu0 0.0
  %1794 = vmatmul.mubr.f32.gmra.mxu0 %v1718
  %v1795 = vpop.f32.mrf.mxu0
  %v1796 = vadd.f32 0.0, %v1795
  %v1797 = vpop.f32.mrf.mxu0
  %v1798 = vadd.f32 0.0, %v1797
  %1799 = vdwg.mxu0
  %1800 = vmatprep.subr.mxu0 %v101
  %1801 = vmatpush1.msra.mxu0 %v100
  %1802 = vmatprep.subr.mxu0 %v97
  %1803 = vmatpush1.msra.mxu0 %v96
  %1804 = vmatprep.subr.mxu0 %v93
  %1805 = vmatpush1.msra.mxu0 %v92
  %1806 = vmatprep.subr.mxu0 %v89
  %1807 = vmatpush1.msra.mxu0 %v88
  %1808 = vmatprep.subr.mxu0 %v85
  %1809 = vmatpush1.msra.mxu0 %v84
  %1810 = vmatprep.subr.mxu0 %v81
  %1811 = vmatpush1.msra.mxu0 %v80
  %1812 = vmatprep.subr.mxu0 %v77
  %1813 = vmatpush1.msra.mxu0 %v76
  %1814 = vmatprep.subr.mxu0 %v73
  %1815 = vmatpush1.msra.mxu0 %v72
  %1816 = vmatprep.subr.mxu0 %v69
  %1817 = vmatpush1.msra.mxu0 %v68
  %1818 = vmatprep.subr.mxu0 %v65
  %1819 = vmatpush1.msra.mxu0 %v64
  %1820 = vmatprep.subr.mxu0 %v61
  %1821 = vmatpush1.msra.mxu0 %v60
  %1822 = vmatprep.subr.mxu0 %v57
  %1823 = vmatpush1.msra.mxu0 %v56
  %1824 = vmatprep.subr.mxu0 %v53
  %1825 = vmatpush1.msra.mxu0 %v52
  %1826 = vmatprep.subr.mxu0 %v49
  %1827 = vmatpush1.msra.mxu0 %v48
  %1828 = vmatprep.subr.mxu0 %v45
  %1829 = vmatpush1.msra.mxu0 %v44
  %1830 = vmatprep.subr.mxu0 %v41
  %1831 = vmatpush1.msra.mxu0 %v40
  %1832 = vmatprep.subr.mxu0 0.0
  %1833 = vmatpush2.msra.mxu0 0.0
  %1834 = vmatprep.subr.mxu0 0.0
  %1835 = vmatpush2.msra.mxu0 0.0
  %1836 = vmatprep.subr.mxu0 0.0
  %1837 = vmatpush2.msra.mxu0 0.0
  %1838 = vmatprep.subr.mxu0 0.0
  %1839 = vmatpush2.msra.mxu0 0.0
  %1840 = vmatprep.subr.mxu0 0.0
  %1841 = vmatpush2.msra.mxu0 0.0
  %1842 = vmatprep.subr.mxu0 0.0
  %1843 = vmatpush2.msra.mxu0 0.0
  %1844 = vmatprep.subr.mxu0 0.0
  %1845 = vmatpush2.msra.mxu0 0.0
  %1846 = vmatprep.subr.mxu0 0.0
  %1847 = vmatpush2.msra.mxu0 0.0
  %1848 = vmatprep.subr.mxu0 0.0
  %1849 = vmatpush2.msra.mxu0 0.0
  %1850 = vmatprep.subr.mxu0 0.0
  %1851 = vmatpush2.msra.mxu0 0.0
  %1852 = vmatprep.subr.mxu0 0.0
  %1853 = vmatpush2.msra.mxu0 0.0
  %1854 = vmatprep.subr.mxu0 0.0
  %1855 = vmatpush2.msra.mxu0 0.0
  %1856 = vmatprep.subr.mxu0 0.0
  %1857 = vmatpush2.msra.mxu0 0.0
  %1858 = vmatprep.subr.mxu0 0.0
  %1859 = vmatpush2.msra.mxu0 0.0
  %1860 = vmatprep.subr.mxu0 0.0
  %1861 = vmatpush2.msra.mxu0 0.0
  %1862 = vmatprep.subr.mxu0 0.0
  %1863 = vmatpush2.msra.mxu0 0.0
  %1864 = vmatprep.mubr.f32.mxu0 0.0
  %1865 = vmatmul.mubr.f32.gmra.mxu0 %v1718
  %v1866 = vpop.f32.mrf.mxu0
  %v1867 = vadd.f32 0.0, %v1866
  %v1868 = vpop.f32.mrf.mxu0
  %v1869 = vadd.f32 0.0, %v1868
  %1870 = vdwg.mxu0
  %v1871 = vadd.f32 %v1725, %v1796
  %v1872 = vadd.f32 %v1726, %v1798
  %v1873 = vadd.f32 %v1727, %v1867
  %v1874 = vadd.f32 %v1728, %v1869
  %v1875 = vxor.u32 %v1871, 2147483648
  %v1876 = vmul.f32 %v1875, 1.442695
  %v1877 = vpow.pop %v1876
  %v1878 = vadd.f32 %v1877, 1.0
  %v1879 = vrcp.pop %v1878
  %v1880 = vmul.f32 1.0, %v1879
  %v1881 = vxor.u32 %v1872, 2147483648
  %v1882 = vmul.f32 %v1881, 1.442695
  %v1883 = vpow.pop %v1882
  %v1884 = vadd.f32 %v1883, 1.0
  %v1885 = vrcp.pop %v1884
  %v1886 = vmul.f32 1.0, %v1885
  %v1887 = vtanh.pop %v1873
  %v1888 = vxor.u32 %v1874, 2147483648
  %v1889 = vmul.f32 %v1888, 1.442695
  %v1890 = vpow.pop %v1889
  %v1891 = vadd.f32 %v1890, 1.0
  %v1892 = vrcp.pop %v1891
  %v1893 = vmul.f32 1.0, %v1892
  %v1894 = vmul.f32 %v1886, %v1719
  %v1895 = vmul.f32 %v1880, %v1887
  %v1896 = vadd.f32 %v1894, %v1895
  %v1897 = vtanh.pop %v1896
  %v1898 = vmul.f32 %v1893, %v1897
  %v1899 = vstv %s1717
  %vm1900 = vcmp.lt.s32.totalorder %v1899, %v37
  %v1901 = vsel %vm1900, 1, 0
  %1902 = vset.pattern.permute.xlu0 0
  %1903 = vperm.xlu0 %1902, %v1901
  %v1904 = vpop.permute.xlu0 %1903
  %vm1905 = vcmp.eq.s32.totalorder %v1904, 1
  %v1906 = vsel %vm1905, %v1898, %v1718
  %v1907 = vsel %vm1905, %v1896, %v1719
  %1908 = vst [vmem:[#allocation2] sm:$0xff] %v1906
  %1909 = vst [vmem:[#allocation3] sm:$0xff] %v1907
  %1910 = vmatprep.subr.mxu0 0.0
  %1911 = vmatpush1.msra.mxu0 %v121
  %1912 = vmatprep.subr.mxu0 0.0
  %1913 = vmatpush1.msra.mxu0 %v120
  %1914 = vmatprep.subr.mxu0 0.0
  %1915 = vmatpush1.msra.mxu0 %v119
  %1916 = vmatprep.subr.mxu0 0.0
  %1917 = vmatpush1.msra.mxu0 %v118
  %1918 = vmatprep.subr.mxu0 0.0
  %1919 = vmatpush1.msra.mxu0 %v117
  %1920 = vmatprep.subr.mxu0 0.0
  %1921 = vmatpush1.msra.mxu0 %v116
  %1922 = vmatprep.subr.mxu0 0.0
  %1923 = vmatpush1.msra.mxu0 %v115
  %1924 = vmatprep.subr.mxu0 0.0
  %1925 = vmatpush1.msra.mxu0 %v114
  %1926 = vmatprep.subr.mxu0 0.0
  %1927 = vmatpush1.msra.mxu0 %v113
  %1928 = vmatprep.subr.mxu0 0.0
  %1929 = vmatpush1.msra.mxu0 %v112
  %1930 = vmatprep.subr.mxu0 0.0
  %1931 = vmatpush1.msra.mxu0 %v111
  %1932 = vmatprep.subr.mxu0 0.0
  %1933 = vmatpush1.msra.mxu0 %v110
  %1934 = vmatprep.subr.mxu0 0.0
  %1935 = vmatpush1.msra.mxu0 %v109
  %1936 = vmatprep.subr.mxu0 0.0
  %1937 = vmatpush1.msra.mxu0 %v108
  %1938 = vmatprep.subr.mxu0 0.0
  %1939 = vmatpush1.msra.mxu0 %v107
  %1940 = vmatprep.subr.mxu0 0.0
  %1941 = vmatpush1.msra.mxu0 %v106
  %1942 = vmatprep.subr.mxu0 0.0
  %1943 = vmatpush2.msra.mxu0 0.0
  %1944 = vmatprep.subr.mxu0 0.0
  %1945 = vmatpush2.msra.mxu0 0.0
  %1946 = vmatprep.subr.mxu0 0.0
  %1947 = vmatpush2.msra.mxu0 0.0
  %1948 = vmatprep.subr.mxu0 0.0
  %1949 = vmatpush2.msra.mxu0 0.0
  %1950 = vmatprep.subr.mxu0 0.0
  %1951 = vmatpush2.msra.mxu0 0.0
  %1952 = vmatprep.subr.mxu0 0.0
  %1953 = vmatpush2.msra.mxu0 0.0
  %1954 = vmatprep.subr.mxu0 0.0
  %1955 = vmatpush2.msra.mxu0 0.0
  %1956 = vmatprep.subr.mxu0 0.0
  %1957 = vmatpush2.msra.mxu0 0.0
  %1958 = vmatprep.subr.mxu0 0.0
  %1959 = vmatpush2.msra.mxu0 0.0
  %1960 = vmatprep.subr.mxu0 0.0
  %1961 = vmatpush2.msra.mxu0 0.0
  %1962 = vmatprep.subr.mxu0 0.0
  %1963 = vmatpush2.msra.mxu0 0.0
  %1964 = vmatprep.subr.mxu0 0.0
  %1965 = vmatpush2.msra.mxu0 0.0
  %1966 = vmatprep.subr.mxu0 0.0
  %1967 = vmatpush2.msra.mxu0 0.0
  %1968 = vmatprep.subr.mxu0 0.0
  %1969 = vmatpush2.msra.mxu0 0.0
  %1970 = vmatprep.subr.mxu0 0.0
  %1971 = vmatpush2.msra.mxu0 0.0
  %1972 = vmatprep.subr.mxu0 0.0
  %1973 = vmatpush2.msra.mxu0 0.0
  %1974 = vmatprep.mubr.f32.mxu0 0.0
  %1975 = vmatmul.mubr.f32.gmra.mxu0 %v1906
  %v1976 = vpop.f32.mrf.mxu0
  %v1977 = vadd.f32 %v319, %v1976
  %v1978 = vpop.f32.mrf.mxu0
  %1979 = vdwg.mxu0
  %s1980 = scalar_lea.vmem %s8, 48
  %1981 = vst [vmem:[%s1980] sm:$0xff] %v1977
  %s1982 = sadd.s32 %s123, 7
  %v1983 = vld [vmem:[#allocation2] sm:$0xff]
  %v1984 = vld [vmem:[#allocation3] sm:$0xff]
  %s1985 = scalar_lea.vmem %s0, 224
  %v1986 = vld [vmem:[%s1985] sm:$0xff]
  %v1987 = vld [vmem:[%s1985 + $0x8] sm:$0xff]
  %v1988 = vld [vmem:[%s1985 + $0x10] sm:$0xff]
  %v1989 = vld [vmem:[%s1985 + $0x18] sm:$0xff]
  %v1990 = vadd.f32 %v1986, %v102
  %v1991 = vadd.f32 %v1987, %v103
  %v1992 = vadd.f32 %v1988, %v104
  %v1993 = vadd.f32 %v1989, %v105
  %1994 = vmatprep.subr.mxu0 %v99
  %1995 = vmatpush1.msra.mxu0 %v98
  %1996 = vmatprep.subr.mxu0 %v95
  %1997 = vmatpush1.msra.mxu0 %v94
  %1998 = vmatprep.subr.mxu0 %v91
  %1999 = vmatpush1.msra.mxu0 %v90
  %2000 = vmatprep.subr.mxu0 %v87
  %2001 = vmatpush1.msra.mxu0 %v86
  %2002 = vmatprep.subr.mxu0 %v83
  %2003 = vmatpush1.msra.mxu0 %v82
  %2004 = vmatprep.subr.mxu0 %v79
  %2005 = vmatpush1.msra.mxu0 %v78
  %2006 = vmatprep.subr.mxu0 %v75
  %2007 = vmatpush1.msra.mxu0 %v74
  %2008 = vmatprep.subr.mxu0 %v71
  %2009 = vmatpush1.msra.mxu0 %v70
  %2010 = vmatprep.subr.mxu0 %v67
  %2011 = vmatpush1.msra.mxu0 %v66
  %2012 = vmatprep.subr.mxu0 %v63
  %2013 = vmatpush1.msra.mxu0 %v62
  %2014 = vmatprep.subr.mxu0 %v59
  %2015 = vmatpush1.msra.mxu0 %v58
  %2016 = vmatprep.subr.mxu0 %v55
  %2017 = vmatpush1.msra.mxu0 %v54
  %2018 = vmatprep.subr.mxu0 %v51
  %2019 = vmatpush1.msra.mxu0 %v50
  %2020 = vmatprep.subr.mxu0 %v47
  %2021 = vmatpush1.msra.mxu0 %v46
  %2022 = vmatprep.subr.mxu0 %v43
  %2023 = vmatpush1.msra.mxu0 %v42
  %2024 = vmatprep.subr.mxu0 %v39
  %2025 = vmatpush1.msra.mxu0 %v38
  %2026 = vmatprep.subr.mxu0 0.0
  %2027 = vmatpush2.msra.mxu0 0.0
  %2028 = vmatprep.subr.mxu0 0.0
  %2029 = vmatpush2.msra.mxu0 0.0
  %2030 = vmatprep.subr.mxu0 0.0
  %2031 = vmatpush2.msra.mxu0 0.0
  %2032 = vmatprep.subr.mxu0 0.0
  %2033 = vmatpush2.msra.mxu0 0.0
  %2034 = vmatprep.subr.mxu0 0.0
  %2035 = vmatpush2.msra.mxu0 0.0
  %2036 = vmatprep.subr.mxu0 0.0
  %2037 = vmatpush2.msra.mxu0 0.0
  %2038 = vmatprep.subr.mxu0 0.0
  %2039 = vmatpush2.msra.mxu0 0.0
  %2040 = vmatprep.subr.mxu0 0.0
  %2041 = vmatpush2.msra.mxu0 0.0
  %2042 = vmatprep.subr.mxu0 0.0
  %2043 = vmatpush2.msra.mxu0 0.0
  %2044 = vmatprep.subr.mxu0 0.0
  %2045 = vmatpush2.msra.mxu0 0.0
  %2046 = vmatprep.subr.mxu0 0.0
  %2047 = vmatpush2.msra.mxu0 0.0
  %2048 = vmatprep.subr.mxu0 0.0
  %2049 = vmatpush2.msra.mxu0 0.0
  %2050 = vmatprep.subr.mxu0 0.0
  %2051 = vmatpush2.msra.mxu0 0.0
  %2052 = vmatprep.subr.mxu0 0.0
  %2053 = vmatpush2.msra.mxu0 0.0
  %2054 = vmatprep.subr.mxu0 0.0
  %2055 = vmatpush2.msra.mxu0 0.0
  %2056 = vmatprep.subr.mxu0 0.0
  %2057 = vmatpush2.msra.mxu0 0.0
  %2058 = vmatprep.mubr.f32.mxu0 0.0
  %2059 = vmatmul.mubr.f32.gmra.mxu0 %v1983
  %v2060 = vpop.f32.mrf.mxu0
  %v2061 = vadd.f32 0.0, %v2060
  %v2062 = vpop.f32.mrf.mxu0
  %v2063 = vadd.f32 0.0, %v2062
  %2064 = vdwg.mxu0
  %2065 = vmatprep.subr.mxu0 %v101
  %2066 = vmatpush1.msra.mxu0 %v100
  %2067 = vmatprep.subr.mxu0 %v97
  %2068 = vmatpush1.msra.mxu0 %v96
  %2069 = vmatprep.subr.mxu0 %v93
  %2070 = vmatpush1.msra.mxu0 %v92
  %2071 = vmatprep.subr.mxu0 %v89
  %2072 = vmatpush1.msra.mxu0 %v88
  %2073 = vmatprep.subr.mxu0 %v85
  %2074 = vmatpush1.msra.mxu0 %v84
  %2075 = vmatprep.subr.mxu0 %v81
  %2076 = vmatpush1.msra.mxu0 %v80
  %2077 = vmatprep.subr.mxu0 %v77
  %2078 = vmatpush1.msra.mxu0 %v76
  %2079 = vmatprep.subr.mxu0 %v73
  %2080 = vmatpush1.msra.mxu0 %v72
  %2081 = vmatprep.subr.mxu0 %v69
  %2082 = vmatpush1.msra.mxu0 %v68
  %2083 = vmatprep.subr.mxu0 %v65
  %2084 = vmatpush1.msra.mxu0 %v64
  %2085 = vmatprep.subr.mxu0 %v61
  %2086 = vmatpush1.msra.mxu0 %v60
  %2087 = vmatprep.subr.mxu0 %v57
  %2088 = vmatpush1.msra.mxu0 %v56
  %2089 = vmatprep.subr.mxu0 %v53
  %2090 = vmatpush1.msra.mxu0 %v52
  %2091 = vmatprep.subr.mxu0 %v49
  %2092 = vmatpush1.msra.mxu0 %v48
  %2093 = vmatprep.subr.mxu0 %v45
  %2094 = vmatpush1.msra.mxu0 %v44
  %2095 = vmatprep.subr.mxu0 %v41
  %2096 = vmatpush1.msra.mxu0 %v40
  %2097 = vmatprep.subr.mxu0 0.0
  %2098 = vmatpush2.msra.mxu0 0.0
  %2099 = vmatprep.subr.mxu0 0.0
  %2100 = vmatpush2.msra.mxu0 0.0
  %2101 = vmatprep.subr.mxu0 0.0
  %2102 = vmatpush2.msra.mxu0 0.0
  %2103 = vmatprep.subr.mxu0 0.0
  %2104 = vmatpush2.msra.mxu0 0.0
  %2105 = vmatprep.subr.mxu0 0.0
  %2106 = vmatpush2.msra.mxu0 0.0
  %2107 = vmatprep.subr.mxu0 0.0
  %2108 = vmatpush2.msra.mxu0 0.0
  %2109 = vmatprep.subr.mxu0 0.0
  %2110 = vmatpush2.msra.mxu0 0.0
  %2111 = vmatprep.subr.mxu0 0.0
  %2112 = vmatpush2.msra.mxu0 0.0
  %2113 = vmatprep.subr.mxu0 0.0
  %2114 = vmatpush2.msra.mxu0 0.0
  %2115 = vmatprep.subr.mxu0 0.0
  %2116 = vmatpush2.msra.mxu0 0.0
  %2117 = vmatprep.subr.mxu0 0.0
  %2118 = vmatpush2.msra.mxu0 0.0
  %2119 = vmatprep.subr.mxu0 0.0
  %2120 = vmatpush2.msra.mxu0 0.0
  %2121 = vmatprep.subr.mxu0 0.0
  %2122 = vmatpush2.msra.mxu0 0.0
  %2123 = vmatprep.subr.mxu0 0.0
  %2124 = vmatpush2.msra.mxu0 0.0
  %2125 = vmatprep.subr.mxu0 0.0
  %2126 = vmatpush2.msra.mxu0 0.0
  %2127 = vmatprep.subr.mxu0 0.0
  %2128 = vmatpush2.msra.mxu0 0.0
  %2129 = vmatprep.mubr.f32.mxu0 0.0
  %2130 = vmatmul.mubr.f32.gmra.mxu0 %v1983
  %v2131 = vpop.f32.mrf.mxu0
  %v2132 = vadd.f32 0.0, %v2131
  %v2133 = vpop.f32.mrf.mxu0
  %v2134 = vadd.f32 0.0, %v2133
  %2135 = vdwg.mxu0
  %v2136 = vadd.f32 %v1990, %v2061
  %v2137 = vadd.f32 %v1991, %v2063
  %v2138 = vadd.f32 %v1992, %v2132
  %v2139 = vadd.f32 %v1993, %v2134
  %v2140 = vxor.u32 %v2136, 2147483648
  %v2141 = vmul.f32 %v2140, 1.442695
  %v2142 = vpow.pop %v2141
  %v2143 = vadd.f32 %v2142, 1.0
  %v2144 = vrcp.pop %v2143
  %v2145 = vmul.f32 1.0, %v2144
  %v2146 = vxor.u32 %v2137, 2147483648
  %v2147 = vmul.f32 %v2146, 1.442695
  %v2148 = vpow.pop %v2147
  %v2149 = vadd.f32 %v2148, 1.0
  %v2150 = vrcp.pop %v2149
  %v2151 = vmul.f32 1.0, %v2150
  %v2152 = vtanh.pop %v2138
  %v2153 = vxor.u32 %v2139, 2147483648
  %v2154 = vmul.f32 %v2153, 1.442695
  %v2155 = vpow.pop %v2154
  %v2156 = vadd.f32 %v2155, 1.0
  %v2157 = vrcp.pop %v2156
  %v2158 = vmul.f32 1.0, %v2157
  %v2159 = vmul.f32 %v2151, %v1984
  %v2160 = vmul.f32 %v2145, %v2152
  %v2161 = vadd.f32 %v2159, %v2160
  %v2162 = vtanh.pop %v2161
  %v2163 = vmul.f32 %v2158, %v2162
  %v2164 = vstv %s1982
  %vm2165 = vcmp.lt.s32.totalorder %v2164, %v37
  %v2166 = vsel %vm2165, 1, 0
  %2167 = vset.pattern.permute.xlu0 0
  %2168 = vperm.xlu0 %2167, %v2166
  %v2169 = vpop.permute.xlu0 %2168
  %vm2170 = vcmp.eq.s32.totalorder %v2169, 1
  %v2171 = vsel %vm2170, %v2163, %v1983
  %v2172 = vsel %vm2170, %v2161, %v1984
  %2173 = vst [vmem:[#allocation2] sm:$0xff] %v2171
  %2174 = vst [vmem:[#allocation3] sm:$0xff] %v2172
  %2175 = vmatprep.subr.mxu0 0.0
  %2176 = vmatpush1.msra.mxu0 %v121
  %2177 = vmatprep.subr.mxu0 0.0
  %2178 = vmatpush1.msra.mxu0 %v120
  %2179 = vmatprep.subr.mxu0 0.0
  %2180 = vmatpush1.msra.mxu0 %v119
  %2181 = vmatprep.subr.mxu0 0.0
  %2182 = vmatpush1.msra.mxu0 %v118
  %2183 = vmatprep.subr.mxu0 0.0
  %2184 = vmatpush1.msra.mxu0 %v117
  %2185 = vmatprep.subr.mxu0 0.0
  %2186 = vmatpush1.msra.mxu0 %v116
  %2187 = vmatprep.subr.mxu0 0.0
  %2188 = vmatpush1.msra.mxu0 %v115
  %2189 = vmatprep.subr.mxu0 0.0
  %2190 = vmatpush1.msra.mxu0 %v114
  %2191 = vmatprep.subr.mxu0 0.0
  %2192 = vmatpush1.msra.mxu0 %v113
  %2193 = vmatprep.subr.mxu0 0.0
  %2194 = vmatpush1.msra.mxu0 %v112
  %2195 = vmatprep.subr.mxu0 0.0
  %2196 = vmatpush1.msra.mxu0 %v111
  %2197 = vmatprep.subr.mxu0 0.0
  %2198 = vmatpush1.msra.mxu0 %v110
  %2199 = vmatprep.subr.mxu0 0.0
  %2200 = vmatpush1.msra.mxu0 %v109
  %2201 = vmatprep.subr.mxu0 0.0
  %2202 = vmatpush1.msra.mxu0 %v108
  %2203 = vmatprep.subr.mxu0 0.0
  %2204 = vmatpush1.msra.mxu0 %v107
  %2205 = vmatprep.subr.mxu0 0.0
  %2206 = vmatpush1.msra.mxu0 %v106
  %2207 = vmatprep.subr.mxu0 0.0
  %2208 = vmatpush2.msra.mxu0 0.0
  %2209 = vmatprep.subr.mxu0 0.0
  %2210 = vmatpush2.msra.mxu0 0.0
  %2211 = vmatprep.subr.mxu0 0.0
  %2212 = vmatpush2.msra.mxu0 0.0
  %2213 = vmatprep.subr.mxu0 0.0
  %2214 = vmatpush2.msra.mxu0 0.0
  %2215 = vmatprep.subr.mxu0 0.0
  %2216 = vmatpush2.msra.mxu0 0.0
  %2217 = vmatprep.subr.mxu0 0.0
  %2218 = vmatpush2.msra.mxu0 0.0
  %2219 = vmatprep.subr.mxu0 0.0
  %2220 = vmatpush2.msra.mxu0 0.0
  %2221 = vmatprep.subr.mxu0 0.0
  %2222 = vmatpush2.msra.mxu0 0.0
  %2223 = vmatprep.subr.mxu0 0.0
  %2224 = vmatpush2.msra.mxu0 0.0
  %2225 = vmatprep.subr.mxu0 0.0
  %2226 = vmatpush2.msra.mxu0 0.0
  %2227 = vmatprep.subr.mxu0 0.0
  %2228 = vmatpush2.msra.mxu0 0.0
  %2229 = vmatprep.subr.mxu0 0.0
  %2230 = vmatpush2.msra.mxu0 0.0
  %2231 = vmatprep.subr.mxu0 0.0
  %2232 = vmatpush2.msra.mxu0 0.0
  %2233 = vmatprep.subr.mxu0 0.0
  %2234 = vmatpush2.msra.mxu0 0.0
  %2235 = vmatprep.subr.mxu0 0.0
  %2236 = vmatpush2.msra.mxu0 0.0
  %2237 = vmatprep.subr.mxu0 0.0
  %2238 = vmatpush2.msra.mxu0 0.0
  %2239 = vmatprep.mubr.f32.mxu0 0.0
  %2240 = vmatmul.mubr.f32.gmra.mxu0 %v2171
  %v2241 = vpop.f32.mrf.mxu0
  %v2242 = vadd.f32 %v319, %v2241
  %v2243 = vpop.f32.mrf.mxu0
  %2244 = vdwg.mxu0
  %s2245 = scalar_lea.vmem %s8, 56
  %2246 = vst [vmem:[%s2245] sm:$0xff] %v2242
  // Predicated region
  $region38: #{sketch_rnn_forward.13} parent=0 // pred_check
    _
  $region39: #{sketch_rnn_forward.13} parent=0 // pred_check_branch
    %2248 = sbr.rel (0) target = $region41
  $region40: #{sketch_rnn_forward.13} parent=0 // pred_region
    _
  $region41: #{sketch_rnn_forward.13} parent=0 // pred_fallthru
    _
  // Predicated region
  $region42: #{sketch_rnn_forward.13} parent=0 // pred_check
    _
  $region43: #{sketch_rnn_forward.13} parent=0 // pred_check_branch
    %2250 = sbr.rel (0) target = $region45
  $region44: #{sketch_rnn_forward.13} parent=0 // pred_region
    _
  $region45: #{sketch_rnn_forward.13} parent=0 // pred_fallthru
    _

</llo_original>
